<compile_context>
chip_gen: v5e
topology: v5e:2x2
jax: 0.10.0
libtpu: 0.0.40
codegen_flags: <defaults>
</compile_context>

<pallas_src>
import jax
import jax.numpy as jnp
from jax.experimental import pallas as pl
from jax.experimental.pallas import tpu as pltpu

D_MODEL = 768
D_K = 128
D_V = 128
N_HEADS = 4
N_TOK = 3            # 1 pooled-text token + 2 env tokens (3 * 768 == 384 * 6)
D_OUT = 128
HD = N_HEADS * D_K   # 512 (d_k == d_v)


# ----------------------------------------------------------------------------
# Single fused kernel: env path (pool + MHA + bound_linear1 + env_linear + tanh)
#                      + dist path (VSDH/TSDH linears + sdhlinear + tanh)
# One grid step == TB batch samples.
# ----------------------------------------------------------------------------
def _fusion_kernel(text_ref, env_ref, vsdh_ref, tsdh_ref,
                   wqkv_ref, bqkv_ref, wo_ref, bo_ref,
                   wb_ref, bb_ref, we_ref, be_ref,
                   wvs_ref, bvs_ref, wts_ref, bts_ref,
                   ws1_ref, ws2_ref, bs_ref,
                   env_out_ref, dist_out_ref):
    tb = text_ref.shape[0]                                   # batch tile (static)

    # ---------------- dist path (TB x 128 matmuls) ----------------
    a = jnp.dot(vsdh_ref[...], wvs_ref[...], preferred_element_type=jnp.float32) + bvs_ref[...]
    b = jnp.dot(tsdh_ref[...], wts_ref[...], preferred_element_type=jnp.float32) + bts_ref[...]
    # cat([a, b], -1) @ Ws == a @ Ws[:128] + b @ Ws[128:]
    dist_out_ref[...] = jnp.tanh(
        jnp.dot(a, ws1_ref[...], preferred_element_type=jnp.float32)
        + jnp.dot(b, ws2_ref[...], preferred_element_type=jnp.float32)
        + bs_ref[...])

    # ---------------- env path ----------------
    # AdaptiveAvgPool2d((1, 768)) on text[:, 0:1]: W is already 768 -> mean over H only.
    pooled = jnp.mean(text_ref[...], axis=1)                 # (TB, 768)
    e0 = env_ref[:, 0, :]                                    # (TB, 768)
    e1 = env_ref[:, 1, :]                                    # (TB, 768)
    # token-major stack: rows [0:TB]=pooled, [TB:2TB]=env0, [2TB:3TB]=env1
    x2d = jnp.concatenate([pooled, e0, e1], axis=0)          # (3*TB, 768)

    # fused QKV projection: one (3*TB, 768) x (768, 1536) matmul
    qkv = jnp.dot(x2d, wqkv_ref[...], preferred_element_type=jnp.float32) + bqkv_ref[...]
    scale = 1.0 / (D_K ** 0.5)
    q = qkv[:, 0 * HD:1 * HD] * scale                        # fold 1/sqrt(d_k) into q once
    k = qkv[:, 1 * HD:2 * HD]
    v = qkv[:, 2 * HD:3 * HD]

    # per-token, per-head attention over the 3-token sequence (tiny -> VPU/XLU, negligible FLOPs)
    attn_rows = []
    for t in range(N_TOK):
        qrows = slice(t * tb, (t + 1) * tb)
        head_outs = []
        for h in range(N_HEADS):
            lanes = slice(h * D_K, (h + 1) * D_K)
            qh = q[qrows, lanes]                             # (TB, 128)
            scores = []
            for s_ in range(N_TOK):
                kh = k[s_ * tb:(s_ + 1) * tb, lanes]
                scores.append(jnp.sum(qh * kh, axis=-1, keepdims=True))           # (TB, 1)
            s_mat = jnp.concatenate(scores, axis=-1)         # (TB, 3)
            s_mat = s_mat - jnp.max(s_mat, axis=-1, keepdims=True)
            p = jnp.exp(s_mat)
            p = p / jnp.sum(p, axis=-1, keepdims=True)
            o = jnp.zeros((tb, D_V), jnp.float32)
            for s_ in range(N_TOK):
                vh = v[s_ * tb:(s_ + 1) * tb, lanes]
                o = o + p[:, s_:s_ + 1] * vh                 # (TB, 128)
            head_outs.append(o)
        attn_rows.append(jnp.concatenate(head_outs, axis=-1))   # (TB, 512)

    # single output projection for all 3 tokens: (3*TB, 512) x (512, 768)
    attn_all = jnp.concatenate(attn_rows, axis=0)            # (3*TB, 512), token-major
    o_all = jnp.dot(attn_all, wo_ref[...], preferred_element_type=jnp.float32) + bo_ref[...]

    # softmax(env_weight, dim=-1) is over a size-1 axis => identically 1.0;
    # the elementwise multiply is an exact no-op and is omitted.
    # bound_linear1 on the flattened (B, 3*768) view == sum_t o_t @ Wb[t]
    y = jnp.zeros((tb, D_MODEL), jnp.float32) + bb_ref[...]
    for t in range(N_TOK):
        y = y + jnp.dot(o_all[t * tb:(t + 1) * tb, :], wb_ref[t],
                        preferred_element_type=jnp.float32)

    # env_linear + tanh
    env_out_ref[...] = jnp.tanh(
        jnp.dot(y, we_ref[...], preferred_element_type=jnp.float32) + be_ref[...])


# ----------------------------------------------------------------------------
# Wrapper
# ----------------------------------------------------------------------------
def environment_fusion_forward(params, env, env_weight, VSDH, TSDH, text):
    # env_weight is accepted to mirror the PyTorch signature but is mathematically a no-op
    # (softmax over its size-1 last axis is 1.0), so it is not fed to the kernel.
    del env_weight
    B = env.shape[0]
    S = text.shape[2]
    # batch tile: whole batch in one step when small, otherwise 32 samples per step
    TB = B if B <= 64 else 32
    grid = (pl.cdiv(B, TB),)

    kernel = pl.pallas_call(
        _fusion_kernel,
        out_shape=(jax.ShapeDtypeStruct((B, D_OUT), jnp.float32),   # env_feat
                   jax.ShapeDtypeStruct((B, D_OUT), jnp.float32)),  # env_dist_feat
        grid=grid,
        in_specs=[
            # per-batch-tile data (channel 0 of text selected via the squeezed dim -> no HBM copy)
            pl.BlockSpec((TB, None, S, D_MODEL), lambda b: (b, 0, 0, 0)),  # text[:, 0]
            pl.BlockSpec((TB, 2, None, D_MODEL), lambda b: (b, 0, 0, 0)),  # env.squeeze(2)
            pl.BlockSpec((TB, 128), lambda b: (b, 0)),                     # VSDH[:, :128]
            pl.BlockSpec((TB, 128), lambda b: (b, 0)),                     # TSDH[:, :128]
            # constant-index weights: DMA'd once, reused every grid step
            pl.BlockSpec((D_MODEL, 3 * HD), lambda b: (0, 0)),             # Wqkv (fused)
            pl.BlockSpec((1, 3 * HD), lambda b: (0, 0)),                   # bqkv
            pl.BlockSpec((HD, D_MODEL), lambda b: (0, 0)),                 # Wo
            pl.BlockSpec((1, D_MODEL), lambda b: (0, 0)),                  # bo
            pl.BlockSpec((N_TOK, D_MODEL, D_MODEL), lambda b: (0, 0, 0)),  # bound_linear1 W
            pl.BlockSpec((1, D_MODEL), lambda b: (0, 0)),                  # bound_linear1 b
            pl.BlockSpec((D_MODEL, D_OUT), lambda b: (0, 0)),              # env_linear W
            pl.BlockSpec((1, D_OUT), lambda b: (0, 0)),                    # env_linear b
            pl.BlockSpec((128, 128), lambda b: (0, 0)),                    # VSDH_linear W
            pl.BlockSpec((1, 128), lambda b: (0, 0)),                      # VSDH_linear b
            pl.BlockSpec((128, 128), lambda b: (0, 0)),                    # TSDH_linear W
            pl.BlockSpec((1, 128), lambda b: (0, 0)),                      # TSDH_linear b
            pl.BlockSpec((128, 128), lambda b: (0, 0)),                    # sdhlinear W[:128]
            pl.BlockSpec((128, 128), lambda b: (0, 0)),                    # sdhlinear W[128:]
            pl.BlockSpec((1, 128), lambda b: (0, 0)),                      # sdhlinear b
        ],
        out_specs=(pl.BlockSpec((TB, D_OUT), lambda b: (b, 0)),
                   pl.BlockSpec((TB, D_OUT), lambda b: (b, 0))),
        compiler_params=pltpu.CompilerParams(
            dimension_semantics=("parallel",),            # independent batch tiles
            vmem_limit_bytes=48 * 1024 * 1024),           # fits v7x's 64 MiB physical VMEM
    )
    env_feat, env_dist_feat = kernel(
        text, env, VSDH, TSDH,
        params["wqkv"], params["bqkv"], params["wo"], params["bo"],
        params["wb3"], params["bb"], params["we"], params["be"],
        params["wvsdh"], params["bvsdh"], params["wtsdh"], params["btsdh"],
        params["ws1"], params["ws2"], params["bs"])
    return env_feat, env_dist_feat


# ----------------------------------------------------------------------------
# Deterministic parameter init (synthetic — no checkpoint load)
# ----------------------------------------------------------------------------
def init_params(key):
    ks = jax.random.split(key, 16)

    def w(k, shape, scale=0.02):
        return (scale * jax.random.normal(k, shape)).astype(jnp.float32)

    return {
        # attention (image_attention_layer), QKV fused
        "wqkv": w(ks[0], (D_MODEL, 3 * HD)), "bqkv": w(ks[1], (1, 3 * HD)),
        "wo": w(ks[2], (HD, D_MODEL)), "bo": w(ks[3], (1, D_MODEL)),
        # bound_linear1: (2304, 768) stored pre-reshaped as (3, 768, 768)
        "wb3": w(ks[4], (N_TOK, D_MODEL, D_MODEL)), "bb": w(ks[5], (1, D_MODEL)),
        # env_linear: 768 -> 128
        "we": w(ks[6], (D_MODEL, D_OUT)), "be": w(ks[7], (1, D_OUT)),
        # VSDH / TSDH linears: 128 -> 128
        "wvsdh": w(ks[8], (128, 128)), "bvsdh": w(ks[9], (1, 128)),
        "wtsdh": w(ks[10], (128, 128)), "btsdh": w(ks[11], (1, 128)),
        # sdhlinear: 256 -> 128 stored as two 128x128 halves
        "ws1": w(ks[12], (128, 128)), "ws2": w(ks[13], (128, 128)),
        "bs": w(ks[14], (1, 128)),
    }


# ----------------------------------------------------------------------------
# Pure-JAX reference (same math) for a sanity check
# ----------------------------------------------------------------------------
def reference_forward(params, env, env_weight, VSDH, TSDH, text):
    B = env.shape[0]
    # dist path
    a = VSDH[:, :128] @ params["wvsdh"] + params["bvsdh"][0]
    b = TSDH[:, :128] @ params["wtsdh"] + params["btsdh"][0]
    env_dist_feat = jnp.tanh(a @ params["ws1"] + b @ params["ws2"] + params["bs"][0])
    # env path
    pooled = jnp.mean(text[:, 0], axis=1, keepdims=True)                  # (B, 1, 768)
    x = jnp.concatenate([pooled, env[:, :, 0, :]], axis=1)                # (B, 3, 768)
    qkv = x @ params["wqkv"] + params["bqkv"][0]
    q = qkv[..., 0 * HD:1 * HD].reshape(B, N_TOK, N_HEADS, D_K)
    k = qkv[..., 1 * HD:2 * HD].reshape(B, N_TOK, N_HEADS, D_K)
    v = qkv[..., 2 * HD:3 * HD].reshape(B, N_TOK, N_HEADS, D_V)
    s = jnp.einsum("bqhd,bkhd->bhqk", q, k) / (D_K ** 0.5)
    p = jax.nn.softmax(s, axis=-1)
    o = jnp.einsum("bhqk,bkhd->bqhd", p, v).reshape(B, N_TOK, HD)
    o = o @ params["wo"] + params["bo"][0]
    o = o * jax.nn.softmax(env_weight, axis=-1)                           # (B, 3, 1) -> all ones
    wb = params["wb3"].reshape(N_TOK * D_MODEL, D_MODEL)
    y = o.reshape(B, N_TOK * D_MODEL) @ wb + params["bb"][0]
    env_feat = jnp.tanh(y @ params["we"] + params["be"][0])
    return env_feat, env_dist_feat


if __name__ == "__main__":
    key = jax.random.PRNGKey(0)
    kp, k1, k2, k3, k4, k5 = jax.random.split(key, 6)
    params = init_params(kp)

    B, C_TXT, S = 2, 2, 8
    env = jax.random.normal(k1, (B, 2, 1, D_MODEL), dtype=jnp.float32)
    env_weight = jax.random.normal(k2, (B, N_TOK, 1), dtype=jnp.float32)
    VSDH = jax.random.normal(k3, (B, 128), dtype=jnp.float32)
    TSDH = jax.random.normal(k4, (B, 128), dtype=jnp.float32)
    text = jax.random.normal(k5, (B, C_TXT, S, D_MODEL), dtype=jnp.float32)

    env_feat, env_dist_feat = jax.block_until_ready(
        environment_fusion_forward(params, env, env_weight, VSDH, TSDH, text))

    assert env_feat.shape == (B, 128) and env_dist_feat.shape == (B, 128)

    with jax.default_matmul_precision("float32"):
        ref_feat, ref_dist = reference_forward(params, env, env_weight, VSDH, TSDH, text)
    assert jnp.max(jnp.abs(env_feat - ref_feat)) < 5e-2
    assert jnp.max(jnp.abs(env_dist_feat - ref_dist)) < 5e-2

    print("KERNEL_OK")
</pallas_src>

<mosaic_0001>
module attributes {stable_mosaic.version = 11 : i64} {
  func.func @_fusion_kernel(%arg0: i32, %arg1: memref<2x1x8x768xf32, #tpu.memory_space<vmem>>, %arg2: memref<2x2x1x768xf32, #tpu.memory_space<vmem>>, %arg3: memref<2x128xf32, #tpu.memory_space<vmem>>, %arg4: memref<2x128xf32, #tpu.memory_space<vmem>>, %arg5: memref<768x1536xf32, #tpu.memory_space<vmem>>, %arg6: memref<1x1536xf32, #tpu.memory_space<vmem>>, %arg7: memref<512x768xf32, #tpu.memory_space<vmem>>, %arg8: memref<1x768xf32, #tpu.memory_space<vmem>>, %arg9: memref<3x768x768xf32, #tpu.memory_space<vmem>>, %arg10: memref<1x768xf32, #tpu.memory_space<vmem>>, %arg11: memref<768x128xf32, #tpu.memory_space<vmem>>, %arg12: memref<1x128xf32, #tpu.memory_space<vmem>>, %arg13: memref<128x128xf32, #tpu.memory_space<vmem>>, %arg14: memref<1x128xf32, #tpu.memory_space<vmem>>, %arg15: memref<128x128xf32, #tpu.memory_space<vmem>>, %arg16: memref<1x128xf32, #tpu.memory_space<vmem>>, %arg17: memref<128x128xf32, #tpu.memory_space<vmem>>, %arg18: memref<128x128xf32, #tpu.memory_space<vmem>>, %arg19: memref<1x128xf32, #tpu.memory_space<vmem>>, %arg20: memref<2x128xf32, #tpu.memory_space<vmem>>, %arg21: memref<2x128xf32, #tpu.memory_space<vmem>>) attributes {dimension_semantics = [#tpu.dimension_semantics<parallel>], iteration_bounds = array<i64: 1>, scalar_prefetch = 0 : i64, scratch_operands = 0 : i64, tpu.core_type = #tpu.core_type<tc>, window_params = [{transform_indices = @transform_0, window_bounds = array<i64: 2, 1, 8, 768>}, {transform_indices = @transform_1, window_bounds = array<i64: 2, 2, 1, 768>}, {transform_indices = @transform_2, window_bounds = array<i64: 2, 128>}, {transform_indices = @transform_3, window_bounds = array<i64: 2, 128>}, {pipeline_mode = #tpu.pipeline_mode<synchronous>, transform_indices = @transform_4, window_bounds = array<i64: 768, 1536>}, {pipeline_mode = #tpu.pipeline_mode<synchronous>, transform_indices = @transform_5, window_bounds = array<i64: 1, 1536>}, {pipeline_mode = #tpu.pipeline_mode<synchronous>, transform_indices = @transform_6, window_bounds = array<i64: 512, 768>}, {pipeline_mode = #tpu.pipeline_mode<synchronous>, transform_indices = @transform_7, window_bounds = array<i64: 1, 768>}, {pipeline_mode = #tpu.pipeline_mode<synchronous>, transform_indices = @transform_8, window_bounds = array<i64: 3, 768, 768>}, {pipeline_mode = #tpu.pipeline_mode<synchronous>, transform_indices = @transform_9, window_bounds = array<i64: 1, 768>}, {pipeline_mode = #tpu.pipeline_mode<synchronous>, transform_indices = @transform_10, window_bounds = array<i64: 768, 128>}, {pipeline_mode = #tpu.pipeline_mode<synchronous>, transform_indices = @transform_11, window_bounds = array<i64: 1, 128>}, {pipeline_mode = #tpu.pipeline_mode<synchronous>, transform_indices = @transform_12, window_bounds = array<i64: 128, 128>}, {pipeline_mode = #tpu.pipeline_mode<synchronous>, transform_indices = @transform_13, window_bounds = array<i64: 1, 128>}, {pipeline_mode = #tpu.pipeline_mode<synchronous>, transform_indices = @transform_14, window_bounds = array<i64: 128, 128>}, {pipeline_mode = #tpu.pipeline_mode<synchronous>, transform_indices = @transform_15, window_bounds = array<i64: 1, 128>}, {pipeline_mode = #tpu.pipeline_mode<synchronous>, transform_indices = @transform_16, window_bounds = array<i64: 128, 128>}, {pipeline_mode = #tpu.pipeline_mode<synchronous>, transform_indices = @transform_17, window_bounds = array<i64: 128, 128>}, {pipeline_mode = #tpu.pipeline_mode<synchronous>, transform_indices = @transform_18, window_bounds = array<i64: 1, 128>}, {transform_indices = @transform_19, window_bounds = array<i64: 2, 128>}, {transform_indices = @transform_20, window_bounds = array<i64: 2, 128>}]} {
    %c0 = arith.constant 0 : index
    %c0_0 = arith.constant 0 : index
    %0 = vector.load %arg3[%c0, %c0_0] : memref<2x128xf32, #tpu.memory_space<vmem>>, vector<2x128xf32>
    %c0_1 = arith.constant 0 : index
    %c0_2 = arith.constant 0 : index
    %1 = vector.load %arg13[%c0_1, %c0_2] : memref<128x128xf32, #tpu.memory_space<vmem>>, vector<128x128xf32>
    %cst = arith.constant dense<0.000000e+00> : vector<2x128xf32>
    %2 = tpu.matmul %0, %1, %cst {dimension_numbers = #tpu.dot_dimension_numbers<[1], [0], [0], [1], [0, 0, 1, 1], [], []>} : vector<2x128xf32>, vector<128x128xf32>, vector<2x128xf32> -> vector<2x128xf32>
    %c0_3 = arith.constant 0 : index
    %c0_4 = arith.constant 0 : index
    %3 = vector.load %arg14[%c0_3, %c0_4] : memref<1x128xf32, #tpu.memory_space<vmem>>, vector<1x128xf32>
    %4 = vector.broadcast %3 : vector<1x128xf32> to vector<2x128xf32>
    %5 = arith.addf %2, %4 : vector<2x128xf32>
    %c0_5 = arith.constant 0 : index
    %c0_6 = arith.constant 0 : index
    %6 = vector.load %arg4[%c0_5, %c0_6] : memref<2x128xf32, #tpu.memory_space<vmem>>, vector<2x128xf32>
    %c0_7 = arith.constant 0 : index
    %c0_8 = arith.constant 0 : index
    %7 = vector.load %arg15[%c0_7, %c0_8] : memref<128x128xf32, #tpu.memory_space<vmem>>, vector<128x128xf32>
    %cst_9 = arith.constant dense<0.000000e+00> : vector<2x128xf32>
    %8 = tpu.matmul %6, %7, %cst_9 {dimension_numbers = #tpu.dot_dimension_numbers<[1], [0], [0], [1], [0, 0, 1, 1], [], []>} : vector<2x128xf32>, vector<128x128xf32>, vector<2x128xf32> -> vector<2x128xf32>
    %c0_10 = arith.constant 0 : index
    %c0_11 = arith.constant 0 : index
    %9 = vector.load %arg16[%c0_10, %c0_11] : memref<1x128xf32, #tpu.memory_space<vmem>>, vector<1x128xf32>
    %10 = vector.broadcast %9 : vector<1x128xf32> to vector<2x128xf32>
    %11 = arith.addf %8, %10 : vector<2x128xf32>
    %c0_12 = arith.constant 0 : index
    %c0_13 = arith.constant 0 : index
    %12 = vector.load %arg17[%c0_12, %c0_13] : memref<128x128xf32, #tpu.memory_space<vmem>>, vector<128x128xf32>
    %cst_14 = arith.constant dense<0.000000e+00> : vector<2x128xf32>
    %13 = tpu.matmul %5, %12, %cst_14 {dimension_numbers = #tpu.dot_dimension_numbers<[1], [0], [0], [1], [0, 0, 1, 1], [], []>} : vector<2x128xf32>, vector<128x128xf32>, vector<2x128xf32> -> vector<2x128xf32>
    %c0_15 = arith.constant 0 : index
    %c0_16 = arith.constant 0 : index
    %14 = vector.load %arg18[%c0_15, %c0_16] : memref<128x128xf32, #tpu.memory_space<vmem>>, vector<128x128xf32>
    %cst_17 = arith.constant dense<0.000000e+00> : vector<2x128xf32>
    %15 = tpu.matmul %11, %14, %cst_17 {dimension_numbers = #tpu.dot_dimension_numbers<[1], [0], [0], [1], [0, 0, 1, 1], [], []>} : vector<2x128xf32>, vector<128x128xf32>, vector<2x128xf32> -> vector<2x128xf32>
    %16 = arith.addf %13, %15 : vector<2x128xf32>
    %c0_18 = arith.constant 0 : index
    %c0_19 = arith.constant 0 : index
    %17 = vector.load %arg19[%c0_18, %c0_19] : memref<1x128xf32, #tpu.memory_space<vmem>>, vector<1x128xf32>
    %18 = vector.broadcast %17 : vector<1x128xf32> to vector<2x128xf32>
    %19 = arith.addf %16, %18 : vector<2x128xf32>
    %20 = math.tanh %19 : vector<2x128xf32>
    %c0_20 = arith.constant 0 : index
    %c0_21 = arith.constant 0 : index
    %21 = vector.load %arg21[%c0_20, %c0_21] : memref<2x128xf32, #tpu.memory_space<vmem>>, vector<2x128xf32>
    tpu.vector_store %arg21[%c0_20, %c0_21], %20 {strides = array<i32>} : memref<2x128xf32, #tpu.memory_space<vmem>>, vector<2x128xf32>,
    %c0_22 = arith.constant 0 : index
    %c0_23 = arith.constant 0 : index
    %c0_24 = arith.constant 0 : index
    %c0_25 = arith.constant 0 : index
    %22 = vector.load %arg1[%c0_22, %c0_23, %c0_24, %c0_25] : memref<2x1x8x768xf32, #tpu.memory_space<vmem>>, vector<2x1x8x768xf32>
    %23 = vector.shape_cast %22 : vector<2x1x8x768xf32> to vector<2x8x768xf32>
    %cst_26 = arith.constant dense<0.000000e+00> : vector<2x768xf32>
    %24 = vector.multi_reduction <add>, %23, %cst_26 [1] : vector<2x8x768xf32> to vector<2x768xf32>
    %cst_27 = arith.constant 8.000000e+00 : f32
    %25 = vector.broadcast %cst_27 : f32 to vector<2x768xf32>
    %26 = arith.divf %24, %25 : vector<2x768xf32>
    %c0_28 = arith.constant 0 : index
    %c0_29 = arith.constant 0 : index
    %c0_30 = arith.constant 0 : index
    %c0_31 = arith.constant 0 : index
    %27 = vector.load %arg2[%c0_28, %c0_29, %c0_30, %c0_31] : memref<2x2x1x768xf32, #tpu.memory_space<vmem>>, vector<2x1x1x768xf32>
    %28 = vector.shape_cast %27 : vector<2x1x1x768xf32> to vector<2x768xf32>
    %c0_32 = arith.constant 0 : index
    %c1 = arith.constant 1 : index
    %c0_33 = arith.constant 0 : index
    %c0_34 = arith.constant 0 : index
    %29 = vector.load %arg2[%c0_32, %c1, %c0_33, %c0_34] : memref<2x2x1x768xf32, #tpu.memory_space<vmem>>, vector<2x1x1x768xf32>
    %30 = vector.shape_cast %29 : vector<2x1x1x768xf32> to vector<2x768xf32>
    %31 = tpu.concatenate %26, %28, %30 in 0 : vector<2x768xf32>, vector<2x768xf32>, vector<2x768xf32> -> vector<6x768xf32>
    %c0_35 = arith.constant 0 : index
    %c0_36 = arith.constant 0 : index
    %32 = vector.load %arg5[%c0_35, %c0_36] : memref<768x1536xf32, #tpu.memory_space<vmem>>, vector<768x1536xf32>
    %cst_37 = arith.constant dense<0.000000e+00> : vector<6x1536xf32>
    %33 = tpu.matmul %31, %32, %cst_37 {dimension_numbers = #tpu.dot_dimension_numbers<[1], [0], [0], [1], [0, 0, 1, 1], [], []>} : vector<6x768xf32>, vector<768x1536xf32>, vector<6x1536xf32> -> vector<6x1536xf32>
    %c0_38 = arith.constant 0 : index
    %c0_39 = arith.constant 0 : index
    %34 = vector.load %arg6[%c0_38, %c0_39] : memref<1x1536xf32, #tpu.memory_space<vmem>>, vector<1x1536xf32>
    %35 = vector.broadcast %34 : vector<1x1536xf32> to vector<6x1536xf32>
    %36 = arith.addf %33, %35 : vector<6x1536xf32>
    %37 = vector.extract_strided_slice %36 {offsets = [0, 0], sizes = [6, 512], strides = [1, 1]} : vector<6x1536xf32> to vector<6x512xf32>
    %cst_40 = arith.constant 0.0883883461 : f32
    %38 = vector.broadcast %cst_40 : f32 to vector<6x512xf32>
    %39 = arith.mulf %37, %38 : vector<6x512xf32>
    %40 = vector.extract_strided_slice %36 {offsets = [0, 512], sizes = [6, 512], strides = [1, 1]} : vector<6x1536xf32> to vector<6x512xf32>
    %41 = vector.extract_strided_slice %36 {offsets = [0, 1024], sizes = [6, 512], strides = [1, 1]} : vector<6x1536xf32> to vector<6x512xf32>
    %42 = vector.extract_strided_slice %39 {offsets = [0, 0], sizes = [2, 128], strides = [1, 1]} : vector<6x512xf32> to vector<2x128xf32>
    %43 = vector.extract_strided_slice %40 {offsets = [0, 0], sizes = [2, 128], strides = [1, 1]} : vector<6x512xf32> to vector<2x128xf32>
    %44 = arith.mulf %42, %43 : vector<2x128xf32>
    %cst_41 = arith.constant dense<0.000000e+00> : vector<2xf32>
    %45 = vector.multi_reduction <add>, %44, %cst_41 [1] : vector<2x128xf32> to vector<2xf32>
    %46 = vector.shape_cast %45 : vector<2xf32> to vector<2x1xf32>
    %47 = vector.extract_strided_slice %40 {offsets = [2, 0], sizes = [2, 128], strides = [1, 1]} : vector<6x512xf32> to vector<2x128xf32>
    %48 = arith.mulf %42, %47 : vector<2x128xf32>
    %cst_42 = arith.constant dense<0.000000e+00> : vector<2xf32>
    %49 = vector.multi_reduction <add>, %48, %cst_42 [1] : vector<2x128xf32> to vector<2xf32>
    %50 = vector.shape_cast %49 : vector<2xf32> to vector<2x1xf32>
    %51 = vector.extract_strided_slice %40 {offsets = [4, 0], sizes = [2, 128], strides = [1, 1]} : vector<6x512xf32> to vector<2x128xf32>
    %52 = arith.mulf %42, %51 : vector<2x128xf32>
    %cst_43 = arith.constant dense<0.000000e+00> : vector<2xf32>
    %53 = vector.multi_reduction <add>, %52, %cst_43 [1] : vector<2x128xf32> to vector<2xf32>
    %54 = vector.shape_cast %53 : vector<2xf32> to vector<2x1xf32>
    %55 = tpu.concatenate %46, %50, %54 in 1 : vector<2x1xf32>, vector<2x1xf32>, vector<2x1xf32> -> vector<2x3xf32>
    %cst_44 = arith.constant dense<0xFF800000> : vector<2xf32>
    %56 = vector.multi_reduction <maximumf>, %55, %cst_44 [1] : vector<2x3xf32> to vector<2xf32>
    %57 = vector.shape_cast %56 : vector<2xf32> to vector<2x1xf32>
    %58 = vector.broadcast %57 : vector<2x1xf32> to vector<2x3xf32>
    %59 = arith.subf %55, %58 : vector<2x3xf32>
    %60 = math.exp %59 : vector<2x3xf32>
    %cst_45 = arith.constant dense<0.000000e+00> : vector<2xf32>
    %61 = vector.multi_reduction <add>, %60, %cst_45 [1] : vector<2x3xf32> to vector<2xf32>
    %62 = vector.shape_cast %61 : vector<2xf32> to vector<2x1xf32>
    %63 = vector.broadcast %62 : vector<2x1xf32> to vector<2x3xf32>
    %64 = arith.divf %60, %63 : vector<2x3xf32>
    %cst_46 = arith.constant 0.000000e+00 : f32
    %65 = vector.broadcast %cst_46 : f32 to vector<2x128xf32>
    %66 = vector.extract_strided_slice %41 {offsets = [0, 0], sizes = [2, 128], strides = [1, 1]} : vector<6x512xf32> to vector<2x128xf32>
    %67 = vector.extract_strided_slice %64 {offsets = [0, 0], sizes = [2, 1], strides = [1, 1]} : vector<2x3xf32> to vector<2x1xf32>
    %68 = vector.broadcast %67 : vector<2x1xf32> to vector<2x128xf32>
    %69 = arith.mulf %68, %66 : vector<2x128xf32>
    %70 = arith.addf %65, %69 : vector<2x128xf32>
    %71 = vector.extract_strided_slice %41 {offsets = [2, 0], sizes = [2, 128], strides = [1, 1]} : vector<6x512xf32> to vector<2x128xf32>
    %72 = vector.extract_strided_slice %64 {offsets = [0, 1], sizes = [2, 1], strides = [1, 1]} : vector<2x3xf32> to vector<2x1xf32>
    %73 = vector.broadcast %72 : vector<2x1xf32> to vector<2x128xf32>
    %74 = arith.mulf %73, %71 : vector<2x128xf32>
    %75 = arith.addf %70, %74 : vector<2x128xf32>
    %76 = vector.extract_strided_slice %41 {offsets = [4, 0], sizes = [2, 128], strides = [1, 1]} : vector<6x512xf32> to vector<2x128xf32>
    %77 = vector.extract_strided_slice %64 {offsets = [0, 2], sizes = [2, 1], strides = [1, 1]} : vector<2x3xf32> to vector<2x1xf32>
    %78 = vector.broadcast %77 : vector<2x1xf32> to vector<2x128xf32>
    %79 = arith.mulf %78, %76 : vector<2x128xf32>
    %80 = arith.addf %75, %79 : vector<2x128xf32>
    %81 = vector.extract_strided_slice %39 {offsets = [0, 128], sizes = [2, 128], strides = [1, 1]} : vector<6x512xf32> to vector<2x128xf32>
    %82 = vector.extract_strided_slice %40 {offsets = [0, 128], sizes = [2, 128], strides = [1, 1]} : vector<6x512xf32> to vector<2x128xf32>
    %83 = arith.mulf %81, %82 : vector<2x128xf32>
    %cst_47 = arith.constant dense<0.000000e+00> : vector<2xf32>
    %84 = vector.multi_reduction <add>, %83, %cst_47 [1] : vector<2x128xf32> to vector<2xf32>
    %85 = vector.shape_cast %84 : vector<2xf32> to vector<2x1xf32>
    %86 = vector.extract_strided_slice %40 {offsets = [2, 128], sizes = [2, 128], strides = [1, 1]} : vector<6x512xf32> to vector<2x128xf32>
    %87 = arith.mulf %81, %86 : vector<2x128xf32>
    %cst_48 = arith.constant dense<0.000000e+00> : vector<2xf32>
    %88 = vector.multi_reduction <add>, %87, %cst_48 [1] : vector<2x128xf32> to vector<2xf32>
    %89 = vector.shape_cast %88 : vector<2xf32> to vector<2x1xf32>
    %90 = vector.extract_strided_slice %40 {offsets = [4, 128], sizes = [2, 128], strides = [1, 1]} : vector<6x512xf32> to vector<2x128xf32>
    %91 = arith.mulf %81, %90 : vector<2x128xf32>
    %cst_49 = arith.constant dense<0.000000e+00> : vector<2xf32>
    %92 = vector.multi_reduction <add>, %91, %cst_49 [1] : vector<2x128xf32> to vector<2xf32>
    %93 = vector.shape_cast %92 : vector<2xf32> to vector<2x1xf32>
    %94 = tpu.concatenate %85, %89, %93 in 1 : vector<2x1xf32>, vector<2x1xf32>, vector<2x1xf32> -> vector<2x3xf32>
    %cst_50 = arith.constant dense<0xFF800000> : vector<2xf32>
    %95 = vector.multi_reduction <maximumf>, %94, %cst_50 [1] : vector<2x3xf32> to vector<2xf32>
    %96 = vector.shape_cast %95 : vector<2xf32> to vector<2x1xf32>
    %97 = vector.broadcast %96 : vector<2x1xf32> to vector<2x3xf32>
    %98 = arith.subf %94, %97 : vector<2x3xf32>
    %99 = math.exp %98 : vector<2x3xf32>
    %cst_51 = arith.constant dense<0.000000e+00> : vector<2xf32>
    %100 = vector.multi_reduction <add>, %99, %cst_51 [1] : vector<2x3xf32> to vector<2xf32>
    %101 = vector.shape_cast %100 : vector<2xf32> to vector<2x1xf32>
    %102 = vector.broadcast %101 : vector<2x1xf32> to vector<2x3xf32>
    %103 = arith.divf %99, %102 : vector<2x3xf32>
    %cst_52 = arith.constant 0.000000e+00 : f32
    %104 = vector.broadcast %cst_52 : f32 to vector<2x128xf32>
    %105 = vector.extract_strided_slice %41 {offsets = [0, 128], sizes = [2, 128], strides = [1, 1]} : vector<6x512xf32> to vector<2x128xf32>
    %106 = vector.extract_strided_slice %103 {offsets = [0, 0], sizes = [2, 1], strides = [1, 1]} : vector<2x3xf32> to vector<2x1xf32>
    %107 = vector.broadcast %106 : vector<2x1xf32> to vector<2x128xf32>
    %108 = arith.mulf %107, %105 : vector<2x128xf32>
    %109 = arith.addf %104, %108 : vector<2x128xf32>
    %110 = vector.extract_strided_slice %41 {offsets = [2, 128], sizes = [2, 128], strides = [1, 1]} : vector<6x512xf32> to vector<2x128xf32>
    %111 = vector.extract_strided_slice %103 {offsets = [0, 1], sizes = [2, 1], strides = [1, 1]} : vector<2x3xf32> to vector<2x1xf32>
    %112 = vector.broadcast %111 : vector<2x1xf32> to vector<2x128xf32>
    %113 = arith.mulf %112, %110 : vector<2x128xf32>
    %114 = arith.addf %109, %113 : vector<2x128xf32>
    %115 = vector.extract_strided_slice %41 {offsets = [4, 128], sizes = [2, 128], strides = [1, 1]} : vector<6x512xf32> to vector<2x128xf32>
    %116 = vector.extract_strided_slice %103 {offsets = [0, 2], sizes = [2, 1], strides = [1, 1]} : vector<2x3xf32> to vector<2x1xf32>
    %117 = vector.broadcast %116 : vector<2x1xf32> to vector<2x128xf32>
    %118 = arith.mulf %117, %115 : vector<2x128xf32>
    %119 = arith.addf %114, %118 : vector<2x128xf32>
    %120 = vector.extract_strided_slice %39 {offsets = [0, 256], sizes = [2, 128], strides = [1, 1]} : vector<6x512xf32> to vector<2x128xf32>
    %121 = vector.extract_strided_slice %40 {offsets = [0, 256], sizes = [2, 128], strides = [1, 1]} : vector<6x512xf32> to vector<2x128xf32>
    %122 = arith.mulf %120, %121 : vector<2x128xf32>
    %cst_53 = arith.constant dense<0.000000e+00> : vector<2xf32>
    %123 = vector.multi_reduction <add>, %122, %cst_53 [1] : vector<2x128xf32> to vector<2xf32>
    %124 = vector.shape_cast %123 : vector<2xf32> to vector<2x1xf32>
    %125 = vector.extract_strided_slice %40 {offsets = [2, 256], sizes = [2, 128], strides = [1, 1]} : vector<6x512xf32> to vector<2x128xf32>
    %126 = arith.mulf %120, %125 : vector<2x128xf32>
    %cst_54 = arith.constant dense<0.000000e+00> : vector<2xf32>
    %127 = vector.multi_reduction <add>, %126, %cst_54 [1] : vector<2x128xf32> to vector<2xf32>
    %128 = vector.shape_cast %127 : vector<2xf32> to vector<2x1xf32>
    %129 = vector.extract_strided_slice %40 {offsets = [4, 256], sizes = [2, 128], strides = [1, 1]} : vector<6x512xf32> to vector<2x128xf32>
    %130 = arith.mulf %120, %129 : vector<2x128xf32>
    %cst_55 = arith.constant dense<0.000000e+00> : vector<2xf32>
    %131 = vector.multi_reduction <add>, %130, %cst_55 [1] : vector<2x128xf32> to vector<2xf32>
    %132 = vector.shape_cast %131 : vector<2xf32> to vector<2x1xf32>
    %133 = tpu.concatenate %124, %128, %132 in 1 : vector<2x1xf32>, vector<2x1xf32>, vector<2x1xf32> -> vector<2x3xf32>
    %cst_56 = arith.constant dense<0xFF800000> : vector<2xf32>
    %134 = vector.multi_reduction <maximumf>, %133, %cst_56 [1] : vector<2x3xf32> to vector<2xf32>
    %135 = vector.shape_cast %134 : vector<2xf32> to vector<2x1xf32>
    %136 = vector.broadcast %135 : vector<2x1xf32> to vector<2x3xf32>
    %137 = arith.subf %133, %136 : vector<2x3xf32>
    %138 = math.exp %137 : vector<2x3xf32>
    %cst_57 = arith.constant dense<0.000000e+00> : vector<2xf32>
    %139 = vector.multi_reduction <add>, %138, %cst_57 [1] : vector<2x3xf32> to vector<2xf32>
    %140 = vector.shape_cast %139 : vector<2xf32> to vector<2x1xf32>
    %141 = vector.broadcast %140 : vector<2x1xf32> to vector<2x3xf32>
    %142 = arith.divf %138, %141 : vector<2x3xf32>
    %cst_58 = arith.constant 0.000000e+00 : f32
    %143 = vector.broadcast %cst_58 : f32 to vector<2x128xf32>
    %144 = vector.extract_strided_slice %41 {offsets = [0, 256], sizes = [2, 128], strides = [1, 1]} : vector<6x512xf32> to vector<2x128xf32>
    %145 = vector.extract_strided_slice %142 {offsets = [0, 0], sizes = [2, 1], strides = [1, 1]} : vector<2x3xf32> to vector<2x1xf32>
    %146 = vector.broadcast %145 : vector<2x1xf32> to vector<2x128xf32>
    %147 = arith.mulf %146, %144 : vector<2x128xf32>
    %148 = arith.addf %143, %147 : vector<2x128xf32>
    %149 = vector.extract_strided_slice %41 {offsets = [2, 256], sizes = [2, 128], strides = [1, 1]} : vector<6x512xf32> to vector<2x128xf32>
    %150 = vector.extract_strided_slice %142 {offsets = [0, 1], sizes = [2, 1], strides = [1, 1]} : vector<2x3xf32> to vector<2x1xf32>
    %151 = vector.broadcast %150 : vector<2x1xf32> to vector<2x128xf32>
    %152 = arith.mulf %151, %149 : vector<2x128xf32>
    %153 = arith.addf %148, %152 : vector<2x128xf32>
    %154 = vector.extract_strided_slice %41 {offsets = [4, 256], sizes = [2, 128], strides = [1, 1]} : vector<6x512xf32> to vector<2x128xf32>
    %155 = vector.extract_strided_slice %142 {offsets = [0, 2], sizes = [2, 1], strides = [1, 1]} : vector<2x3xf32> to vector<2x1xf32>
    %156 = vector.broadcast %155 : vector<2x1xf32> to vector<2x128xf32>
    %157 = arith.mulf %156, %154 : vector<2x128xf32>
    %158 = arith.addf %153, %157 : vector<2x128xf32>
    %159 = vector.extract_strided_slice %39 {offsets = [0, 384], sizes = [2, 128], strides = [1, 1]} : vector<6x512xf32> to vector<2x128xf32>
    %160 = vector.extract_strided_slice %40 {offsets = [0, 384], sizes = [2, 128], strides = [1, 1]} : vector<6x512xf32> to vector<2x128xf32>
    %161 = arith.mulf %159, %160 : vector<2x128xf32>
    %cst_59 = arith.constant dense<0.000000e+00> : vector<2xf32>
    %162 = vector.multi_reduction <add>, %161, %cst_59 [1] : vector<2x128xf32> to vector<2xf32>
    %163 = vector.shape_cast %162 : vector<2xf32> to vector<2x1xf32>
    %164 = vector.extract_strided_slice %40 {offsets = [2, 384], sizes = [2, 128], strides = [1, 1]} : vector<6x512xf32> to vector<2x128xf32>
    %165 = arith.mulf %159, %164 : vector<2x128xf32>
    %cst_60 = arith.constant dense<0.000000e+00> : vector<2xf32>
    %166 = vector.multi_reduction <add>, %165, %cst_60 [1] : vector<2x128xf32> to vector<2xf32>
    %167 = vector.shape_cast %166 : vector<2xf32> to vector<2x1xf32>
    %168 = vector.extract_strided_slice %40 {offsets = [4, 384], sizes = [2, 128], strides = [1, 1]} : vector<6x512xf32> to vector<2x128xf32>
    %169 = arith.mulf %159, %168 : vector<2x128xf32>
    %cst_61 = arith.constant dense<0.000000e+00> : vector<2xf32>
    %170 = vector.multi_reduction <add>, %169, %cst_61 [1] : vector<2x128xf32> to vector<2xf32>
    %171 = vector.shape_cast %170 : vector<2xf32> to vector<2x1xf32>
    %172 = tpu.concatenate %163, %167, %171 in 1 : vector<2x1xf32>, vector<2x1xf32>, vector<2x1xf32> -> vector<2x3xf32>
    %cst_62 = arith.constant dense<0xFF800000> : vector<2xf32>
    %173 = vector.multi_reduction <maximumf>, %172, %cst_62 [1] : vector<2x3xf32> to vector<2xf32>
    %174 = vector.shape_cast %173 : vector<2xf32> to vector<2x1xf32>
    %175 = vector.broadcast %174 : vector<2x1xf32> to vector<2x3xf32>
    %176 = arith.subf %172, %175 : vector<2x3xf32>
    %177 = math.exp %176 : vector<2x3xf32>
    %cst_63 = arith.constant dense<0.000000e+00> : vector<2xf32>
    %178 = vector.multi_reduction <add>, %177, %cst_63 [1] : vector<2x3xf32> to vector<2xf32>
    %179 = vector.shape_cast %178 : vector<2xf32> to vector<2x1xf32>
    %180 = vector.broadcast %179 : vector<2x1xf32> to vector<2x3xf32>
    %181 = arith.divf %177, %180 : vector<2x3xf32>
    %cst_64 = arith.constant 0.000000e+00 : f32
    %182 = vector.broadcast %cst_64 : f32 to vector<2x128xf32>
    %183 = vector.extract_strided_slice %41 {offsets = [0, 384], sizes = [2, 128], strides = [1, 1]} : vector<6x512xf32> to vector<2x128xf32>
    %184 = vector.extract_strided_slice %181 {offsets = [0, 0], sizes = [2, 1], strides = [1, 1]} : vector<2x3xf32> to vector<2x1xf32>
    %185 = vector.broadcast %184 : vector<2x1xf32> to vector<2x128xf32>
    %186 = arith.mulf %185, %183 : vector<2x128xf32>
    %187 = arith.addf %182, %186 : vector<2x128xf32>
    %188 = vector.extract_strided_slice %41 {offsets = [2, 384], sizes = [2, 128], strides = [1, 1]} : vector<6x512xf32> to vector<2x128xf32>
    %189 = vector.extract_strided_slice %181 {offsets = [0, 1], sizes = [2, 1], strides = [1, 1]} : vector<2x3xf32> to vector<2x1xf32>
    %190 = vector.broadcast %189 : vector<2x1xf32> to vector<2x128xf32>
    %191 = arith.mulf %190, %188 : vector<2x128xf32>
    %192 = arith.addf %187, %191 : vector<2x128xf32>
    %193 = vector.extract_strided_slice %41 {offsets = [4, 384], sizes = [2, 128], strides = [1, 1]} : vector<6x512xf32> to vector<2x128xf32>
    %194 = vector.extract_strided_slice %181 {offsets = [0, 2], sizes = [2, 1], strides = [1, 1]} : vector<2x3xf32> to vector<2x1xf32>
    %195 = vector.broadcast %194 : vector<2x1xf32> to vector<2x128xf32>
    %196 = arith.mulf %195, %193 : vector<2x128xf32>
    %197 = arith.addf %192, %196 : vector<2x128xf32>
    %198 = tpu.concatenate %80, %119, %158, %197 in 1 : vector<2x128xf32>, vector<2x128xf32>, vector<2x128xf32>, vector<2x128xf32> -> vector<2x512xf32>
    %199 = vector.extract_strided_slice %39 {offsets = [2, 0], sizes = [2, 128], strides = [1, 1]} : vector<6x512xf32> to vector<2x128xf32>
    %200 = vector.extract_strided_slice %40 {offsets = [0, 0], sizes = [2, 128], strides = [1, 1]} : vector<6x512xf32> to vector<2x128xf32>
    %201 = arith.mulf %199, %200 : vector<2x128xf32>
    %cst_65 = arith.constant dense<0.000000e+00> : vector<2xf32>
    %202 = vector.multi_reduction <add>, %201, %cst_65 [1] : vector<2x128xf32> to vector<2xf32>
    %203 = vector.shape_cast %202 : vector<2xf32> to vector<2x1xf32>
    %204 = vector.extract_strided_slice %40 {offsets = [2, 0], sizes = [2, 128], strides = [1, 1]} : vector<6x512xf32> to vector<2x128xf32>
    %205 = arith.mulf %199, %204 : vector<2x128xf32>
    %cst_66 = arith.constant dense<0.000000e+00> : vector<2xf32>
    %206 = vector.multi_reduction <add>, %205, %cst_66 [1] : vector<2x128xf32> to vector<2xf32>
    %207 = vector.shape_cast %206 : vector<2xf32> to vector<2x1xf32>
    %208 = vector.extract_strided_slice %40 {offsets = [4, 0], sizes = [2, 128], strides = [1, 1]} : vector<6x512xf32> to vector<2x128xf32>
    %209 = arith.mulf %199, %208 : vector<2x128xf32>
    %cst_67 = arith.constant dense<0.000000e+00> : vector<2xf32>
    %210 = vector.multi_reduction <add>, %209, %cst_67 [1] : vector<2x128xf32> to vector<2xf32>
    %211 = vector.shape_cast %210 : vector<2xf32> to vector<2x1xf32>
    %212 = tpu.concatenate %203, %207, %211 in 1 : vector<2x1xf32>, vector<2x1xf32>, vector<2x1xf32> -> vector<2x3xf32>
    %cst_68 = arith.constant dense<0xFF800000> : vector<2xf32>
    %213 = vector.multi_reduction <maximumf>, %212, %cst_68 [1] : vector<2x3xf32> to vector<2xf32>
    %214 = vector.shape_cast %213 : vector<2xf32> to vector<2x1xf32>
    %215 = vector.broadcast %214 : vector<2x1xf32> to vector<2x3xf32>
    %216 = arith.subf %212, %215 : vector<2x3xf32>
    %217 = math.exp %216 : vector<2x3xf32>
    %cst_69 = arith.constant dense<0.000000e+00> : vector<2xf32>
    %218 = vector.multi_reduction <add>, %217, %cst_69 [1] : vector<2x3xf32> to vector<2xf32>
    %219 = vector.shape_cast %218 : vector<2xf32> to vector<2x1xf32>
    %220 = vector.broadcast %219 : vector<2x1xf32> to vector<2x3xf32>
    %221 = arith.divf %217, %220 : vector<2x3xf32>
    %cst_70 = arith.constant 0.000000e+00 : f32
    %222 = vector.broadcast %cst_70 : f32 to vector<2x128xf32>
    %223 = vector.extract_strided_slice %41 {offsets = [0, 0], sizes = [2, 128], strides = [1, 1]} : vector<6x512xf32> to vector<2x128xf32>
    %224 = vector.extract_strided_slice %221 {offsets = [0, 0], sizes = [2, 1], strides = [1, 1]} : vector<2x3xf32> to vector<2x1xf32>
    %225 = vector.broadcast %224 : vector<2x1xf32> to vector<2x128xf32>
    %226 = arith.mulf %225, %223 : vector<2x128xf32>
    %227 = arith.addf %222, %226 : vector<2x128xf32>
    %228 = vector.extract_strided_slice %41 {offsets = [2, 0], sizes = [2, 128], strides = [1, 1]} : vector<6x512xf32> to vector<2x128xf32>
    %229 = vector.extract_strided_slice %221 {offsets = [0, 1], sizes = [2, 1], strides = [1, 1]} : vector<2x3xf32> to vector<2x1xf32>
    %230 = vector.broadcast %229 : vector<2x1xf32> to vector<2x128xf32>
    %231 = arith.mulf %230, %228 : vector<2x128xf32>
    %232 = arith.addf %227, %231 : vector<2x128xf32>
    %233 = vector.extract_strided_slice %41 {offsets = [4, 0], sizes = [2, 128], strides = [1, 1]} : vector<6x512xf32> to vector<2x128xf32>
    %234 = vector.extract_strided_slice %221 {offsets = [0, 2], sizes = [2, 1], strides = [1, 1]} : vector<2x3xf32> to vector<2x1xf32>
    %235 = vector.broadcast %234 : vector<2x1xf32> to vector<2x128xf32>
    %236 = arith.mulf %235, %233 : vector<2x128xf32>
    %237 = arith.addf %232, %236 : vector<2x128xf32>
    %238 = vector.extract_strided_slice %39 {offsets = [2, 128], sizes = [2, 128], strides = [1, 1]} : vector<6x512xf32> to vector<2x128xf32>
    %239 = vector.extract_strided_slice %40 {offsets = [0, 128], sizes = [2, 128], strides = [1, 1]} : vector<6x512xf32> to vector<2x128xf32>
    %240 = arith.mulf %238, %239 : vector<2x128xf32>
    %cst_71 = arith.constant dense<0.000000e+00> : vector<2xf32>
    %241 = vector.multi_reduction <add>, %240, %cst_71 [1] : vector<2x128xf32> to vector<2xf32>
    %242 = vector.shape_cast %241 : vector<2xf32> to vector<2x1xf32>
    %243 = vector.extract_strided_slice %40 {offsets = [2, 128], sizes = [2, 128], strides = [1, 1]} : vector<6x512xf32> to vector<2x128xf32>
    %244 = arith.mulf %238, %243 : vector<2x128xf32>
    %cst_72 = arith.constant dense<0.000000e+00> : vector<2xf32>
    %245 = vector.multi_reduction <add>, %244, %cst_72 [1] : vector<2x128xf32> to vector<2xf32>
    %246 = vector.shape_cast %245 : vector<2xf32> to vector<2x1xf32>
    %247 = vector.extract_strided_slice %40 {offsets = [4, 128], sizes = [2, 128], strides = [1, 1]} : vector<6x512xf32> to vector<2x128xf32>
    %248 = arith.mulf %238, %247 : vector<2x128xf32>
    %cst_73 = arith.constant dense<0.000000e+00> : vector<2xf32>
    %249 = vector.multi_reduction <add>, %248, %cst_73 [1] : vector<2x128xf32> to vector<2xf32>
    %250 = vector.shape_cast %249 : vector<2xf32> to vector<2x1xf32>
    %251 = tpu.concatenate %242, %246, %250 in 1 : vector<2x1xf32>, vector<2x1xf32>, vector<2x1xf32> -> vector<2x3xf32>
    %cst_74 = arith.constant dense<0xFF800000> : vector<2xf32>
    %252 = vector.multi_reduction <maximumf>, %251, %cst_74 [1] : vector<2x3xf32> to vector<2xf32>
    %253 = vector.shape_cast %252 : vector<2xf32> to vector<2x1xf32>
    %254 = vector.broadcast %253 : vector<2x1xf32> to vector<2x3xf32>
    %255 = arith.subf %251, %254 : vector<2x3xf32>
    %256 = math.exp %255 : vector<2x3xf32>
    %cst_75 = arith.constant dense<0.000000e+00> : vector<2xf32>
    %257 = vector.multi_reduction <add>, %256, %cst_75 [1] : vector<2x3xf32> to vector<2xf32>
    %258 = vector.shape_cast %257 : vector<2xf32> to vector<2x1xf32>
    %259 = vector.broadcast %258 : vector<2x1xf32> to vector<2x3xf32>
    %260 = arith.divf %256, %259 : vector<2x3xf32>
    %cst_76 = arith.constant 0.000000e+00 : f32
    %261 = vector.broadcast %cst_76 : f32 to vector<2x128xf32>
    %262 = vector.extract_strided_slice %41 {offsets = [0, 128], sizes = [2, 128], strides = [1, 1]} : vector<6x512xf32> to vector<2x128xf32>
    %263 = vector.extract_strided_slice %260 {offsets = [0, 0], sizes = [2, 1], strides = [1, 1]} : vector<2x3xf32> to vector<2x1xf32>
    %264 = vector.broadcast %263 : vector<2x1xf32> to vector<2x128xf32>
    %265 = arith.mulf %264, %262 : vector<2x128xf32>
    %266 = arith.addf %261, %265 : vector<2x128xf32>
    %267 = vector.extract_strided_slice %41 {offsets = [2, 128], sizes = [2, 128], strides = [1, 1]} : vector<6x512xf32> to vector<2x128xf32>
    %268 = vector.extract_strided_slice %260 {offsets = [0, 1], sizes = [2, 1], strides = [1, 1]} : vector<2x3xf32> to vector<2x1xf32>
    %269 = vector.broadcast %268 : vector<2x1xf32> to vector<2x128xf32>
    %270 = arith.mulf %269, %267 : vector<2x128xf32>
    %271 = arith.addf %266, %270 : vector<2x128xf32>
    %272 = vector.extract_strided_slice %41 {offsets = [4, 128], sizes = [2, 128], strides = [1, 1]} : vector<6x512xf32> to vector<2x128xf32>
    %273 = vector.extract_strided_slice %260 {offsets = [0, 2], sizes = [2, 1], strides = [1, 1]} : vector<2x3xf32> to vector<2x1xf32>
    %274 = vector.broadcast %273 : vector<2x1xf32> to vector<2x128xf32>
    %275 = arith.mulf %274, %272 : vector<2x128xf32>
    %276 = arith.addf %271, %275 : vector<2x128xf32>
    %277 = vector.extract_strided_slice %39 {offsets = [2, 256], sizes = [2, 128], strides = [1, 1]} : vector<6x512xf32> to vector<2x128xf32>
    %278 = vector.extract_strided_slice %40 {offsets = [0, 256], sizes = [2, 128], strides = [1, 1]} : vector<6x512xf32> to vector<2x128xf32>
    %279 = arith.mulf %277, %278 : vector<2x128xf32>
    %cst_77 = arith.constant dense<0.000000e+00> : vector<2xf32>
    %280 = vector.multi_reduction <add>, %279, %cst_77 [1] : vector<2x128xf32> to vector<2xf32>
    %281 = vector.shape_cast %280 : vector<2xf32> to vector<2x1xf32>
    %282 = vector.extract_strided_slice %40 {offsets = [2, 256], sizes = [2, 128], strides = [1, 1]} : vector<6x512xf32> to vector<2x128xf32>
    %283 = arith.mulf %277, %282 : vector<2x128xf32>
    %cst_78 = arith.constant dense<0.000000e+00> : vector<2xf32>
    %284 = vector.multi_reduction <add>, %283, %cst_78 [1] : vector<2x128xf32> to vector<2xf32>
    %285 = vector.shape_cast %284 : vector<2xf32> to vector<2x1xf32>
    %286 = vector.extract_strided_slice %40 {offsets = [4, 256], sizes = [2, 128], strides = [1, 1]} : vector<6x512xf32> to vector<2x128xf32>
    %287 = arith.mulf %277, %286 : vector<2x128xf32>
    %cst_79 = arith.constant dense<0.000000e+00> : vector<2xf32>
    %288 = vector.multi_reduction <add>, %287, %cst_79 [1] : vector<2x128xf32> to vector<2xf32>
    %289 = vector.shape_cast %288 : vector<2xf32> to vector<2x1xf32>
    %290 = tpu.concatenate %281, %285, %289 in 1 : vector<2x1xf32>, vector<2x1xf32>, vector<2x1xf32> -> vector<2x3xf32>
    %cst_80 = arith.constant dense<0xFF800000> : vector<2xf32>
    %291 = vector.multi_reduction <maximumf>, %290, %cst_80 [1] : vector<2x3xf32> to vector<2xf32>
    %292 = vector.shape_cast %291 : vector<2xf32> to vector<2x1xf32>
    %293 = vector.broadcast %292 : vector<2x1xf32> to vector<2x3xf32>
    %294 = arith.subf %290, %293 : vector<2x3xf32>
    %295 = math.exp %294 : vector<2x3xf32>
    %cst_81 = arith.constant dense<0.000000e+00> : vector<2xf32>
    %296 = vector.multi_reduction <add>, %295, %cst_81 [1] : vector<2x3xf32> to vector<2xf32>
    %297 = vector.shape_cast %296 : vector<2xf32> to vector<2x1xf32>
    %298 = vector.broadcast %297 : vector<2x1xf32> to vector<2x3xf32>
    %299 = arith.divf %295, %298 : vector<2x3xf32>
    %cst_82 = arith.constant 0.000000e+00 : f32
    %300 = vector.broadcast %cst_82 : f32 to vector<2x128xf32>
    %301 = vector.extract_strided_slice %41 {offsets = [0, 256], sizes = [2, 128], strides = [1, 1]} : vector<6x512xf32> to vector<2x128xf32>
    %302 = vector.extract_strided_slice %299 {offsets = [0, 0], sizes = [2, 1], strides = [1, 1]} : vector<2x3xf32> to vector<2x1xf32>
    %303 = vector.broadcast %302 : vector<2x1xf32> to vector<2x128xf32>
    %304 = arith.mulf %303, %301 : vector<2x128xf32>
    %305 = arith.addf %300, %304 : vector<2x128xf32>
    %306 = vector.extract_strided_slice %41 {offsets = [2, 256], sizes = [2, 128], strides = [1, 1]} : vector<6x512xf32> to vector<2x128xf32>
    %307 = vector.extract_strided_slice %299 {offsets = [0, 1], sizes = [2, 1], strides = [1, 1]} : vector<2x3xf32> to vector<2x1xf32>
    %308 = vector.broadcast %307 : vector<2x1xf32> to vector<2x128xf32>
    %309 = arith.mulf %308, %306 : vector<2x128xf32>
    %310 = arith.addf %305, %309 : vector<2x128xf32>
    %311 = vector.extract_strided_slice %41 {offsets = [4, 256], sizes = [2, 128], strides = [1, 1]} : vector<6x512xf32> to vector<2x128xf32>
    %312 = vector.extract_strided_slice %299 {offsets = [0, 2], sizes = [2, 1], strides = [1, 1]} : vector<2x3xf32> to vector<2x1xf32>
    %313 = vector.broadcast %312 : vector<2x1xf32> to vector<2x128xf32>
    %314 = arith.mulf %313, %311 : vector<2x128xf32>
    %315 = arith.addf %310, %314 : vector<2x128xf32>
    %316 = vector.extract_strided_slice %39 {offsets = [2, 384], sizes = [2, 128], strides = [1, 1]} : vector<6x512xf32> to vector<2x128xf32>
    %317 = vector.extract_strided_slice %40 {offsets = [0, 384], sizes = [2, 128], strides = [1, 1]} : vector<6x512xf32> to vector<2x128xf32>
    %318 = arith.mulf %316, %317 : vector<2x128xf32>
    %cst_83 = arith.constant dense<0.000000e+00> : vector<2xf32>
    %319 = vector.multi_reduction <add>, %318, %cst_83 [1] : vector<2x128xf32> to vector<2xf32>
    %320 = vector.shape_cast %319 : vector<2xf32> to vector<2x1xf32>
    %321 = vector.extract_strided_slice %40 {offsets = [2, 384], sizes = [2, 128], strides = [1, 1]} : vector<6x512xf32> to vector<2x128xf32>
    %322 = arith.mulf %316, %321 : vector<2x128xf32>
    %cst_84 = arith.constant dense<0.000000e+00> : vector<2xf32>
    %323 = vector.multi_reduction <add>, %322, %cst_84 [1] : vector<2x128xf32> to vector<2xf32>
    %324 = vector.shape_cast %323 : vector<2xf32> to vector<2x1xf32>
    %325 = vector.extract_strided_slice %40 {offsets = [4, 384], sizes = [2, 128], strides = [1, 1]} : vector<6x512xf32> to vector<2x128xf32>
    %326 = arith.mulf %316, %325 : vector<2x128xf32>
    %cst_85 = arith.constant dense<0.000000e+00> : vector<2xf32>
    %327 = vector.multi_reduction <add>, %326, %cst_85 [1] : vector<2x128xf32> to vector<2xf32>
    %328 = vector.shape_cast %327 : vector<2xf32> to vector<2x1xf32>
    %329 = tpu.concatenate %320, %324, %328 in 1 : vector<2x1xf32>, vector<2x1xf32>, vector<2x1xf32> -> vector<2x3xf32>
    %cst_86 = arith.constant dense<0xFF800000> : vector<2xf32>
    %330 = vector.multi_reduction <maximumf>, %329, %cst_86 [1] : vector<2x3xf32> to vector<2xf32>
    %331 = vector.shape_cast %330 : vector<2xf32> to vector<2x1xf32>
    %332 = vector.broadcast %331 : vector<2x1xf32> to vector<2x3xf32>
    %333 = arith.subf %329, %332 : vector<2x3xf32>
    %334 = math.exp %333 : vector<2x3xf32>
    %cst_87 = arith.constant dense<0.000000e+00> : vector<2xf32>
    %335 = vector.multi_reduction <add>, %334, %cst_87 [1] : vector<2x3xf32> to vector<2xf32>
    %336 = vector.shape_cast %335 : vector<2xf32> to vector<2x1xf32>
    %337 = vector.broadcast %336 : vector<2x1xf32> to vector<2x3xf32>
    %338 = arith.divf %334, %337 : vector<2x3xf32>
    %cst_88 = arith.constant 0.000000e+00 : f32
    %339 = vector.broadcast %cst_88 : f32 to vector<2x128xf32>
    %340 = vector.extract_strided_slice %41 {offsets = [0, 384], sizes = [2, 128], strides = [1, 1]} : vector<6x512xf32> to vector<2x128xf32>
    %341 = vector.extract_strided_slice %338 {offsets = [0, 0], sizes = [2, 1], strides = [1, 1]} : vector<2x3xf32> to vector<2x1xf32>
    %342 = vector.broadcast %341 : vector<2x1xf32> to vector<2x128xf32>
    %343 = arith.mulf %342, %340 : vector<2x128xf32>
    %344 = arith.addf %339, %343 : vector<2x128xf32>
    %345 = vector.extract_strided_slice %41 {offsets = [2, 384], sizes = [2, 128], strides = [1, 1]} : vector<6x512xf32> to vector<2x128xf32>
    %346 = vector.extract_strided_slice %338 {offsets = [0, 1], sizes = [2, 1], strides = [1, 1]} : vector<2x3xf32> to vector<2x1xf32>
    %347 = vector.broadcast %346 : vector<2x1xf32> to vector<2x128xf32>
    %348 = arith.mulf %347, %345 : vector<2x128xf32>
    %349 = arith.addf %344, %348 : vector<2x128xf32>
    %350 = vector.extract_strided_slice %41 {offsets = [4, 384], sizes = [2, 128], strides = [1, 1]} : vector<6x512xf32> to vector<2x128xf32>
    %351 = vector.extract_strided_slice %338 {offsets = [0, 2], sizes = [2, 1], strides = [1, 1]} : vector<2x3xf32> to vector<2x1xf32>
    %352 = vector.broadcast %351 : vector<2x1xf32> to vector<2x128xf32>
    %353 = arith.mulf %352, %350 : vector<2x128xf32>
    %354 = arith.addf %349, %353 : vector<2x128xf32>
    %355 = tpu.concatenate %237, %276, %315, %354 in 1 : vector<2x128xf32>, vector<2x128xf32>, vector<2x128xf32>, vector<2x128xf32> -> vector<2x512xf32>
    %356 = vector.extract_strided_slice %39 {offsets = [4, 0], sizes = [2, 128], strides = [1, 1]} : vector<6x512xf32> to vector<2x128xf32>
    %357 = vector.extract_strided_slice %40 {offsets = [0, 0], sizes = [2, 128], strides = [1, 1]} : vector<6x512xf32> to vector<2x128xf32>
    %358 = arith.mulf %356, %357 : vector<2x128xf32>
    %cst_89 = arith.constant dense<0.000000e+00> : vector<2xf32>
    %359 = vector.multi_reduction <add>, %358, %cst_89 [1] : vector<2x128xf32> to vector<2xf32>
    %360 = vector.shape_cast %359 : vector<2xf32> to vector<2x1xf32>
    %361 = vector.extract_strided_slice %40 {offsets = [2, 0], sizes = [2, 128], strides = [1, 1]} : vector<6x512xf32> to vector<2x128xf32>
    %362 = arith.mulf %356, %361 : vector<2x128xf32>
    %cst_90 = arith.constant dense<0.000000e+00> : vector<2xf32>
    %363 = vector.multi_reduction <add>, %362, %cst_90 [1] : vector<2x128xf32> to vector<2xf32>
    %364 = vector.shape_cast %363 : vector<2xf32> to vector<2x1xf32>
    %365 = vector.extract_strided_slice %40 {offsets = [4, 0], sizes = [2, 128], strides = [1, 1]} : vector<6x512xf32> to vector<2x128xf32>
    %366 = arith.mulf %356, %365 : vector<2x128xf32>
    %cst_91 = arith.constant dense<0.000000e+00> : vector<2xf32>
    %367 = vector.multi_reduction <add>, %366, %cst_91 [1] : vector<2x128xf32> to vector<2xf32>
    %368 = vector.shape_cast %367 : vector<2xf32> to vector<2x1xf32>
    %369 = tpu.concatenate %360, %364, %368 in 1 : vector<2x1xf32>, vector<2x1xf32>, vector<2x1xf32> -> vector<2x3xf32>
    %cst_92 = arith.constant dense<0xFF800000> : vector<2xf32>
    %370 = vector.multi_reduction <maximumf>, %369, %cst_92 [1] : vector<2x3xf32> to vector<2xf32>
    %371 = vector.shape_cast %370 : vector<2xf32> to vector<2x1xf32>
    %372 = vector.broadcast %371 : vector<2x1xf32> to vector<2x3xf32>
    %373 = arith.subf %369, %372 : vector<2x3xf32>
    %374 = math.exp %373 : vector<2x3xf32>
    %cst_93 = arith.constant dense<0.000000e+00> : vector<2xf32>
    %375 = vector.multi_reduction <add>, %374, %cst_93 [1] : vector<2x3xf32> to vector<2xf32>
    %376 = vector.shape_cast %375 : vector<2xf32> to vector<2x1xf32>
    %377 = vector.broadcast %376 : vector<2x1xf32> to vector<2x3xf32>
    %378 = arith.divf %374, %377 : vector<2x3xf32>
    %cst_94 = arith.constant 0.000000e+00 : f32
    %379 = vector.broadcast %cst_94 : f32 to vector<2x128xf32>
    %380 = vector.extract_strided_slice %41 {offsets = [0, 0], sizes = [2, 128], strides = [1, 1]} : vector<6x512xf32> to vector<2x128xf32>
    %381 = vector.extract_strided_slice %378 {offsets = [0, 0], sizes = [2, 1], strides = [1, 1]} : vector<2x3xf32> to vector<2x1xf32>
    %382 = vector.broadcast %381 : vector<2x1xf32> to vector<2x128xf32>
    %383 = arith.mulf %382, %380 : vector<2x128xf32>
    %384 = arith.addf %379, %383 : vector<2x128xf32>
    %385 = vector.extract_strided_slice %41 {offsets = [2, 0], sizes = [2, 128], strides = [1, 1]} : vector<6x512xf32> to vector<2x128xf32>
    %386 = vector.extract_strided_slice %378 {offsets = [0, 1], sizes = [2, 1], strides = [1, 1]} : vector<2x3xf32> to vector<2x1xf32>
    %387 = vector.broadcast %386 : vector<2x1xf32> to vector<2x128xf32>
    %388 = arith.mulf %387, %385 : vector<2x128xf32>
    %389 = arith.addf %384, %388 : vector<2x128xf32>
    %390 = vector.extract_strided_slice %41 {offsets = [4, 0], sizes = [2, 128], strides = [1, 1]} : vector<6x512xf32> to vector<2x128xf32>
    %391 = vector.extract_strided_slice %378 {offsets = [0, 2], sizes = [2, 1], strides = [1, 1]} : vector<2x3xf32> to vector<2x1xf32>
    %392 = vector.broadcast %391 : vector<2x1xf32> to vector<2x128xf32>
    %393 = arith.mulf %392, %390 : vector<2x128xf32>
    %394 = arith.addf %389, %393 : vector<2x128xf32>
    %395 = vector.extract_strided_slice %39 {offsets = [4, 128], sizes = [2, 128], strides = [1, 1]} : vector<6x512xf32> to vector<2x128xf32>
    %396 = vector.extract_strided_slice %40 {offsets = [0, 128], sizes = [2, 128], strides = [1, 1]} : vector<6x512xf32> to vector<2x128xf32>
    %397 = arith.mulf %395, %396 : vector<2x128xf32>
    %cst_95 = arith.constant dense<0.000000e+00> : vector<2xf32>
    %398 = vector.multi_reduction <add>, %397, %cst_95 [1] : vector<2x128xf32> to vector<2xf32>
    %399 = vector.shape_cast %398 : vector<2xf32> to vector<2x1xf32>
    %400 = vector.extract_strided_slice %40 {offsets = [2, 128], sizes = [2, 128], strides = [1, 1]} : vector<6x512xf32> to vector<2x128xf32>
    %401 = arith.mulf %395, %400 : vector<2x128xf32>
    %cst_96 = arith.constant dense<0.000000e+00> : vector<2xf32>
    %402 = vector.multi_reduction <add>, %401, %cst_96 [1] : vector<2x128xf32> to vector<2xf32>
    %403 = vector.shape_cast %402 : vector<2xf32> to vector<2x1xf32>
    %404 = vector.extract_strided_slice %40 {offsets = [4, 128], sizes = [2, 128], strides = [1, 1]} : vector<6x512xf32> to vector<2x128xf32>
    %405 = arith.mulf %395, %404 : vector<2x128xf32>
    %cst_97 = arith.constant dense<0.000000e+00> : vector<2xf32>
    %406 = vector.multi_reduction <add>, %405, %cst_97 [1] : vector<2x128xf32> to vector<2xf32>
    %407 = vector.shape_cast %406 : vector<2xf32> to vector<2x1xf32>
    %408 = tpu.concatenate %399, %403, %407 in 1 : vector<2x1xf32>, vector<2x1xf32>, vector<2x1xf32> -> vector<2x3xf32>
    %cst_98 = arith.constant dense<0xFF800000> : vector<2xf32>
    %409 = vector.multi_reduction <maximumf>, %408, %cst_98 [1] : vector<2x3xf32> to vector<2xf32>
    %410 = vector.shape_cast %409 : vector<2xf32> to vector<2x1xf32>
    %411 = vector.broadcast %410 : vector<2x1xf32> to vector<2x3xf32>
    %412 = arith.subf %408, %411 : vector<2x3xf32>
    %413 = math.exp %412 : vector<2x3xf32>
    %cst_99 = arith.constant dense<0.000000e+00> : vector<2xf32>
    %414 = vector.multi_reduction <add>, %413, %cst_99 [1] : vector<2x3xf32> to vector<2xf32>
    %415 = vector.shape_cast %414 : vector<2xf32> to vector<2x1xf32>
    %416 = vector.broadcast %415 : vector<2x1xf32> to vector<2x3xf32>
    %417 = arith.divf %413, %416 : vector<2x3xf32>
    %cst_100 = arith.constant 0.000000e+00 : f32
    %418 = vector.broadcast %cst_100 : f32 to vector<2x128xf32>
    %419 = vector.extract_strided_slice %41 {offsets = [0, 128], sizes = [2, 128], strides = [1, 1]} : vector<6x512xf32> to vector<2x128xf32>
    %420 = vector.extract_strided_slice %417 {offsets = [0, 0], sizes = [2, 1], strides = [1, 1]} : vector<2x3xf32> to vector<2x1xf32>
    %421 = vector.broadcast %420 : vector<2x1xf32> to vector<2x128xf32>
    %422 = arith.mulf %421, %419 : vector<2x128xf32>
    %423 = arith.addf %418, %422 : vector<2x128xf32>
    %424 = vector.extract_strided_slice %41 {offsets = [2, 128], sizes = [2, 128], strides = [1, 1]} : vector<6x512xf32> to vector<2x128xf32>
    %425 = vector.extract_strided_slice %417 {offsets = [0, 1], sizes = [2, 1], strides = [1, 1]} : vector<2x3xf32> to vector<2x1xf32>
    %426 = vector.broadcast %425 : vector<2x1xf32> to vector<2x128xf32>
    %427 = arith.mulf %426, %424 : vector<2x128xf32>
    %428 = arith.addf %423, %427 : vector<2x128xf32>
    %429 = vector.extract_strided_slice %41 {offsets = [4, 128], sizes = [2, 128], strides = [1, 1]} : vector<6x512xf32> to vector<2x128xf32>
    %430 = vector.extract_strided_slice %417 {offsets = [0, 2], sizes = [2, 1], strides = [1, 1]} : vector<2x3xf32> to vector<2x1xf32>
    %431 = vector.broadcast %430 : vector<2x1xf32> to vector<2x128xf32>
    %432 = arith.mulf %431, %429 : vector<2x128xf32>
    %433 = arith.addf %428, %432 : vector<2x128xf32>
    %434 = vector.extract_strided_slice %39 {offsets = [4, 256], sizes = [2, 128], strides = [1, 1]} : vector<6x512xf32> to vector<2x128xf32>
    %435 = vector.extract_strided_slice %40 {offsets = [0, 256], sizes = [2, 128], strides = [1, 1]} : vector<6x512xf32> to vector<2x128xf32>
    %436 = arith.mulf %434, %435 : vector<2x128xf32>
    %cst_101 = arith.constant dense<0.000000e+00> : vector<2xf32>
    %437 = vector.multi_reduction <add>, %436, %cst_101 [1] : vector<2x128xf32> to vector<2xf32>
    %438 = vector.shape_cast %437 : vector<2xf32> to vector<2x1xf32>
    %439 = vector.extract_strided_slice %40 {offsets = [2, 256], sizes = [2, 128], strides = [1, 1]} : vector<6x512xf32> to vector<2x128xf32>
    %440 = arith.mulf %434, %439 : vector<2x128xf32>
    %cst_102 = arith.constant dense<0.000000e+00> : vector<2xf32>
    %441 = vector.multi_reduction <add>, %440, %cst_102 [1] : vector<2x128xf32> to vector<2xf32>
    %442 = vector.shape_cast %441 : vector<2xf32> to vector<2x1xf32>
    %443 = vector.extract_strided_slice %40 {offsets = [4, 256], sizes = [2, 128], strides = [1, 1]} : vector<6x512xf32> to vector<2x128xf32>
    %444 = arith.mulf %434, %443 : vector<2x128xf32>
    %cst_103 = arith.constant dense<0.000000e+00> : vector<2xf32>
    %445 = vector.multi_reduction <add>, %444, %cst_103 [1] : vector<2x128xf32> to vector<2xf32>
    %446 = vector.shape_cast %445 : vector<2xf32> to vector<2x1xf32>
    %447 = tpu.concatenate %438, %442, %446 in 1 : vector<2x1xf32>, vector<2x1xf32>, vector<2x1xf32> -> vector<2x3xf32>
    %cst_104 = arith.constant dense<0xFF800000> : vector<2xf32>
    %448 = vector.multi_reduction <maximumf>, %447, %cst_104 [1] : vector<2x3xf32> to vector<2xf32>
    %449 = vector.shape_cast %448 : vector<2xf32> to vector<2x1xf32>
    %450 = vector.broadcast %449 : vector<2x1xf32> to vector<2x3xf32>
    %451 = arith.subf %447, %450 : vector<2x3xf32>
    %452 = math.exp %451 : vector<2x3xf32>
    %cst_105 = arith.constant dense<0.000000e+00> : vector<2xf32>
    %453 = vector.multi_reduction <add>, %452, %cst_105 [1] : vector<2x3xf32> to vector<2xf32>
    %454 = vector.shape_cast %453 : vector<2xf32> to vector<2x1xf32>
    %455 = vector.broadcast %454 : vector<2x1xf32> to vector<2x3xf32>
    %456 = arith.divf %452, %455 : vector<2x3xf32>
    %cst_106 = arith.constant 0.000000e+00 : f32
    %457 = vector.broadcast %cst_106 : f32 to vector<2x128xf32>
    %458 = vector.extract_strided_slice %41 {offsets = [0, 256], sizes = [2, 128], strides = [1, 1]} : vector<6x512xf32> to vector<2x128xf32>
    %459 = vector.extract_strided_slice %456 {offsets = [0, 0], sizes = [2, 1], strides = [1, 1]} : vector<2x3xf32> to vector<2x1xf32>
    %460 = vector.broadcast %459 : vector<2x1xf32> to vector<2x128xf32>
    %461 = arith.mulf %460, %458 : vector<2x128xf32>
    %462 = arith.addf %457, %461 : vector<2x128xf32>
    %463 = vector.extract_strided_slice %41 {offsets = [2, 256], sizes = [2, 128], strides = [1, 1]} : vector<6x512xf32> to vector<2x128xf32>
    %464 = vector.extract_strided_slice %456 {offsets = [0, 1], sizes = [2, 1], strides = [1, 1]} : vector<2x3xf32> to vector<2x1xf32>
    %465 = vector.broadcast %464 : vector<2x1xf32> to vector<2x128xf32>
    %466 = arith.mulf %465, %463 : vector<2x128xf32>
    %467 = arith.addf %462, %466 : vector<2x128xf32>
    %468 = vector.extract_strided_slice %41 {offsets = [4, 256], sizes = [2, 128], strides = [1, 1]} : vector<6x512xf32> to vector<2x128xf32>
    %469 = vector.extract_strided_slice %456 {offsets = [0, 2], sizes = [2, 1], strides = [1, 1]} : vector<2x3xf32> to vector<2x1xf32>
    %470 = vector.broadcast %469 : vector<2x1xf32> to vector<2x128xf32>
    %471 = arith.mulf %470, %468 : vector<2x128xf32>
    %472 = arith.addf %467, %471 : vector<2x128xf32>
    %473 = vector.extract_strided_slice %39 {offsets = [4, 384], sizes = [2, 128], strides = [1, 1]} : vector<6x512xf32> to vector<2x128xf32>
    %474 = vector.extract_strided_slice %40 {offsets = [0, 384], sizes = [2, 128], strides = [1, 1]} : vector<6x512xf32> to vector<2x128xf32>
    %475 = arith.mulf %473, %474 : vector<2x128xf32>
    %cst_107 = arith.constant dense<0.000000e+00> : vector<2xf32>
    %476 = vector.multi_reduction <add>, %475, %cst_107 [1] : vector<2x128xf32> to vector<2xf32>
    %477 = vector.shape_cast %476 : vector<2xf32> to vector<2x1xf32>
    %478 = vector.extract_strided_slice %40 {offsets = [2, 384], sizes = [2, 128], strides = [1, 1]} : vector<6x512xf32> to vector<2x128xf32>
    %479 = arith.mulf %473, %478 : vector<2x128xf32>
    %cst_108 = arith.constant dense<0.000000e+00> : vector<2xf32>
    %480 = vector.multi_reduction <add>, %479, %cst_108 [1] : vector<2x128xf32> to vector<2xf32>
    %481 = vector.shape_cast %480 : vector<2xf32> to vector<2x1xf32>
    %482 = vector.extract_strided_slice %40 {offsets = [4, 384], sizes = [2, 128], strides = [1, 1]} : vector<6x512xf32> to vector<2x128xf32>
    %483 = arith.mulf %473, %482 : vector<2x128xf32>
    %cst_109 = arith.constant dense<0.000000e+00> : vector<2xf32>
    %484 = vector.multi_reduction <add>, %483, %cst_109 [1] : vector<2x128xf32> to vector<2xf32>
    %485 = vector.shape_cast %484 : vector<2xf32> to vector<2x1xf32>
    %486 = tpu.concatenate %477, %481, %485 in 1 : vector<2x1xf32>, vector<2x1xf32>, vector<2x1xf32> -> vector<2x3xf32>
    %cst_110 = arith.constant dense<0xFF800000> : vector<2xf32>
    %487 = vector.multi_reduction <maximumf>, %486, %cst_110 [1] : vector<2x3xf32> to vector<2xf32>
    %488 = vector.shape_cast %487 : vector<2xf32> to vector<2x1xf32>
    %489 = vector.broadcast %488 : vector<2x1xf32> to vector<2x3xf32>
    %490 = arith.subf %486, %489 : vector<2x3xf32>
    %491 = math.exp %490 : vector<2x3xf32>
    %cst_111 = arith.constant dense<0.000000e+00> : vector<2xf32>
    %492 = vector.multi_reduction <add>, %491, %cst_111 [1] : vector<2x3xf32> to vector<2xf32>
    %493 = vector.shape_cast %492 : vector<2xf32> to vector<2x1xf32>
    %494 = vector.broadcast %493 : vector<2x1xf32> to vector<2x3xf32>
    %495 = arith.divf %491, %494 : vector<2x3xf32>
    %cst_112 = arith.constant 0.000000e+00 : f32
    %496 = vector.broadcast %cst_112 : f32 to vector<2x128xf32>
    %497 = vector.extract_strided_slice %41 {offsets = [0, 384], sizes = [2, 128], strides = [1, 1]} : vector<6x512xf32> to vector<2x128xf32>
    %498 = vector.extract_strided_slice %495 {offsets = [0, 0], sizes = [2, 1], strides = [1, 1]} : vector<2x3xf32> to vector<2x1xf32>
    %499 = vector.broadcast %498 : vector<2x1xf32> to vector<2x128xf32>
    %500 = arith.mulf %499, %497 : vector<2x128xf32>
    %501 = arith.addf %496, %500 : vector<2x128xf32>
    %502 = vector.extract_strided_slice %41 {offsets = [2, 384], sizes = [2, 128], strides = [1, 1]} : vector<6x512xf32> to vector<2x128xf32>
    %503 = vector.extract_strided_slice %495 {offsets = [0, 1], sizes = [2, 1], strides = [1, 1]} : vector<2x3xf32> to vector<2x1xf32>
    %504 = vector.broadcast %503 : vector<2x1xf32> to vector<2x128xf32>
    %505 = arith.mulf %504, %502 : vector<2x128xf32>
    %506 = arith.addf %501, %505 : vector<2x128xf32>
    %507 = vector.extract_strided_slice %41 {offsets = [4, 384], sizes = [2, 128], strides = [1, 1]} : vector<6x512xf32> to vector<2x128xf32>
    %508 = vector.extract_strided_slice %495 {offsets = [0, 2], sizes = [2, 1], strides = [1, 1]} : vector<2x3xf32> to vector<2x1xf32>
    %509 = vector.broadcast %508 : vector<2x1xf32> to vector<2x128xf32>
    %510 = arith.mulf %509, %507 : vector<2x128xf32>
    %511 = arith.addf %506, %510 : vector<2x128xf32>
    %512 = tpu.concatenate %394, %433, %472, %511 in 1 : vector<2x128xf32>, vector<2x128xf32>, vector<2x128xf32>, vector<2x128xf32> -> vector<2x512xf32>
    %513 = tpu.concatenate %198, %355, %512 in 0 : vector<2x512xf32>, vector<2x512xf32>, vector<2x512xf32> -> vector<6x512xf32>
    %c0_113 = arith.constant 0 : index
    %c0_114 = arith.constant 0 : index
    %514 = vector.load %arg7[%c0_113, %c0_114] : memref<512x768xf32, #tpu.memory_space<vmem>>, vector<512x768xf32>
    %cst_115 = arith.constant dense<0.000000e+00> : vector<6x768xf32>
    %515 = tpu.matmul %513, %514, %cst_115 {dimension_numbers = #tpu.dot_dimension_numbers<[1], [0], [0], [1], [0, 0, 1, 1], [], []>} : vector<6x512xf32>, vector<512x768xf32>, vector<6x768xf32> -> vector<6x768xf32>
    %c0_116 = arith.constant 0 : index
    %c0_117 = arith.constant 0 : index
    %516 = vector.load %arg8[%c0_116, %c0_117] : memref<1x768xf32, #tpu.memory_space<vmem>>, vector<1x768xf32>
    %517 = vector.broadcast %516 : vector<1x768xf32> to vector<6x768xf32>
    %518 = arith.addf %515, %517 : vector<6x768xf32>
    %cst_118 = arith.constant 0.000000e+00 : f32
    %519 = vector.broadcast %cst_118 : f32 to vector<2x768xf32>
    %c0_119 = arith.constant 0 : index
    %c0_120 = arith.constant 0 : index
    %520 = vector.load %arg10[%c0_119, %c0_120] : memref<1x768xf32, #tpu.memory_space<vmem>>, vector<1x768xf32>
    %521 = vector.broadcast %520 : vector<1x768xf32> to vector<2x768xf32>
    %522 = arith.addf %519, %521 : vector<2x768xf32>
    %523 = vector.extract_strided_slice %518 {offsets = [0, 0], sizes = [2, 768], strides = [1, 1]} : vector<6x768xf32> to vector<2x768xf32>
    %c0_121 = arith.constant 0 : index
    %c0_122 = arith.constant 0 : index
    %c0_123 = arith.constant 0 : index
    %524 = vector.load %arg9[%c0_121, %c0_122, %c0_123] : memref<3x768x768xf32, #tpu.memory_space<vmem>>, vector<1x768x768xf32>
    %525 = vector.shape_cast %524 : vector<1x768x768xf32> to vector<768x768xf32>
    %cst_124 = arith.constant dense<0.000000e+00> : vector<2x768xf32>
    %526 = tpu.matmul %523, %525, %cst_124 {dimension_numbers = #tpu.dot_dimension_numbers<[1], [0], [0], [1], [0, 0, 1, 1], [], []>} : vector<2x768xf32>, vector<768x768xf32>, vector<2x768xf32> -> vector<2x768xf32>
    %527 = arith.addf %522, %526 : vector<2x768xf32>
    %528 = vector.extract_strided_slice %518 {offsets = [2, 0], sizes = [2, 768], strides = [1, 1]} : vector<6x768xf32> to vector<2x768xf32>
    %c1_125 = arith.constant 1 : index
    %c0_126 = arith.constant 0 : index
    %c0_127 = arith.constant 0 : index
    %529 = vector.load %arg9[%c1_125, %c0_126, %c0_127] : memref<3x768x768xf32, #tpu.memory_space<vmem>>, vector<1x768x768xf32>
    %530 = vector.shape_cast %529 : vector<1x768x768xf32> to vector<768x768xf32>
    %cst_128 = arith.constant dense<0.000000e+00> : vector<2x768xf32>
    %531 = tpu.matmul %528, %530, %cst_128 {dimension_numbers = #tpu.dot_dimension_numbers<[1], [0], [0], [1], [0, 0, 1, 1], [], []>} : vector<2x768xf32>, vector<768x768xf32>, vector<2x768xf32> -> vector<2x768xf32>
    %532 = arith.addf %527, %531 : vector<2x768xf32>
    %533 = vector.extract_strided_slice %518 {offsets = [4, 0], sizes = [2, 768], strides = [1, 1]} : vector<6x768xf32> to vector<2x768xf32>
    %c2 = arith.constant 2 : index
    %c0_129 = arith.constant 0 : index
    %c0_130 = arith.constant 0 : index
    %534 = vector.load %arg9[%c2, %c0_129, %c0_130] : memref<3x768x768xf32, #tpu.memory_space<vmem>>, vector<1x768x768xf32>
    %535 = vector.shape_cast %534 : vector<1x768x768xf32> to vector<768x768xf32>
    %cst_131 = arith.constant dense<0.000000e+00> : vector<2x768xf32>
    %536 = tpu.matmul %533, %535, %cst_131 {dimension_numbers = #tpu.dot_dimension_numbers<[1], [0], [0], [1], [0, 0, 1, 1], [], []>} : vector<2x768xf32>, vector<768x768xf32>, vector<2x768xf32> -> vector<2x768xf32>
    %537 = arith.addf %532, %536 : vector<2x768xf32>
    %c0_132 = arith.constant 0 : index
    %c0_133 = arith.constant 0 : index
    %538 = vector.load %arg11[%c0_132, %c0_133] : memref<768x128xf32, #tpu.memory_space<vmem>>, vector<768x128xf32>
    %cst_134 = arith.constant dense<0.000000e+00> : vector<2x128xf32>
    %539 = tpu.matmul %537, %538, %cst_134 {dimension_numbers = #tpu.dot_dimension_numbers<[1], [0], [0], [1], [0, 0, 1, 1], [], []>} : vector<2x768xf32>, vector<768x128xf32>, vector<2x128xf32> -> vector<2x128xf32>
    %c0_135 = arith.constant 0 : index
    %c0_136 = arith.constant 0 : index
    %540 = vector.load %arg12[%c0_135, %c0_136] : memref<1x128xf32, #tpu.memory_space<vmem>>, vector<1x128xf32>
    %541 = vector.broadcast %540 : vector<1x128xf32> to vector<2x128xf32>
    %542 = arith.addf %539, %541 : vector<2x128xf32>
    %543 = math.tanh %542 : vector<2x128xf32>
    %c0_137 = arith.constant 0 : index
    %c0_138 = arith.constant 0 : index
    %544 = vector.load %arg20[%c0_137, %c0_138] : memref<2x128xf32, #tpu.memory_space<vmem>>, vector<2x128xf32>
    tpu.vector_store %arg20[%c0_137, %c0_138], %543 {strides = array<i32>} : memref<2x128xf32, #tpu.memory_space<vmem>>, vector<2x128xf32>,
    return
  }
  func.func @transform_0(%arg0: i32) -> (i32, i32, i32, i32) {
    %c0_i32 = arith.constant 0 : i32
    %c0_i32_0 = arith.constant 0 : i32
    %c0_i32_1 = arith.constant 0 : i32
    %c0_i32_2 = arith.constant 0 : i32
    return %arg0, %c0_i32, %c0_i32_0, %c0_i32_1 : i32, i32, i32, i32
  }
  func.func @transform_1(%arg0: i32) -> (i32, i32, i32, i32) {
    %c0_i32 = arith.constant 0 : i32
    %c0_i32_0 = arith.constant 0 : i32
    %c0_i32_1 = arith.constant 0 : i32
    %c0_i32_2 = arith.constant 0 : i32
    return %arg0, %c0_i32, %c0_i32_0, %c0_i32_1 : i32, i32, i32, i32
  }
  func.func @transform_2(%arg0: i32) -> (i32, i32) {
    %c0_i32 = arith.constant 0 : i32
    %c0_i32_0 = arith.constant 0 : i32
    return %arg0, %c0_i32 : i32, i32
  }
  func.func @transform_3(%arg0: i32) -> (i32, i32) {
    %c0_i32 = arith.constant 0 : i32
    %c0_i32_0 = arith.constant 0 : i32
    return %arg0, %c0_i32 : i32, i32
  }
  func.func @transform_4(%arg0: i32) -> (i32, i32) {
    %c0_i32 = arith.constant 0 : i32
    %c0_i32_0 = arith.constant 0 : i32
    %c0_i32_1 = arith.constant 0 : i32
    return %c0_i32, %c0_i32_0 : i32, i32
  }
  func.func @transform_5(%arg0: i32) -> (i32, i32) {
    %c0_i32 = arith.constant 0 : i32
    %c0_i32_0 = arith.constant 0 : i32
    %c0_i32_1 = arith.constant 0 : i32
    return %c0_i32, %c0_i32_0 : i32, i32
  }
  func.func @transform_6(%arg0: i32) -> (i32, i32) {
    %c0_i32 = arith.constant 0 : i32
    %c0_i32_0 = arith.constant 0 : i32
    %c0_i32_1 = arith.constant 0 : i32
    return %c0_i32, %c0_i32_0 : i32, i32
  }
  func.func @transform_7(%arg0: i32) -> (i32, i32) {
    %c0_i32 = arith.constant 0 : i32
    %c0_i32_0 = arith.constant 0 : i32
    %c0_i32_1 = arith.constant 0 : i32
    return %c0_i32, %c0_i32_0 : i32, i32
  }
  func.func @transform_8(%arg0: i32) -> (i32, i32, i32) {
    %c0_i32 = arith.constant 0 : i32
    %c0_i32_0 = arith.constant 0 : i32
    %c0_i32_1 = arith.constant 0 : i32
    %c0_i32_2 = arith.constant 0 : i32
    return %c0_i32, %c0_i32_0, %c0_i32_1 : i32, i32, i32
  }
  func.func @transform_9(%arg0: i32) -> (i32, i32) {
    %c0_i32 = arith.constant 0 : i32
    %c0_i32_0 = arith.constant 0 : i32
    %c0_i32_1 = arith.constant 0 : i32
    return %c0_i32, %c0_i32_0 : i32, i32
  }
  func.func @transform_10(%arg0: i32) -> (i32, i32) {
    %c0_i32 = arith.constant 0 : i32
    %c0_i32_0 = arith.constant 0 : i32
    %c0_i32_1 = arith.constant 0 : i32
    return %c0_i32, %c0_i32_0 : i32, i32
  }
  func.func @transform_11(%arg0: i32) -> (i32, i32) {
    %c0_i32 = arith.constant 0 : i32
    %c0_i32_0 = arith.constant 0 : i32
    %c0_i32_1 = arith.constant 0 : i32
    return %c0_i32, %c0_i32_0 : i32, i32
  }
  func.func @transform_12(%arg0: i32) -> (i32, i32) {
    %c0_i32 = arith.constant 0 : i32
    %c0_i32_0 = arith.constant 0 : i32
    %c0_i32_1 = arith.constant 0 : i32
    return %c0_i32, %c0_i32_0 : i32, i32
  }
  func.func @transform_13(%arg0: i32) -> (i32, i32) {
    %c0_i32 = arith.constant 0 : i32
    %c0_i32_0 = arith.constant 0 : i32
    %c0_i32_1 = arith.constant 0 : i32
    return %c0_i32, %c0_i32_0 : i32, i32
  }
  func.func @transform_14(%arg0: i32) -> (i32, i32) {
    %c0_i32 = arith.constant 0 : i32
    %c0_i32_0 = arith.constant 0 : i32
    %c0_i32_1 = arith.constant 0 : i32
    return %c0_i32, %c0_i32_0 : i32, i32
  }
  func.func @transform_15(%arg0: i32) -> (i32, i32) {
    %c0_i32 = arith.constant 0 : i32
    %c0_i32_0 = arith.constant 0 : i32
    %c0_i32_1 = arith.constant 0 : i32
    return %c0_i32, %c0_i32_0 : i32, i32
  }
  func.func @transform_16(%arg0: i32) -> (i32, i32) {
    %c0_i32 = arith.constant 0 : i32
    %c0_i32_0 = arith.constant 0 : i32
    %c0_i32_1 = arith.constant 0 : i32
    return %c0_i32, %c0_i32_0 : i32, i32
  }
  func.func @transform_17(%arg0: i32) -> (i32, i32) {
    %c0_i32 = arith.constant 0 : i32
    %c0_i32_0 = arith.constant 0 : i32
    %c0_i32_1 = arith.constant 0 : i32
    return %c0_i32, %c0_i32_0 : i32, i32
  }
  func.func @transform_18(%arg0: i32) -> (i32, i32) {
    %c0_i32 = arith.constant 0 : i32
    %c0_i32_0 = arith.constant 0 : i32
    %c0_i32_1 = arith.constant 0 : i32
    return %c0_i32, %c0_i32_0 : i32, i32
  }
  func.func @transform_19(%arg0: i32) -> (i32, i32) {
    %c0_i32 = arith.constant 0 : i32
    %c0_i32_0 = arith.constant 0 : i32
    return %arg0, %c0_i32 : i32, i32
  }
  func.func @transform_20(%arg0: i32) -> (i32, i32) {
    %c0_i32 = arith.constant 0 : i32
    %c0_i32_0 = arith.constant 0 : i32
    return %arg0, %c0_i32 : i32, i32
  }
}

</mosaic_0001>

<llo_original>
// kernel: tpu_custom_call.1
$region0: #{tpu_custom_call.1}
  #allocation0 [shape = 'u32[]', space=smem, size = 0x4, offset = 0x4, fixed_abs, tag = 'smem constant byte address 0x4 - core index']
  #allocation1 [shape = 'u32[72,128]{1,0:T(1,128)}', space=vmem, size = 0x9000, scoped, tag = 'internal scratch']
  %s0 = inlined_call_operand.hbm [shape: f32[2,2,8,768], index: 0, kind: input, shape index: {}]
  %s1 = inlined_call_operand.hbm [shape: f32[2,2,1,768], index: 1, kind: input, shape index: {}]
  %s2 = inlined_call_operand.hbm [shape: f32[2,128], index: 2, kind: input, shape index: {}]
  %s3 = inlined_call_operand.hbm [shape: f32[2,128], index: 3, kind: input, shape index: {}]
  %s4 = inlined_call_operand.hbm [shape: f32[768,1536], index: 4, kind: input, shape index: {}]
  %s5 = inlined_call_operand.hbm [shape: f32[1,1536], index: 5, kind: input, shape index: {}]
  %s6 = inlined_call_operand.hbm [shape: f32[512,768], index: 6, kind: input, shape index: {}]
  %s7 = inlined_call_operand.hbm [shape: f32[1,768], index: 7, kind: input, shape index: {}]
  %s8 = inlined_call_operand.hbm [shape: f32[3,768,768], index: 8, kind: input, shape index: {}]
  %s9 = inlined_call_operand.hbm [shape: f32[1,768], index: 9, kind: input, shape index: {}]
  %s10 = inlined_call_operand.hbm [shape: f32[768,128], index: 10, kind: input, shape index: {}]
  %s11 = inlined_call_operand.hbm [shape: f32[1,128], index: 11, kind: input, shape index: {}]
  %s12 = inlined_call_operand.hbm [shape: f32[128,128], index: 12, kind: input, shape index: {}]
  %s13 = inlined_call_operand.hbm [shape: f32[1,128], index: 13, kind: input, shape index: {}]
  %s14 = inlined_call_operand.hbm [shape: f32[128,128], index: 14, kind: input, shape index: {}]
  %s15 = inlined_call_operand.hbm [shape: f32[1,128], index: 15, kind: input, shape index: {}]
  %s16 = inlined_call_operand.hbm [shape: f32[128,128], index: 16, kind: input, shape index: {}]
  %s17 = inlined_call_operand.hbm [shape: f32[128,128], index: 17, kind: input, shape index: {}]
  %s18 = inlined_call_operand.hbm [shape: f32[1,128], index: 18, kind: input, shape index: {}]
  %s19 = inlined_call_operand.hbm [shape: f32[2,128], index: 19, kind: output, shape index: {0}]
  %s20 = inlined_call_operand.hbm [shape: f32[2,128], index: 20, kind: output, shape index: {1}]
  %21 = xla_tuple %s19, %s20
  %s22 = sld [smem:[#allocation0]]
  $region170: #{tpu_custom_call.1} parent=0
    _
  %s24 = ssub.s32 1, %s22
  %s25 = scalar_select 0, %s24, %s22
  $region1: #{tpu_custom_call.1} parent=0
    #allocation2 [shape = 'u8[49152]{0}', space=vmem, size = 0xc000, scoped, tag = 'input window, operand 0, single buffered']
    #allocation3 [shape = 's32[1]{0}', space=sflag, size = 0x4, scoped, tag = 'scoped memory for tpu_custom_call.1']
    #allocation4 [shape = 's32[1]{0}', space=sflag, size = 0x4, scoped, tag = 'scoped memory for tpu_custom_call.1']
    #allocation5 [shape = 'u8[12288]{0}', space=vmem, size = 0x3000, scoped, tag = 'input window, operand 1, single buffered']
    #allocation6 [shape = 's32[1]{0}', space=sflag, size = 0x4, scoped, tag = 'scoped memory for tpu_custom_call.1']
    #allocation7 [shape = 'u8[1024]{0}', space=vmem, size = 0x400, scoped, tag = 'input window, operand 2, single buffered']
    #allocation8 [shape = 'u8[1024]{0}', space=vmem, size = 0x400, scoped, tag = 'input window, operand 3, single buffered']
    #allocation9 [shape = 's32[1]{0}', space=sflag, size = 0x4, scoped, tag = 'scoped memory for tpu_custom_call.1']
    #allocation10 [shape = 'u8[4718592]{0}', space=vmem, size = 0x480000, scoped, tag = 'input window, operand 4, single buffered']
    #allocation11 [shape = 'u8[6144]{0}', space=vmem, size = 0x1800, scoped, tag = 'input window, operand 5, single buffered']
    #allocation12 [shape = 's32[1]{0}', space=sflag, size = 0x4, scoped, tag = 'scoped memory for tpu_custom_call.1']
    #allocation13 [shape = 'u8[1572864]{0}', space=vmem, size = 0x180000, scoped, tag = 'input window, operand 6, single buffered']
    #allocation14 [shape = 'u8[3072]{0}', space=vmem, size = 0xc00, scoped, tag = 'input window, operand 7, single buffered']
    #allocation15 [shape = 's32[1]{0}', space=sflag, size = 0x4, scoped, tag = 'scoped memory for tpu_custom_call.1']
    #allocation16 [shape = 'u8[7077888]{0}', space=vmem, size = 0x6c0000, scoped, tag = 'input window, operand 8, single buffered']
    #allocation17 [shape = 'u8[3072]{0}', space=vmem, size = 0xc00, scoped, tag = 'input window, operand 9, single buffered']
    #allocation18 [shape = 's32[1]{0}', space=sflag, size = 0x4, scoped, tag = 'scoped memory for tpu_custom_call.1']
    #allocation19 [shape = 'u8[393216]{0}', space=vmem, size = 0x60000, scoped, tag = 'input window, operand 10, single buffered']
    #allocation20 [shape = 'u8[512]{0}', space=vmem, size = 0x400, scoped, tag = 'input window, operand 11, single buffered']
    #allocation21 [shape = 's32[1]{0}', space=sflag, size = 0x4, scoped, tag = 'scoped memory for tpu_custom_call.1']
    #allocation22 [shape = 'u8[65536]{0}', space=vmem, size = 0x10000, scoped, tag = 'input window, operand 12, single buffered']
    #allocation23 [shape = 'u8[512]{0}', space=vmem, size = 0x400, scoped, tag = 'input window, operand 13, single buffered']
    #allocation24 [shape = 's32[1]{0}', space=sflag, size = 0x4, scoped, tag = 'scoped memory for tpu_custom_call.1']
    #allocation25 [shape = 'u8[65536]{0}', space=vmem, size = 0x10000, scoped, tag = 'input window, operand 14, single buffered']
    #allocation26 [shape = 'u8[512]{0}', space=vmem, size = 0x400, scoped, tag = 'input window, operand 15, single buffered']
    #allocation27 [shape = 's32[1]{0}', space=sflag, size = 0x4, scoped, tag = 'scoped memory for tpu_custom_call.1']
    #allocation28 [shape = 'u8[65536]{0}', space=vmem, size = 0x10000, scoped, tag = 'input window, operand 16, single buffered']
    #allocation29 [shape = 'u8[65536]{0}', space=vmem, size = 0x10000, scoped, tag = 'input window, operand 17, single buffered']
    #allocation30 [shape = 's32[1]{0}', space=sflag, size = 0x4, scoped, tag = 'scoped memory for tpu_custom_call.1']
    #allocation31 [shape = 'u8[512]{0}', space=vmem, size = 0x400, scoped, tag = 'input window, operand 18, single buffered']
    #allocation32 [shape = 'u8[1024]{0}', space=vmem, size = 0x400, scoped, tag = 'output window, operand 0, single buffered']
    #allocation33 [shape = 'u8[1024]{0}', space=vmem, size = 0x400, scoped, tag = 'output window, operand 1, single buffered']
    #allocation34 [shape = 's32[1]{0}', space=sflag, size = 0x4, scoped, tag = 'scoped memory for tpu_custom_call.1']
    %26 = vsyncpa [#allocation3], 0
    %27 = vsyncpa [#allocation6], 0
    %28 = vsyncpa [#allocation9], 0
    %29 = vsyncpa [#allocation12], 0
    %30 = vsyncpa [#allocation15], 0
    %31 = vsyncpa [#allocation18], 0
    %32 = vsyncpa [#allocation21], 0
    %33 = vsyncpa [#allocation24], 0
    %34 = vsyncpa [#allocation27], 0
    %35 = vsyncpa [#allocation30], 0
    %36 = vsyncpa [#allocation4], 0
    %37 = vsyncpa [#allocation34], 0
    // Predicated region
    $region2: #{tpu_custom_call.1} parent=1 // pred_check
      _
    $region3: #{tpu_custom_call.1} parent=1 // pred_check_branch
      %39 = sbr.rel (0) target = $region5
    $region4: #{tpu_custom_call.1} parent=1 // pred_region
      %41 = vsyncadd [#allocation3], 0
      %s42 = sshll.u32 %s0, 4
      %s43 = int_to_ptr.hbm [resolvable:$true] %s42
      %s44 = sshll.u32 [#allocation2], 4
      %s45 = int_to_ptr.vmem [resolvable:$true] %s44
      %50 = dma.hbm_to_vmem [thread:$0]  %s43, 1536, %s45, [#allocation3], 1536, 768, 48
    $region5: #{tpu_custom_call.1} parent=1 // pred_fallthru
      _
    // Predicated region
    $region6: #{tpu_custom_call.1} parent=1 // pred_check
      _
    $region7: #{tpu_custom_call.1} parent=1 // pred_check_branch
      %52 = sbr.rel (0) target = $region9
    $region8: #{tpu_custom_call.1} parent=1 // pred_region
      %54 = vsyncadd [#allocation6], 0
      %s55 = sshll.u32 %s1, 4
      %s56 = int_to_ptr.hbm [resolvable:$true] %s55
      %s57 = sshll.u32 [#allocation5], 4
      %s58 = int_to_ptr.vmem [resolvable:$true] %s57
      %63 = dma.hbm_to_vmem [thread:$0]  %s56, 384, %s58, [#allocation6], 96, 96, 6
    $region9: #{tpu_custom_call.1} parent=1 // pred_fallthru
      _
    // Predicated region
    $region10: #{tpu_custom_call.1} parent=1 // pred_check
      _
    $region11: #{tpu_custom_call.1} parent=1 // pred_check_branch
      %65 = sbr.rel (0) target = $region13
    $region12: #{tpu_custom_call.1} parent=1 // pred_region
      %67 = vsyncadd [#allocation6], 0
      %s69 = sshll.u32 %s2, 4
      %s70 = int_to_ptr.hbm [resolvable:$true] %s69
      %s71 = sshll.u32 [#allocation7], 4
      %s72 = int_to_ptr.vmem [resolvable:$true] %s71
      %74 = dma.hbm_to_vmem [thread:$0]  %s70, 32, %s72, [#allocation6]
    $region13: #{tpu_custom_call.1} parent=1 // pred_fallthru
      _
    // Predicated region
    $region14: #{tpu_custom_call.1} parent=1 // pred_check
      _
    $region15: #{tpu_custom_call.1} parent=1 // pred_check_branch
      %76 = sbr.rel (0) target = $region17
    $region16: #{tpu_custom_call.1} parent=1 // pred_region
      %78 = vsyncadd [#allocation9], 0
      %s80 = sshll.u32 %s3, 4
      %s81 = int_to_ptr.hbm [resolvable:$true] %s80
      %s82 = sshll.u32 [#allocation8], 4
      %s83 = int_to_ptr.vmem [resolvable:$true] %s82
      %85 = dma.hbm_to_vmem [thread:$0]  %s81, 32, %s83, [#allocation9]
    $region17: #{tpu_custom_call.1} parent=1 // pred_fallthru
      _
    // Predicated region
    $region18: #{tpu_custom_call.1} parent=1 // pred_check
      _
    $region19: #{tpu_custom_call.1} parent=1 // pred_check_branch
      %87 = sbr.rel (0) target = $region21
    $region20: #{tpu_custom_call.1} parent=1 // pred_region
      %89 = vsyncadd [#allocation9], 0
      %s90 = sshll.u32 %s4, 4
      %s91 = int_to_ptr.hbm [resolvable:$true] %s90
      %s92 = sshll.u32 [#allocation10], 4
      %s93 = int_to_ptr.vmem [resolvable:$true] %s92
      %98 = dma.hbm_to_vmem [thread:$0]  %s91, 147456, %s93, [#allocation9], 1536, 1536, 96
    $region21: #{tpu_custom_call.1} parent=1 // pred_fallthru
      _
    // Predicated region
    $region22: #{tpu_custom_call.1} parent=1 // pred_check
      _
    $region23: #{tpu_custom_call.1} parent=1 // pred_check_branch
      %100 = sbr.rel (0) target = $region25
    $region24: #{tpu_custom_call.1} parent=1 // pred_region
      %102 = vsyncadd [#allocation12], 0
      %s104 = sshll.u32 %s5, 4
      %s105 = int_to_ptr.hbm [resolvable:$true] %s104
      %s106 = sshll.u32 [#allocation11], 4
      %s107 = int_to_ptr.vmem [resolvable:$true] %s106
      %109 = dma.hbm_to_vmem [thread:$0]  %s105, 192, %s107, [#allocation12]
    $region25: #{tpu_custom_call.1} parent=1 // pred_fallthru
      _
    // Predicated region
    $region26: #{tpu_custom_call.1} parent=1 // pred_check
      _
    $region27: #{tpu_custom_call.1} parent=1 // pred_check_branch
      %111 = sbr.rel (0) target = $region29
    $region28: #{tpu_custom_call.1} parent=1 // pred_region
      %113 = vsyncadd [#allocation12], 0
      %s114 = sshll.u32 %s6, 4
      %s115 = int_to_ptr.hbm [resolvable:$true] %s114
      %s116 = sshll.u32 [#allocation13], 4
      %s117 = int_to_ptr.vmem [resolvable:$true] %s116
      %122 = dma.hbm_to_vmem [thread:$0]  %s115, 49152, %s117, [#allocation12], 768, 768, 48
    $region29: #{tpu_custom_call.1} parent=1 // pred_fallthru
      _
    // Predicated region
    $region30: #{tpu_custom_call.1} parent=1 // pred_check
      _
    $region31: #{tpu_custom_call.1} parent=1 // pred_check_branch
      %124 = sbr.rel (0) target = $region33
    $region32: #{tpu_custom_call.1} parent=1 // pred_region
      %126 = vsyncadd [#allocation15], 0
      %s128 = sshll.u32 %s7, 4
      %s129 = int_to_ptr.hbm [resolvable:$true] %s128
      %s130 = sshll.u32 [#allocation14], 4
      %s131 = int_to_ptr.vmem [resolvable:$true] %s130
      %133 = dma.hbm_to_vmem [thread:$0]  %s129, 96, %s131, [#allocation15]
    $region33: #{tpu_custom_call.1} parent=1 // pred_fallthru
      _
    // Predicated region
    $region34: #{tpu_custom_call.1} parent=1 // pred_check
      _
    $region35: #{tpu_custom_call.1} parent=1 // pred_check_branch
      %135 = sbr.rel (0) target = $region37
    $region36: #{tpu_custom_call.1} parent=1 // pred_region
      %137 = vsyncadd [#allocation15], 0
      %s138 = sshll.u32 %s8, 4
      %s139 = int_to_ptr.hbm [resolvable:$true] %s138
      %s140 = sshll.u32 [#allocation16], 4
      %s141 = int_to_ptr.vmem [resolvable:$true] %s140
      %146 = dma.hbm_to_vmem [thread:$0]  %s139, 221184, %s141, [#allocation15], 768, 768, 48
    $region37: #{tpu_custom_call.1} parent=1 // pred_fallthru
      _
    // Predicated region
    $region38: #{tpu_custom_call.1} parent=1 // pred_check
      _
    $region39: #{tpu_custom_call.1} parent=1 // pred_check_branch
      %148 = sbr.rel (0) target = $region41
    $region40: #{tpu_custom_call.1} parent=1 // pred_region
      %150 = vsyncadd [#allocation18], 0
      %s152 = sshll.u32 %s9, 4
      %s153 = int_to_ptr.hbm [resolvable:$true] %s152
      %s154 = sshll.u32 [#allocation17], 4
      %s155 = int_to_ptr.vmem [resolvable:$true] %s154
      %157 = dma.hbm_to_vmem [thread:$0]  %s153, 96, %s155, [#allocation18]
    $region41: #{tpu_custom_call.1} parent=1 // pred_fallthru
      _
    // Predicated region
    $region42: #{tpu_custom_call.1} parent=1 // pred_check
      _
    $region43: #{tpu_custom_call.1} parent=1 // pred_check_branch
      %159 = sbr.rel (0) target = $region45
    $region44: #{tpu_custom_call.1} parent=1 // pred_region
      %161 = vsyncadd [#allocation18], 0
      %s162 = sshll.u32 %s10, 4
      %s163 = int_to_ptr.hbm [resolvable:$true] %s162
      %s164 = sshll.u32 [#allocation19], 4
      %s165 = int_to_ptr.vmem [resolvable:$true] %s164
      %170 = dma.hbm_to_vmem [thread:$0]  %s163, 12288, %s165, [#allocation18], 128, 128, 8
    $region45: #{tpu_custom_call.1} parent=1 // pred_fallthru
      _
    // Predicated region
    $region46: #{tpu_custom_call.1} parent=1 // pred_check
      _
    $region47: #{tpu_custom_call.1} parent=1 // pred_check_branch
      %172 = sbr.rel (0) target = $region49
    $region48: #{tpu_custom_call.1} parent=1 // pred_region
      %174 = vsyncadd [#allocation21], 0
      %s176 = sshll.u32 %s11, 4
      %s177 = int_to_ptr.hbm [resolvable:$true] %s176
      %s178 = sshll.u32 [#allocation20], 4
      %s179 = int_to_ptr.vmem [resolvable:$true] %s178
      %181 = dma.hbm_to_vmem [thread:$0]  %s177, 16, %s179, [#allocation21]
    $region49: #{tpu_custom_call.1} parent=1 // pred_fallthru
      _
    // Predicated region
    $region50: #{tpu_custom_call.1} parent=1 // pred_check
      _
    $region51: #{tpu_custom_call.1} parent=1 // pred_check_branch
      %183 = sbr.rel (0) target = $region53
    $region52: #{tpu_custom_call.1} parent=1 // pred_region
      %185 = vsyncadd [#allocation21], 0
      %s186 = sshll.u32 %s12, 4
      %s187 = int_to_ptr.hbm [resolvable:$true] %s186
      %s188 = sshll.u32 [#allocation22], 4
      %s189 = int_to_ptr.vmem [resolvable:$true] %s188
      %194 = dma.hbm_to_vmem [thread:$0]  %s187, 2048, %s189, [#allocation21], 128, 128, 8
    $region53: #{tpu_custom_call.1} parent=1 // pred_fallthru
      _
    // Predicated region
    $region54: #{tpu_custom_call.1} parent=1 // pred_check
      _
    $region55: #{tpu_custom_call.1} parent=1 // pred_check_branch
      %196 = sbr.rel (0) target = $region57
    $region56: #{tpu_custom_call.1} parent=1 // pred_region
      %198 = vsyncadd [#allocation24], 0
      %s200 = sshll.u32 %s13, 4
      %s201 = int_to_ptr.hbm [resolvable:$true] %s200
      %s202 = sshll.u32 [#allocation23], 4
      %s203 = int_to_ptr.vmem [resolvable:$true] %s202
      %205 = dma.hbm_to_vmem [thread:$0]  %s201, 16, %s203, [#allocation24]
    $region57: #{tpu_custom_call.1} parent=1 // pred_fallthru
      _
    // Predicated region
    $region58: #{tpu_custom_call.1} parent=1 // pred_check
      _
    $region59: #{tpu_custom_call.1} parent=1 // pred_check_branch
      %207 = sbr.rel (0) target = $region61
    $region60: #{tpu_custom_call.1} parent=1 // pred_region
      %209 = vsyncadd [#allocation24], 0
      %s210 = sshll.u32 %s14, 4
      %s211 = int_to_ptr.hbm [resolvable:$true] %s210
      %s212 = sshll.u32 [#allocation25], 4
      %s213 = int_to_ptr.vmem [resolvable:$true] %s212
      %218 = dma.hbm_to_vmem [thread:$0]  %s211, 2048, %s213, [#allocation24], 128, 128, 8
    $region61: #{tpu_custom_call.1} parent=1 // pred_fallthru
      _
    // Predicated region
    $region62: #{tpu_custom_call.1} parent=1 // pred_check
      _
    $region63: #{tpu_custom_call.1} parent=1 // pred_check_branch
      %220 = sbr.rel (0) target = $region65
    $region64: #{tpu_custom_call.1} parent=1 // pred_region
      %222 = vsyncadd [#allocation27], 0
      %s224 = sshll.u32 %s15, 4
      %s225 = int_to_ptr.hbm [resolvable:$true] %s224
      %s226 = sshll.u32 [#allocation26], 4
      %s227 = int_to_ptr.vmem [resolvable:$true] %s226
      %229 = dma.hbm_to_vmem [thread:$0]  %s225, 16, %s227, [#allocation27]
    $region65: #{tpu_custom_call.1} parent=1 // pred_fallthru
      _
    // Predicated region
    $region66: #{tpu_custom_call.1} parent=1 // pred_check
      _
    $region67: #{tpu_custom_call.1} parent=1 // pred_check_branch
      %231 = sbr.rel (0) target = $region69
    $region68: #{tpu_custom_call.1} parent=1 // pred_region
      %233 = vsyncadd [#allocation27], 0
      %s234 = sshll.u32 %s16, 4
      %s235 = int_to_ptr.hbm [resolvable:$true] %s234
      %s236 = sshll.u32 [#allocation28], 4
      %s237 = int_to_ptr.vmem [resolvable:$true] %s236
      %242 = dma.hbm_to_vmem [thread:$0]  %s235, 2048, %s237, [#allocation27], 128, 128, 8
    $region69: #{tpu_custom_call.1} parent=1 // pred_fallthru
      _
    // Predicated region
    $region70: #{tpu_custom_call.1} parent=1 // pred_check
      _
    $region71: #{tpu_custom_call.1} parent=1 // pred_check_branch
      %244 = sbr.rel (0) target = $region73
    $region72: #{tpu_custom_call.1} parent=1 // pred_region
      %246 = vsyncadd [#allocation30], 0
      %s247 = sshll.u32 %s17, 4
      %s248 = int_to_ptr.hbm [resolvable:$true] %s247
      %s249 = sshll.u32 [#allocation29], 4
      %s250 = int_to_ptr.vmem [resolvable:$true] %s249
      %255 = dma.hbm_to_vmem [thread:$0]  %s248, 2048, %s250, [#allocation30], 128, 128, 8
    $region73: #{tpu_custom_call.1} parent=1 // pred_fallthru
      _
    // Predicated region
    $region74: #{tpu_custom_call.1} parent=1 // pred_check
      _
    $region75: #{tpu_custom_call.1} parent=1 // pred_check_branch
      %257 = sbr.rel (0) target = $region77
    $region76: #{tpu_custom_call.1} parent=1 // pred_region
      %259 = vsyncadd [#allocation30], 0
      %s261 = sshll.u32 %s18, 4
      %s262 = int_to_ptr.hbm [resolvable:$true] %s261
      %s263 = sshll.u32 [#allocation31], 4
      %s264 = int_to_ptr.vmem [resolvable:$true] %s263
      %266 = dma.hbm_to_vmem [thread:$0]  %s262, 16, %s264, [#allocation30]
    $region77: #{tpu_custom_call.1} parent=1 // pred_fallthru
      _
    // Predicated region
    $region78: #{tpu_custom_call.1} parent=1 // pred_check
      _
    $region79: #{tpu_custom_call.1} parent=1 // pred_check_branch
      %268 = sbr.rel (0) target = $region81
    $region80: #{tpu_custom_call.1} parent=1 // pred_region
      %270 = dma.done [#allocation3], 1536
    $region81: #{tpu_custom_call.1} parent=1 // pred_fallthru
      _
    // Predicated region
    $region82: #{tpu_custom_call.1} parent=1 // pred_check
      _
    $region83: #{tpu_custom_call.1} parent=1 // pred_check_branch
      %272 = sbr.rel (0) target = $region85
    $region84: #{tpu_custom_call.1} parent=1 // pred_region
      %274 = dma.done [#allocation6], 384
    $region85: #{tpu_custom_call.1} parent=1 // pred_fallthru
      _
    // Predicated region
    $region86: #{tpu_custom_call.1} parent=1 // pred_check
      _
    $region87: #{tpu_custom_call.1} parent=1 // pred_check_branch
      %276 = sbr.rel (0) target = $region89
    $region88: #{tpu_custom_call.1} parent=1 // pred_region
      %278 = dma.done [#allocation6], 32
    $region89: #{tpu_custom_call.1} parent=1 // pred_fallthru
      _
    // Predicated region
    $region90: #{tpu_custom_call.1} parent=1 // pred_check
      _
    $region91: #{tpu_custom_call.1} parent=1 // pred_check_branch
      %280 = sbr.rel (0) target = $region93
    $region92: #{tpu_custom_call.1} parent=1 // pred_region
      %282 = dma.done [#allocation9], 32
    $region93: #{tpu_custom_call.1} parent=1 // pred_fallthru
      _
    // Predicated region
    $region94: #{tpu_custom_call.1} parent=1 // pred_check
      _
    $region95: #{tpu_custom_call.1} parent=1 // pred_check_branch
      %284 = sbr.rel (0) target = $region97
    $region96: #{tpu_custom_call.1} parent=1 // pred_region
      %286 = dma.done [#allocation9], 147456
    $region97: #{tpu_custom_call.1} parent=1 // pred_fallthru
      _
    // Predicated region
    $region98: #{tpu_custom_call.1} parent=1 // pred_check
      _
    $region99: #{tpu_custom_call.1} parent=1 // pred_check_branch
      %288 = sbr.rel (0) target = $region101
    $region100: #{tpu_custom_call.1} parent=1 // pred_region
      %290 = dma.done [#allocation12], 192
    $region101: #{tpu_custom_call.1} parent=1 // pred_fallthru
      _
    // Predicated region
    $region102: #{tpu_custom_call.1} parent=1 // pred_check
      _
    $region103: #{tpu_custom_call.1} parent=1 // pred_check_branch
      %292 = sbr.rel (0) target = $region105
    $region104: #{tpu_custom_call.1} parent=1 // pred_region
      %294 = dma.done [#allocation12], 49152
    $region105: #{tpu_custom_call.1} parent=1 // pred_fallthru
      _
    // Predicated region
    $region106: #{tpu_custom_call.1} parent=1 // pred_check
      _
    $region107: #{tpu_custom_call.1} parent=1 // pred_check_branch
      %296 = sbr.rel (0) target = $region109
    $region108: #{tpu_custom_call.1} parent=1 // pred_region
      %298 = dma.done [#allocation15], 96
    $region109: #{tpu_custom_call.1} parent=1 // pred_fallthru
      _
    // Predicated region
    $region110: #{tpu_custom_call.1} parent=1 // pred_check
      _
    $region111: #{tpu_custom_call.1} parent=1 // pred_check_branch
      %300 = sbr.rel (0) target = $region113
    $region112: #{tpu_custom_call.1} parent=1 // pred_region
      %302 = dma.done [#allocation15], 221184
    $region113: #{tpu_custom_call.1} parent=1 // pred_fallthru
      _
    // Predicated region
    $region114: #{tpu_custom_call.1} parent=1 // pred_check
      _
    $region115: #{tpu_custom_call.1} parent=1 // pred_check_branch
      %304 = sbr.rel (0) target = $region117
    $region116: #{tpu_custom_call.1} parent=1 // pred_region
      %306 = dma.done [#allocation18], 96
    $region117: #{tpu_custom_call.1} parent=1 // pred_fallthru
      _
    // Predicated region
    $region118: #{tpu_custom_call.1} parent=1 // pred_check
      _
    $region119: #{tpu_custom_call.1} parent=1 // pred_check_branch
      %308 = sbr.rel (0) target = $region121
    $region120: #{tpu_custom_call.1} parent=1 // pred_region
      %310 = dma.done [#allocation18], 12288
    $region121: #{tpu_custom_call.1} parent=1 // pred_fallthru
      _
    // Predicated region
    $region122: #{tpu_custom_call.1} parent=1 // pred_check
      _
    $region123: #{tpu_custom_call.1} parent=1 // pred_check_branch
      %312 = sbr.rel (0) target = $region125
    $region124: #{tpu_custom_call.1} parent=1 // pred_region
      %314 = dma.done [#allocation21], 16
    $region125: #{tpu_custom_call.1} parent=1 // pred_fallthru
      _
    // Predicated region
    $region126: #{tpu_custom_call.1} parent=1 // pred_check
      _
    $region127: #{tpu_custom_call.1} parent=1 // pred_check_branch
      %316 = sbr.rel (0) target = $region129
    $region128: #{tpu_custom_call.1} parent=1 // pred_region
      %318 = dma.done [#allocation21], 2048
    $region129: #{tpu_custom_call.1} parent=1 // pred_fallthru
      _
    // Predicated region
    $region130: #{tpu_custom_call.1} parent=1 // pred_check
      _
    $region131: #{tpu_custom_call.1} parent=1 // pred_check_branch
      %320 = sbr.rel (0) target = $region133
    $region132: #{tpu_custom_call.1} parent=1 // pred_region
      %322 = dma.done [#allocation24], 16
    $region133: #{tpu_custom_call.1} parent=1 // pred_fallthru
      _
    // Predicated region
    $region134: #{tpu_custom_call.1} parent=1 // pred_check
      _
    $region135: #{tpu_custom_call.1} parent=1 // pred_check_branch
      %324 = sbr.rel (0) target = $region137
    $region136: #{tpu_custom_call.1} parent=1 // pred_region
      %326 = dma.done [#allocation24], 2048
    $region137: #{tpu_custom_call.1} parent=1 // pred_fallthru
      _
    // Predicated region
    $region138: #{tpu_custom_call.1} parent=1 // pred_check
      _
    $region139: #{tpu_custom_call.1} parent=1 // pred_check_branch
      %328 = sbr.rel (0) target = $region141
    $region140: #{tpu_custom_call.1} parent=1 // pred_region
      %330 = dma.done [#allocation27], 16
    $region141: #{tpu_custom_call.1} parent=1 // pred_fallthru
      _
    // Predicated region
    $region142: #{tpu_custom_call.1} parent=1 // pred_check
      _
    $region143: #{tpu_custom_call.1} parent=1 // pred_check_branch
      %332 = sbr.rel (0) target = $region145
    $region144: #{tpu_custom_call.1} parent=1 // pred_region
      %334 = dma.done [#allocation27], 2048
    $region145: #{tpu_custom_call.1} parent=1 // pred_fallthru
      _
    // Predicated region
    $region146: #{tpu_custom_call.1} parent=1 // pred_check
      _
    $region147: #{tpu_custom_call.1} parent=1 // pred_check_branch
      %336 = sbr.rel (0) target = $region149
    $region148: #{tpu_custom_call.1} parent=1 // pred_region
      %338 = dma.done [#allocation30], 2048
    $region149: #{tpu_custom_call.1} parent=1 // pred_fallthru
      _
    // Predicated region
    $region150: #{tpu_custom_call.1} parent=1 // pred_check
      _
    $region151: #{tpu_custom_call.1} parent=1 // pred_check_branch
      %340 = sbr.rel (0) target = $region153
    $region152: #{tpu_custom_call.1} parent=1 // pred_region
      %342 = dma.done [#allocation30], 16
    $region153: #{tpu_custom_call.1} parent=1 // pred_fallthru
      _
    %v343 = vld [vmem:[#allocation7] sm:$0x3]
    %v344 = vld [vmem:[#allocation22] sm:$0xff]
    %v345 = vld [vmem:[#allocation22 + $0x8] sm:$0xff]
    %v346 = vld [vmem:[#allocation22 + $0x10] sm:$0xff]
    %v347 = vld [vmem:[#allocation22 + $0x18] sm:$0xff]
    %v348 = vld [vmem:[#allocation22 + $0x20] sm:$0xff]
    %v349 = vld [vmem:[#allocation22 + $0x28] sm:$0xff]
    %v350 = vld [vmem:[#allocation22 + $0x30] sm:$0xff]
    %v351 = vld [vmem:[#allocation22 + $0x38] sm:$0xff]
    %v352 = vld [vmem:[#allocation22 + $0x40] sm:$0xff]
    %v353 = vld [vmem:[#allocation22 + $0x48] sm:$0xff]
    %v354 = vld [vmem:[#allocation22 + $0x50] sm:$0xff]
    %v355 = vld [vmem:[#allocation22 + $0x58] sm:$0xff]
    %v356 = vld [vmem:[#allocation22 + $0x60] sm:$0xff]
    %v357 = vld [vmem:[#allocation22 + $0x68] sm:$0xff]
    %v358 = vld [vmem:[#allocation22 + $0x70] sm:$0xff]
    %v359 = vld [vmem:[#allocation22 + $0x78] sm:$0xff]
    %v360 = vld [vmem:[#allocation23] sm:$0x1]
    %v362 = vperm.slane %v360, 0
    %364 = vmatpush.msra.mxu0 %v359
    %365 = vmatpush.msra.mxu0 %v358
    %366 = vmatpush.msra.mxu0 %v357
    %367 = vmatpush.msra.mxu0 %v356
    %368 = vmatpush.msra.mxu0 %v355
    %369 = vmatpush.msra.mxu0 %v354
    %370 = vmatpush.msra.mxu0 %v353
    %371 = vmatpush.msra.mxu0 %v352
    %372 = vmatpush.msra.mxu0 %v351
    %373 = vmatpush.msra.mxu0 %v350
    %374 = vmatpush.msra.mxu0 %v349
    %375 = vmatpush.msra.mxu0 %v348
    %376 = vmatpush.msra.mxu0 %v347
    %377 = vmatpush.msra.mxu0 %v346
    %378 = vmatpush.msra.mxu0 %v345
    %379 = vmatpush.msra.mxu0 %v344
    %380 = vmatmul.f32.gmra.mxu0 %v343
    %v381 = vpop.f32.mrf.mxu0
    %v382 = vadd.f32 %v362, %v381
    %383 = vdwg.mxu0
    %v384 = vld [vmem:[#allocation8] sm:$0x3]
    %v385 = vld [vmem:[#allocation25] sm:$0xff]
    %v386 = vld [vmem:[#allocation25 + $0x8] sm:$0xff]
    %v387 = vld [vmem:[#allocation25 + $0x10] sm:$0xff]
    %v388 = vld [vmem:[#allocation25 + $0x18] sm:$0xff]
    %v389 = vld [vmem:[#allocation25 + $0x20] sm:$0xff]
    %v390 = vld [vmem:[#allocation25 + $0x28] sm:$0xff]
    %v391 = vld [vmem:[#allocation25 + $0x30] sm:$0xff]
    %v392 = vld [vmem:[#allocation25 + $0x38] sm:$0xff]
    %v393 = vld [vmem:[#allocation25 + $0x40] sm:$0xff]
    %v394 = vld [vmem:[#allocation25 + $0x48] sm:$0xff]
    %v395 = vld [vmem:[#allocation25 + $0x50] sm:$0xff]
    %v396 = vld [vmem:[#allocation25 + $0x58] sm:$0xff]
    %v397 = vld [vmem:[#allocation25 + $0x60] sm:$0xff]
    %v398 = vld [vmem:[#allocation25 + $0x68] sm:$0xff]
    %v399 = vld [vmem:[#allocation25 + $0x70] sm:$0xff]
    %v400 = vld [vmem:[#allocation25 + $0x78] sm:$0xff]
    %v401 = vld [vmem:[#allocation26] sm:$0x1]
    %v403 = vperm.slane %v401, 0
    %405 = vmatpush.msra.mxu0 %v400
    %406 = vmatpush.msra.mxu0 %v399
    %407 = vmatpush.msra.mxu0 %v398
    %408 = vmatpush.msra.mxu0 %v397
    %409 = vmatpush.msra.mxu0 %v396
    %410 = vmatpush.msra.mxu0 %v395
    %411 = vmatpush.msra.mxu0 %v394
    %412 = vmatpush.msra.mxu0 %v393
    %413 = vmatpush.msra.mxu0 %v392
    %414 = vmatpush.msra.mxu0 %v391
    %415 = vmatpush.msra.mxu0 %v390
    %416 = vmatpush.msra.mxu0 %v389
    %417 = vmatpush.msra.mxu0 %v388
    %418 = vmatpush.msra.mxu0 %v387
    %419 = vmatpush.msra.mxu0 %v386
    %420 = vmatpush.msra.mxu0 %v385
    %421 = vmatmul.f32.gmra.mxu0 %v384
    %v422 = vpop.f32.mrf.mxu0
    %v423 = vadd.f32 %v403, %v422
    %424 = vdwg.mxu0
    %v425 = vld [vmem:[#allocation28] sm:$0xff]
    %v426 = vld [vmem:[#allocation28 + $0x8] sm:$0xff]
    %v427 = vld [vmem:[#allocation28 + $0x10] sm:$0xff]
    %v428 = vld [vmem:[#allocation28 + $0x18] sm:$0xff]
    %v429 = vld [vmem:[#allocation28 + $0x20] sm:$0xff]
    %v430 = vld [vmem:[#allocation28 + $0x28] sm:$0xff]
    %v431 = vld [vmem:[#allocation28 + $0x30] sm:$0xff]
    %v432 = vld [vmem:[#allocation28 + $0x38] sm:$0xff]
    %v433 = vld [vmem:[#allocation28 + $0x40] sm:$0xff]
    %v434 = vld [vmem:[#allocation28 + $0x48] sm:$0xff]
    %v435 = vld [vmem:[#allocation28 + $0x50] sm:$0xff]
    %v436 = vld [vmem:[#allocation28 + $0x58] sm:$0xff]
    %v437 = vld [vmem:[#allocation28 + $0x60] sm:$0xff]
    %v438 = vld [vmem:[#allocation28 + $0x68] sm:$0xff]
    %v439 = vld [vmem:[#allocation28 + $0x70] sm:$0xff]
    %v440 = vld [vmem:[#allocation28 + $0x78] sm:$0xff]
    %v441 = vld [vmem:[#allocation29] sm:$0xff]
    %v442 = vld [vmem:[#allocation29 + $0x8] sm:$0xff]
    %v443 = vld [vmem:[#allocation29 + $0x10] sm:$0xff]
    %v444 = vld [vmem:[#allocation29 + $0x18] sm:$0xff]
    %v445 = vld [vmem:[#allocation29 + $0x20] sm:$0xff]
    %v446 = vld [vmem:[#allocation29 + $0x28] sm:$0xff]
    %v447 = vld [vmem:[#allocation29 + $0x30] sm:$0xff]
    %v448 = vld [vmem:[#allocation29 + $0x38] sm:$0xff]
    %v449 = vld [vmem:[#allocation29 + $0x40] sm:$0xff]
    %v450 = vld [vmem:[#allocation29 + $0x48] sm:$0xff]
    %v451 = vld [vmem:[#allocation29 + $0x50] sm:$0xff]
    %v452 = vld [vmem:[#allocation29 + $0x58] sm:$0xff]
    %v453 = vld [vmem:[#allocation29 + $0x60] sm:$0xff]
    %v454 = vld [vmem:[#allocation29 + $0x68] sm:$0xff]
    %v455 = vld [vmem:[#allocation29 + $0x70] sm:$0xff]
    %v456 = vld [vmem:[#allocation29 + $0x78] sm:$0xff]
    %457 = vmatpush.msra.mxu0 %v456
    %458 = vmatpush.msra.mxu0 %v455
    %459 = vmatpush.msra.mxu0 %v454
    %460 = vmatpush.msra.mxu0 %v453
    %461 = vmatpush.msra.mxu0 %v452
    %462 = vmatpush.msra.mxu0 %v451
    %463 = vmatpush.msra.mxu0 %v450
    %464 = vmatpush.msra.mxu0 %v449
    %465 = vmatpush.msra.mxu0 %v448
    %466 = vmatpush.msra.mxu0 %v447
    %467 = vmatpush.msra.mxu0 %v446
    %468 = vmatpush.msra.mxu0 %v445
    %469 = vmatpush.msra.mxu0 %v444
    %470 = vmatpush.msra.mxu0 %v443
    %471 = vmatpush.msra.mxu0 %v442
    %472 = vmatpush.msra.mxu0 %v441
    %473 = vmatmul.f32.gmra.mxu0 %v423
    %v474 = vpop.f32.mrf.mxu0
    %v475 = vadd.f32 0.0, %v474
    %476 = vdwg.mxu0
    %477 = vmatpush.msra.mxu0 %v440
    %478 = vmatpush.msra.mxu0 %v439
    %479 = vmatpush.msra.mxu0 %v438
    %480 = vmatpush.msra.mxu0 %v437
    %481 = vmatpush.msra.mxu0 %v436
    %482 = vmatpush.msra.mxu0 %v435
    %483 = vmatpush.msra.mxu0 %v434
    %484 = vmatpush.msra.mxu0 %v433
    %485 = vmatpush.msra.mxu0 %v432
    %486 = vmatpush.msra.mxu0 %v431
    %487 = vmatpush.msra.mxu0 %v430
    %488 = vmatpush.msra.mxu0 %v429
    %489 = vmatpush.msra.mxu0 %v428
    %490 = vmatpush.msra.mxu0 %v427
    %491 = vmatpush.msra.mxu0 %v426
    %492 = vmatpush.msra.mxu0 %v425
    %493 = vmatmul.f32.gmra.mxu0 %v382
    %v494 = vpop.f32.mrf.mxu0
    %v495 = vadd.f32 %v475, %v494
    %496 = vdwg.mxu0
    %v497 = vld [vmem:[#allocation31] sm:$0x1]
    %v499 = vperm.slane %v497, 0
    %v501 = vadd.f32 %v495, %v499
    %v502 = vtanh.pop %v501
    %503 = vst [vmem:[#allocation33] sm:$0x3] %v502
    %v504 = vld [vmem:[#allocation2] sm:$0xff]
    %v505 = vld [vmem:[#allocation2 + $0x8] sm:$0xff]
    %v506 = vld [vmem:[#allocation2 + $0x10] sm:$0xff]
    %v507 = vld [vmem:[#allocation2 + $0x18] sm:$0xff]
    %v508 = vld [vmem:[#allocation2 + $0x20] sm:$0xff]
    %v509 = vld [vmem:[#allocation2 + $0x28] sm:$0xff]
    %v510 = vld [vmem:[#allocation2 + $0x30] sm:$0xff]
    %v511 = vld [vmem:[#allocation2 + $0x38] sm:$0xff]
    %v512 = vld [vmem:[#allocation2 + $0x40] sm:$0xff]
    %v513 = vld [vmem:[#allocation2 + $0x48] sm:$0xff]
    %v514 = vld [vmem:[#allocation2 + $0x50] sm:$0xff]
    %v515 = vld [vmem:[#allocation2 + $0x58] sm:$0xff]
    %v516 = vrot.slane %v504, 4
    %v517 = vadd.f32 %v504, %v516
    %v518 = vrot.slane %v517, 2
    %v519 = vadd.f32 %v517, %v518
    %v520 = vrot.slane %v519, 1
    %v521 = vadd.f32 %v519, %v520
    %v522 = vrot.slane %v505, 4
    %v523 = vadd.f32 %v505, %v522
    %v524 = vrot.slane %v523, 2
    %v525 = vadd.f32 %v523, %v524
    %v526 = vrot.slane %v525, 1
    %v527 = vadd.f32 %v525, %v526
    %v528 = vrot.slane %v506, 4
    %v529 = vadd.f32 %v506, %v528
    %v530 = vrot.slane %v529, 2
    %v531 = vadd.f32 %v529, %v530
    %v532 = vrot.slane %v531, 1
    %v533 = vadd.f32 %v531, %v532
    %v534 = vrot.slane %v507, 4
    %v535 = vadd.f32 %v507, %v534
    %v536 = vrot.slane %v535, 2
    %v537 = vadd.f32 %v535, %v536
    %v538 = vrot.slane %v537, 1
    %v539 = vadd.f32 %v537, %v538
    %v540 = vrot.slane %v508, 4
    %v541 = vadd.f32 %v508, %v540
    %v542 = vrot.slane %v541, 2
    %v543 = vadd.f32 %v541, %v542
    %v544 = vrot.slane %v543, 1
    %v545 = vadd.f32 %v543, %v544
    %v546 = vrot.slane %v509, 4
    %v547 = vadd.f32 %v509, %v546
    %v548 = vrot.slane %v547, 2
    %v549 = vadd.f32 %v547, %v548
    %v550 = vrot.slane %v549, 1
    %v551 = vadd.f32 %v549, %v550
    %v552 = vrot.slane %v510, 4
    %v553 = vadd.f32 %v510, %v552
    %v554 = vrot.slane %v553, 2
    %v555 = vadd.f32 %v553, %v554
    %v556 = vrot.slane %v555, 1
    %v557 = vadd.f32 %v555, %v556
    %v558 = vrot.slane %v511, 4
    %v559 = vadd.f32 %v511, %v558
    %v560 = vrot.slane %v559, 2
    %v561 = vadd.f32 %v559, %v560
    %v562 = vrot.slane %v561, 1
    %v563 = vadd.f32 %v561, %v562
    %v564 = vrot.slane %v512, 4
    %v565 = vadd.f32 %v512, %v564
    %v566 = vrot.slane %v565, 2
    %v567 = vadd.f32 %v565, %v566
    %v568 = vrot.slane %v567, 1
    %v569 = vadd.f32 %v567, %v568
    %v570 = vrot.slane %v513, 4
    %v571 = vadd.f32 %v513, %v570
    %v572 = vrot.slane %v571, 2
    %v573 = vadd.f32 %v571, %v572
    %v574 = vrot.slane %v573, 1
    %v575 = vadd.f32 %v573, %v574
    %v576 = vrot.slane %v514, 4
    %v577 = vadd.f32 %v514, %v576
    %v578 = vrot.slane %v577, 2
    %v579 = vadd.f32 %v577, %v578
    %v580 = vrot.slane %v579, 1
    %v581 = vadd.f32 %v579, %v580
    %v582 = vrot.slane %v515, 4
    %v583 = vadd.f32 %v515, %v582
    %v584 = vrot.slane %v583, 2
    %v585 = vadd.f32 %v583, %v584
    %v586 = vrot.slane %v585, 1
    %v587 = vadd.f32 %v585, %v586
    %v588 = vrcp.pop 8.0
    %v589 = vmul.f32 8.0, %v588
    %v590 = vsub.f32 1.0, %v589
    %v591 = vmul.f32 %v588, %v590
    %v592 = vadd.f32 %v588, %v591
    %vm593 = vweird.f32 %v588
    %v594 = vsel %vm593, %v588, %v592
    %v595 = vmul.f32 %v521, %v594
    %v596 = vmul.f32 %v527, %v594
    %v597 = vmul.f32 %v533, %v594
    %v598 = vmul.f32 %v539, %v594
    %v599 = vmul.f32 %v545, %v594
    %v600 = vmul.f32 %v551, %v594
    %v601 = vmul.f32 %v557, %v594
    %v602 = vmul.f32 %v563, %v594
    %v603 = vmul.f32 %v569, %v594
    %v604 = vmul.f32 %v575, %v594
    %v605 = vmul.f32 %v581, %v594
    %v606 = vmul.f32 %v587, %v594
    %v607 = vld [vmem:[#allocation5] sm:$0x3f]
    %v608 = vld [vmem:[#allocation5 + $0xc] sm:$0x3f]
    %s609 = scalar_lea.vmem [#allocation5], 6
    %v610 = vld [vmem:[%s609] sm:$0x3f]
    %v611 = vld [vmem:[%s609 + $0xc] sm:$0x3f]
    %vm624 = vcmask 1041409
    %v625 = vsel %vm624, %v601, %v595
    %v626 = vsel %vm624, %v602, %v596
    %v627 = vsel %vm624, %v603, %v597
    %v628 = vsel %vm624, %v604, %v598
    %v629 = vsel %vm624, %v605, %v599
    %v630 = vsel %vm624, %v606, %v600
    %s639 = scalar_lea.vmem [#allocation1], 2
    %640 = vst [vmem:[%s639] ss:$9 sm:$0xff] %v607
    %s641 = scalar_lea.vmem [#allocation1], 3
    %642 = vst [vmem:[%s641] ss:$9 sm:$0xff] %v608
    %v643 = vld [vmem:[#allocation1] sm:$0xff]
    %v644 = vld [vmem:[#allocation1 + $0x9] sm:$0xff]
    %v645 = vld [vmem:[#allocation1 + $0x12] sm:$0xff]
    %v646 = vld [vmem:[#allocation1 + $0x1b] sm:$0xff]
    %v647 = vld [vmem:[#allocation1 + $0x24] sm:$0xff]
    %v648 = vld [vmem:[#allocation1 + $0x2d] sm:$0xff]
    %s657 = scalar_lea.vmem [#allocation1], 4
    %658 = vst [vmem:[%s657] ss:$9 sm:$0xff] %v610
    %s659 = scalar_lea.vmem [#allocation1], 5
    %660 = vst [vmem:[%s659] ss:$9 sm:$0xff] %v611
    %v661 = vld [vmem:[#allocation1] sm:$0xff]
    %v662 = vld [vmem:[#allocation1 + $0x9] sm:$0xff]
    %v663 = vld [vmem:[#allocation1 + $0x12] sm:$0xff]
    %v664 = vld [vmem:[#allocation1 + $0x1b] sm:$0xff]
    %v665 = vld [vmem:[#allocation1 + $0x24] sm:$0xff]
    %v666 = vld [vmem:[#allocation1 + $0x2d] sm:$0xff]
    %vm673 = vcmask 1041408
    %v674 = vsel %vm673, %v625, %v643
    %v675 = vsel %vm673, %v626, %v644
    %v676 = vsel %vm673, %v627, %v645
    %v677 = vsel %vm673, %v628, %v646
    %v678 = vsel %vm673, %v629, %v647
    %v679 = vsel %vm673, %v630, %v648
    %vm680 = vcmask 1043456
    %v681 = vsel %vm680, %v674, %v661
    %v682 = vsel %vm680, %v675, %v662
    %v683 = vsel %vm680, %v676, %v663
    %v684 = vsel %vm680, %v677, %v664
    %v685 = vsel %vm680, %v678, %v665
    %v686 = vsel %vm680, %v679, %v666
    %v687 = vld [vmem:[#allocation10] sm:$0xff]
    %v688 = vld [vmem:[#allocation10 + $0x8] sm:$0xff]
    %v689 = vld [vmem:[#allocation10 + $0x10] sm:$0xff]
    %v690 = vld [vmem:[#allocation10 + $0x18] sm:$0xff]
    %v691 = vld [vmem:[#allocation10 + $0x20] sm:$0xff]
    %v692 = vld [vmem:[#allocation10 + $0x28] sm:$0xff]
    %v693 = vld [vmem:[#allocation10 + $0x30] sm:$0xff]
    %v694 = vld [vmem:[#allocation10 + $0x38] sm:$0xff]
    %v695 = vld [vmem:[#allocation10 + $0x40] sm:$0xff]
    %v696 = vld [vmem:[#allocation10 + $0x48] sm:$0xff]
    %v697 = vld [vmem:[#allocation10 + $0x50] sm:$0xff]
    %v698 = vld [vmem:[#allocation10 + $0x58] sm:$0xff]
    %v699 = vld [vmem:[#allocation10 + $0x60] sm:$0xff]
    %v700 = vld [vmem:[#allocation10 + $0x68] sm:$0xff]
    %v701 = vld [vmem:[#allocation10 + $0x70] sm:$0xff]
    %v702 = vld [vmem:[#allocation10 + $0x78] sm:$0xff]
    %v703 = vld [vmem:[#allocation10 + $0x80] sm:$0xff]
    %v704 = vld [vmem:[#allocation10 + $0x88] sm:$0xff]
    %v705 = vld [vmem:[#allocation10 + $0x90] sm:$0xff]
    %v706 = vld [vmem:[#allocation10 + $0x98] sm:$0xff]
    %v707 = vld [vmem:[#allocation10 + $0xa0] sm:$0xff]
    %v708 = vld [vmem:[#allocation10 + $0xa8] sm:$0xff]
    %v709 = vld [vmem:[#allocation10 + $0xb0] sm:$0xff]
    %v710 = vld [vmem:[#allocation10 + $0xb8] sm:$0xff]
    %v711 = vld [vmem:[#allocation10 + $0xc0] sm:$0xff]
    %v712 = vld [vmem:[#allocation10 + $0xc8] sm:$0xff]
    %v713 = vld [vmem:[#allocation10 + $0xd0] sm:$0xff]
    %v714 = vld [vmem:[#allocation10 + $0xd8] sm:$0xff]
    %v715 = vld [vmem:[#allocation10 + $0xe0] sm:$0xff]
    %v716 = vld [vmem:[#allocation10 + $0xe8] sm:$0xff]
    %v717 = vld [vmem:[#allocation10 + $0xf0] sm:$0xff]
    %v718 = vld [vmem:[#allocation10 + $0xf8] sm:$0xff]
    %v719 = vld [vmem:[#allocation10 + $0x100] sm:$0xff]
    %v720 = vld [vmem:[#allocation10 + $0x108] sm:$0xff]
    %v721 = vld [vmem:[#allocation10 + $0x110] sm:$0xff]
    %v722 = vld [vmem:[#allocation10 + $0x118] sm:$0xff]
    %v723 = vld [vmem:[#allocation10 + $0x120] sm:$0xff]
    %v724 = vld [vmem:[#allocation10 + $0x128] sm:$0xff]
    %v725 = vld [vmem:[#allocation10 + $0x130] sm:$0xff]
    %v726 = vld [vmem:[#allocation10 + $0x138] sm:$0xff]
    %v727 = vld [vmem:[#allocation10 + $0x140] sm:$0xff]
    %v728 = vld [vmem:[#allocation10 + $0x148] sm:$0xff]
    %v729 = vld [vmem:[#allocation10 + $0x150] sm:$0xff]
    %v730 = vld [vmem:[#allocation10 + $0x158] sm:$0xff]
    %v731 = vld [vmem:[#allocation10 + $0x160] sm:$0xff]
    %v732 = vld [vmem:[#allocation10 + $0x168] sm:$0xff]
    %v733 = vld [vmem:[#allocation10 + $0x170] sm:$0xff]
    %v734 = vld [vmem:[#allocation10 + $0x178] sm:$0xff]
    %v735 = vld [vmem:[#allocation10 + $0x180] sm:$0xff]
    %v736 = vld [vmem:[#allocation10 + $0x188] sm:$0xff]
    %v737 = vld [vmem:[#allocation10 + $0x190] sm:$0xff]
    %v738 = vld [vmem:[#allocation10 + $0x198] sm:$0xff]
    %v739 = vld [vmem:[#allocation10 + $0x1a0] sm:$0xff]
    %v740 = vld [vmem:[#allocation10 + $0x1a8] sm:$0xff]
    %v741 = vld [vmem:[#allocation10 + $0x1b0] sm:$0xff]
    %v742 = vld [vmem:[#allocation10 + $0x1b8] sm:$0xff]
    %v743 = vld [vmem:[#allocation10 + $0x1c0] sm:$0xff]
    %v744 = vld [vmem:[#allocation10 + $0x1c8] sm:$0xff]
    %v745 = vld [vmem:[#allocation10 + $0x1d0] sm:$0xff]
    %v746 = vld [vmem:[#allocation10 + $0x1d8] sm:$0xff]
    %v747 = vld [vmem:[#allocation10 + $0x1e0] sm:$0xff]
    %v748 = vld [vmem:[#allocation10 + $0x1e8] sm:$0xff]
    %v749 = vld [vmem:[#allocation10 + $0x1f0] sm:$0xff]
    %v750 = vld [vmem:[#allocation10 + $0x1f8] sm:$0xff]
    %v751 = vld [vmem:[#allocation10 + $0x200] sm:$0xff]
    %v752 = vld [vmem:[#allocation10 + $0x208] sm:$0xff]
    %v753 = vld [vmem:[#allocation10 + $0x210] sm:$0xff]
    %v754 = vld [vmem:[#allocation10 + $0x218] sm:$0xff]
    %v755 = vld [vmem:[#allocation10 + $0x220] sm:$0xff]
    %v756 = vld [vmem:[#allocation10 + $0x228] sm:$0xff]
    %v757 = vld [vmem:[#allocation10 + $0x230] sm:$0xff]
    %v758 = vld [vmem:[#allocation10 + $0x238] sm:$0xff]
    %v759 = vld [vmem:[#allocation10 + $0x240] sm:$0xff]
    %v760 = vld [vmem:[#allocation10 + $0x248] sm:$0xff]
    %v761 = vld [vmem:[#allocation10 + $0x250] sm:$0xff]
    %v762 = vld [vmem:[#allocation10 + $0x258] sm:$0xff]
    %v763 = vld [vmem:[#allocation10 + $0x260] sm:$0xff]
    %v764 = vld [vmem:[#allocation10 + $0x268] sm:$0xff]
    %v765 = vld [vmem:[#allocation10 + $0x270] sm:$0xff]
    %v766 = vld [vmem:[#allocation10 + $0x278] sm:$0xff]
    %v767 = vld [vmem:[#allocation10 + $0x280] sm:$0xff]
    %v768 = vld [vmem:[#allocation10 + $0x288] sm:$0xff]
    %v769 = vld [vmem:[#allocation10 + $0x290] sm:$0xff]
    %v770 = vld [vmem:[#allocation10 + $0x298] sm:$0xff]
    %v771 = vld [vmem:[#allocation10 + $0x2a0] sm:$0xff]
    %v772 = vld [vmem:[#allocation10 + $0x2a8] sm:$0xff]
    %v773 = vld [vmem:[#allocation10 + $0x2b0] sm:$0xff]
    %v774 = vld [vmem:[#allocation10 + $0x2b8] sm:$0xff]
    %v775 = vld [vmem:[#allocation10 + $0x2c0] sm:$0xff]
    %v776 = vld [vmem:[#allocation10 + $0x2c8] sm:$0xff]
    %v777 = vld [vmem:[#allocation10 + $0x2d0] sm:$0xff]
    %v778 = vld [vmem:[#allocation10 + $0x2d8] sm:$0xff]
    %v779 = vld [vmem:[#allocation10 + $0x2e0] sm:$0xff]
    %v780 = vld [vmem:[#allocation10 + $0x2e8] sm:$0xff]
    %v781 = vld [vmem:[#allocation10 + $0x2f0] sm:$0xff]
    %v782 = vld [vmem:[#allocation10 + $0x2f8] sm:$0xff]
    %v783 = vld [vmem:[#allocation10 + $0x300] sm:$0xff]
    %v784 = vld [vmem:[#allocation10 + $0x308] sm:$0xff]
    %v785 = vld [vmem:[#allocation10 + $0x310] sm:$0xff]
    %v786 = vld [vmem:[#allocation10 + $0x318] sm:$0xff]
    %v787 = vld [vmem:[#allocation10 + $0x320] sm:$0xff]
    %v788 = vld [vmem:[#allocation10 + $0x328] sm:$0xff]
    %v789 = vld [vmem:[#allocation10 + $0x330] sm:$0xff]
    %v790 = vld [vmem:[#allocation10 + $0x338] sm:$0xff]
    %v791 = vld [vmem:[#allocation10 + $0x340] sm:$0xff]
    %v792 = vld [vmem:[#allocation10 + $0x348] sm:$0xff]
    %v793 = vld [vmem:[#allocation10 + $0x350] sm:$0xff]
    %v794 = vld [vmem:[#allocation10 + $0x358] sm:$0xff]
    %v795 = vld [vmem:[#allocation10 + $0x360] sm:$0xff]
    %v796 = vld [vmem:[#allocation10 + $0x368] sm:$0xff]
    %v797 = vld [vmem:[#allocation10 + $0x370] sm:$0xff]
    %v798 = vld [vmem:[#allocation10 + $0x378] sm:$0xff]
    %v799 = vld [vmem:[#allocation10 + $0x380] sm:$0xff]
    %v800 = vld [vmem:[#allocation10 + $0x388] sm:$0xff]
    %v801 = vld [vmem:[#allocation10 + $0x390] sm:$0xff]
    %v802 = vld [vmem:[#allocation10 + $0x398] sm:$0xff]
    %v803 = vld [vmem:[#allocation10 + $0x3a0] sm:$0xff]
    %v804 = vld [vmem:[#allocation10 + $0x3a8] sm:$0xff]
    %v805 = vld [vmem:[#allocation10 + $0x3b0] sm:$0xff]
    %v806 = vld [vmem:[#allocation10 + $0x3b8] sm:$0xff]
    %v807 = vld [vmem:[#allocation10 + $0x3c0] sm:$0xff]
    %v808 = vld [vmem:[#allocation10 + $0x3c8] sm:$0xff]
    %v809 = vld [vmem:[#allocation10 + $0x3d0] sm:$0xff]
    %v810 = vld [vmem:[#allocation10 + $0x3d8] sm:$0xff]
    %v811 = vld [vmem:[#allocation10 + $0x3e0] sm:$0xff]
    %v812 = vld [vmem:[#allocation10 + $0x3e8] sm:$0xff]
    %v813 = vld [vmem:[#allocation10 + $0x3f0] sm:$0xff]
    %v814 = vld [vmem:[#allocation10 + $0x3f8] sm:$0xff]
    %v815 = vld [vmem:[#allocation10 + $0x400] sm:$0xff]
    %v816 = vld [vmem:[#allocation10 + $0x408] sm:$0xff]
    %v817 = vld [vmem:[#allocation10 + $0x410] sm:$0xff]
    %v818 = vld [vmem:[#allocation10 + $0x418] sm:$0xff]
    %v819 = vld [vmem:[#allocation10 + $0x420] sm:$0xff]
    %v820 = vld [vmem:[#allocation10 + $0x428] sm:$0xff]
    %v821 = vld [vmem:[#allocation10 + $0x430] sm:$0xff]
    %v822 = vld [vmem:[#allocation10 + $0x438] sm:$0xff]
    %v823 = vld [vmem:[#allocation10 + $0x440] sm:$0xff]
    %v824 = vld [vmem:[#allocation10 + $0x448] sm:$0xff]
    %v825 = vld [vmem:[#allocation10 + $0x450] sm:$0xff]
    %v826 = vld [vmem:[#allocation10 + $0x458] sm:$0xff]
    %v827 = vld [vmem:[#allocation10 + $0x460] sm:$0xff]
    %v828 = vld [vmem:[#allocation10 + $0x468] sm:$0xff]
    %v829 = vld [vmem:[#allocation10 + $0x470] sm:$0xff]
    %v830 = vld [vmem:[#allocation10 + $0x478] sm:$0xff]
    %v831 = vld [vmem:[#allocation10 + $0x480] sm:$0xff]
    %v832 = vld [vmem:[#allocation10 + $0x488] sm:$0xff]
    %v833 = vld [vmem:[#allocation10 + $0x490] sm:$0xff]
    %v834 = vld [vmem:[#allocation10 + $0x498] sm:$0xff]
    %v835 = vld [vmem:[#allocation10 + $0x4a0] sm:$0xff]
    %v836 = vld [vmem:[#allocation10 + $0x4a8] sm:$0xff]
    %v837 = vld [vmem:[#allocation10 + $0x4b0] sm:$0xff]
    %v838 = vld [vmem:[#allocation10 + $0x4b8] sm:$0xff]
    %v839 = vld [vmem:[#allocation10 + $0x4c0] sm:$0xff]
    %v840 = vld [vmem:[#allocation10 + $0x4c8] sm:$0xff]
    %v841 = vld [vmem:[#allocation10 + $0x4d0] sm:$0xff]
    %v842 = vld [vmem:[#allocation10 + $0x4d8] sm:$0xff]
    %v843 = vld [vmem:[#allocation10 + $0x4e0] sm:$0xff]
    %v844 = vld [vmem:[#allocation10 + $0x4e8] sm:$0xff]
    %v845 = vld [vmem:[#allocation10 + $0x4f0] sm:$0xff]
    %v846 = vld [vmem:[#allocation10 + $0x4f8] sm:$0xff]
    %v847 = vld [vmem:[#allocation10 + $0x500] sm:$0xff]
    %v848 = vld [vmem:[#allocation10 + $0x508] sm:$0xff]
    %v849 = vld [vmem:[#allocation10 + $0x510] sm:$0xff]
    %v850 = vld [vmem:[#allocation10 + $0x518] sm:$0xff]
    %v851 = vld [vmem:[#allocation10 + $0x520] sm:$0xff]
    %v852 = vld [vmem:[#allocation10 + $0x528] sm:$0xff]
    %v853 = vld [vmem:[#allocation10 + $0x530] sm:$0xff]
    %v854 = vld [vmem:[#allocation10 + $0x538] sm:$0xff]
    %v855 = vld [vmem:[#allocation10 + $0x540] sm:$0xff]
    %v856 = vld [vmem:[#allocation10 + $0x548] sm:$0xff]
    %v857 = vld [vmem:[#allocation10 + $0x550] sm:$0xff]
    %v858 = vld [vmem:[#allocation10 + $0x558] sm:$0xff]
    %v859 = vld [vmem:[#allocation10 + $0x560] sm:$0xff]
    %v860 = vld [vmem:[#allocation10 + $0x568] sm:$0xff]
    %v861 = vld [vmem:[#allocation10 + $0x570] sm:$0xff]
    %v862 = vld [vmem:[#allocation10 + $0x578] sm:$0xff]
    %v863 = vld [vmem:[#allocation10 + $0x580] sm:$0xff]
    %v864 = vld [vmem:[#allocation10 + $0x588] sm:$0xff]
    %v865 = vld [vmem:[#allocation10 + $0x590] sm:$0xff]
    %v866 = vld [vmem:[#allocation10 + $0x598] sm:$0xff]
    %v867 = vld [vmem:[#allocation10 + $0x5a0] sm:$0xff]
    %v868 = vld [vmem:[#allocation10 + $0x5a8] sm:$0xff]
    %v869 = vld [vmem:[#allocation10 + $0x5b0] sm:$0xff]
    %v870 = vld [vmem:[#allocation10 + $0x5b8] sm:$0xff]
    %v871 = vld [vmem:[#allocation10 + $0x5c0] sm:$0xff]
    %v872 = vld [vmem:[#allocation10 + $0x5c8] sm:$0xff]
    %v873 = vld [vmem:[#allocation10 + $0x5d0] sm:$0xff]
    %v874 = vld [vmem:[#allocation10 + $0x5d8] sm:$0xff]
    %v875 = vld [vmem:[#allocation10 + $0x5e0] sm:$0xff]
    %v876 = vld [vmem:[#allocation10 + $0x5e8] sm:$0xff]
    %v877 = vld [vmem:[#allocation10 + $0x5f0] sm:$0xff]
    %v878 = vld [vmem:[#allocation10 + $0x5f8] sm:$0xff]
    %v879 = vld [vmem:[#allocation10 + $0x600] sm:$0xff]
    %v880 = vld [vmem:[#allocation10 + $0x608] sm:$0xff]
    %v881 = vld [vmem:[#allocation10 + $0x610] sm:$0xff]
    %v882 = vld [vmem:[#allocation10 + $0x618] sm:$0xff]
    %v883 = vld [vmem:[#allocation10 + $0x620] sm:$0xff]
    %v884 = vld [vmem:[#allocation10 + $0x628] sm:$0xff]
    %v885 = vld [vmem:[#allocation10 + $0x630] sm:$0xff]
    %v886 = vld [vmem:[#allocation10 + $0x638] sm:$0xff]
    %v887 = vld [vmem:[#allocation10 + $0x640] sm:$0xff]
    %v888 = vld [vmem:[#allocation10 + $0x648] sm:$0xff]
    %v889 = vld [vmem:[#allocation10 + $0x650] sm:$0xff]
    %v890 = vld [vmem:[#allocation10 + $0x658] sm:$0xff]
    %v891 = vld [vmem:[#allocation10 + $0x660] sm:$0xff]
    %v892 = vld [vmem:[#allocation10 + $0x668] sm:$0xff]
    %v893 = vld [vmem:[#allocation10 + $0x670] sm:$0xff]
    %v894 = vld [vmem:[#allocation10 + $0x678] sm:$0xff]
    %v895 = vld [vmem:[#allocation10 + $0x680] sm:$0xff]
    %v896 = vld [vmem:[#allocation10 + $0x688] sm:$0xff]
    %v897 = vld [vmem:[#allocation10 + $0x690] sm:$0xff]
    %v898 = vld [vmem:[#allocation10 + $0x698] sm:$0xff]
    %v899 = vld [vmem:[#allocation10 + $0x6a0] sm:$0xff]
    %v900 = vld [vmem:[#allocation10 + $0x6a8] sm:$0xff]
    %v901 = vld [vmem:[#allocation10 + $0x6b0] sm:$0xff]
    %v902 = vld [vmem:[#allocation10 + $0x6b8] sm:$0xff]
    %v903 = vld [vmem:[#allocation10 + $0x6c0] sm:$0xff]
    %v904 = vld [vmem:[#allocation10 + $0x6c8] sm:$0xff]
    %v905 = vld [vmem:[#allocation10 + $0x6d0] sm:$0xff]
    %v906 = vld [vmem:[#allocation10 + $0x6d8] sm:$0xff]
    %v907 = vld [vmem:[#allocation10 + $0x6e0] sm:$0xff]
    %v908 = vld [vmem:[#allocation10 + $0x6e8] sm:$0xff]
    %v909 = vld [vmem:[#allocation10 + $0x6f0] sm:$0xff]
    %v910 = vld [vmem:[#allocation10 + $0x6f8] sm:$0xff]
    %v911 = vld [vmem:[#allocation10 + $0x700] sm:$0xff]
    %v912 = vld [vmem:[#allocation10 + $0x708] sm:$0xff]
    %v913 = vld [vmem:[#allocation10 + $0x710] sm:$0xff]
    %v914 = vld [vmem:[#allocation10 + $0x718] sm:$0xff]
    %v915 = vld [vmem:[#allocation10 + $0x720] sm:$0xff]
    %v916 = vld [vmem:[#allocation10 + $0x728] sm:$0xff]
    %v917 = vld [vmem:[#allocation10 + $0x730] sm:$0xff]
    %v918 = vld [vmem:[#allocation10 + $0x738] sm:$0xff]
    %v919 = vld [vmem:[#allocation10 + $0x740] sm:$0xff]
    %v920 = vld [vmem:[#allocation10 + $0x748] sm:$0xff]
    %v921 = vld [vmem:[#allocation10 + $0x750] sm:$0xff]
    %v922 = vld [vmem:[#allocation10 + $0x758] sm:$0xff]
    %v923 = vld [vmem:[#allocation10 + $0x760] sm:$0xff]
    %v924 = vld [vmem:[#allocation10 + $0x768] sm:$0xff]
    %v925 = vld [vmem:[#allocation10 + $0x770] sm:$0xff]
    %v926 = vld [vmem:[#allocation10 + $0x778] sm:$0xff]
    %v927 = vld [vmem:[#allocation10 + $0x780] sm:$0xff]
    %v928 = vld [vmem:[#allocation10 + $0x788] sm:$0xff]
    %v929 = vld [vmem:[#allocation10 + $0x790] sm:$0xff]
    %v930 = vld [vmem:[#allocation10 + $0x798] sm:$0xff]
    %v931 = vld [vmem:[#allocation10 + $0x7a0] sm:$0xff]
    %v932 = vld [vmem:[#allocation10 + $0x7a8] sm:$0xff]
    %v933 = vld [vmem:[#allocation10 + $0x7b0] sm:$0xff]
    %v934 = vld [vmem:[#allocation10 + $0x7b8] sm:$0xff]
    %v935 = vld [vmem:[#allocation10 + $0x7c0] sm:$0xff]
    %v936 = vld [vmem:[#allocation10 + $0x7c8] sm:$0xff]
    %v937 = vld [vmem:[#allocation10 + $0x7d0] sm:$0xff]
    %v938 = vld [vmem:[#allocation10 + $0x7d8] sm:$0xff]
    %v939 = vld [vmem:[#allocation10 + $0x7e0] sm:$0xff]
    %v940 = vld [vmem:[#allocation10 + $0x7e8] sm:$0xff]
    %v941 = vld [vmem:[#allocation10 + $0x7f0] sm:$0xff]
    %v942 = vld [vmem:[#allocation10 + $0x7f8] sm:$0xff]
    %v943 = vld [vmem:[#allocation10 + $0x800] sm:$0xff]
    %v944 = vld [vmem:[#allocation10 + $0x808] sm:$0xff]
    %v945 = vld [vmem:[#allocation10 + $0x810] sm:$0xff]
    %v946 = vld [vmem:[#allocation10 + $0x818] sm:$0xff]
    %v947 = vld [vmem:[#allocation10 + $0x820] sm:$0xff]
    %v948 = vld [vmem:[#allocation10 + $0x828] sm:$0xff]
    %v949 = vld [vmem:[#allocation10 + $0x830] sm:$0xff]
    %v950 = vld [vmem:[#allocation10 + $0x838] sm:$0xff]
    %v951 = vld [vmem:[#allocation10 + $0x840] sm:$0xff]
    %v952 = vld [vmem:[#allocation10 + $0x848] sm:$0xff]
    %v953 = vld [vmem:[#allocation10 + $0x850] sm:$0xff]
    %v954 = vld [vmem:[#allocation10 + $0x858] sm:$0xff]
    %v955 = vld [vmem:[#allocation10 + $0x860] sm:$0xff]
    %v956 = vld [vmem:[#allocation10 + $0x868] sm:$0xff]
    %v957 = vld [vmem:[#allocation10 + $0x870] sm:$0xff]
    %v958 = vld [vmem:[#allocation10 + $0x878] sm:$0xff]
    %v959 = vld [vmem:[#allocation10 + $0x880] sm:$0xff]
    %v960 = vld [vmem:[#allocation10 + $0x888] sm:$0xff]
    %v961 = vld [vmem:[#allocation10 + $0x890] sm:$0xff]
    %v962 = vld [vmem:[#allocation10 + $0x898] sm:$0xff]
    %v963 = vld [vmem:[#allocation10 + $0x8a0] sm:$0xff]
    %v964 = vld [vmem:[#allocation10 + $0x8a8] sm:$0xff]
    %v965 = vld [vmem:[#allocation10 + $0x8b0] sm:$0xff]
    %v966 = vld [vmem:[#allocation10 + $0x8b8] sm:$0xff]
    %v967 = vld [vmem:[#allocation10 + $0x8c0] sm:$0xff]
    %v968 = vld [vmem:[#allocation10 + $0x8c8] sm:$0xff]
    %v969 = vld [vmem:[#allocation10 + $0x8d0] sm:$0xff]
    %v970 = vld [vmem:[#allocation10 + $0x8d8] sm:$0xff]
    %v971 = vld [vmem:[#allocation10 + $0x8e0] sm:$0xff]
    %v972 = vld [vmem:[#allocation10 + $0x8e8] sm:$0xff]
    %v973 = vld [vmem:[#allocation10 + $0x8f0] sm:$0xff]
    %v974 = vld [vmem:[#allocation10 + $0x8f8] sm:$0xff]
    %v975 = vld [vmem:[#allocation10 + $0x900] sm:$0xff]
    %v976 = vld [vmem:[#allocation10 + $0x908] sm:$0xff]
    %v977 = vld [vmem:[#allocation10 + $0x910] sm:$0xff]
    %v978 = vld [vmem:[#allocation10 + $0x918] sm:$0xff]
    %v979 = vld [vmem:[#allocation10 + $0x920] sm:$0xff]
    %v980 = vld [vmem:[#allocation10 + $0x928] sm:$0xff]
    %v981 = vld [vmem:[#allocation10 + $0x930] sm:$0xff]
    %v982 = vld [vmem:[#allocation10 + $0x938] sm:$0xff]
    %v983 = vld [vmem:[#allocation10 + $0x940] sm:$0xff]
    %v984 = vld [vmem:[#allocation10 + $0x948] sm:$0xff]
    %v985 = vld [vmem:[#allocation10 + $0x950] sm:$0xff]
    %v986 = vld [vmem:[#allocation10 + $0x958] sm:$0xff]
    %v987 = vld [vmem:[#allocation10 + $0x960] sm:$0xff]
    %v988 = vld [vmem:[#allocation10 + $0x968] sm:$0xff]
    %v989 = vld [vmem:[#allocation10 + $0x970] sm:$0xff]
    %v990 = vld [vmem:[#allocation10 + $0x978] sm:$0xff]
    %v991 = vld [vmem:[#allocation10 + $0x980] sm:$0xff]
    %v992 = vld [vmem:[#allocation10 + $0x988] sm:$0xff]
    %v993 = vld [vmem:[#allocation10 + $0x990] sm:$0xff]
    %v994 = vld [vmem:[#allocation10 + $0x998] sm:$0xff]
    %v995 = vld [vmem:[#allocation10 + $0x9a0] sm:$0xff]
    %v996 = vld [vmem:[#allocation10 + $0x9a8] sm:$0xff]
    %v997 = vld [vmem:[#allocation10 + $0x9b0] sm:$0xff]
    %v998 = vld [vmem:[#allocation10 + $0x9b8] sm:$0xff]
    %v999 = vld [vmem:[#allocation10 + $0x9c0] sm:$0xff]
    %v1000 = vld [vmem:[#allocation10 + $0x9c8] sm:$0xff]
    %v1001 = vld [vmem:[#allocation10 + $0x9d0] sm:$0xff]
    %v1002 = vld [vmem:[#allocation10 + $0x9d8] sm:$0xff]
    %v1003 = vld [vmem:[#allocation10 + $0x9e0] sm:$0xff]
    %v1004 = vld [vmem:[#allocation10 + $0x9e8] sm:$0xff]
    %v1005 = vld [vmem:[#allocation10 + $0x9f0] sm:$0xff]
    %v1006 = vld [vmem:[#allocation10 + $0x9f8] sm:$0xff]
    %v1007 = vld [vmem:[#allocation10 + $0xa00] sm:$0xff]
    %v1008 = vld [vmem:[#allocation10 + $0xa08] sm:$0xff]
    %v1009 = vld [vmem:[#allocation10 + $0xa10] sm:$0xff]
    %v1010 = vld [vmem:[#allocation10 + $0xa18] sm:$0xff]
    %v1011 = vld [vmem:[#allocation10 + $0xa20] sm:$0xff]
    %v1012 = vld [vmem:[#allocation10 + $0xa28] sm:$0xff]
    %v1013 = vld [vmem:[#allocation10 + $0xa30] sm:$0xff]
    %v1014 = vld [vmem:[#allocation10 + $0xa38] sm:$0xff]
    %v1015 = vld [vmem:[#allocation10 + $0xa40] sm:$0xff]
    %v1016 = vld [vmem:[#allocation10 + $0xa48] sm:$0xff]
    %v1017 = vld [vmem:[#allocation10 + $0xa50] sm:$0xff]
    %v1018 = vld [vmem:[#allocation10 + $0xa58] sm:$0xff]
    %v1019 = vld [vmem:[#allocation10 + $0xa60] sm:$0xff]
    %v1020 = vld [vmem:[#allocation10 + $0xa68] sm:$0xff]
    %v1021 = vld [vmem:[#allocation10 + $0xa70] sm:$0xff]
    %v1022 = vld [vmem:[#allocation10 + $0xa78] sm:$0xff]
    %v1023 = vld [vmem:[#allocation10 + $0xa80] sm:$0xff]
    %v1024 = vld [vmem:[#allocation10 + $0xa88] sm:$0xff]
    %v1025 = vld [vmem:[#allocation10 + $0xa90] sm:$0xff]
    %v1026 = vld [vmem:[#allocation10 + $0xa98] sm:$0xff]
    %v1027 = vld [vmem:[#allocation10 + $0xaa0] sm:$0xff]
    %v1028 = vld [vmem:[#allocation10 + $0xaa8] sm:$0xff]
    %v1029 = vld [vmem:[#allocation10 + $0xab0] sm:$0xff]
    %v1030 = vld [vmem:[#allocation10 + $0xab8] sm:$0xff]
    %v1031 = vld [vmem:[#allocation10 + $0xac0] sm:$0xff]
    %v1032 = vld [vmem:[#allocation10 + $0xac8] sm:$0xff]
    %v1033 = vld [vmem:[#allocation10 + $0xad0] sm:$0xff]
    %v1034 = vld [vmem:[#allocation10 + $0xad8] sm:$0xff]
    %v1035 = vld [vmem:[#allocation10 + $0xae0] sm:$0xff]
    %v1036 = vld [vmem:[#allocation10 + $0xae8] sm:$0xff]
    %v1037 = vld [vmem:[#allocation10 + $0xaf0] sm:$0xff]
    %v1038 = vld [vmem:[#allocation10 + $0xaf8] sm:$0xff]
    %v1039 = vld [vmem:[#allocation10 + $0xb00] sm:$0xff]
    %v1040 = vld [vmem:[#allocation10 + $0xb08] sm:$0xff]
    %v1041 = vld [vmem:[#allocation10 + $0xb10] sm:$0xff]
    %v1042 = vld [vmem:[#allocation10 + $0xb18] sm:$0xff]
    %v1043 = vld [vmem:[#allocation10 + $0xb20] sm:$0xff]
    %v1044 = vld [vmem:[#allocation10 + $0xb28] sm:$0xff]
    %v1045 = vld [vmem:[#allocation10 + $0xb30] sm:$0xff]
    %v1046 = vld [vmem:[#allocation10 + $0xb38] sm:$0xff]
    %v1047 = vld [vmem:[#allocation10 + $0xb40] sm:$0xff]
    %v1048 = vld [vmem:[#allocation10 + $0xb48] sm:$0xff]
    %v1049 = vld [vmem:[#allocation10 + $0xb50] sm:$0xff]
    %v1050 = vld [vmem:[#allocation10 + $0xb58] sm:$0xff]
    %v1051 = vld [vmem:[#allocation10 + $0xb60] sm:$0xff]
    %v1052 = vld [vmem:[#allocation10 + $0xb68] sm:$0xff]
    %v1053 = vld [vmem:[#allocation10 + $0xb70] sm:$0xff]
    %v1054 = vld [vmem:[#allocation10 + $0xb78] sm:$0xff]
    %v1055 = vld [vmem:[#allocation10 + $0xb80] sm:$0xff]
    %v1056 = vld [vmem:[#allocation10 + $0xb88] sm:$0xff]
    %v1057 = vld [vmem:[#allocation10 + $0xb90] sm:$0xff]
    %v1058 = vld [vmem:[#allocation10 + $0xb98] sm:$0xff]
    %v1059 = vld [vmem:[#allocation10 + $0xba0] sm:$0xff]
    %v1060 = vld [vmem:[#allocation10 + $0xba8] sm:$0xff]
    %v1061 = vld [vmem:[#allocation10 + $0xbb0] sm:$0xff]
    %v1062 = vld [vmem:[#allocation10 + $0xbb8] sm:$0xff]
    %v1063 = vld [vmem:[#allocation10 + $0xbc0] sm:$0xff]
    %v1064 = vld [vmem:[#allocation10 + $0xbc8] sm:$0xff]
    %v1065 = vld [vmem:[#allocation10 + $0xbd0] sm:$0xff]
    %v1066 = vld [vmem:[#allocation10 + $0xbd8] sm:$0xff]
    %v1067 = vld [vmem:[#allocation10 + $0xbe0] sm:$0xff]
    %v1068 = vld [vmem:[#allocation10 + $0xbe8] sm:$0xff]
    %v1069 = vld [vmem:[#allocation10 + $0xbf0] sm:$0xff]
    %v1070 = vld [vmem:[#allocation10 + $0xbf8] sm:$0xff]
    %v1071 = vld [vmem:[#allocation10 + $0xc00] sm:$0xff]
    %v1072 = vld [vmem:[#allocation10 + $0xc08] sm:$0xff]
    %v1073 = vld [vmem:[#allocation10 + $0xc10] sm:$0xff]
    %v1074 = vld [vmem:[#allocation10 + $0xc18] sm:$0xff]
    %v1075 = vld [vmem:[#allocation10 + $0xc20] sm:$0xff]
    %v1076 = vld [vmem:[#allocation10 + $0xc28] sm:$0xff]
    %v1077 = vld [vmem:[#allocation10 + $0xc30] sm:$0xff]
    %v1078 = vld [vmem:[#allocation10 + $0xc38] sm:$0xff]
    %v1079 = vld [vmem:[#allocation10 + $0xc40] sm:$0xff]
    %v1080 = vld [vmem:[#allocation10 + $0xc48] sm:$0xff]
    %v1081 = vld [vmem:[#allocation10 + $0xc50] sm:$0xff]
    %v1082 = vld [vmem:[#allocation10 + $0xc58] sm:$0xff]
    %v1083 = vld [vmem:[#allocation10 + $0xc60] sm:$0xff]
    %v1084 = vld [vmem:[#allocation10 + $0xc68] sm:$0xff]
    %v1085 = vld [vmem:[#allocation10 + $0xc70] sm:$0xff]
    %v1086 = vld [vmem:[#allocation10 + $0xc78] sm:$0xff]
    %v1087 = vld [vmem:[#allocation10 + $0xc80] sm:$0xff]
    %v1088 = vld [vmem:[#allocation10 + $0xc88] sm:$0xff]
    %v1089 = vld [vmem:[#allocation10 + $0xc90] sm:$0xff]
    %v1090 = vld [vmem:[#allocation10 + $0xc98] sm:$0xff]
    %v1091 = vld [vmem:[#allocation10 + $0xca0] sm:$0xff]
    %v1092 = vld [vmem:[#allocation10 + $0xca8] sm:$0xff]
    %v1093 = vld [vmem:[#allocation10 + $0xcb0] sm:$0xff]
    %v1094 = vld [vmem:[#allocation10 + $0xcb8] sm:$0xff]
    %v1095 = vld [vmem:[#allocation10 + $0xcc0] sm:$0xff]
    %v1096 = vld [vmem:[#allocation10 + $0xcc8] sm:$0xff]
    %v1097 = vld [vmem:[#allocation10 + $0xcd0] sm:$0xff]
    %v1098 = vld [vmem:[#allocation10 + $0xcd8] sm:$0xff]
    %v1099 = vld [vmem:[#allocation10 + $0xce0] sm:$0xff]
    %v1100 = vld [vmem:[#allocation10 + $0xce8] sm:$0xff]
    %v1101 = vld [vmem:[#allocation10 + $0xcf0] sm:$0xff]
    %v1102 = vld [vmem:[#allocation10 + $0xcf8] sm:$0xff]
    %v1103 = vld [vmem:[#allocation10 + $0xd00] sm:$0xff]
    %v1104 = vld [vmem:[#allocation10 + $0xd08] sm:$0xff]
    %v1105 = vld [vmem:[#allocation10 + $0xd10] sm:$0xff]
    %v1106 = vld [vmem:[#allocation10 + $0xd18] sm:$0xff]
    %v1107 = vld [vmem:[#allocation10 + $0xd20] sm:$0xff]
    %v1108 = vld [vmem:[#allocation10 + $0xd28] sm:$0xff]
    %v1109 = vld [vmem:[#allocation10 + $0xd30] sm:$0xff]
    %v1110 = vld [vmem:[#allocation10 + $0xd38] sm:$0xff]
    %v1111 = vld [vmem:[#allocation10 + $0xd40] sm:$0xff]
    %v1112 = vld [vmem:[#allocation10 + $0xd48] sm:$0xff]
    %v1113 = vld [vmem:[#allocation10 + $0xd50] sm:$0xff]
    %v1114 = vld [vmem:[#allocation10 + $0xd58] sm:$0xff]
    %v1115 = vld [vmem:[#allocation10 + $0xd60] sm:$0xff]
    %v1116 = vld [vmem:[#allocation10 + $0xd68] sm:$0xff]
    %v1117 = vld [vmem:[#allocation10 + $0xd70] sm:$0xff]
    %v1118 = vld [vmem:[#allocation10 + $0xd78] sm:$0xff]
    %v1119 = vld [vmem:[#allocation10 + $0xd80] sm:$0xff]
    %v1120 = vld [vmem:[#allocation10 + $0xd88] sm:$0xff]
    %v1121 = vld [vmem:[#allocation10 + $0xd90] sm:$0xff]
    %v1122 = vld [vmem:[#allocation10 + $0xd98] sm:$0xff]
    %v1123 = vld [vmem:[#allocation10 + $0xda0] sm:$0xff]
    %v1124 = vld [vmem:[#allocation10 + $0xda8] sm:$0xff]
    %v1125 = vld [vmem:[#allocation10 + $0xdb0] sm:$0xff]
    %v1126 = vld [vmem:[#allocation10 + $0xdb8] sm:$0xff]
    %v1127 = vld [vmem:[#allocation10 + $0xdc0] sm:$0xff]
    %v1128 = vld [vmem:[#allocation10 + $0xdc8] sm:$0xff]
    %v1129 = vld [vmem:[#allocation10 + $0xdd0] sm:$0xff]
    %v1130 = vld [vmem:[#allocation10 + $0xdd8] sm:$0xff]
    %v1131 = vld [vmem:[#allocation10 + $0xde0] sm:$0xff]
    %v1132 = vld [vmem:[#allocation10 + $0xde8] sm:$0xff]
    %v1133 = vld [vmem:[#allocation10 + $0xdf0] sm:$0xff]
    %v1134 = vld [vmem:[#allocation10 + $0xdf8] sm:$0xff]
    %v1135 = vld [vmem:[#allocation10 + $0xe00] sm:$0xff]
    %v1136 = vld [vmem:[#allocation10 + $0xe08] sm:$0xff]
    %v1137 = vld [vmem:[#allocation10 + $0xe10] sm:$0xff]
    %v1138 = vld [vmem:[#allocation10 + $0xe18] sm:$0xff]
    %v1139 = vld [vmem:[#allocation10 + $0xe20] sm:$0xff]
    %v1140 = vld [vmem:[#allocation10 + $0xe28] sm:$0xff]
    %v1141 = vld [vmem:[#allocation10 + $0xe30] sm:$0xff]
    %v1142 = vld [vmem:[#allocation10 + $0xe38] sm:$0xff]
    %v1143 = vld [vmem:[#allocation10 + $0xe40] sm:$0xff]
    %v1144 = vld [vmem:[#allocation10 + $0xe48] sm:$0xff]
    %v1145 = vld [vmem:[#allocation10 + $0xe50] sm:$0xff]
    %v1146 = vld [vmem:[#allocation10 + $0xe58] sm:$0xff]
    %v1147 = vld [vmem:[#allocation10 + $0xe60] sm:$0xff]
    %v1148 = vld [vmem:[#allocation10 + $0xe68] sm:$0xff]
    %v1149 = vld [vmem:[#allocation10 + $0xe70] sm:$0xff]
    %v1150 = vld [vmem:[#allocation10 + $0xe78] sm:$0xff]
    %v1151 = vld [vmem:[#allocation10 + $0xe80] sm:$0xff]
    %v1152 = vld [vmem:[#allocation10 + $0xe88] sm:$0xff]
    %v1153 = vld [vmem:[#allocation10 + $0xe90] sm:$0xff]
    %v1154 = vld [vmem:[#allocation10 + $0xe98] sm:$0xff]
    %v1155 = vld [vmem:[#allocation10 + $0xea0] sm:$0xff]
    %v1156 = vld [vmem:[#allocation10 + $0xea8] sm:$0xff]
    %v1157 = vld [vmem:[#allocation10 + $0xeb0] sm:$0xff]
    %v1158 = vld [vmem:[#allocation10 + $0xeb8] sm:$0xff]
    %v1159 = vld [vmem:[#allocation10 + $0xec0] sm:$0xff]
    %v1160 = vld [vmem:[#allocation10 + $0xec8] sm:$0xff]
    %v1161 = vld [vmem:[#allocation10 + $0xed0] sm:$0xff]
    %v1162 = vld [vmem:[#allocation10 + $0xed8] sm:$0xff]
    %v1163 = vld [vmem:[#allocation10 + $0xee0] sm:$0xff]
    %v1164 = vld [vmem:[#allocation10 + $0xee8] sm:$0xff]
    %v1165 = vld [vmem:[#allocation10 + $0xef0] sm:$0xff]
    %v1166 = vld [vmem:[#allocation10 + $0xef8] sm:$0xff]
    %v1167 = vld [vmem:[#allocation10 + $0xf00] sm:$0xff]
    %v1168 = vld [vmem:[#allocation10 + $0xf08] sm:$0xff]
    %v1169 = vld [vmem:[#allocation10 + $0xf10] sm:$0xff]
    %v1170 = vld [vmem:[#allocation10 + $0xf18] sm:$0xff]
    %v1171 = vld [vmem:[#allocation10 + $0xf20] sm:$0xff]
    %v1172 = vld [vmem:[#allocation10 + $0xf28] sm:$0xff]
    %v1173 = vld [vmem:[#allocation10 + $0xf30] sm:$0xff]
    %v1174 = vld [vmem:[#allocation10 + $0xf38] sm:$0xff]
    %v1175 = vld [vmem:[#allocation10 + $0xf40] sm:$0xff]
    %v1176 = vld [vmem:[#allocation10 + $0xf48] sm:$0xff]
    %v1177 = vld [vmem:[#allocation10 + $0xf50] sm:$0xff]
    %v1178 = vld [vmem:[#allocation10 + $0xf58] sm:$0xff]
    %v1179 = vld [vmem:[#allocation10 + $0xf60] sm:$0xff]
    %v1180 = vld [vmem:[#allocation10 + $0xf68] sm:$0xff]
    %v1181 = vld [vmem:[#allocation10 + $0xf70] sm:$0xff]
    %v1182 = vld [vmem:[#allocation10 + $0xf78] sm:$0xff]
    %v1183 = vld [vmem:[#allocation10 + $0xf80] sm:$0xff]
    %v1184 = vld [vmem:[#allocation10 + $0xf88] sm:$0xff]
    %v1185 = vld [vmem:[#allocation10 + $0xf90] sm:$0xff]
    %v1186 = vld [vmem:[#allocation10 + $0xf98] sm:$0xff]
    %v1187 = vld [vmem:[#allocation10 + $0xfa0] sm:$0xff]
    %v1188 = vld [vmem:[#allocation10 + $0xfa8] sm:$0xff]
    %v1189 = vld [vmem:[#allocation10 + $0xfb0] sm:$0xff]
    %v1190 = vld [vmem:[#allocation10 + $0xfb8] sm:$0xff]
    %v1191 = vld [vmem:[#allocation10 + $0xfc0] sm:$0xff]
    %v1192 = vld [vmem:[#allocation10 + $0xfc8] sm:$0xff]
    %v1193 = vld [vmem:[#allocation10 + $0xfd0] sm:$0xff]
    %v1194 = vld [vmem:[#allocation10 + $0xfd8] sm:$0xff]
    %v1195 = vld [vmem:[#allocation10 + $0xfe0] sm:$0xff]
    %v1196 = vld [vmem:[#allocation10 + $0xfe8] sm:$0xff]
    %v1197 = vld [vmem:[#allocation10 + $0xff0] sm:$0xff]
    %v1198 = vld [vmem:[#allocation10 + $0xff8] sm:$0xff]
    %v1199 = vld [vmem:[#allocation10 + $0x1000] sm:$0xff]
    %v1200 = vld [vmem:[#allocation10 + $0x1008] sm:$0xff]
    %v1201 = vld [vmem:[#allocation10 + $0x1010] sm:$0xff]
    %v1202 = vld [vmem:[#allocation10 + $0x1018] sm:$0xff]
    %v1203 = vld [vmem:[#allocation10 + $0x1020] sm:$0xff]
    %v1204 = vld [vmem:[#allocation10 + $0x1028] sm:$0xff]
    %v1205 = vld [vmem:[#allocation10 + $0x1030] sm:$0xff]
    %v1206 = vld [vmem:[#allocation10 + $0x1038] sm:$0xff]
    %v1207 = vld [vmem:[#allocation10 + $0x1040] sm:$0xff]
    %v1208 = vld [vmem:[#allocation10 + $0x1048] sm:$0xff]
    %v1209 = vld [vmem:[#allocation10 + $0x1050] sm:$0xff]
    %v1210 = vld [vmem:[#allocation10 + $0x1058] sm:$0xff]
    %v1211 = vld [vmem:[#allocation10 + $0x1060] sm:$0xff]
    %v1212 = vld [vmem:[#allocation10 + $0x1068] sm:$0xff]
    %v1213 = vld [vmem:[#allocation10 + $0x1070] sm:$0xff]
    %v1214 = vld [vmem:[#allocation10 + $0x1078] sm:$0xff]
    %v1215 = vld [vmem:[#allocation10 + $0x1080] sm:$0xff]
    %v1216 = vld [vmem:[#allocation10 + $0x1088] sm:$0xff]
    %v1217 = vld [vmem:[#allocation10 + $0x1090] sm:$0xff]
    %v1218 = vld [vmem:[#allocation10 + $0x1098] sm:$0xff]
    %v1219 = vld [vmem:[#allocation10 + $0x10a0] sm:$0xff]
    %v1220 = vld [vmem:[#allocation10 + $0x10a8] sm:$0xff]
    %v1221 = vld [vmem:[#allocation10 + $0x10b0] sm:$0xff]
    %v1222 = vld [vmem:[#allocation10 + $0x10b8] sm:$0xff]
    %v1223 = vld [vmem:[#allocation10 + $0x10c0] sm:$0xff]
    %v1224 = vld [vmem:[#allocation10 + $0x10c8] sm:$0xff]
    %v1225 = vld [vmem:[#allocation10 + $0x10d0] sm:$0xff]
    %v1226 = vld [vmem:[#allocation10 + $0x10d8] sm:$0xff]
    %v1227 = vld [vmem:[#allocation10 + $0x10e0] sm:$0xff]
    %v1228 = vld [vmem:[#allocation10 + $0x10e8] sm:$0xff]
    %v1229 = vld [vmem:[#allocation10 + $0x10f0] sm:$0xff]
    %v1230 = vld [vmem:[#allocation10 + $0x10f8] sm:$0xff]
    %v1231 = vld [vmem:[#allocation10 + $0x1100] sm:$0xff]
    %v1232 = vld [vmem:[#allocation10 + $0x1108] sm:$0xff]
    %v1233 = vld [vmem:[#allocation10 + $0x1110] sm:$0xff]
    %v1234 = vld [vmem:[#allocation10 + $0x1118] sm:$0xff]
    %v1235 = vld [vmem:[#allocation10 + $0x1120] sm:$0xff]
    %v1236 = vld [vmem:[#allocation10 + $0x1128] sm:$0xff]
    %v1237 = vld [vmem:[#allocation10 + $0x1130] sm:$0xff]
    %v1238 = vld [vmem:[#allocation10 + $0x1138] sm:$0xff]
    %v1239 = vld [vmem:[#allocation10 + $0x1140] sm:$0xff]
    %v1240 = vld [vmem:[#allocation10 + $0x1148] sm:$0xff]
    %v1241 = vld [vmem:[#allocation10 + $0x1150] sm:$0xff]
    %v1242 = vld [vmem:[#allocation10 + $0x1158] sm:$0xff]
    %v1243 = vld [vmem:[#allocation10 + $0x1160] sm:$0xff]
    %v1244 = vld [vmem:[#allocation10 + $0x1168] sm:$0xff]
    %v1245 = vld [vmem:[#allocation10 + $0x1170] sm:$0xff]
    %v1246 = vld [vmem:[#allocation10 + $0x1178] sm:$0xff]
    %v1247 = vld [vmem:[#allocation10 + $0x1180] sm:$0xff]
    %v1248 = vld [vmem:[#allocation10 + $0x1188] sm:$0xff]
    %v1249 = vld [vmem:[#allocation10 + $0x1190] sm:$0xff]
    %v1250 = vld [vmem:[#allocation10 + $0x1198] sm:$0xff]
    %v1251 = vld [vmem:[#allocation10 + $0x11a0] sm:$0xff]
    %v1252 = vld [vmem:[#allocation10 + $0x11a8] sm:$0xff]
    %v1253 = vld [vmem:[#allocation10 + $0x11b0] sm:$0xff]
    %v1254 = vld [vmem:[#allocation10 + $0x11b8] sm:$0xff]
    %v1255 = vld [vmem:[#allocation10 + $0x11c0] sm:$0xff]
    %v1256 = vld [vmem:[#allocation10 + $0x11c8] sm:$0xff]
    %v1257 = vld [vmem:[#allocation10 + $0x11d0] sm:$0xff]
    %v1258 = vld [vmem:[#allocation10 + $0x11d8] sm:$0xff]
    %v1259 = vld [vmem:[#allocation10 + $0x11e0] sm:$0xff]
    %v1260 = vld [vmem:[#allocation10 + $0x11e8] sm:$0xff]
    %v1261 = vld [vmem:[#allocation10 + $0x11f0] sm:$0xff]
    %v1262 = vld [vmem:[#allocation10 + $0x11f8] sm:$0xff]
    %v1263 = vld [vmem:[#allocation10 + $0x1200] sm:$0xff]
    %v1264 = vld [vmem:[#allocation10 + $0x1208] sm:$0xff]
    %v1265 = vld [vmem:[#allocation10 + $0x1210] sm:$0xff]
    %v1266 = vld [vmem:[#allocation10 + $0x1218] sm:$0xff]
    %v1267 = vld [vmem:[#allocation10 + $0x1220] sm:$0xff]
    %v1268 = vld [vmem:[#allocation10 + $0x1228] sm:$0xff]
    %v1269 = vld [vmem:[#allocation10 + $0x1230] sm:$0xff]
    %v1270 = vld [vmem:[#allocation10 + $0x1238] sm:$0xff]
    %v1271 = vld [vmem:[#allocation10 + $0x1240] sm:$0xff]
    %v1272 = vld [vmem:[#allocation10 + $0x1248] sm:$0xff]
    %v1273 = vld [vmem:[#allocation10 + $0x1250] sm:$0xff]
    %v1274 = vld [vmem:[#allocation10 + $0x1258] sm:$0xff]
    %v1275 = vld [vmem:[#allocation10 + $0x1260] sm:$0xff]
    %v1276 = vld [vmem:[#allocation10 + $0x1268] sm:$0xff]
    %v1277 = vld [vmem:[#allocation10 + $0x1270] sm:$0xff]
    %v1278 = vld [vmem:[#allocation10 + $0x1278] sm:$0xff]
    %v1279 = vld [vmem:[#allocation10 + $0x1280] sm:$0xff]
    %v1280 = vld [vmem:[#allocation10 + $0x1288] sm:$0xff]
    %v1281 = vld [vmem:[#allocation10 + $0x1290] sm:$0xff]
    %v1282 = vld [vmem:[#allocation10 + $0x1298] sm:$0xff]
    %v1283 = vld [vmem:[#allocation10 + $0x12a0] sm:$0xff]
    %v1284 = vld [vmem:[#allocation10 + $0x12a8] sm:$0xff]
    %v1285 = vld [vmem:[#allocation10 + $0x12b0] sm:$0xff]
    %v1286 = vld [vmem:[#allocation10 + $0x12b8] sm:$0xff]
    %v1287 = vld [vmem:[#allocation10 + $0x12c0] sm:$0xff]
    %v1288 = vld [vmem:[#allocation10 + $0x12c8] sm:$0xff]
    %v1289 = vld [vmem:[#allocation10 + $0x12d0] sm:$0xff]
    %v1290 = vld [vmem:[#allocation10 + $0x12d8] sm:$0xff]
    %v1291 = vld [vmem:[#allocation10 + $0x12e0] sm:$0xff]
    %v1292 = vld [vmem:[#allocation10 + $0x12e8] sm:$0xff]
    %v1293 = vld [vmem:[#allocation10 + $0x12f0] sm:$0xff]
    %v1294 = vld [vmem:[#allocation10 + $0x12f8] sm:$0xff]
    %v1295 = vld [vmem:[#allocation10 + $0x1300] sm:$0xff]
    %v1296 = vld [vmem:[#allocation10 + $0x1308] sm:$0xff]
    %v1297 = vld [vmem:[#allocation10 + $0x1310] sm:$0xff]
    %v1298 = vld [vmem:[#allocation10 + $0x1318] sm:$0xff]
    %v1299 = vld [vmem:[#allocation10 + $0x1320] sm:$0xff]
    %v1300 = vld [vmem:[#allocation10 + $0x1328] sm:$0xff]
    %v1301 = vld [vmem:[#allocation10 + $0x1330] sm:$0xff]
    %v1302 = vld [vmem:[#allocation10 + $0x1338] sm:$0xff]
    %v1303 = vld [vmem:[#allocation10 + $0x1340] sm:$0xff]
    %v1304 = vld [vmem:[#allocation10 + $0x1348] sm:$0xff]
    %v1305 = vld [vmem:[#allocation10 + $0x1350] sm:$0xff]
    %v1306 = vld [vmem:[#allocation10 + $0x1358] sm:$0xff]
    %v1307 = vld [vmem:[#allocation10 + $0x1360] sm:$0xff]
    %v1308 = vld [vmem:[#allocation10 + $0x1368] sm:$0xff]
    %v1309 = vld [vmem:[#allocation10 + $0x1370] sm:$0xff]
    %v1310 = vld [vmem:[#allocation10 + $0x1378] sm:$0xff]
    %v1311 = vld [vmem:[#allocation10 + $0x1380] sm:$0xff]
    %v1312 = vld [vmem:[#allocation10 + $0x1388] sm:$0xff]
    %v1313 = vld [vmem:[#allocation10 + $0x1390] sm:$0xff]
    %v1314 = vld [vmem:[#allocation10 + $0x1398] sm:$0xff]
    %v1315 = vld [vmem:[#allocation10 + $0x13a0] sm:$0xff]
    %v1316 = vld [vmem:[#allocation10 + $0x13a8] sm:$0xff]
    %v1317 = vld [vmem:[#allocation10 + $0x13b0] sm:$0xff]
    %v1318 = vld [vmem:[#allocation10 + $0x13b8] sm:$0xff]
    %v1319 = vld [vmem:[#allocation10 + $0x13c0] sm:$0xff]
    %v1320 = vld [vmem:[#allocation10 + $0x13c8] sm:$0xff]
    %v1321 = vld [vmem:[#allocation10 + $0x13d0] sm:$0xff]
    %v1322 = vld [vmem:[#allocation10 + $0x13d8] sm:$0xff]
    %v1323 = vld [vmem:[#allocation10 + $0x13e0] sm:$0xff]
    %v1324 = vld [vmem:[#allocation10 + $0x13e8] sm:$0xff]
    %v1325 = vld [vmem:[#allocation10 + $0x13f0] sm:$0xff]
    %v1326 = vld [vmem:[#allocation10 + $0x13f8] sm:$0xff]
    %v1327 = vld [vmem:[#allocation10 + $0x1400] sm:$0xff]
    %v1328 = vld [vmem:[#allocation10 + $0x1408] sm:$0xff]
    %v1329 = vld [vmem:[#allocation10 + $0x1410] sm:$0xff]
    %v1330 = vld [vmem:[#allocation10 + $0x1418] sm:$0xff]
    %v1331 = vld [vmem:[#allocation10 + $0x1420] sm:$0xff]
    %v1332 = vld [vmem:[#allocation10 + $0x1428] sm:$0xff]
    %v1333 = vld [vmem:[#allocation10 + $0x1430] sm:$0xff]
    %v1334 = vld [vmem:[#allocation10 + $0x1438] sm:$0xff]
    %v1335 = vld [vmem:[#allocation10 + $0x1440] sm:$0xff]
    %v1336 = vld [vmem:[#allocation10 + $0x1448] sm:$0xff]
    %v1337 = vld [vmem:[#allocation10 + $0x1450] sm:$0xff]
    %v1338 = vld [vmem:[#allocation10 + $0x1458] sm:$0xff]
    %v1339 = vld [vmem:[#allocation10 + $0x1460] sm:$0xff]
    %v1340 = vld [vmem:[#allocation10 + $0x1468] sm:$0xff]
    %v1341 = vld [vmem:[#allocation10 + $0x1470] sm:$0xff]
    %v1342 = vld [vmem:[#allocation10 + $0x1478] sm:$0xff]
    %v1343 = vld [vmem:[#allocation10 + $0x1480] sm:$0xff]
    %v1344 = vld [vmem:[#allocation10 + $0x1488] sm:$0xff]
    %v1345 = vld [vmem:[#allocation10 + $0x1490] sm:$0xff]
    %v1346 = vld [vmem:[#allocation10 + $0x1498] sm:$0xff]
    %v1347 = vld [vmem:[#allocation10 + $0x14a0] sm:$0xff]
    %v1348 = vld [vmem:[#allocation10 + $0x14a8] sm:$0xff]
    %v1349 = vld [vmem:[#allocation10 + $0x14b0] sm:$0xff]
    %v1350 = vld [vmem:[#allocation10 + $0x14b8] sm:$0xff]
    %v1351 = vld [vmem:[#allocation10 + $0x14c0] sm:$0xff]
    %v1352 = vld [vmem:[#allocation10 + $0x14c8] sm:$0xff]
    %v1353 = vld [vmem:[#allocation10 + $0x14d0] sm:$0xff]
    %v1354 = vld [vmem:[#allocation10 + $0x14d8] sm:$0xff]
    %v1355 = vld [vmem:[#allocation10 + $0x14e0] sm:$0xff]
    %v1356 = vld [vmem:[#allocation10 + $0x14e8] sm:$0xff]
    %v1357 = vld [vmem:[#allocation10 + $0x14f0] sm:$0xff]
    %v1358 = vld [vmem:[#allocation10 + $0x14f8] sm:$0xff]
    %v1359 = vld [vmem:[#allocation10 + $0x1500] sm:$0xff]
    %v1360 = vld [vmem:[#allocation10 + $0x1508] sm:$0xff]
    %v1361 = vld [vmem:[#allocation10 + $0x1510] sm:$0xff]
    %v1362 = vld [vmem:[#allocation10 + $0x1518] sm:$0xff]
    %v1363 = vld [vmem:[#allocation10 + $0x1520] sm:$0xff]
    %v1364 = vld [vmem:[#allocation10 + $0x1528] sm:$0xff]
    %v1365 = vld [vmem:[#allocation10 + $0x1530] sm:$0xff]
    %v1366 = vld [vmem:[#allocation10 + $0x1538] sm:$0xff]
    %v1367 = vld [vmem:[#allocation10 + $0x1540] sm:$0xff]
    %v1368 = vld [vmem:[#allocation10 + $0x1548] sm:$0xff]
    %v1369 = vld [vmem:[#allocation10 + $0x1550] sm:$0xff]
    %v1370 = vld [vmem:[#allocation10 + $0x1558] sm:$0xff]
    %v1371 = vld [vmem:[#allocation10 + $0x1560] sm:$0xff]
    %v1372 = vld [vmem:[#allocation10 + $0x1568] sm:$0xff]
    %v1373 = vld [vmem:[#allocation10 + $0x1570] sm:$0xff]
    %v1374 = vld [vmem:[#allocation10 + $0x1578] sm:$0xff]
    %v1375 = vld [vmem:[#allocation10 + $0x1580] sm:$0xff]
    %v1376 = vld [vmem:[#allocation10 + $0x1588] sm:$0xff]
    %v1377 = vld [vmem:[#allocation10 + $0x1590] sm:$0xff]
    %v1378 = vld [vmem:[#allocation10 + $0x1598] sm:$0xff]
    %v1379 = vld [vmem:[#allocation10 + $0x15a0] sm:$0xff]
    %v1380 = vld [vmem:[#allocation10 + $0x15a8] sm:$0xff]
    %v1381 = vld [vmem:[#allocation10 + $0x15b0] sm:$0xff]
    %v1382 = vld [vmem:[#allocation10 + $0x15b8] sm:$0xff]
    %v1383 = vld [vmem:[#allocation10 + $0x15c0] sm:$0xff]
    %v1384 = vld [vmem:[#allocation10 + $0x15c8] sm:$0xff]
    %v1385 = vld [vmem:[#allocation10 + $0x15d0] sm:$0xff]
    %v1386 = vld [vmem:[#allocation10 + $0x15d8] sm:$0xff]
    %v1387 = vld [vmem:[#allocation10 + $0x15e0] sm:$0xff]
    %v1388 = vld [vmem:[#allocation10 + $0x15e8] sm:$0xff]
    %v1389 = vld [vmem:[#allocation10 + $0x15f0] sm:$0xff]
    %v1390 = vld [vmem:[#allocation10 + $0x15f8] sm:$0xff]
    %v1391 = vld [vmem:[#allocation10 + $0x1600] sm:$0xff]
    %v1392 = vld [vmem:[#allocation10 + $0x1608] sm:$0xff]
    %v1393 = vld [vmem:[#allocation10 + $0x1610] sm:$0xff]
    %v1394 = vld [vmem:[#allocation10 + $0x1618] sm:$0xff]
    %v1395 = vld [vmem:[#allocation10 + $0x1620] sm:$0xff]
    %v1396 = vld [vmem:[#allocation10 + $0x1628] sm:$0xff]
    %v1397 = vld [vmem:[#allocation10 + $0x1630] sm:$0xff]
    %v1398 = vld [vmem:[#allocation10 + $0x1638] sm:$0xff]
    %v1399 = vld [vmem:[#allocation10 + $0x1640] sm:$0xff]
    %v1400 = vld [vmem:[#allocation10 + $0x1648] sm:$0xff]
    %v1401 = vld [vmem:[#allocation10 + $0x1650] sm:$0xff]
    %v1402 = vld [vmem:[#allocation10 + $0x1658] sm:$0xff]
    %v1403 = vld [vmem:[#allocation10 + $0x1660] sm:$0xff]
    %v1404 = vld [vmem:[#allocation10 + $0x1668] sm:$0xff]
    %v1405 = vld [vmem:[#allocation10 + $0x1670] sm:$0xff]
    %v1406 = vld [vmem:[#allocation10 + $0x1678] sm:$0xff]
    %v1407 = vld [vmem:[#allocation10 + $0x1680] sm:$0xff]
    %v1408 = vld [vmem:[#allocation10 + $0x1688] sm:$0xff]
    %v1409 = vld [vmem:[#allocation10 + $0x1690] sm:$0xff]
    %v1410 = vld [vmem:[#allocation10 + $0x1698] sm:$0xff]
    %v1411 = vld [vmem:[#allocation10 + $0x16a0] sm:$0xff]
    %v1412 = vld [vmem:[#allocation10 + $0x16a8] sm:$0xff]
    %v1413 = vld [vmem:[#allocation10 + $0x16b0] sm:$0xff]
    %v1414 = vld [vmem:[#allocation10 + $0x16b8] sm:$0xff]
    %v1415 = vld [vmem:[#allocation10 + $0x16c0] sm:$0xff]
    %v1416 = vld [vmem:[#allocation10 + $0x16c8] sm:$0xff]
    %v1417 = vld [vmem:[#allocation10 + $0x16d0] sm:$0xff]
    %v1418 = vld [vmem:[#allocation10 + $0x16d8] sm:$0xff]
    %v1419 = vld [vmem:[#allocation10 + $0x16e0] sm:$0xff]
    %v1420 = vld [vmem:[#allocation10 + $0x16e8] sm:$0xff]
    %v1421 = vld [vmem:[#allocation10 + $0x16f0] sm:$0xff]
    %v1422 = vld [vmem:[#allocation10 + $0x16f8] sm:$0xff]
    %v1423 = vld [vmem:[#allocation10 + $0x1700] sm:$0xff]
    %v1424 = vld [vmem:[#allocation10 + $0x1708] sm:$0xff]
    %v1425 = vld [vmem:[#allocation10 + $0x1710] sm:$0xff]
    %v1426 = vld [vmem:[#allocation10 + $0x1718] sm:$0xff]
    %v1427 = vld [vmem:[#allocation10 + $0x1720] sm:$0xff]
    %v1428 = vld [vmem:[#allocation10 + $0x1728] sm:$0xff]
    %v1429 = vld [vmem:[#allocation10 + $0x1730] sm:$0xff]
    %v1430 = vld [vmem:[#allocation10 + $0x1738] sm:$0xff]
    %v1431 = vld [vmem:[#allocation10 + $0x1740] sm:$0xff]
    %v1432 = vld [vmem:[#allocation10 + $0x1748] sm:$0xff]
    %v1433 = vld [vmem:[#allocation10 + $0x1750] sm:$0xff]
    %v1434 = vld [vmem:[#allocation10 + $0x1758] sm:$0xff]
    %v1435 = vld [vmem:[#allocation10 + $0x1760] sm:$0xff]
    %v1436 = vld [vmem:[#allocation10 + $0x1768] sm:$0xff]
    %v1437 = vld [vmem:[#allocation10 + $0x1770] sm:$0xff]
    %v1438 = vld [vmem:[#allocation10 + $0x1778] sm:$0xff]
    %v1439 = vld [vmem:[#allocation10 + $0x1780] sm:$0xff]
    %v1440 = vld [vmem:[#allocation10 + $0x1788] sm:$0xff]
    %v1441 = vld [vmem:[#allocation10 + $0x1790] sm:$0xff]
    %v1442 = vld [vmem:[#allocation10 + $0x1798] sm:$0xff]
    %v1443 = vld [vmem:[#allocation10 + $0x17a0] sm:$0xff]
    %v1444 = vld [vmem:[#allocation10 + $0x17a8] sm:$0xff]
    %v1445 = vld [vmem:[#allocation10 + $0x17b0] sm:$0xff]
    %v1446 = vld [vmem:[#allocation10 + $0x17b8] sm:$0xff]
    %v1447 = vld [vmem:[#allocation10 + $0x17c0] sm:$0xff]
    %v1448 = vld [vmem:[#allocation10 + $0x17c8] sm:$0xff]
    %v1449 = vld [vmem:[#allocation10 + $0x17d0] sm:$0xff]
    %v1450 = vld [vmem:[#allocation10 + $0x17d8] sm:$0xff]
    %v1451 = vld [vmem:[#allocation10 + $0x17e0] sm:$0xff]
    %v1452 = vld [vmem:[#allocation10 + $0x17e8] sm:$0xff]
    %v1453 = vld [vmem:[#allocation10 + $0x17f0] sm:$0xff]
    %v1454 = vld [vmem:[#allocation10 + $0x17f8] sm:$0xff]
    %v1455 = vld [vmem:[#allocation10 + $0x1800] sm:$0xff]
    %v1456 = vld [vmem:[#allocation10 + $0x1808] sm:$0xff]
    %v1457 = vld [vmem:[#allocation10 + $0x1810] sm:$0xff]
    %v1458 = vld [vmem:[#allocation10 + $0x1818] sm:$0xff]
    %v1459 = vld [vmem:[#allocation10 + $0x1820] sm:$0xff]
    %v1460 = vld [vmem:[#allocation10 + $0x1828] sm:$0xff]
    %v1461 = vld [vmem:[#allocation10 + $0x1830] sm:$0xff]
    %v1462 = vld [vmem:[#allocation10 + $0x1838] sm:$0xff]
    %v1463 = vld [vmem:[#allocation10 + $0x1840] sm:$0xff]
    %v1464 = vld [vmem:[#allocation10 + $0x1848] sm:$0xff]
    %v1465 = vld [vmem:[#allocation10 + $0x1850] sm:$0xff]
    %v1466 = vld [vmem:[#allocation10 + $0x1858] sm:$0xff]
    %v1467 = vld [vmem:[#allocation10 + $0x1860] sm:$0xff]
    %v1468 = vld [vmem:[#allocation10 + $0x1868] sm:$0xff]
    %v1469 = vld [vmem:[#allocation10 + $0x1870] sm:$0xff]
    %v1470 = vld [vmem:[#allocation10 + $0x1878] sm:$0xff]
    %v1471 = vld [vmem:[#allocation10 + $0x1880] sm:$0xff]
    %v1472 = vld [vmem:[#allocation10 + $0x1888] sm:$0xff]
    %v1473 = vld [vmem:[#allocation10 + $0x1890] sm:$0xff]
    %v1474 = vld [vmem:[#allocation10 + $0x1898] sm:$0xff]
    %v1475 = vld [vmem:[#allocation10 + $0x18a0] sm:$0xff]
    %v1476 = vld [vmem:[#allocation10 + $0x18a8] sm:$0xff]
    %v1477 = vld [vmem:[#allocation10 + $0x18b0] sm:$0xff]
    %v1478 = vld [vmem:[#allocation10 + $0x18b8] sm:$0xff]
    %v1479 = vld [vmem:[#allocation10 + $0x18c0] sm:$0xff]
    %v1480 = vld [vmem:[#allocation10 + $0x18c8] sm:$0xff]
    %v1481 = vld [vmem:[#allocation10 + $0x18d0] sm:$0xff]
    %v1482 = vld [vmem:[#allocation10 + $0x18d8] sm:$0xff]
    %v1483 = vld [vmem:[#allocation10 + $0x18e0] sm:$0xff]
    %v1484 = vld [vmem:[#allocation10 + $0x18e8] sm:$0xff]
    %v1485 = vld [vmem:[#allocation10 + $0x18f0] sm:$0xff]
    %v1486 = vld [vmem:[#allocation10 + $0x18f8] sm:$0xff]
    %v1487 = vld [vmem:[#allocation10 + $0x1900] sm:$0xff]
    %v1488 = vld [vmem:[#allocation10 + $0x1908] sm:$0xff]
    %v1489 = vld [vmem:[#allocation10 + $0x1910] sm:$0xff]
    %v1490 = vld [vmem:[#allocation10 + $0x1918] sm:$0xff]
    %v1491 = vld [vmem:[#allocation10 + $0x1920] sm:$0xff]
    %v1492 = vld [vmem:[#allocation10 + $0x1928] sm:$0xff]
    %v1493 = vld [vmem:[#allocation10 + $0x1930] sm:$0xff]
    %v1494 = vld [vmem:[#allocation10 + $0x1938] sm:$0xff]
    %v1495 = vld [vmem:[#allocation10 + $0x1940] sm:$0xff]
    %v1496 = vld [vmem:[#allocation10 + $0x1948] sm:$0xff]
    %v1497 = vld [vmem:[#allocation10 + $0x1950] sm:$0xff]
    %v1498 = vld [vmem:[#allocation10 + $0x1958] sm:$0xff]
    %v1499 = vld [vmem:[#allocation10 + $0x1960] sm:$0xff]
    %v1500 = vld [vmem:[#allocation10 + $0x1968] sm:$0xff]
    %v1501 = vld [vmem:[#allocation10 + $0x1970] sm:$0xff]
    %v1502 = vld [vmem:[#allocation10 + $0x1978] sm:$0xff]
    %v1503 = vld [vmem:[#allocation10 + $0x1980] sm:$0xff]
    %v1504 = vld [vmem:[#allocation10 + $0x1988] sm:$0xff]
    %v1505 = vld [vmem:[#allocation10 + $0x1990] sm:$0xff]
    %v1506 = vld [vmem:[#allocation10 + $0x1998] sm:$0xff]
    %v1507 = vld [vmem:[#allocation10 + $0x19a0] sm:$0xff]
    %v1508 = vld [vmem:[#allocation10 + $0x19a8] sm:$0xff]
    %v1509 = vld [vmem:[#allocation10 + $0x19b0] sm:$0xff]
    %v1510 = vld [vmem:[#allocation10 + $0x19b8] sm:$0xff]
    %v1511 = vld [vmem:[#allocation10 + $0x19c0] sm:$0xff]
    %v1512 = vld [vmem:[#allocation10 + $0x19c8] sm:$0xff]
    %v1513 = vld [vmem:[#allocation10 + $0x19d0] sm:$0xff]
    %v1514 = vld [vmem:[#allocation10 + $0x19d8] sm:$0xff]
    %v1515 = vld [vmem:[#allocation10 + $0x19e0] sm:$0xff]
    %v1516 = vld [vmem:[#allocation10 + $0x19e8] sm:$0xff]
    %v1517 = vld [vmem:[#allocation10 + $0x19f0] sm:$0xff]
    %v1518 = vld [vmem:[#allocation10 + $0x19f8] sm:$0xff]
    %v1519 = vld [vmem:[#allocation10 + $0x1a00] sm:$0xff]
    %v1520 = vld [vmem:[#allocation10 + $0x1a08] sm:$0xff]
    %v1521 = vld [vmem:[#allocation10 + $0x1a10] sm:$0xff]
    %v1522 = vld [vmem:[#allocation10 + $0x1a18] sm:$0xff]
    %v1523 = vld [vmem:[#allocation10 + $0x1a20] sm:$0xff]
    %v1524 = vld [vmem:[#allocation10 + $0x1a28] sm:$0xff]
    %v1525 = vld [vmem:[#allocation10 + $0x1a30] sm:$0xff]
    %v1526 = vld [vmem:[#allocation10 + $0x1a38] sm:$0xff]
    %v1527 = vld [vmem:[#allocation10 + $0x1a40] sm:$0xff]
    %v1528 = vld [vmem:[#allocation10 + $0x1a48] sm:$0xff]
    %v1529 = vld [vmem:[#allocation10 + $0x1a50] sm:$0xff]
    %v1530 = vld [vmem:[#allocation10 + $0x1a58] sm:$0xff]
    %v1531 = vld [vmem:[#allocation10 + $0x1a60] sm:$0xff]
    %v1532 = vld [vmem:[#allocation10 + $0x1a68] sm:$0xff]
    %v1533 = vld [vmem:[#allocation10 + $0x1a70] sm:$0xff]
    %v1534 = vld [vmem:[#allocation10 + $0x1a78] sm:$0xff]
    %v1535 = vld [vmem:[#allocation10 + $0x1a80] sm:$0xff]
    %v1536 = vld [vmem:[#allocation10 + $0x1a88] sm:$0xff]
    %v1537 = vld [vmem:[#allocation10 + $0x1a90] sm:$0xff]
    %v1538 = vld [vmem:[#allocation10 + $0x1a98] sm:$0xff]
    %v1539 = vld [vmem:[#allocation10 + $0x1aa0] sm:$0xff]
    %v1540 = vld [vmem:[#allocation10 + $0x1aa8] sm:$0xff]
    %v1541 = vld [vmem:[#allocation10 + $0x1ab0] sm:$0xff]
    %v1542 = vld [vmem:[#allocation10 + $0x1ab8] sm:$0xff]
    %v1543 = vld [vmem:[#allocation10 + $0x1ac0] sm:$0xff]
    %v1544 = vld [vmem:[#allocation10 + $0x1ac8] sm:$0xff]
    %v1545 = vld [vmem:[#allocation10 + $0x1ad0] sm:$0xff]
    %v1546 = vld [vmem:[#allocation10 + $0x1ad8] sm:$0xff]
    %v1547 = vld [vmem:[#allocation10 + $0x1ae0] sm:$0xff]
    %v1548 = vld [vmem:[#allocation10 + $0x1ae8] sm:$0xff]
    %v1549 = vld [vmem:[#allocation10 + $0x1af0] sm:$0xff]
    %v1550 = vld [vmem:[#allocation10 + $0x1af8] sm:$0xff]
    %v1551 = vld [vmem:[#allocation10 + $0x1b00] sm:$0xff]
    %v1552 = vld [vmem:[#allocation10 + $0x1b08] sm:$0xff]
    %v1553 = vld [vmem:[#allocation10 + $0x1b10] sm:$0xff]
    %v1554 = vld [vmem:[#allocation10 + $0x1b18] sm:$0xff]
    %v1555 = vld [vmem:[#allocation10 + $0x1b20] sm:$0xff]
    %v1556 = vld [vmem:[#allocation10 + $0x1b28] sm:$0xff]
    %v1557 = vld [vmem:[#allocation10 + $0x1b30] sm:$0xff]
    %v1558 = vld [vmem:[#allocation10 + $0x1b38] sm:$0xff]
    %v1559 = vld [vmem:[#allocation10 + $0x1b40] sm:$0xff]
    %v1560 = vld [vmem:[#allocation10 + $0x1b48] sm:$0xff]
    %v1561 = vld [vmem:[#allocation10 + $0x1b50] sm:$0xff]
    %v1562 = vld [vmem:[#allocation10 + $0x1b58] sm:$0xff]
    %v1563 = vld [vmem:[#allocation10 + $0x1b60] sm:$0xff]
    %v1564 = vld [vmem:[#allocation10 + $0x1b68] sm:$0xff]
    %v1565 = vld [vmem:[#allocation10 + $0x1b70] sm:$0xff]
    %v1566 = vld [vmem:[#allocation10 + $0x1b78] sm:$0xff]
    %v1567 = vld [vmem:[#allocation10 + $0x1b80] sm:$0xff]
    %v1568 = vld [vmem:[#allocation10 + $0x1b88] sm:$0xff]
    %v1569 = vld [vmem:[#allocation10 + $0x1b90] sm:$0xff]
    %v1570 = vld [vmem:[#allocation10 + $0x1b98] sm:$0xff]
    %v1571 = vld [vmem:[#allocation10 + $0x1ba0] sm:$0xff]
    %v1572 = vld [vmem:[#allocation10 + $0x1ba8] sm:$0xff]
    %v1573 = vld [vmem:[#allocation10 + $0x1bb0] sm:$0xff]
    %v1574 = vld [vmem:[#allocation10 + $0x1bb8] sm:$0xff]
    %v1575 = vld [vmem:[#allocation10 + $0x1bc0] sm:$0xff]
    %v1576 = vld [vmem:[#allocation10 + $0x1bc8] sm:$0xff]
    %v1577 = vld [vmem:[#allocation10 + $0x1bd0] sm:$0xff]
    %v1578 = vld [vmem:[#allocation10 + $0x1bd8] sm:$0xff]
    %v1579 = vld [vmem:[#allocation10 + $0x1be0] sm:$0xff]
    %v1580 = vld [vmem:[#allocation10 + $0x1be8] sm:$0xff]
    %v1581 = vld [vmem:[#allocation10 + $0x1bf0] sm:$0xff]
    %v1582 = vld [vmem:[#allocation10 + $0x1bf8] sm:$0xff]
    %v1583 = vld [vmem:[#allocation10 + $0x1c00] sm:$0xff]
    %v1584 = vld [vmem:[#allocation10 + $0x1c08] sm:$0xff]
    %v1585 = vld [vmem:[#allocation10 + $0x1c10] sm:$0xff]
    %v1586 = vld [vmem:[#allocation10 + $0x1c18] sm:$0xff]
    %v1587 = vld [vmem:[#allocation10 + $0x1c20] sm:$0xff]
    %v1588 = vld [vmem:[#allocation10 + $0x1c28] sm:$0xff]
    %v1589 = vld [vmem:[#allocation10 + $0x1c30] sm:$0xff]
    %v1590 = vld [vmem:[#allocation10 + $0x1c38] sm:$0xff]
    %v1591 = vld [vmem:[#allocation10 + $0x1c40] sm:$0xff]
    %v1592 = vld [vmem:[#allocation10 + $0x1c48] sm:$0xff]
    %v1593 = vld [vmem:[#allocation10 + $0x1c50] sm:$0xff]
    %v1594 = vld [vmem:[#allocation10 + $0x1c58] sm:$0xff]
    %v1595 = vld [vmem:[#allocation10 + $0x1c60] sm:$0xff]
    %v1596 = vld [vmem:[#allocation10 + $0x1c68] sm:$0xff]
    %v1597 = vld [vmem:[#allocation10 + $0x1c70] sm:$0xff]
    %v1598 = vld [vmem:[#allocation10 + $0x1c78] sm:$0xff]
    %v1599 = vld [vmem:[#allocation10 + $0x1c80] sm:$0xff]
    %v1600 = vld [vmem:[#allocation10 + $0x1c88] sm:$0xff]
    %v1601 = vld [vmem:[#allocation10 + $0x1c90] sm:$0xff]
    %v1602 = vld [vmem:[#allocation10 + $0x1c98] sm:$0xff]
    %v1603 = vld [vmem:[#allocation10 + $0x1ca0] sm:$0xff]
    %v1604 = vld [vmem:[#allocation10 + $0x1ca8] sm:$0xff]
    %v1605 = vld [vmem:[#allocation10 + $0x1cb0] sm:$0xff]
    %v1606 = vld [vmem:[#allocation10 + $0x1cb8] sm:$0xff]
    %v1607 = vld [vmem:[#allocation10 + $0x1cc0] sm:$0xff]
    %v1608 = vld [vmem:[#allocation10 + $0x1cc8] sm:$0xff]
    %v1609 = vld [vmem:[#allocation10 + $0x1cd0] sm:$0xff]
    %v1610 = vld [vmem:[#allocation10 + $0x1cd8] sm:$0xff]
    %v1611 = vld [vmem:[#allocation10 + $0x1ce0] sm:$0xff]
    %v1612 = vld [vmem:[#allocation10 + $0x1ce8] sm:$0xff]
    %v1613 = vld [vmem:[#allocation10 + $0x1cf0] sm:$0xff]
    %v1614 = vld [vmem:[#allocation10 + $0x1cf8] sm:$0xff]
    %v1615 = vld [vmem:[#allocation10 + $0x1d00] sm:$0xff]
    %v1616 = vld [vmem:[#allocation10 + $0x1d08] sm:$0xff]
    %v1617 = vld [vmem:[#allocation10 + $0x1d10] sm:$0xff]
    %v1618 = vld [vmem:[#allocation10 + $0x1d18] sm:$0xff]
    %v1619 = vld [vmem:[#allocation10 + $0x1d20] sm:$0xff]
    %v1620 = vld [vmem:[#allocation10 + $0x1d28] sm:$0xff]
    %v1621 = vld [vmem:[#allocation10 + $0x1d30] sm:$0xff]
    %v1622 = vld [vmem:[#allocation10 + $0x1d38] sm:$0xff]
    %v1623 = vld [vmem:[#allocation10 + $0x1d40] sm:$0xff]
    %v1624 = vld [vmem:[#allocation10 + $0x1d48] sm:$0xff]
    %v1625 = vld [vmem:[#allocation10 + $0x1d50] sm:$0xff]
    %v1626 = vld [vmem:[#allocation10 + $0x1d58] sm:$0xff]
    %v1627 = vld [vmem:[#allocation10 + $0x1d60] sm:$0xff]
    %v1628 = vld [vmem:[#allocation10 + $0x1d68] sm:$0xff]
    %v1629 = vld [vmem:[#allocation10 + $0x1d70] sm:$0xff]
    %v1630 = vld [vmem:[#allocation10 + $0x1d78] sm:$0xff]
    %v1631 = vld [vmem:[#allocation10 + $0x1d80] sm:$0xff]
    %v1632 = vld [vmem:[#allocation10 + $0x1d88] sm:$0xff]
    %v1633 = vld [vmem:[#allocation10 + $0x1d90] sm:$0xff]
    %v1634 = vld [vmem:[#allocation10 + $0x1d98] sm:$0xff]
    %v1635 = vld [vmem:[#allocation10 + $0x1da0] sm:$0xff]
    %v1636 = vld [vmem:[#allocation10 + $0x1da8] sm:$0xff]
    %v1637 = vld [vmem:[#allocation10 + $0x1db0] sm:$0xff]
    %v1638 = vld [vmem:[#allocation10 + $0x1db8] sm:$0xff]
    %v1639 = vld [vmem:[#allocation10 + $0x1dc0] sm:$0xff]
    %v1640 = vld [vmem:[#allocation10 + $0x1dc8] sm:$0xff]
    %v1641 = vld [vmem:[#allocation10 + $0x1dd0] sm:$0xff]
    %v1642 = vld [vmem:[#allocation10 + $0x1dd8] sm:$0xff]
    %v1643 = vld [vmem:[#allocation10 + $0x1de0] sm:$0xff]
    %v1644 = vld [vmem:[#allocation10 + $0x1de8] sm:$0xff]
    %v1645 = vld [vmem:[#allocation10 + $0x1df0] sm:$0xff]
    %v1646 = vld [vmem:[#allocation10 + $0x1df8] sm:$0xff]
    %v1647 = vld [vmem:[#allocation10 + $0x1e00] sm:$0xff]
    %v1648 = vld [vmem:[#allocation10 + $0x1e08] sm:$0xff]
    %v1649 = vld [vmem:[#allocation10 + $0x1e10] sm:$0xff]
    %v1650 = vld [vmem:[#allocation10 + $0x1e18] sm:$0xff]
    %v1651 = vld [vmem:[#allocation10 + $0x1e20] sm:$0xff]
    %v1652 = vld [vmem:[#allocation10 + $0x1e28] sm:$0xff]
    %v1653 = vld [vmem:[#allocation10 + $0x1e30] sm:$0xff]
    %v1654 = vld [vmem:[#allocation10 + $0x1e38] sm:$0xff]
    %v1655 = vld [vmem:[#allocation10 + $0x1e40] sm:$0xff]
    %v1656 = vld [vmem:[#allocation10 + $0x1e48] sm:$0xff]
    %v1657 = vld [vmem:[#allocation10 + $0x1e50] sm:$0xff]
    %v1658 = vld [vmem:[#allocation10 + $0x1e58] sm:$0xff]
    %v1659 = vld [vmem:[#allocation10 + $0x1e60] sm:$0xff]
    %v1660 = vld [vmem:[#allocation10 + $0x1e68] sm:$0xff]
    %v1661 = vld [vmem:[#allocation10 + $0x1e70] sm:$0xff]
    %v1662 = vld [vmem:[#allocation10 + $0x1e78] sm:$0xff]
    %v1663 = vld [vmem:[#allocation10 + $0x1e80] sm:$0xff]
    %v1664 = vld [vmem:[#allocation10 + $0x1e88] sm:$0xff]
    %v1665 = vld [vmem:[#allocation10 + $0x1e90] sm:$0xff]
    %v1666 = vld [vmem:[#allocation10 + $0x1e98] sm:$0xff]
    %v1667 = vld [vmem:[#allocation10 + $0x1ea0] sm:$0xff]
    %v1668 = vld [vmem:[#allocation10 + $0x1ea8] sm:$0xff]
    %v1669 = vld [vmem:[#allocation10 + $0x1eb0] sm:$0xff]
    %v1670 = vld [vmem:[#allocation10 + $0x1eb8] sm:$0xff]
    %v1671 = vld [vmem:[#allocation10 + $0x1ec0] sm:$0xff]
    %v1672 = vld [vmem:[#allocation10 + $0x1ec8] sm:$0xff]
    %v1673 = vld [vmem:[#allocation10 + $0x1ed0] sm:$0xff]
    %v1674 = vld [vmem:[#allocation10 + $0x1ed8] sm:$0xff]
    %v1675 = vld [vmem:[#allocation10 + $0x1ee0] sm:$0xff]
    %v1676 = vld [vmem:[#allocation10 + $0x1ee8] sm:$0xff]
    %v1677 = vld [vmem:[#allocation10 + $0x1ef0] sm:$0xff]
    %v1678 = vld [vmem:[#allocation10 + $0x1ef8] sm:$0xff]
    %v1679 = vld [vmem:[#allocation10 + $0x1f00] sm:$0xff]
    %v1680 = vld [vmem:[#allocation10 + $0x1f08] sm:$0xff]
    %v1681 = vld [vmem:[#allocation10 + $0x1f10] sm:$0xff]
    %v1682 = vld [vmem:[#allocation10 + $0x1f18] sm:$0xff]
    %v1683 = vld [vmem:[#allocation10 + $0x1f20] sm:$0xff]
    %v1684 = vld [vmem:[#allocation10 + $0x1f28] sm:$0xff]
    %v1685 = vld [vmem:[#allocation10 + $0x1f30] sm:$0xff]
    %v1686 = vld [vmem:[#allocation10 + $0x1f38] sm:$0xff]
    %v1687 = vld [vmem:[#allocation10 + $0x1f40] sm:$0xff]
    %v1688 = vld [vmem:[#allocation10 + $0x1f48] sm:$0xff]
    %v1689 = vld [vmem:[#allocation10 + $0x1f50] sm:$0xff]
    %v1690 = vld [vmem:[#allocation10 + $0x1f58] sm:$0xff]
    %v1691 = vld [vmem:[#allocation10 + $0x1f60] sm:$0xff]
    %v1692 = vld [vmem:[#allocation10 + $0x1f68] sm:$0xff]
    %v1693 = vld [vmem:[#allocation10 + $0x1f70] sm:$0xff]
    %v1694 = vld [vmem:[#allocation10 + $0x1f78] sm:$0xff]
    %v1695 = vld [vmem:[#allocation10 + $0x1f80] sm:$0xff]
    %v1696 = vld [vmem:[#allocation10 + $0x1f88] sm:$0xff]
    %v1697 = vld [vmem:[#allocation10 + $0x1f90] sm:$0xff]
    %v1698 = vld [vmem:[#allocation10 + $0x1f98] sm:$0xff]
    %v1699 = vld [vmem:[#allocation10 + $0x1fa0] sm:$0xff]
    %v1700 = vld [vmem:[#allocation10 + $0x1fa8] sm:$0xff]
    %v1701 = vld [vmem:[#allocation10 + $0x1fb0] sm:$0xff]
    %v1702 = vld [vmem:[#allocation10 + $0x1fb8] sm:$0xff]
    %v1703 = vld [vmem:[#allocation10 + $0x1fc0] sm:$0xff]
    %v1704 = vld [vmem:[#allocation10 + $0x1fc8] sm:$0xff]
    %v1705 = vld [vmem:[#allocation10 + $0x1fd0] sm:$0xff]
    %v1706 = vld [vmem:[#allocation10 + $0x1fd8] sm:$0xff]
    %v1707 = vld [vmem:[#allocation10 + $0x1fe0] sm:$0xff]
    %v1708 = vld [vmem:[#allocation10 + $0x1fe8] sm:$0xff]
    %v1709 = vld [vmem:[#allocation10 + $0x1ff0] sm:$0xff]
    %v1710 = vld [vmem:[#allocation10 + $0x1ff8] sm:$0xff]
    %v1711 = vld [vmem:[#allocation10 + $0x2000] sm:$0xff]
    %v1712 = vld [vmem:[#allocation10 + $0x2008] sm:$0xff]
    %v1713 = vld [vmem:[#allocation10 + $0x2010] sm:$0xff]
    %v1714 = vld [vmem:[#allocation10 + $0x2018] sm:$0xff]
    %v1715 = vld [vmem:[#allocation10 + $0x2020] sm:$0xff]
    %v1716 = vld [vmem:[#allocation10 + $0x2028] sm:$0xff]
    %v1717 = vld [vmem:[#allocation10 + $0x2030] sm:$0xff]
    %v1718 = vld [vmem:[#allocation10 + $0x2038] sm:$0xff]
    %v1719 = vld [vmem:[#allocation10 + $0x2040] sm:$0xff]
    %v1720 = vld [vmem:[#allocation10 + $0x2048] sm:$0xff]
    %v1721 = vld [vmem:[#allocation10 + $0x2050] sm:$0xff]
    %v1722 = vld [vmem:[#allocation10 + $0x2058] sm:$0xff]
    %v1723 = vld [vmem:[#allocation10 + $0x2060] sm:$0xff]
    %v1724 = vld [vmem:[#allocation10 + $0x2068] sm:$0xff]
    %v1725 = vld [vmem:[#allocation10 + $0x2070] sm:$0xff]
    %v1726 = vld [vmem:[#allocation10 + $0x2078] sm:$0xff]
    %v1727 = vld [vmem:[#allocation10 + $0x2080] sm:$0xff]
    %v1728 = vld [vmem:[#allocation10 + $0x2088] sm:$0xff]
    %v1729 = vld [vmem:[#allocation10 + $0x2090] sm:$0xff]
    %v1730 = vld [vmem:[#allocation10 + $0x2098] sm:$0xff]
    %v1731 = vld [vmem:[#allocation10 + $0x20a0] sm:$0xff]
    %v1732 = vld [vmem:[#allocation10 + $0x20a8] sm:$0xff]
    %v1733 = vld [vmem:[#allocation10 + $0x20b0] sm:$0xff]
    %v1734 = vld [vmem:[#allocation10 + $0x20b8] sm:$0xff]
    %v1735 = vld [vmem:[#allocation10 + $0x20c0] sm:$0xff]
    %v1736 = vld [vmem:[#allocation10 + $0x20c8] sm:$0xff]
    %v1737 = vld [vmem:[#allocation10 + $0x20d0] sm:$0xff]
    %v1738 = vld [vmem:[#allocation10 + $0x20d8] sm:$0xff]
    %v1739 = vld [vmem:[#allocation10 + $0x20e0] sm:$0xff]
    %v1740 = vld [vmem:[#allocation10 + $0x20e8] sm:$0xff]
    %v1741 = vld [vmem:[#allocation10 + $0x20f0] sm:$0xff]
    %v1742 = vld [vmem:[#allocation10 + $0x20f8] sm:$0xff]
    %v1743 = vld [vmem:[#allocation10 + $0x2100] sm:$0xff]
    %v1744 = vld [vmem:[#allocation10 + $0x2108] sm:$0xff]
    %v1745 = vld [vmem:[#allocation10 + $0x2110] sm:$0xff]
    %v1746 = vld [vmem:[#allocation10 + $0x2118] sm:$0xff]
    %v1747 = vld [vmem:[#allocation10 + $0x2120] sm:$0xff]
    %v1748 = vld [vmem:[#allocation10 + $0x2128] sm:$0xff]
    %v1749 = vld [vmem:[#allocation10 + $0x2130] sm:$0xff]
    %v1750 = vld [vmem:[#allocation10 + $0x2138] sm:$0xff]
    %v1751 = vld [vmem:[#allocation10 + $0x2140] sm:$0xff]
    %v1752 = vld [vmem:[#allocation10 + $0x2148] sm:$0xff]
    %v1753 = vld [vmem:[#allocation10 + $0x2150] sm:$0xff]
    %v1754 = vld [vmem:[#allocation10 + $0x2158] sm:$0xff]
    %v1755 = vld [vmem:[#allocation10 + $0x2160] sm:$0xff]
    %v1756 = vld [vmem:[#allocation10 + $0x2168] sm:$0xff]
    %v1757 = vld [vmem:[#allocation10 + $0x2170] sm:$0xff]
    %v1758 = vld [vmem:[#allocation10 + $0x2178] sm:$0xff]
    %v1759 = vld [vmem:[#allocation10 + $0x2180] sm:$0xff]
    %v1760 = vld [vmem:[#allocation10 + $0x2188] sm:$0xff]
    %v1761 = vld [vmem:[#allocation10 + $0x2190] sm:$0xff]
    %v1762 = vld [vmem:[#allocation10 + $0x2198] sm:$0xff]
    %v1763 = vld [vmem:[#allocation10 + $0x21a0] sm:$0xff]
    %v1764 = vld [vmem:[#allocation10 + $0x21a8] sm:$0xff]
    %v1765 = vld [vmem:[#allocation10 + $0x21b0] sm:$0xff]
    %v1766 = vld [vmem:[#allocation10 + $0x21b8] sm:$0xff]
    %v1767 = vld [vmem:[#allocation10 + $0x21c0] sm:$0xff]
    %v1768 = vld [vmem:[#allocation10 + $0x21c8] sm:$0xff]
    %v1769 = vld [vmem:[#allocation10 + $0x21d0] sm:$0xff]
    %v1770 = vld [vmem:[#allocation10 + $0x21d8] sm:$0xff]
    %v1771 = vld [vmem:[#allocation10 + $0x21e0] sm:$0xff]
    %v1772 = vld [vmem:[#allocation10 + $0x21e8] sm:$0xff]
    %v1773 = vld [vmem:[#allocation10 + $0x21f0] sm:$0xff]
    %v1774 = vld [vmem:[#allocation10 + $0x21f8] sm:$0xff]
    %v1775 = vld [vmem:[#allocation10 + $0x2200] sm:$0xff]
    %v1776 = vld [vmem:[#allocation10 + $0x2208] sm:$0xff]
    %v1777 = vld [vmem:[#allocation10 + $0x2210] sm:$0xff]
    %v1778 = vld [vmem:[#allocation10 + $0x2218] sm:$0xff]
    %v1779 = vld [vmem:[#allocation10 + $0x2220] sm:$0xff]
    %v1780 = vld [vmem:[#allocation10 + $0x2228] sm:$0xff]
    %v1781 = vld [vmem:[#allocation10 + $0x2230] sm:$0xff]
    %v1782 = vld [vmem:[#allocation10 + $0x2238] sm:$0xff]
    %v1783 = vld [vmem:[#allocation10 + $0x2240] sm:$0xff]
    %v1784 = vld [vmem:[#allocation10 + $0x2248] sm:$0xff]
    %v1785 = vld [vmem:[#allocation10 + $0x2250] sm:$0xff]
    %v1786 = vld [vmem:[#allocation10 + $0x2258] sm:$0xff]
    %v1787 = vld [vmem:[#allocation10 + $0x2260] sm:$0xff]
    %v1788 = vld [vmem:[#allocation10 + $0x2268] sm:$0xff]
    %v1789 = vld [vmem:[#allocation10 + $0x2270] sm:$0xff]
    %v1790 = vld [vmem:[#allocation10 + $0x2278] sm:$0xff]
    %v1791 = vld [vmem:[#allocation10 + $0x2280] sm:$0xff]
    %v1792 = vld [vmem:[#allocation10 + $0x2288] sm:$0xff]
    %v1793 = vld [vmem:[#allocation10 + $0x2290] sm:$0xff]
    %v1794 = vld [vmem:[#allocation10 + $0x2298] sm:$0xff]
    %v1795 = vld [vmem:[#allocation10 + $0x22a0] sm:$0xff]
    %v1796 = vld [vmem:[#allocation10 + $0x22a8] sm:$0xff]
    %v1797 = vld [vmem:[#allocation10 + $0x22b0] sm:$0xff]
    %v1798 = vld [vmem:[#allocation10 + $0x22b8] sm:$0xff]
    %v1799 = vld [vmem:[#allocation10 + $0x22c0] sm:$0xff]
    %v1800 = vld [vmem:[#allocation10 + $0x22c8] sm:$0xff]
    %v1801 = vld [vmem:[#allocation10 + $0x22d0] sm:$0xff]
    %v1802 = vld [vmem:[#allocation10 + $0x22d8] sm:$0xff]
    %v1803 = vld [vmem:[#allocation10 + $0x22e0] sm:$0xff]
    %v1804 = vld [vmem:[#allocation10 + $0x22e8] sm:$0xff]
    %v1805 = vld [vmem:[#allocation10 + $0x22f0] sm:$0xff]
    %v1806 = vld [vmem:[#allocation10 + $0x22f8] sm:$0xff]
    %v1807 = vld [vmem:[#allocation10 + $0x2300] sm:$0xff]
    %v1808 = vld [vmem:[#allocation10 + $0x2308] sm:$0xff]
    %v1809 = vld [vmem:[#allocation10 + $0x2310] sm:$0xff]
    %v1810 = vld [vmem:[#allocation10 + $0x2318] sm:$0xff]
    %v1811 = vld [vmem:[#allocation10 + $0x2320] sm:$0xff]
    %v1812 = vld [vmem:[#allocation10 + $0x2328] sm:$0xff]
    %v1813 = vld [vmem:[#allocation10 + $0x2330] sm:$0xff]
    %v1814 = vld [vmem:[#allocation10 + $0x2338] sm:$0xff]
    %v1815 = vld [vmem:[#allocation10 + $0x2340] sm:$0xff]
    %v1816 = vld [vmem:[#allocation10 + $0x2348] sm:$0xff]
    %v1817 = vld [vmem:[#allocation10 + $0x2350] sm:$0xff]
    %v1818 = vld [vmem:[#allocation10 + $0x2358] sm:$0xff]
    %v1819 = vld [vmem:[#allocation10 + $0x2360] sm:$0xff]
    %v1820 = vld [vmem:[#allocation10 + $0x2368] sm:$0xff]
    %v1821 = vld [vmem:[#allocation10 + $0x2370] sm:$0xff]
    %v1822 = vld [vmem:[#allocation10 + $0x2378] sm:$0xff]
    %v1823 = vld [vmem:[#allocation10 + $0x2380] sm:$0xff]
    %v1824 = vld [vmem:[#allocation10 + $0x2388] sm:$0xff]
    %v1825 = vld [vmem:[#allocation10 + $0x2390] sm:$0xff]
    %v1826 = vld [vmem:[#allocation10 + $0x2398] sm:$0xff]
    %v1827 = vld [vmem:[#allocation10 + $0x23a0] sm:$0xff]
    %v1828 = vld [vmem:[#allocation10 + $0x23a8] sm:$0xff]
    %v1829 = vld [vmem:[#allocation10 + $0x23b0] sm:$0xff]
    %v1830 = vld [vmem:[#allocation10 + $0x23b8] sm:$0xff]
    %v1831 = vld [vmem:[#allocation10 + $0x23c0] sm:$0xff]
    %v1832 = vld [vmem:[#allocation10 + $0x23c8] sm:$0xff]
    %v1833 = vld [vmem:[#allocation10 + $0x23d0] sm:$0xff]
    %v1834 = vld [vmem:[#allocation10 + $0x23d8] sm:$0xff]
    %v1835 = vld [vmem:[#allocation10 + $0x23e0] sm:$0xff]
    %v1836 = vld [vmem:[#allocation10 + $0x23e8] sm:$0xff]
    %v1837 = vld [vmem:[#allocation10 + $0x23f0] sm:$0xff]
    %v1838 = vld [vmem:[#allocation10 + $0x23f8] sm:$0xff]
    %v1839 = vld [vmem:[#allocation11] sm:$0xff]
    %v1840 = vld [vmem:[#allocation11 + $0x8] sm:$0xf]
    %v1843 = vperm.slane %v1839, 0
    %v1844 = vperm.slane %v1839, 1
    %v1845 = vperm.slane %v1839, 2
    %v1846 = vperm.slane %v1839, 3
    %v1847 = vperm.slane %v1839, 4
    %v1848 = vperm.slane %v1839, 5
    %v1849 = vperm.slane %v1839, 6
    %v1850 = vperm.slane %v1839, 7
    %v1851 = vperm.slane %v1840, 0
    %v1852 = vperm.slane %v1840, 1
    %v1853 = vperm.slane %v1840, 2
    %v1854 = vperm.slane %v1840, 3
    %1867 = vmatpush.msra.mxu0 %v867
    %1868 = vmatpush.msra.mxu0 %v855
    %1869 = vmatpush.msra.mxu0 %v843
    %1870 = vmatpush.msra.mxu0 %v831
    %1871 = vmatpush.msra.mxu0 %v819
    %1872 = vmatpush.msra.mxu0 %v807
    %1873 = vmatpush.msra.mxu0 %v795
    %1874 = vmatpush.msra.mxu0 %v783
    %1875 = vmatpush.msra.mxu0 %v771
    %1876 = vmatpush.msra.mxu0 %v759
    %1877 = vmatpush.msra.mxu0 %v747
    %1878 = vmatpush.msra.mxu0 %v735
    %1879 = vmatpush.msra.mxu0 %v723
    %1880 = vmatpush.msra.mxu0 %v711
    %1881 = vmatpush.msra.mxu0 %v699
    %1882 = vmatpush.msra.mxu0 %v687
    %1883 = vmatmul.f32.gmra.mxu0 %v681
    %v1884 = vpop.f32.mrf.mxu0
    %v1885 = vadd.f32 %v1843, %v1884
    %1886 = vdwg.mxu0
    %1887 = vmatpush.msra.mxu0 %v1059
    %1888 = vmatpush.msra.mxu0 %v1047
    %1889 = vmatpush.msra.mxu0 %v1035
    %1890 = vmatpush.msra.mxu0 %v1023
    %1891 = vmatpush.msra.mxu0 %v1011
    %1892 = vmatpush.msra.mxu0 %v999
    %1893 = vmatpush.msra.mxu0 %v987
    %1894 = vmatpush.msra.mxu0 %v975
    %1895 = vmatpush.msra.mxu0 %v963
    %1896 = vmatpush.msra.mxu0 %v951
    %1897 = vmatpush.msra.mxu0 %v939
    %1898 = vmatpush.msra.mxu0 %v927
    %1899 = vmatpush.msra.mxu0 %v915
    %1900 = vmatpush.msra.mxu0 %v903
    %1901 = vmatpush.msra.mxu0 %v891
    %1902 = vmatpush.msra.mxu0 %v879
    %1903 = vmatmul.f32.gmra.mxu0 %v682
    %v1904 = vpop.f32.mrf.mxu0
    %v1905 = vadd.f32 %v1885, %v1904
    %1906 = vdwg.mxu0
    %1907 = vmatpush.msra.mxu0 %v1251
    %1908 = vmatpush.msra.mxu0 %v1239
    %1909 = vmatpush.msra.mxu0 %v1227
    %1910 = vmatpush.msra.mxu0 %v1215
    %1911 = vmatpush.msra.mxu0 %v1203
    %1912 = vmatpush.msra.mxu0 %v1191
    %1913 = vmatpush.msra.mxu0 %v1179
    %1914 = vmatpush.msra.mxu0 %v1167
    %1915 = vmatpush.msra.mxu0 %v1155
    %1916 = vmatpush.msra.mxu0 %v1143
    %1917 = vmatpush.msra.mxu0 %v1131
    %1918 = vmatpush.msra.mxu0 %v1119
    %1919 = vmatpush.msra.mxu0 %v1107
    %1920 = vmatpush.msra.mxu0 %v1095
    %1921 = vmatpush.msra.mxu0 %v1083
    %1922 = vmatpush.msra.mxu0 %v1071
    %1923 = vmatmul.f32.gmra.mxu0 %v683
    %v1924 = vpop.f32.mrf.mxu0
    %v1925 = vadd.f32 %v1905, %v1924
    %1926 = vdwg.mxu0
    %1927 = vmatpush.msra.mxu0 %v1443
    %1928 = vmatpush.msra.mxu0 %v1431
    %1929 = vmatpush.msra.mxu0 %v1419
    %1930 = vmatpush.msra.mxu0 %v1407
    %1931 = vmatpush.msra.mxu0 %v1395
    %1932 = vmatpush.msra.mxu0 %v1383
    %1933 = vmatpush.msra.mxu0 %v1371
    %1934 = vmatpush.msra.mxu0 %v1359
    %1935 = vmatpush.msra.mxu0 %v1347
    %1936 = vmatpush.msra.mxu0 %v1335
    %1937 = vmatpush.msra.mxu0 %v1323
    %1938 = vmatpush.msra.mxu0 %v1311
    %1939 = vmatpush.msra.mxu0 %v1299
    %1940 = vmatpush.msra.mxu0 %v1287
    %1941 = vmatpush.msra.mxu0 %v1275
    %1942 = vmatpush.msra.mxu0 %v1263
    %1943 = vmatmul.f32.gmra.mxu0 %v684
    %v1944 = vpop.f32.mrf.mxu0
    %v1945 = vadd.f32 %v1925, %v1944
    %1946 = vdwg.mxu0
    %1947 = vmatpush.msra.mxu0 %v1635
    %1948 = vmatpush.msra.mxu0 %v1623
    %1949 = vmatpush.msra.mxu0 %v1611
    %1950 = vmatpush.msra.mxu0 %v1599
    %1951 = vmatpush.msra.mxu0 %v1587
    %1952 = vmatpush.msra.mxu0 %v1575
    %1953 = vmatpush.msra.mxu0 %v1563
    %1954 = vmatpush.msra.mxu0 %v1551
    %1955 = vmatpush.msra.mxu0 %v1539
    %1956 = vmatpush.msra.mxu0 %v1527
    %1957 = vmatpush.msra.mxu0 %v1515
    %1958 = vmatpush.msra.mxu0 %v1503
    %1959 = vmatpush.msra.mxu0 %v1491
    %1960 = vmatpush.msra.mxu0 %v1479
    %1961 = vmatpush.msra.mxu0 %v1467
    %1962 = vmatpush.msra.mxu0 %v1455
    %1963 = vmatmul.f32.gmra.mxu0 %v685
    %v1964 = vpop.f32.mrf.mxu0
    %v1965 = vadd.f32 %v1945, %v1964
    %1966 = vdwg.mxu0
    %1967 = vmatpush.msra.mxu0 %v1827
    %1968 = vmatpush.msra.mxu0 %v1815
    %1969 = vmatpush.msra.mxu0 %v1803
    %1970 = vmatpush.msra.mxu0 %v1791
    %1971 = vmatpush.msra.mxu0 %v1779
    %1972 = vmatpush.msra.mxu0 %v1767
    %1973 = vmatpush.msra.mxu0 %v1755
    %1974 = vmatpush.msra.mxu0 %v1743
    %1975 = vmatpush.msra.mxu0 %v1731
    %1976 = vmatpush.msra.mxu0 %v1719
    %1977 = vmatpush.msra.mxu0 %v1707
    %1978 = vmatpush.msra.mxu0 %v1695
    %1979 = vmatpush.msra.mxu0 %v1683
    %1980 = vmatpush.msra.mxu0 %v1671
    %1981 = vmatpush.msra.mxu0 %v1659
    %1982 = vmatpush.msra.mxu0 %v1647
    %1983 = vmatmul.f32.gmra.mxu0 %v686
    %v1984 = vpop.f32.mrf.mxu0
    %v1985 = vadd.f32 %v1965, %v1984
    %1986 = vdwg.mxu0
    %1987 = vmatpush.msra.mxu0 %v868
    %1988 = vmatpush.msra.mxu0 %v856
    %1989 = vmatpush.msra.mxu0 %v844
    %1990 = vmatpush.msra.mxu0 %v832
    %1991 = vmatpush.msra.mxu0 %v820
    %1992 = vmatpush.msra.mxu0 %v808
    %1993 = vmatpush.msra.mxu0 %v796
    %1994 = vmatpush.msra.mxu0 %v784
    %1995 = vmatpush.msra.mxu0 %v772
    %1996 = vmatpush.msra.mxu0 %v760
    %1997 = vmatpush.msra.mxu0 %v748
    %1998 = vmatpush.msra.mxu0 %v736
    %1999 = vmatpush.msra.mxu0 %v724
    %2000 = vmatpush.msra.mxu0 %v712
    %2001 = vmatpush.msra.mxu0 %v700
    %2002 = vmatpush.msra.mxu0 %v688
    %2003 = vmatmul.f32.gmra.mxu0 %v681
    %v2004 = vpop.f32.mrf.mxu0
    %v2005 = vadd.f32 %v1844, %v2004
    %2006 = vdwg.mxu0
    %2007 = vmatpush.msra.mxu0 %v1060
    %2008 = vmatpush.msra.mxu0 %v1048
    %2009 = vmatpush.msra.mxu0 %v1036
    %2010 = vmatpush.msra.mxu0 %v1024
    %2011 = vmatpush.msra.mxu0 %v1012
    %2012 = vmatpush.msra.mxu0 %v1000
    %2013 = vmatpush.msra.mxu0 %v988
    %2014 = vmatpush.msra.mxu0 %v976
    %2015 = vmatpush.msra.mxu0 %v964
    %2016 = vmatpush.msra.mxu0 %v952
    %2017 = vmatpush.msra.mxu0 %v940
    %2018 = vmatpush.msra.mxu0 %v928
    %2019 = vmatpush.msra.mxu0 %v916
    %2020 = vmatpush.msra.mxu0 %v904
    %2021 = vmatpush.msra.mxu0 %v892
    %2022 = vmatpush.msra.mxu0 %v880
    %2023 = vmatmul.f32.gmra.mxu0 %v682
    %v2024 = vpop.f32.mrf.mxu0
    %v2025 = vadd.f32 %v2005, %v2024
    %2026 = vdwg.mxu0
    %2027 = vmatpush.msra.mxu0 %v1252
    %2028 = vmatpush.msra.mxu0 %v1240
    %2029 = vmatpush.msra.mxu0 %v1228
    %2030 = vmatpush.msra.mxu0 %v1216
    %2031 = vmatpush.msra.mxu0 %v1204
    %2032 = vmatpush.msra.mxu0 %v1192
    %2033 = vmatpush.msra.mxu0 %v1180
    %2034 = vmatpush.msra.mxu0 %v1168
    %2035 = vmatpush.msra.mxu0 %v1156
    %2036 = vmatpush.msra.mxu0 %v1144
    %2037 = vmatpush.msra.mxu0 %v1132
    %2038 = vmatpush.msra.mxu0 %v1120
    %2039 = vmatpush.msra.mxu0 %v1108
    %2040 = vmatpush.msra.mxu0 %v1096
    %2041 = vmatpush.msra.mxu0 %v1084
    %2042 = vmatpush.msra.mxu0 %v1072
    %2043 = vmatmul.f32.gmra.mxu0 %v683
    %v2044 = vpop.f32.mrf.mxu0
    %v2045 = vadd.f32 %v2025, %v2044
    %2046 = vdwg.mxu0
    %2047 = vmatpush.msra.mxu0 %v1444
    %2048 = vmatpush.msra.mxu0 %v1432
    %2049 = vmatpush.msra.mxu0 %v1420
    %2050 = vmatpush.msra.mxu0 %v1408
    %2051 = vmatpush.msra.mxu0 %v1396
    %2052 = vmatpush.msra.mxu0 %v1384
    %2053 = vmatpush.msra.mxu0 %v1372
    %2054 = vmatpush.msra.mxu0 %v1360
    %2055 = vmatpush.msra.mxu0 %v1348
    %2056 = vmatpush.msra.mxu0 %v1336
    %2057 = vmatpush.msra.mxu0 %v1324
    %2058 = vmatpush.msra.mxu0 %v1312
    %2059 = vmatpush.msra.mxu0 %v1300
    %2060 = vmatpush.msra.mxu0 %v1288
    %2061 = vmatpush.msra.mxu0 %v1276
    %2062 = vmatpush.msra.mxu0 %v1264
    %2063 = vmatmul.f32.gmra.mxu0 %v684
    %v2064 = vpop.f32.mrf.mxu0
    %v2065 = vadd.f32 %v2045, %v2064
    %2066 = vdwg.mxu0
    %2067 = vmatpush.msra.mxu0 %v1636
    %2068 = vmatpush.msra.mxu0 %v1624
    %2069 = vmatpush.msra.mxu0 %v1612
    %2070 = vmatpush.msra.mxu0 %v1600
    %2071 = vmatpush.msra.mxu0 %v1588
    %2072 = vmatpush.msra.mxu0 %v1576
    %2073 = vmatpush.msra.mxu0 %v1564
    %2074 = vmatpush.msra.mxu0 %v1552
    %2075 = vmatpush.msra.mxu0 %v1540
    %2076 = vmatpush.msra.mxu0 %v1528
    %2077 = vmatpush.msra.mxu0 %v1516
    %2078 = vmatpush.msra.mxu0 %v1504
    %2079 = vmatpush.msra.mxu0 %v1492
    %2080 = vmatpush.msra.mxu0 %v1480
    %2081 = vmatpush.msra.mxu0 %v1468
    %2082 = vmatpush.msra.mxu0 %v1456
    %2083 = vmatmul.f32.gmra.mxu0 %v685
    %v2084 = vpop.f32.mrf.mxu0
    %v2085 = vadd.f32 %v2065, %v2084
    %2086 = vdwg.mxu0
    %2087 = vmatpush.msra.mxu0 %v1828
    %2088 = vmatpush.msra.mxu0 %v1816
    %2089 = vmatpush.msra.mxu0 %v1804
    %2090 = vmatpush.msra.mxu0 %v1792
    %2091 = vmatpush.msra.mxu0 %v1780
    %2092 = vmatpush.msra.mxu0 %v1768
    %2093 = vmatpush.msra.mxu0 %v1756
    %2094 = vmatpush.msra.mxu0 %v1744
    %2095 = vmatpush.msra.mxu0 %v1732
    %2096 = vmatpush.msra.mxu0 %v1720
    %2097 = vmatpush.msra.mxu0 %v1708
    %2098 = vmatpush.msra.mxu0 %v1696
    %2099 = vmatpush.msra.mxu0 %v1684
    %2100 = vmatpush.msra.mxu0 %v1672
    %2101 = vmatpush.msra.mxu0 %v1660
    %2102 = vmatpush.msra.mxu0 %v1648
    %2103 = vmatmul.f32.gmra.mxu0 %v686
    %v2104 = vpop.f32.mrf.mxu0
    %v2105 = vadd.f32 %v2085, %v2104
    %2106 = vdwg.mxu0
    %2107 = vmatpush.msra.mxu0 %v869
    %2108 = vmatpush.msra.mxu0 %v857
    %2109 = vmatpush.msra.mxu0 %v845
    %2110 = vmatpush.msra.mxu0 %v833
    %2111 = vmatpush.msra.mxu0 %v821
    %2112 = vmatpush.msra.mxu0 %v809
    %2113 = vmatpush.msra.mxu0 %v797
    %2114 = vmatpush.msra.mxu0 %v785
    %2115 = vmatpush.msra.mxu0 %v773
    %2116 = vmatpush.msra.mxu0 %v761
    %2117 = vmatpush.msra.mxu0 %v749
    %2118 = vmatpush.msra.mxu0 %v737
    %2119 = vmatpush.msra.mxu0 %v725
    %2120 = vmatpush.msra.mxu0 %v713
    %2121 = vmatpush.msra.mxu0 %v701
    %2122 = vmatpush.msra.mxu0 %v689
    %2123 = vmatmul.f32.gmra.mxu0 %v681
    %v2124 = vpop.f32.mrf.mxu0
    %v2125 = vadd.f32 %v1845, %v2124
    %2126 = vdwg.mxu0
    %2127 = vmatpush.msra.mxu0 %v1061
    %2128 = vmatpush.msra.mxu0 %v1049
    %2129 = vmatpush.msra.mxu0 %v1037
    %2130 = vmatpush.msra.mxu0 %v1025
    %2131 = vmatpush.msra.mxu0 %v1013
    %2132 = vmatpush.msra.mxu0 %v1001
    %2133 = vmatpush.msra.mxu0 %v989
    %2134 = vmatpush.msra.mxu0 %v977
    %2135 = vmatpush.msra.mxu0 %v965
    %2136 = vmatpush.msra.mxu0 %v953
    %2137 = vmatpush.msra.mxu0 %v941
    %2138 = vmatpush.msra.mxu0 %v929
    %2139 = vmatpush.msra.mxu0 %v917
    %2140 = vmatpush.msra.mxu0 %v905
    %2141 = vmatpush.msra.mxu0 %v893
    %2142 = vmatpush.msra.mxu0 %v881
    %2143 = vmatmul.f32.gmra.mxu0 %v682
    %v2144 = vpop.f32.mrf.mxu0
    %v2145 = vadd.f32 %v2125, %v2144
    %2146 = vdwg.mxu0
    %2147 = vmatpush.msra.mxu0 %v1253
    %2148 = vmatpush.msra.mxu0 %v1241
    %2149 = vmatpush.msra.mxu0 %v1229
    %2150 = vmatpush.msra.mxu0 %v1217
    %2151 = vmatpush.msra.mxu0 %v1205
    %2152 = vmatpush.msra.mxu0 %v1193
    %2153 = vmatpush.msra.mxu0 %v1181
    %2154 = vmatpush.msra.mxu0 %v1169
    %2155 = vmatpush.msra.mxu0 %v1157
    %2156 = vmatpush.msra.mxu0 %v1145
    %2157 = vmatpush.msra.mxu0 %v1133
    %2158 = vmatpush.msra.mxu0 %v1121
    %2159 = vmatpush.msra.mxu0 %v1109
    %2160 = vmatpush.msra.mxu0 %v1097
    %2161 = vmatpush.msra.mxu0 %v1085
    %2162 = vmatpush.msra.mxu0 %v1073
    %2163 = vmatmul.f32.gmra.mxu0 %v683
    %v2164 = vpop.f32.mrf.mxu0
    %v2165 = vadd.f32 %v2145, %v2164
    %2166 = vdwg.mxu0
    %2167 = vmatpush.msra.mxu0 %v1445
    %2168 = vmatpush.msra.mxu0 %v1433
    %2169 = vmatpush.msra.mxu0 %v1421
    %2170 = vmatpush.msra.mxu0 %v1409
    %2171 = vmatpush.msra.mxu0 %v1397
    %2172 = vmatpush.msra.mxu0 %v1385
    %2173 = vmatpush.msra.mxu0 %v1373
    %2174 = vmatpush.msra.mxu0 %v1361
    %2175 = vmatpush.msra.mxu0 %v1349
    %2176 = vmatpush.msra.mxu0 %v1337
    %2177 = vmatpush.msra.mxu0 %v1325
    %2178 = vmatpush.msra.mxu0 %v1313
    %2179 = vmatpush.msra.mxu0 %v1301
    %2180 = vmatpush.msra.mxu0 %v1289
    %2181 = vmatpush.msra.mxu0 %v1277
    %2182 = vmatpush.msra.mxu0 %v1265
    %2183 = vmatmul.f32.gmra.mxu0 %v684
    %v2184 = vpop.f32.mrf.mxu0
    %v2185 = vadd.f32 %v2165, %v2184
    %2186 = vdwg.mxu0
    %2187 = vmatpush.msra.mxu0 %v1637
    %2188 = vmatpush.msra.mxu0 %v1625
    %2189 = vmatpush.msra.mxu0 %v1613
    %2190 = vmatpush.msra.mxu0 %v1601
    %2191 = vmatpush.msra.mxu0 %v1589
    %2192 = vmatpush.msra.mxu0 %v1577
    %2193 = vmatpush.msra.mxu0 %v1565
    %2194 = vmatpush.msra.mxu0 %v1553
    %2195 = vmatpush.msra.mxu0 %v1541
    %2196 = vmatpush.msra.mxu0 %v1529
    %2197 = vmatpush.msra.mxu0 %v1517
    %2198 = vmatpush.msra.mxu0 %v1505
    %2199 = vmatpush.msra.mxu0 %v1493
    %2200 = vmatpush.msra.mxu0 %v1481
    %2201 = vmatpush.msra.mxu0 %v1469
    %2202 = vmatpush.msra.mxu0 %v1457
    %2203 = vmatmul.f32.gmra.mxu0 %v685
    %v2204 = vpop.f32.mrf.mxu0
    %v2205 = vadd.f32 %v2185, %v2204
    %2206 = vdwg.mxu0
    %2207 = vmatpush.msra.mxu0 %v1829
    %2208 = vmatpush.msra.mxu0 %v1817
    %2209 = vmatpush.msra.mxu0 %v1805
    %2210 = vmatpush.msra.mxu0 %v1793
    %2211 = vmatpush.msra.mxu0 %v1781
    %2212 = vmatpush.msra.mxu0 %v1769
    %2213 = vmatpush.msra.mxu0 %v1757
    %2214 = vmatpush.msra.mxu0 %v1745
    %2215 = vmatpush.msra.mxu0 %v1733
    %2216 = vmatpush.msra.mxu0 %v1721
    %2217 = vmatpush.msra.mxu0 %v1709
    %2218 = vmatpush.msra.mxu0 %v1697
    %2219 = vmatpush.msra.mxu0 %v1685
    %2220 = vmatpush.msra.mxu0 %v1673
    %2221 = vmatpush.msra.mxu0 %v1661
    %2222 = vmatpush.msra.mxu0 %v1649
    %2223 = vmatmul.f32.gmra.mxu0 %v686
    %v2224 = vpop.f32.mrf.mxu0
    %v2225 = vadd.f32 %v2205, %v2224
    %2226 = vdwg.mxu0
    %2227 = vmatpush.msra.mxu0 %v870
    %2228 = vmatpush.msra.mxu0 %v858
    %2229 = vmatpush.msra.mxu0 %v846
    %2230 = vmatpush.msra.mxu0 %v834
    %2231 = vmatpush.msra.mxu0 %v822
    %2232 = vmatpush.msra.mxu0 %v810
    %2233 = vmatpush.msra.mxu0 %v798
    %2234 = vmatpush.msra.mxu0 %v786
    %2235 = vmatpush.msra.mxu0 %v774
    %2236 = vmatpush.msra.mxu0 %v762
    %2237 = vmatpush.msra.mxu0 %v750
    %2238 = vmatpush.msra.mxu0 %v738
    %2239 = vmatpush.msra.mxu0 %v726
    %2240 = vmatpush.msra.mxu0 %v714
    %2241 = vmatpush.msra.mxu0 %v702
    %2242 = vmatpush.msra.mxu0 %v690
    %2243 = vmatmul.f32.gmra.mxu0 %v681
    %v2244 = vpop.f32.mrf.mxu0
    %v2245 = vadd.f32 %v1846, %v2244
    %2246 = vdwg.mxu0
    %2247 = vmatpush.msra.mxu0 %v1062
    %2248 = vmatpush.msra.mxu0 %v1050
    %2249 = vmatpush.msra.mxu0 %v1038
    %2250 = vmatpush.msra.mxu0 %v1026
    %2251 = vmatpush.msra.mxu0 %v1014
    %2252 = vmatpush.msra.mxu0 %v1002
    %2253 = vmatpush.msra.mxu0 %v990
    %2254 = vmatpush.msra.mxu0 %v978
    %2255 = vmatpush.msra.mxu0 %v966
    %2256 = vmatpush.msra.mxu0 %v954
    %2257 = vmatpush.msra.mxu0 %v942
    %2258 = vmatpush.msra.mxu0 %v930
    %2259 = vmatpush.msra.mxu0 %v918
    %2260 = vmatpush.msra.mxu0 %v906
    %2261 = vmatpush.msra.mxu0 %v894
    %2262 = vmatpush.msra.mxu0 %v882
    %2263 = vmatmul.f32.gmra.mxu0 %v682
    %v2264 = vpop.f32.mrf.mxu0
    %v2265 = vadd.f32 %v2245, %v2264
    %2266 = vdwg.mxu0
    %2267 = vmatpush.msra.mxu0 %v1254
    %2268 = vmatpush.msra.mxu0 %v1242
    %2269 = vmatpush.msra.mxu0 %v1230
    %2270 = vmatpush.msra.mxu0 %v1218
    %2271 = vmatpush.msra.mxu0 %v1206
    %2272 = vmatpush.msra.mxu0 %v1194
    %2273 = vmatpush.msra.mxu0 %v1182
    %2274 = vmatpush.msra.mxu0 %v1170
    %2275 = vmatpush.msra.mxu0 %v1158
    %2276 = vmatpush.msra.mxu0 %v1146
    %2277 = vmatpush.msra.mxu0 %v1134
    %2278 = vmatpush.msra.mxu0 %v1122
    %2279 = vmatpush.msra.mxu0 %v1110
    %2280 = vmatpush.msra.mxu0 %v1098
    %2281 = vmatpush.msra.mxu0 %v1086
    %2282 = vmatpush.msra.mxu0 %v1074
    %2283 = vmatmul.f32.gmra.mxu0 %v683
    %v2284 = vpop.f32.mrf.mxu0
    %v2285 = vadd.f32 %v2265, %v2284
    %2286 = vdwg.mxu0
    %2287 = vmatpush.msra.mxu0 %v1446
    %2288 = vmatpush.msra.mxu0 %v1434
    %2289 = vmatpush.msra.mxu0 %v1422
    %2290 = vmatpush.msra.mxu0 %v1410
    %2291 = vmatpush.msra.mxu0 %v1398
    %2292 = vmatpush.msra.mxu0 %v1386
    %2293 = vmatpush.msra.mxu0 %v1374
    %2294 = vmatpush.msra.mxu0 %v1362
    %2295 = vmatpush.msra.mxu0 %v1350
    %2296 = vmatpush.msra.mxu0 %v1338
    %2297 = vmatpush.msra.mxu0 %v1326
    %2298 = vmatpush.msra.mxu0 %v1314
    %2299 = vmatpush.msra.mxu0 %v1302
    %2300 = vmatpush.msra.mxu0 %v1290
    %2301 = vmatpush.msra.mxu0 %v1278
    %2302 = vmatpush.msra.mxu0 %v1266
    %2303 = vmatmul.f32.gmra.mxu0 %v684
    %v2304 = vpop.f32.mrf.mxu0
    %v2305 = vadd.f32 %v2285, %v2304
    %2306 = vdwg.mxu0
    %2307 = vmatpush.msra.mxu0 %v1638
    %2308 = vmatpush.msra.mxu0 %v1626
    %2309 = vmatpush.msra.mxu0 %v1614
    %2310 = vmatpush.msra.mxu0 %v1602
    %2311 = vmatpush.msra.mxu0 %v1590
    %2312 = vmatpush.msra.mxu0 %v1578
    %2313 = vmatpush.msra.mxu0 %v1566
    %2314 = vmatpush.msra.mxu0 %v1554
    %2315 = vmatpush.msra.mxu0 %v1542
    %2316 = vmatpush.msra.mxu0 %v1530
    %2317 = vmatpush.msra.mxu0 %v1518
    %2318 = vmatpush.msra.mxu0 %v1506
    %2319 = vmatpush.msra.mxu0 %v1494
    %2320 = vmatpush.msra.mxu0 %v1482
    %2321 = vmatpush.msra.mxu0 %v1470
    %2322 = vmatpush.msra.mxu0 %v1458
    %2323 = vmatmul.f32.gmra.mxu0 %v685
    %v2324 = vpop.f32.mrf.mxu0
    %v2325 = vadd.f32 %v2305, %v2324
    %2326 = vdwg.mxu0
    %2327 = vmatpush.msra.mxu0 %v1830
    %2328 = vmatpush.msra.mxu0 %v1818
    %2329 = vmatpush.msra.mxu0 %v1806
    %2330 = vmatpush.msra.mxu0 %v1794
    %2331 = vmatpush.msra.mxu0 %v1782
    %2332 = vmatpush.msra.mxu0 %v1770
    %2333 = vmatpush.msra.mxu0 %v1758
    %2334 = vmatpush.msra.mxu0 %v1746
    %2335 = vmatpush.msra.mxu0 %v1734
    %2336 = vmatpush.msra.mxu0 %v1722
    %2337 = vmatpush.msra.mxu0 %v1710
    %2338 = vmatpush.msra.mxu0 %v1698
    %2339 = vmatpush.msra.mxu0 %v1686
    %2340 = vmatpush.msra.mxu0 %v1674
    %2341 = vmatpush.msra.mxu0 %v1662
    %2342 = vmatpush.msra.mxu0 %v1650
    %2343 = vmatmul.f32.gmra.mxu0 %v686
    %v2344 = vpop.f32.mrf.mxu0
    %v2345 = vadd.f32 %v2325, %v2344
    %2346 = vdwg.mxu0
    %2347 = vmatpush.msra.mxu0 %v871
    %2348 = vmatpush.msra.mxu0 %v859
    %2349 = vmatpush.msra.mxu0 %v847
    %2350 = vmatpush.msra.mxu0 %v835
    %2351 = vmatpush.msra.mxu0 %v823
    %2352 = vmatpush.msra.mxu0 %v811
    %2353 = vmatpush.msra.mxu0 %v799
    %2354 = vmatpush.msra.mxu0 %v787
    %2355 = vmatpush.msra.mxu0 %v775
    %2356 = vmatpush.msra.mxu0 %v763
    %2357 = vmatpush.msra.mxu0 %v751
    %2358 = vmatpush.msra.mxu0 %v739
    %2359 = vmatpush.msra.mxu0 %v727
    %2360 = vmatpush.msra.mxu0 %v715
    %2361 = vmatpush.msra.mxu0 %v703
    %2362 = vmatpush.msra.mxu0 %v691
    %2363 = vmatmul.f32.gmra.mxu0 %v681
    %v2364 = vpop.f32.mrf.mxu0
    %v2365 = vadd.f32 %v1847, %v2364
    %2366 = vdwg.mxu0
    %2367 = vmatpush.msra.mxu0 %v1063
    %2368 = vmatpush.msra.mxu0 %v1051
    %2369 = vmatpush.msra.mxu0 %v1039
    %2370 = vmatpush.msra.mxu0 %v1027
    %2371 = vmatpush.msra.mxu0 %v1015
    %2372 = vmatpush.msra.mxu0 %v1003
    %2373 = vmatpush.msra.mxu0 %v991
    %2374 = vmatpush.msra.mxu0 %v979
    %2375 = vmatpush.msra.mxu0 %v967
    %2376 = vmatpush.msra.mxu0 %v955
    %2377 = vmatpush.msra.mxu0 %v943
    %2378 = vmatpush.msra.mxu0 %v931
    %2379 = vmatpush.msra.mxu0 %v919
    %2380 = vmatpush.msra.mxu0 %v907
    %2381 = vmatpush.msra.mxu0 %v895
    %2382 = vmatpush.msra.mxu0 %v883
    %2383 = vmatmul.f32.gmra.mxu0 %v682
    %v2384 = vpop.f32.mrf.mxu0
    %v2385 = vadd.f32 %v2365, %v2384
    %2386 = vdwg.mxu0
    %2387 = vmatpush.msra.mxu0 %v1255
    %2388 = vmatpush.msra.mxu0 %v1243
    %2389 = vmatpush.msra.mxu0 %v1231
    %2390 = vmatpush.msra.mxu0 %v1219
    %2391 = vmatpush.msra.mxu0 %v1207
    %2392 = vmatpush.msra.mxu0 %v1195
    %2393 = vmatpush.msra.mxu0 %v1183
    %2394 = vmatpush.msra.mxu0 %v1171
    %2395 = vmatpush.msra.mxu0 %v1159
    %2396 = vmatpush.msra.mxu0 %v1147
    %2397 = vmatpush.msra.mxu0 %v1135
    %2398 = vmatpush.msra.mxu0 %v1123
    %2399 = vmatpush.msra.mxu0 %v1111
    %2400 = vmatpush.msra.mxu0 %v1099
    %2401 = vmatpush.msra.mxu0 %v1087
    %2402 = vmatpush.msra.mxu0 %v1075
    %2403 = vmatmul.f32.gmra.mxu0 %v683
    %v2404 = vpop.f32.mrf.mxu0
    %v2405 = vadd.f32 %v2385, %v2404
    %2406 = vdwg.mxu0
    %2407 = vmatpush.msra.mxu0 %v1447
    %2408 = vmatpush.msra.mxu0 %v1435
    %2409 = vmatpush.msra.mxu0 %v1423
    %2410 = vmatpush.msra.mxu0 %v1411
    %2411 = vmatpush.msra.mxu0 %v1399
    %2412 = vmatpush.msra.mxu0 %v1387
    %2413 = vmatpush.msra.mxu0 %v1375
    %2414 = vmatpush.msra.mxu0 %v1363
    %2415 = vmatpush.msra.mxu0 %v1351
    %2416 = vmatpush.msra.mxu0 %v1339
    %2417 = vmatpush.msra.mxu0 %v1327
    %2418 = vmatpush.msra.mxu0 %v1315
    %2419 = vmatpush.msra.mxu0 %v1303
    %2420 = vmatpush.msra.mxu0 %v1291
    %2421 = vmatpush.msra.mxu0 %v1279
    %2422 = vmatpush.msra.mxu0 %v1267
    %2423 = vmatmul.f32.gmra.mxu0 %v684
    %v2424 = vpop.f32.mrf.mxu0
    %v2425 = vadd.f32 %v2405, %v2424
    %2426 = vdwg.mxu0
    %2427 = vmatpush.msra.mxu0 %v1639
    %2428 = vmatpush.msra.mxu0 %v1627
    %2429 = vmatpush.msra.mxu0 %v1615
    %2430 = vmatpush.msra.mxu0 %v1603
    %2431 = vmatpush.msra.mxu0 %v1591
    %2432 = vmatpush.msra.mxu0 %v1579
    %2433 = vmatpush.msra.mxu0 %v1567
    %2434 = vmatpush.msra.mxu0 %v1555
    %2435 = vmatpush.msra.mxu0 %v1543
    %2436 = vmatpush.msra.mxu0 %v1531
    %2437 = vmatpush.msra.mxu0 %v1519
    %2438 = vmatpush.msra.mxu0 %v1507
    %2439 = vmatpush.msra.mxu0 %v1495
    %2440 = vmatpush.msra.mxu0 %v1483
    %2441 = vmatpush.msra.mxu0 %v1471
    %2442 = vmatpush.msra.mxu0 %v1459
    %2443 = vmatmul.f32.gmra.mxu0 %v685
    %v2444 = vpop.f32.mrf.mxu0
    %v2445 = vadd.f32 %v2425, %v2444
    %2446 = vdwg.mxu0
    %2447 = vmatpush.msra.mxu0 %v1831
    %2448 = vmatpush.msra.mxu0 %v1819
    %2449 = vmatpush.msra.mxu0 %v1807
    %2450 = vmatpush.msra.mxu0 %v1795
    %2451 = vmatpush.msra.mxu0 %v1783
    %2452 = vmatpush.msra.mxu0 %v1771
    %2453 = vmatpush.msra.mxu0 %v1759
    %2454 = vmatpush.msra.mxu0 %v1747
    %2455 = vmatpush.msra.mxu0 %v1735
    %2456 = vmatpush.msra.mxu0 %v1723
    %2457 = vmatpush.msra.mxu0 %v1711
    %2458 = vmatpush.msra.mxu0 %v1699
    %2459 = vmatpush.msra.mxu0 %v1687
    %2460 = vmatpush.msra.mxu0 %v1675
    %2461 = vmatpush.msra.mxu0 %v1663
    %2462 = vmatpush.msra.mxu0 %v1651
    %2463 = vmatmul.f32.gmra.mxu0 %v686
    %v2464 = vpop.f32.mrf.mxu0
    %v2465 = vadd.f32 %v2445, %v2464
    %2466 = vdwg.mxu0
    %2467 = vmatpush.msra.mxu0 %v872
    %2468 = vmatpush.msra.mxu0 %v860
    %2469 = vmatpush.msra.mxu0 %v848
    %2470 = vmatpush.msra.mxu0 %v836
    %2471 = vmatpush.msra.mxu0 %v824
    %2472 = vmatpush.msra.mxu0 %v812
    %2473 = vmatpush.msra.mxu0 %v800
    %2474 = vmatpush.msra.mxu0 %v788
    %2475 = vmatpush.msra.mxu0 %v776
    %2476 = vmatpush.msra.mxu0 %v764
    %2477 = vmatpush.msra.mxu0 %v752
    %2478 = vmatpush.msra.mxu0 %v740
    %2479 = vmatpush.msra.mxu0 %v728
    %2480 = vmatpush.msra.mxu0 %v716
    %2481 = vmatpush.msra.mxu0 %v704
    %2482 = vmatpush.msra.mxu0 %v692
    %2483 = vmatmul.f32.gmra.mxu0 %v681
    %v2484 = vpop.f32.mrf.mxu0
    %v2485 = vadd.f32 %v1848, %v2484
    %2486 = vdwg.mxu0
    %2487 = vmatpush.msra.mxu0 %v1064
    %2488 = vmatpush.msra.mxu0 %v1052
    %2489 = vmatpush.msra.mxu0 %v1040
    %2490 = vmatpush.msra.mxu0 %v1028
    %2491 = vmatpush.msra.mxu0 %v1016
    %2492 = vmatpush.msra.mxu0 %v1004
    %2493 = vmatpush.msra.mxu0 %v992
    %2494 = vmatpush.msra.mxu0 %v980
    %2495 = vmatpush.msra.mxu0 %v968
    %2496 = vmatpush.msra.mxu0 %v956
    %2497 = vmatpush.msra.mxu0 %v944
    %2498 = vmatpush.msra.mxu0 %v932
    %2499 = vmatpush.msra.mxu0 %v920
    %2500 = vmatpush.msra.mxu0 %v908
    %2501 = vmatpush.msra.mxu0 %v896
    %2502 = vmatpush.msra.mxu0 %v884
    %2503 = vmatmul.f32.gmra.mxu0 %v682
    %v2504 = vpop.f32.mrf.mxu0
    %v2505 = vadd.f32 %v2485, %v2504
    %2506 = vdwg.mxu0
    %2507 = vmatpush.msra.mxu0 %v1256
    %2508 = vmatpush.msra.mxu0 %v1244
    %2509 = vmatpush.msra.mxu0 %v1232
    %2510 = vmatpush.msra.mxu0 %v1220
    %2511 = vmatpush.msra.mxu0 %v1208
    %2512 = vmatpush.msra.mxu0 %v1196
    %2513 = vmatpush.msra.mxu0 %v1184
    %2514 = vmatpush.msra.mxu0 %v1172
    %2515 = vmatpush.msra.mxu0 %v1160
    %2516 = vmatpush.msra.mxu0 %v1148
    %2517 = vmatpush.msra.mxu0 %v1136
    %2518 = vmatpush.msra.mxu0 %v1124
    %2519 = vmatpush.msra.mxu0 %v1112
    %2520 = vmatpush.msra.mxu0 %v1100
    %2521 = vmatpush.msra.mxu0 %v1088
    %2522 = vmatpush.msra.mxu0 %v1076
    %2523 = vmatmul.f32.gmra.mxu0 %v683
    %v2524 = vpop.f32.mrf.mxu0
    %v2525 = vadd.f32 %v2505, %v2524
    %2526 = vdwg.mxu0
    %2527 = vmatpush.msra.mxu0 %v1448
    %2528 = vmatpush.msra.mxu0 %v1436
    %2529 = vmatpush.msra.mxu0 %v1424
    %2530 = vmatpush.msra.mxu0 %v1412
    %2531 = vmatpush.msra.mxu0 %v1400
    %2532 = vmatpush.msra.mxu0 %v1388
    %2533 = vmatpush.msra.mxu0 %v1376
    %2534 = vmatpush.msra.mxu0 %v1364
    %2535 = vmatpush.msra.mxu0 %v1352
    %2536 = vmatpush.msra.mxu0 %v1340
    %2537 = vmatpush.msra.mxu0 %v1328
    %2538 = vmatpush.msra.mxu0 %v1316
    %2539 = vmatpush.msra.mxu0 %v1304
    %2540 = vmatpush.msra.mxu0 %v1292
    %2541 = vmatpush.msra.mxu0 %v1280
    %2542 = vmatpush.msra.mxu0 %v1268
    %2543 = vmatmul.f32.gmra.mxu0 %v684
    %v2544 = vpop.f32.mrf.mxu0
    %v2545 = vadd.f32 %v2525, %v2544
    %2546 = vdwg.mxu0
    %2547 = vmatpush.msra.mxu0 %v1640
    %2548 = vmatpush.msra.mxu0 %v1628
    %2549 = vmatpush.msra.mxu0 %v1616
    %2550 = vmatpush.msra.mxu0 %v1604
    %2551 = vmatpush.msra.mxu0 %v1592
    %2552 = vmatpush.msra.mxu0 %v1580
    %2553 = vmatpush.msra.mxu0 %v1568
    %2554 = vmatpush.msra.mxu0 %v1556
    %2555 = vmatpush.msra.mxu0 %v1544
    %2556 = vmatpush.msra.mxu0 %v1532
    %2557 = vmatpush.msra.mxu0 %v1520
    %2558 = vmatpush.msra.mxu0 %v1508
    %2559 = vmatpush.msra.mxu0 %v1496
    %2560 = vmatpush.msra.mxu0 %v1484
    %2561 = vmatpush.msra.mxu0 %v1472
    %2562 = vmatpush.msra.mxu0 %v1460
    %2563 = vmatmul.f32.gmra.mxu0 %v685
    %v2564 = vpop.f32.mrf.mxu0
    %v2565 = vadd.f32 %v2545, %v2564
    %2566 = vdwg.mxu0
    %2567 = vmatpush.msra.mxu0 %v1832
    %2568 = vmatpush.msra.mxu0 %v1820
    %2569 = vmatpush.msra.mxu0 %v1808
    %2570 = vmatpush.msra.mxu0 %v1796
    %2571 = vmatpush.msra.mxu0 %v1784
    %2572 = vmatpush.msra.mxu0 %v1772
    %2573 = vmatpush.msra.mxu0 %v1760
    %2574 = vmatpush.msra.mxu0 %v1748
    %2575 = vmatpush.msra.mxu0 %v1736
    %2576 = vmatpush.msra.mxu0 %v1724
    %2577 = vmatpush.msra.mxu0 %v1712
    %2578 = vmatpush.msra.mxu0 %v1700
    %2579 = vmatpush.msra.mxu0 %v1688
    %2580 = vmatpush.msra.mxu0 %v1676
    %2581 = vmatpush.msra.mxu0 %v1664
    %2582 = vmatpush.msra.mxu0 %v1652
    %2583 = vmatmul.f32.gmra.mxu0 %v686
    %v2584 = vpop.f32.mrf.mxu0
    %v2585 = vadd.f32 %v2565, %v2584
    %2586 = vdwg.mxu0
    %2587 = vmatpush.msra.mxu0 %v873
    %2588 = vmatpush.msra.mxu0 %v861
    %2589 = vmatpush.msra.mxu0 %v849
    %2590 = vmatpush.msra.mxu0 %v837
    %2591 = vmatpush.msra.mxu0 %v825
    %2592 = vmatpush.msra.mxu0 %v813
    %2593 = vmatpush.msra.mxu0 %v801
    %2594 = vmatpush.msra.mxu0 %v789
    %2595 = vmatpush.msra.mxu0 %v777
    %2596 = vmatpush.msra.mxu0 %v765
    %2597 = vmatpush.msra.mxu0 %v753
    %2598 = vmatpush.msra.mxu0 %v741
    %2599 = vmatpush.msra.mxu0 %v729
    %2600 = vmatpush.msra.mxu0 %v717
    %2601 = vmatpush.msra.mxu0 %v705
    %2602 = vmatpush.msra.mxu0 %v693
    %2603 = vmatmul.f32.gmra.mxu0 %v681
    %v2604 = vpop.f32.mrf.mxu0
    %v2605 = vadd.f32 %v1849, %v2604
    %2606 = vdwg.mxu0
    %2607 = vmatpush.msra.mxu0 %v1065
    %2608 = vmatpush.msra.mxu0 %v1053
    %2609 = vmatpush.msra.mxu0 %v1041
    %2610 = vmatpush.msra.mxu0 %v1029
    %2611 = vmatpush.msra.mxu0 %v1017
    %2612 = vmatpush.msra.mxu0 %v1005
    %2613 = vmatpush.msra.mxu0 %v993
    %2614 = vmatpush.msra.mxu0 %v981
    %2615 = vmatpush.msra.mxu0 %v969
    %2616 = vmatpush.msra.mxu0 %v957
    %2617 = vmatpush.msra.mxu0 %v945
    %2618 = vmatpush.msra.mxu0 %v933
    %2619 = vmatpush.msra.mxu0 %v921
    %2620 = vmatpush.msra.mxu0 %v909
    %2621 = vmatpush.msra.mxu0 %v897
    %2622 = vmatpush.msra.mxu0 %v885
    %2623 = vmatmul.f32.gmra.mxu0 %v682
    %v2624 = vpop.f32.mrf.mxu0
    %v2625 = vadd.f32 %v2605, %v2624
    %2626 = vdwg.mxu0
    %2627 = vmatpush.msra.mxu0 %v1257
    %2628 = vmatpush.msra.mxu0 %v1245
    %2629 = vmatpush.msra.mxu0 %v1233
    %2630 = vmatpush.msra.mxu0 %v1221
    %2631 = vmatpush.msra.mxu0 %v1209
    %2632 = vmatpush.msra.mxu0 %v1197
    %2633 = vmatpush.msra.mxu0 %v1185
    %2634 = vmatpush.msra.mxu0 %v1173
    %2635 = vmatpush.msra.mxu0 %v1161
    %2636 = vmatpush.msra.mxu0 %v1149
    %2637 = vmatpush.msra.mxu0 %v1137
    %2638 = vmatpush.msra.mxu0 %v1125
    %2639 = vmatpush.msra.mxu0 %v1113
    %2640 = vmatpush.msra.mxu0 %v1101
    %2641 = vmatpush.msra.mxu0 %v1089
    %2642 = vmatpush.msra.mxu0 %v1077
    %2643 = vmatmul.f32.gmra.mxu0 %v683
    %v2644 = vpop.f32.mrf.mxu0
    %v2645 = vadd.f32 %v2625, %v2644
    %2646 = vdwg.mxu0
    %2647 = vmatpush.msra.mxu0 %v1449
    %2648 = vmatpush.msra.mxu0 %v1437
    %2649 = vmatpush.msra.mxu0 %v1425
    %2650 = vmatpush.msra.mxu0 %v1413
    %2651 = vmatpush.msra.mxu0 %v1401
    %2652 = vmatpush.msra.mxu0 %v1389
    %2653 = vmatpush.msra.mxu0 %v1377
    %2654 = vmatpush.msra.mxu0 %v1365
    %2655 = vmatpush.msra.mxu0 %v1353
    %2656 = vmatpush.msra.mxu0 %v1341
    %2657 = vmatpush.msra.mxu0 %v1329
    %2658 = vmatpush.msra.mxu0 %v1317
    %2659 = vmatpush.msra.mxu0 %v1305
    %2660 = vmatpush.msra.mxu0 %v1293
    %2661 = vmatpush.msra.mxu0 %v1281
    %2662 = vmatpush.msra.mxu0 %v1269
    %2663 = vmatmul.f32.gmra.mxu0 %v684
    %v2664 = vpop.f32.mrf.mxu0
    %v2665 = vadd.f32 %v2645, %v2664
    %2666 = vdwg.mxu0
    %2667 = vmatpush.msra.mxu0 %v1641
    %2668 = vmatpush.msra.mxu0 %v1629
    %2669 = vmatpush.msra.mxu0 %v1617
    %2670 = vmatpush.msra.mxu0 %v1605
    %2671 = vmatpush.msra.mxu0 %v1593
    %2672 = vmatpush.msra.mxu0 %v1581
    %2673 = vmatpush.msra.mxu0 %v1569
    %2674 = vmatpush.msra.mxu0 %v1557
    %2675 = vmatpush.msra.mxu0 %v1545
    %2676 = vmatpush.msra.mxu0 %v1533
    %2677 = vmatpush.msra.mxu0 %v1521
    %2678 = vmatpush.msra.mxu0 %v1509
    %2679 = vmatpush.msra.mxu0 %v1497
    %2680 = vmatpush.msra.mxu0 %v1485
    %2681 = vmatpush.msra.mxu0 %v1473
    %2682 = vmatpush.msra.mxu0 %v1461
    %2683 = vmatmul.f32.gmra.mxu0 %v685
    %v2684 = vpop.f32.mrf.mxu0
    %v2685 = vadd.f32 %v2665, %v2684
    %2686 = vdwg.mxu0
    %2687 = vmatpush.msra.mxu0 %v1833
    %2688 = vmatpush.msra.mxu0 %v1821
    %2689 = vmatpush.msra.mxu0 %v1809
    %2690 = vmatpush.msra.mxu0 %v1797
    %2691 = vmatpush.msra.mxu0 %v1785
    %2692 = vmatpush.msra.mxu0 %v1773
    %2693 = vmatpush.msra.mxu0 %v1761
    %2694 = vmatpush.msra.mxu0 %v1749
    %2695 = vmatpush.msra.mxu0 %v1737
    %2696 = vmatpush.msra.mxu0 %v1725
    %2697 = vmatpush.msra.mxu0 %v1713
    %2698 = vmatpush.msra.mxu0 %v1701
    %2699 = vmatpush.msra.mxu0 %v1689
    %2700 = vmatpush.msra.mxu0 %v1677
    %2701 = vmatpush.msra.mxu0 %v1665
    %2702 = vmatpush.msra.mxu0 %v1653
    %2703 = vmatmul.f32.gmra.mxu0 %v686
    %v2704 = vpop.f32.mrf.mxu0
    %v2705 = vadd.f32 %v2685, %v2704
    %2706 = vdwg.mxu0
    %2707 = vmatpush.msra.mxu0 %v874
    %2708 = vmatpush.msra.mxu0 %v862
    %2709 = vmatpush.msra.mxu0 %v850
    %2710 = vmatpush.msra.mxu0 %v838
    %2711 = vmatpush.msra.mxu0 %v826
    %2712 = vmatpush.msra.mxu0 %v814
    %2713 = vmatpush.msra.mxu0 %v802
    %2714 = vmatpush.msra.mxu0 %v790
    %2715 = vmatpush.msra.mxu0 %v778
    %2716 = vmatpush.msra.mxu0 %v766
    %2717 = vmatpush.msra.mxu0 %v754
    %2718 = vmatpush.msra.mxu0 %v742
    %2719 = vmatpush.msra.mxu0 %v730
    %2720 = vmatpush.msra.mxu0 %v718
    %2721 = vmatpush.msra.mxu0 %v706
    %2722 = vmatpush.msra.mxu0 %v694
    %2723 = vmatmul.f32.gmra.mxu0 %v681
    %v2724 = vpop.f32.mrf.mxu0
    %v2725 = vadd.f32 %v1850, %v2724
    %2726 = vdwg.mxu0
    %2727 = vmatpush.msra.mxu0 %v1066
    %2728 = vmatpush.msra.mxu0 %v1054
    %2729 = vmatpush.msra.mxu0 %v1042
    %2730 = vmatpush.msra.mxu0 %v1030
    %2731 = vmatpush.msra.mxu0 %v1018
    %2732 = vmatpush.msra.mxu0 %v1006
    %2733 = vmatpush.msra.mxu0 %v994
    %2734 = vmatpush.msra.mxu0 %v982
    %2735 = vmatpush.msra.mxu0 %v970
    %2736 = vmatpush.msra.mxu0 %v958
    %2737 = vmatpush.msra.mxu0 %v946
    %2738 = vmatpush.msra.mxu0 %v934
    %2739 = vmatpush.msra.mxu0 %v922
    %2740 = vmatpush.msra.mxu0 %v910
    %2741 = vmatpush.msra.mxu0 %v898
    %2742 = vmatpush.msra.mxu0 %v886
    %2743 = vmatmul.f32.gmra.mxu0 %v682
    %v2744 = vpop.f32.mrf.mxu0
    %v2745 = vadd.f32 %v2725, %v2744
    %2746 = vdwg.mxu0
    %2747 = vmatpush.msra.mxu0 %v1258
    %2748 = vmatpush.msra.mxu0 %v1246
    %2749 = vmatpush.msra.mxu0 %v1234
    %2750 = vmatpush.msra.mxu0 %v1222
    %2751 = vmatpush.msra.mxu0 %v1210
    %2752 = vmatpush.msra.mxu0 %v1198
    %2753 = vmatpush.msra.mxu0 %v1186
    %2754 = vmatpush.msra.mxu0 %v1174
    %2755 = vmatpush.msra.mxu0 %v1162
    %2756 = vmatpush.msra.mxu0 %v1150
    %2757 = vmatpush.msra.mxu0 %v1138
    %2758 = vmatpush.msra.mxu0 %v1126
    %2759 = vmatpush.msra.mxu0 %v1114
    %2760 = vmatpush.msra.mxu0 %v1102
    %2761 = vmatpush.msra.mxu0 %v1090
    %2762 = vmatpush.msra.mxu0 %v1078
    %2763 = vmatmul.f32.gmra.mxu0 %v683
    %v2764 = vpop.f32.mrf.mxu0
    %v2765 = vadd.f32 %v2745, %v2764
    %2766 = vdwg.mxu0
    %2767 = vmatpush.msra.mxu0 %v1450
    %2768 = vmatpush.msra.mxu0 %v1438
    %2769 = vmatpush.msra.mxu0 %v1426
    %2770 = vmatpush.msra.mxu0 %v1414
    %2771 = vmatpush.msra.mxu0 %v1402
    %2772 = vmatpush.msra.mxu0 %v1390
    %2773 = vmatpush.msra.mxu0 %v1378
    %2774 = vmatpush.msra.mxu0 %v1366
    %2775 = vmatpush.msra.mxu0 %v1354
    %2776 = vmatpush.msra.mxu0 %v1342
    %2777 = vmatpush.msra.mxu0 %v1330
    %2778 = vmatpush.msra.mxu0 %v1318
    %2779 = vmatpush.msra.mxu0 %v1306
    %2780 = vmatpush.msra.mxu0 %v1294
    %2781 = vmatpush.msra.mxu0 %v1282
    %2782 = vmatpush.msra.mxu0 %v1270
    %2783 = vmatmul.f32.gmra.mxu0 %v684
    %v2784 = vpop.f32.mrf.mxu0
    %v2785 = vadd.f32 %v2765, %v2784
    %2786 = vdwg.mxu0
    %2787 = vmatpush.msra.mxu0 %v1642
    %2788 = vmatpush.msra.mxu0 %v1630
    %2789 = vmatpush.msra.mxu0 %v1618
    %2790 = vmatpush.msra.mxu0 %v1606
    %2791 = vmatpush.msra.mxu0 %v1594
    %2792 = vmatpush.msra.mxu0 %v1582
    %2793 = vmatpush.msra.mxu0 %v1570
    %2794 = vmatpush.msra.mxu0 %v1558
    %2795 = vmatpush.msra.mxu0 %v1546
    %2796 = vmatpush.msra.mxu0 %v1534
    %2797 = vmatpush.msra.mxu0 %v1522
    %2798 = vmatpush.msra.mxu0 %v1510
    %2799 = vmatpush.msra.mxu0 %v1498
    %2800 = vmatpush.msra.mxu0 %v1486
    %2801 = vmatpush.msra.mxu0 %v1474
    %2802 = vmatpush.msra.mxu0 %v1462
    %2803 = vmatmul.f32.gmra.mxu0 %v685
    %v2804 = vpop.f32.mrf.mxu0
    %v2805 = vadd.f32 %v2785, %v2804
    %2806 = vdwg.mxu0
    %2807 = vmatpush.msra.mxu0 %v1834
    %2808 = vmatpush.msra.mxu0 %v1822
    %2809 = vmatpush.msra.mxu0 %v1810
    %2810 = vmatpush.msra.mxu0 %v1798
    %2811 = vmatpush.msra.mxu0 %v1786
    %2812 = vmatpush.msra.mxu0 %v1774
    %2813 = vmatpush.msra.mxu0 %v1762
    %2814 = vmatpush.msra.mxu0 %v1750
    %2815 = vmatpush.msra.mxu0 %v1738
    %2816 = vmatpush.msra.mxu0 %v1726
    %2817 = vmatpush.msra.mxu0 %v1714
    %2818 = vmatpush.msra.mxu0 %v1702
    %2819 = vmatpush.msra.mxu0 %v1690
    %2820 = vmatpush.msra.mxu0 %v1678
    %2821 = vmatpush.msra.mxu0 %v1666
    %2822 = vmatpush.msra.mxu0 %v1654
    %2823 = vmatmul.f32.gmra.mxu0 %v686
    %v2824 = vpop.f32.mrf.mxu0
    %v2825 = vadd.f32 %v2805, %v2824
    %2826 = vdwg.mxu0
    %2827 = vmatpush.msra.mxu0 %v875
    %2828 = vmatpush.msra.mxu0 %v863
    %2829 = vmatpush.msra.mxu0 %v851
    %2830 = vmatpush.msra.mxu0 %v839
    %2831 = vmatpush.msra.mxu0 %v827
    %2832 = vmatpush.msra.mxu0 %v815
    %2833 = vmatpush.msra.mxu0 %v803
    %2834 = vmatpush.msra.mxu0 %v791
    %2835 = vmatpush.msra.mxu0 %v779
    %2836 = vmatpush.msra.mxu0 %v767
    %2837 = vmatpush.msra.mxu0 %v755
    %2838 = vmatpush.msra.mxu0 %v743
    %2839 = vmatpush.msra.mxu0 %v731
    %2840 = vmatpush.msra.mxu0 %v719
    %2841 = vmatpush.msra.mxu0 %v707
    %2842 = vmatpush.msra.mxu0 %v695
    %2843 = vmatmul.f32.gmra.mxu0 %v681
    %v2844 = vpop.f32.mrf.mxu0
    %v2845 = vadd.f32 %v1851, %v2844
    %2846 = vdwg.mxu0
    %2847 = vmatpush.msra.mxu0 %v1067
    %2848 = vmatpush.msra.mxu0 %v1055
    %2849 = vmatpush.msra.mxu0 %v1043
    %2850 = vmatpush.msra.mxu0 %v1031
    %2851 = vmatpush.msra.mxu0 %v1019
    %2852 = vmatpush.msra.mxu0 %v1007
    %2853 = vmatpush.msra.mxu0 %v995
    %2854 = vmatpush.msra.mxu0 %v983
    %2855 = vmatpush.msra.mxu0 %v971
    %2856 = vmatpush.msra.mxu0 %v959
    %2857 = vmatpush.msra.mxu0 %v947
    %2858 = vmatpush.msra.mxu0 %v935
    %2859 = vmatpush.msra.mxu0 %v923
    %2860 = vmatpush.msra.mxu0 %v911
    %2861 = vmatpush.msra.mxu0 %v899
    %2862 = vmatpush.msra.mxu0 %v887
    %2863 = vmatmul.f32.gmra.mxu0 %v682
    %v2864 = vpop.f32.mrf.mxu0
    %v2865 = vadd.f32 %v2845, %v2864
    %2866 = vdwg.mxu0
    %2867 = vmatpush.msra.mxu0 %v1259
    %2868 = vmatpush.msra.mxu0 %v1247
    %2869 = vmatpush.msra.mxu0 %v1235
    %2870 = vmatpush.msra.mxu0 %v1223
    %2871 = vmatpush.msra.mxu0 %v1211
    %2872 = vmatpush.msra.mxu0 %v1199
    %2873 = vmatpush.msra.mxu0 %v1187
    %2874 = vmatpush.msra.mxu0 %v1175
    %2875 = vmatpush.msra.mxu0 %v1163
    %2876 = vmatpush.msra.mxu0 %v1151
    %2877 = vmatpush.msra.mxu0 %v1139
    %2878 = vmatpush.msra.mxu0 %v1127
    %2879 = vmatpush.msra.mxu0 %v1115
    %2880 = vmatpush.msra.mxu0 %v1103
    %2881 = vmatpush.msra.mxu0 %v1091
    %2882 = vmatpush.msra.mxu0 %v1079
    %2883 = vmatmul.f32.gmra.mxu0 %v683
    %v2884 = vpop.f32.mrf.mxu0
    %v2885 = vadd.f32 %v2865, %v2884
    %2886 = vdwg.mxu0
    %2887 = vmatpush.msra.mxu0 %v1451
    %2888 = vmatpush.msra.mxu0 %v1439
    %2889 = vmatpush.msra.mxu0 %v1427
    %2890 = vmatpush.msra.mxu0 %v1415
    %2891 = vmatpush.msra.mxu0 %v1403
    %2892 = vmatpush.msra.mxu0 %v1391
    %2893 = vmatpush.msra.mxu0 %v1379
    %2894 = vmatpush.msra.mxu0 %v1367
    %2895 = vmatpush.msra.mxu0 %v1355
    %2896 = vmatpush.msra.mxu0 %v1343
    %2897 = vmatpush.msra.mxu0 %v1331
    %2898 = vmatpush.msra.mxu0 %v1319
    %2899 = vmatpush.msra.mxu0 %v1307
    %2900 = vmatpush.msra.mxu0 %v1295
    %2901 = vmatpush.msra.mxu0 %v1283
    %2902 = vmatpush.msra.mxu0 %v1271
    %2903 = vmatmul.f32.gmra.mxu0 %v684
    %v2904 = vpop.f32.mrf.mxu0
    %v2905 = vadd.f32 %v2885, %v2904
    %2906 = vdwg.mxu0
    %2907 = vmatpush.msra.mxu0 %v1643
    %2908 = vmatpush.msra.mxu0 %v1631
    %2909 = vmatpush.msra.mxu0 %v1619
    %2910 = vmatpush.msra.mxu0 %v1607
    %2911 = vmatpush.msra.mxu0 %v1595
    %2912 = vmatpush.msra.mxu0 %v1583
    %2913 = vmatpush.msra.mxu0 %v1571
    %2914 = vmatpush.msra.mxu0 %v1559
    %2915 = vmatpush.msra.mxu0 %v1547
    %2916 = vmatpush.msra.mxu0 %v1535
    %2917 = vmatpush.msra.mxu0 %v1523
    %2918 = vmatpush.msra.mxu0 %v1511
    %2919 = vmatpush.msra.mxu0 %v1499
    %2920 = vmatpush.msra.mxu0 %v1487
    %2921 = vmatpush.msra.mxu0 %v1475
    %2922 = vmatpush.msra.mxu0 %v1463
    %2923 = vmatmul.f32.gmra.mxu0 %v685
    %v2924 = vpop.f32.mrf.mxu0
    %v2925 = vadd.f32 %v2905, %v2924
    %2926 = vdwg.mxu0
    %2927 = vmatpush.msra.mxu0 %v1835
    %2928 = vmatpush.msra.mxu0 %v1823
    %2929 = vmatpush.msra.mxu0 %v1811
    %2930 = vmatpush.msra.mxu0 %v1799
    %2931 = vmatpush.msra.mxu0 %v1787
    %2932 = vmatpush.msra.mxu0 %v1775
    %2933 = vmatpush.msra.mxu0 %v1763
    %2934 = vmatpush.msra.mxu0 %v1751
    %2935 = vmatpush.msra.mxu0 %v1739
    %2936 = vmatpush.msra.mxu0 %v1727
    %2937 = vmatpush.msra.mxu0 %v1715
    %2938 = vmatpush.msra.mxu0 %v1703
    %2939 = vmatpush.msra.mxu0 %v1691
    %2940 = vmatpush.msra.mxu0 %v1679
    %2941 = vmatpush.msra.mxu0 %v1667
    %2942 = vmatpush.msra.mxu0 %v1655
    %2943 = vmatmul.f32.gmra.mxu0 %v686
    %v2944 = vpop.f32.mrf.mxu0
    %v2945 = vadd.f32 %v2925, %v2944
    %2946 = vdwg.mxu0
    %2947 = vmatpush.msra.mxu0 %v876
    %2948 = vmatpush.msra.mxu0 %v864
    %2949 = vmatpush.msra.mxu0 %v852
    %2950 = vmatpush.msra.mxu0 %v840
    %2951 = vmatpush.msra.mxu0 %v828
    %2952 = vmatpush.msra.mxu0 %v816
    %2953 = vmatpush.msra.mxu0 %v804
    %2954 = vmatpush.msra.mxu0 %v792
    %2955 = vmatpush.msra.mxu0 %v780
    %2956 = vmatpush.msra.mxu0 %v768
    %2957 = vmatpush.msra.mxu0 %v756
    %2958 = vmatpush.msra.mxu0 %v744
    %2959 = vmatpush.msra.mxu0 %v732
    %2960 = vmatpush.msra.mxu0 %v720
    %2961 = vmatpush.msra.mxu0 %v708
    %2962 = vmatpush.msra.mxu0 %v696
    %2963 = vmatmul.f32.gmra.mxu0 %v681
    %v2964 = vpop.f32.mrf.mxu0
    %v2965 = vadd.f32 %v1852, %v2964
    %2966 = vdwg.mxu0
    %2967 = vmatpush.msra.mxu0 %v1068
    %2968 = vmatpush.msra.mxu0 %v1056
    %2969 = vmatpush.msra.mxu0 %v1044
    %2970 = vmatpush.msra.mxu0 %v1032
    %2971 = vmatpush.msra.mxu0 %v1020
    %2972 = vmatpush.msra.mxu0 %v1008
    %2973 = vmatpush.msra.mxu0 %v996
    %2974 = vmatpush.msra.mxu0 %v984
    %2975 = vmatpush.msra.mxu0 %v972
    %2976 = vmatpush.msra.mxu0 %v960
    %2977 = vmatpush.msra.mxu0 %v948
    %2978 = vmatpush.msra.mxu0 %v936
    %2979 = vmatpush.msra.mxu0 %v924
    %2980 = vmatpush.msra.mxu0 %v912
    %2981 = vmatpush.msra.mxu0 %v900
    %2982 = vmatpush.msra.mxu0 %v888
    %2983 = vmatmul.f32.gmra.mxu0 %v682
    %v2984 = vpop.f32.mrf.mxu0
    %v2985 = vadd.f32 %v2965, %v2984
    %2986 = vdwg.mxu0
    %2987 = vmatpush.msra.mxu0 %v1260
    %2988 = vmatpush.msra.mxu0 %v1248
    %2989 = vmatpush.msra.mxu0 %v1236
    %2990 = vmatpush.msra.mxu0 %v1224
    %2991 = vmatpush.msra.mxu0 %v1212
    %2992 = vmatpush.msra.mxu0 %v1200
    %2993 = vmatpush.msra.mxu0 %v1188
    %2994 = vmatpush.msra.mxu0 %v1176
    %2995 = vmatpush.msra.mxu0 %v1164
    %2996 = vmatpush.msra.mxu0 %v1152
    %2997 = vmatpush.msra.mxu0 %v1140
    %2998 = vmatpush.msra.mxu0 %v1128
    %2999 = vmatpush.msra.mxu0 %v1116
    %3000 = vmatpush.msra.mxu0 %v1104
    %3001 = vmatpush.msra.mxu0 %v1092
    %3002 = vmatpush.msra.mxu0 %v1080
    %3003 = vmatmul.f32.gmra.mxu0 %v683
    %v3004 = vpop.f32.mrf.mxu0
    %v3005 = vadd.f32 %v2985, %v3004
    %3006 = vdwg.mxu0
    %3007 = vmatpush.msra.mxu0 %v1452
    %3008 = vmatpush.msra.mxu0 %v1440
    %3009 = vmatpush.msra.mxu0 %v1428
    %3010 = vmatpush.msra.mxu0 %v1416
    %3011 = vmatpush.msra.mxu0 %v1404
    %3012 = vmatpush.msra.mxu0 %v1392
    %3013 = vmatpush.msra.mxu0 %v1380
    %3014 = vmatpush.msra.mxu0 %v1368
    %3015 = vmatpush.msra.mxu0 %v1356
    %3016 = vmatpush.msra.mxu0 %v1344
    %3017 = vmatpush.msra.mxu0 %v1332
    %3018 = vmatpush.msra.mxu0 %v1320
    %3019 = vmatpush.msra.mxu0 %v1308
    %3020 = vmatpush.msra.mxu0 %v1296
    %3021 = vmatpush.msra.mxu0 %v1284
    %3022 = vmatpush.msra.mxu0 %v1272
    %3023 = vmatmul.f32.gmra.mxu0 %v684
    %v3024 = vpop.f32.mrf.mxu0
    %v3025 = vadd.f32 %v3005, %v3024
    %3026 = vdwg.mxu0
    %3027 = vmatpush.msra.mxu0 %v1644
    %3028 = vmatpush.msra.mxu0 %v1632
    %3029 = vmatpush.msra.mxu0 %v1620
    %3030 = vmatpush.msra.mxu0 %v1608
    %3031 = vmatpush.msra.mxu0 %v1596
    %3032 = vmatpush.msra.mxu0 %v1584
    %3033 = vmatpush.msra.mxu0 %v1572
    %3034 = vmatpush.msra.mxu0 %v1560
    %3035 = vmatpush.msra.mxu0 %v1548
    %3036 = vmatpush.msra.mxu0 %v1536
    %3037 = vmatpush.msra.mxu0 %v1524
    %3038 = vmatpush.msra.mxu0 %v1512
    %3039 = vmatpush.msra.mxu0 %v1500
    %3040 = vmatpush.msra.mxu0 %v1488
    %3041 = vmatpush.msra.mxu0 %v1476
    %3042 = vmatpush.msra.mxu0 %v1464
    %3043 = vmatmul.f32.gmra.mxu0 %v685
    %v3044 = vpop.f32.mrf.mxu0
    %v3045 = vadd.f32 %v3025, %v3044
    %3046 = vdwg.mxu0
    %3047 = vmatpush.msra.mxu0 %v1836
    %3048 = vmatpush.msra.mxu0 %v1824
    %3049 = vmatpush.msra.mxu0 %v1812
    %3050 = vmatpush.msra.mxu0 %v1800
    %3051 = vmatpush.msra.mxu0 %v1788
    %3052 = vmatpush.msra.mxu0 %v1776
    %3053 = vmatpush.msra.mxu0 %v1764
    %3054 = vmatpush.msra.mxu0 %v1752
    %3055 = vmatpush.msra.mxu0 %v1740
    %3056 = vmatpush.msra.mxu0 %v1728
    %3057 = vmatpush.msra.mxu0 %v1716
    %3058 = vmatpush.msra.mxu0 %v1704
    %3059 = vmatpush.msra.mxu0 %v1692
    %3060 = vmatpush.msra.mxu0 %v1680
    %3061 = vmatpush.msra.mxu0 %v1668
    %3062 = vmatpush.msra.mxu0 %v1656
    %3063 = vmatmul.f32.gmra.mxu0 %v686
    %v3064 = vpop.f32.mrf.mxu0
    %v3065 = vadd.f32 %v3045, %v3064
    %3066 = vdwg.mxu0
    %3067 = vmatpush.msra.mxu0 %v877
    %3068 = vmatpush.msra.mxu0 %v865
    %3069 = vmatpush.msra.mxu0 %v853
    %3070 = vmatpush.msra.mxu0 %v841
    %3071 = vmatpush.msra.mxu0 %v829
    %3072 = vmatpush.msra.mxu0 %v817
    %3073 = vmatpush.msra.mxu0 %v805
    %3074 = vmatpush.msra.mxu0 %v793
    %3075 = vmatpush.msra.mxu0 %v781
    %3076 = vmatpush.msra.mxu0 %v769
    %3077 = vmatpush.msra.mxu0 %v757
    %3078 = vmatpush.msra.mxu0 %v745
    %3079 = vmatpush.msra.mxu0 %v733
    %3080 = vmatpush.msra.mxu0 %v721
    %3081 = vmatpush.msra.mxu0 %v709
    %3082 = vmatpush.msra.mxu0 %v697
    %3083 = vmatmul.f32.gmra.mxu0 %v681
    %v3084 = vpop.f32.mrf.mxu0
    %v3085 = vadd.f32 %v1853, %v3084
    %3086 = vdwg.mxu0
    %3087 = vmatpush.msra.mxu0 %v1069
    %3088 = vmatpush.msra.mxu0 %v1057
    %3089 = vmatpush.msra.mxu0 %v1045
    %3090 = vmatpush.msra.mxu0 %v1033
    %3091 = vmatpush.msra.mxu0 %v1021
    %3092 = vmatpush.msra.mxu0 %v1009
    %3093 = vmatpush.msra.mxu0 %v997
    %3094 = vmatpush.msra.mxu0 %v985
    %3095 = vmatpush.msra.mxu0 %v973
    %3096 = vmatpush.msra.mxu0 %v961
    %3097 = vmatpush.msra.mxu0 %v949
    %3098 = vmatpush.msra.mxu0 %v937
    %3099 = vmatpush.msra.mxu0 %v925
    %3100 = vmatpush.msra.mxu0 %v913
    %3101 = vmatpush.msra.mxu0 %v901
    %3102 = vmatpush.msra.mxu0 %v889
    %3103 = vmatmul.f32.gmra.mxu0 %v682
    %v3104 = vpop.f32.mrf.mxu0
    %v3105 = vadd.f32 %v3085, %v3104
    %3106 = vdwg.mxu0
    %3107 = vmatpush.msra.mxu0 %v1261
    %3108 = vmatpush.msra.mxu0 %v1249
    %3109 = vmatpush.msra.mxu0 %v1237
    %3110 = vmatpush.msra.mxu0 %v1225
    %3111 = vmatpush.msra.mxu0 %v1213
    %3112 = vmatpush.msra.mxu0 %v1201
    %3113 = vmatpush.msra.mxu0 %v1189
    %3114 = vmatpush.msra.mxu0 %v1177
    %3115 = vmatpush.msra.mxu0 %v1165
    %3116 = vmatpush.msra.mxu0 %v1153
    %3117 = vmatpush.msra.mxu0 %v1141
    %3118 = vmatpush.msra.mxu0 %v1129
    %3119 = vmatpush.msra.mxu0 %v1117
    %3120 = vmatpush.msra.mxu0 %v1105
    %3121 = vmatpush.msra.mxu0 %v1093
    %3122 = vmatpush.msra.mxu0 %v1081
    %3123 = vmatmul.f32.gmra.mxu0 %v683
    %v3124 = vpop.f32.mrf.mxu0
    %v3125 = vadd.f32 %v3105, %v3124
    %3126 = vdwg.mxu0
    %3127 = vmatpush.msra.mxu0 %v1453
    %3128 = vmatpush.msra.mxu0 %v1441
    %3129 = vmatpush.msra.mxu0 %v1429
    %3130 = vmatpush.msra.mxu0 %v1417
    %3131 = vmatpush.msra.mxu0 %v1405
    %3132 = vmatpush.msra.mxu0 %v1393
    %3133 = vmatpush.msra.mxu0 %v1381
    %3134 = vmatpush.msra.mxu0 %v1369
    %3135 = vmatpush.msra.mxu0 %v1357
    %3136 = vmatpush.msra.mxu0 %v1345
    %3137 = vmatpush.msra.mxu0 %v1333
    %3138 = vmatpush.msra.mxu0 %v1321
    %3139 = vmatpush.msra.mxu0 %v1309
    %3140 = vmatpush.msra.mxu0 %v1297
    %3141 = vmatpush.msra.mxu0 %v1285
    %3142 = vmatpush.msra.mxu0 %v1273
    %3143 = vmatmul.f32.gmra.mxu0 %v684
    %v3144 = vpop.f32.mrf.mxu0
    %v3145 = vadd.f32 %v3125, %v3144
    %3146 = vdwg.mxu0
    %3147 = vmatpush.msra.mxu0 %v1645
    %3148 = vmatpush.msra.mxu0 %v1633
    %3149 = vmatpush.msra.mxu0 %v1621
    %3150 = vmatpush.msra.mxu0 %v1609
    %3151 = vmatpush.msra.mxu0 %v1597
    %3152 = vmatpush.msra.mxu0 %v1585
    %3153 = vmatpush.msra.mxu0 %v1573
    %3154 = vmatpush.msra.mxu0 %v1561
    %3155 = vmatpush.msra.mxu0 %v1549
    %3156 = vmatpush.msra.mxu0 %v1537
    %3157 = vmatpush.msra.mxu0 %v1525
    %3158 = vmatpush.msra.mxu0 %v1513
    %3159 = vmatpush.msra.mxu0 %v1501
    %3160 = vmatpush.msra.mxu0 %v1489
    %3161 = vmatpush.msra.mxu0 %v1477
    %3162 = vmatpush.msra.mxu0 %v1465
    %3163 = vmatmul.f32.gmra.mxu0 %v685
    %v3164 = vpop.f32.mrf.mxu0
    %v3165 = vadd.f32 %v3145, %v3164
    %3166 = vdwg.mxu0
    %3167 = vmatpush.msra.mxu0 %v1837
    %3168 = vmatpush.msra.mxu0 %v1825
    %3169 = vmatpush.msra.mxu0 %v1813
    %3170 = vmatpush.msra.mxu0 %v1801
    %3171 = vmatpush.msra.mxu0 %v1789
    %3172 = vmatpush.msra.mxu0 %v1777
    %3173 = vmatpush.msra.mxu0 %v1765
    %3174 = vmatpush.msra.mxu0 %v1753
    %3175 = vmatpush.msra.mxu0 %v1741
    %3176 = vmatpush.msra.mxu0 %v1729
    %3177 = vmatpush.msra.mxu0 %v1717
    %3178 = vmatpush.msra.mxu0 %v1705
    %3179 = vmatpush.msra.mxu0 %v1693
    %3180 = vmatpush.msra.mxu0 %v1681
    %3181 = vmatpush.msra.mxu0 %v1669
    %3182 = vmatpush.msra.mxu0 %v1657
    %3183 = vmatmul.f32.gmra.mxu0 %v686
    %v3184 = vpop.f32.mrf.mxu0
    %v3185 = vadd.f32 %v3165, %v3184
    %3186 = vdwg.mxu0
    %3187 = vmatpush.msra.mxu0 %v878
    %3188 = vmatpush.msra.mxu0 %v866
    %3189 = vmatpush.msra.mxu0 %v854
    %3190 = vmatpush.msra.mxu0 %v842
    %3191 = vmatpush.msra.mxu0 %v830
    %3192 = vmatpush.msra.mxu0 %v818
    %3193 = vmatpush.msra.mxu0 %v806
    %3194 = vmatpush.msra.mxu0 %v794
    %3195 = vmatpush.msra.mxu0 %v782
    %3196 = vmatpush.msra.mxu0 %v770
    %3197 = vmatpush.msra.mxu0 %v758
    %3198 = vmatpush.msra.mxu0 %v746
    %3199 = vmatpush.msra.mxu0 %v734
    %3200 = vmatpush.msra.mxu0 %v722
    %3201 = vmatpush.msra.mxu0 %v710
    %3202 = vmatpush.msra.mxu0 %v698
    %3203 = vmatmul.f32.gmra.mxu0 %v681
    %v3204 = vpop.f32.mrf.mxu0
    %v3205 = vadd.f32 %v1854, %v3204
    %3206 = vdwg.mxu0
    %3207 = vmatpush.msra.mxu0 %v1070
    %3208 = vmatpush.msra.mxu0 %v1058
    %3209 = vmatpush.msra.mxu0 %v1046
    %3210 = vmatpush.msra.mxu0 %v1034
    %3211 = vmatpush.msra.mxu0 %v1022
    %3212 = vmatpush.msra.mxu0 %v1010
    %3213 = vmatpush.msra.mxu0 %v998
    %3214 = vmatpush.msra.mxu0 %v986
    %3215 = vmatpush.msra.mxu0 %v974
    %3216 = vmatpush.msra.mxu0 %v962
    %3217 = vmatpush.msra.mxu0 %v950
    %3218 = vmatpush.msra.mxu0 %v938
    %3219 = vmatpush.msra.mxu0 %v926
    %3220 = vmatpush.msra.mxu0 %v914
    %3221 = vmatpush.msra.mxu0 %v902
    %3222 = vmatpush.msra.mxu0 %v890
    %3223 = vmatmul.f32.gmra.mxu0 %v682
    %v3224 = vpop.f32.mrf.mxu0
    %v3225 = vadd.f32 %v3205, %v3224
    %3226 = vdwg.mxu0
    %3227 = vmatpush.msra.mxu0 %v1262
    %3228 = vmatpush.msra.mxu0 %v1250
    %3229 = vmatpush.msra.mxu0 %v1238
    %3230 = vmatpush.msra.mxu0 %v1226
    %3231 = vmatpush.msra.mxu0 %v1214
    %3232 = vmatpush.msra.mxu0 %v1202
    %3233 = vmatpush.msra.mxu0 %v1190
    %3234 = vmatpush.msra.mxu0 %v1178
    %3235 = vmatpush.msra.mxu0 %v1166
    %3236 = vmatpush.msra.mxu0 %v1154
    %3237 = vmatpush.msra.mxu0 %v1142
    %3238 = vmatpush.msra.mxu0 %v1130
    %3239 = vmatpush.msra.mxu0 %v1118
    %3240 = vmatpush.msra.mxu0 %v1106
    %3241 = vmatpush.msra.mxu0 %v1094
    %3242 = vmatpush.msra.mxu0 %v1082
    %3243 = vmatmul.f32.gmra.mxu0 %v683
    %v3244 = vpop.f32.mrf.mxu0
    %v3245 = vadd.f32 %v3225, %v3244
    %3246 = vdwg.mxu0
    %3247 = vmatpush.msra.mxu0 %v1454
    %3248 = vmatpush.msra.mxu0 %v1442
    %3249 = vmatpush.msra.mxu0 %v1430
    %3250 = vmatpush.msra.mxu0 %v1418
    %3251 = vmatpush.msra.mxu0 %v1406
    %3252 = vmatpush.msra.mxu0 %v1394
    %3253 = vmatpush.msra.mxu0 %v1382
    %3254 = vmatpush.msra.mxu0 %v1370
    %3255 = vmatpush.msra.mxu0 %v1358
    %3256 = vmatpush.msra.mxu0 %v1346
    %3257 = vmatpush.msra.mxu0 %v1334
    %3258 = vmatpush.msra.mxu0 %v1322
    %3259 = vmatpush.msra.mxu0 %v1310
    %3260 = vmatpush.msra.mxu0 %v1298
    %3261 = vmatpush.msra.mxu0 %v1286
    %3262 = vmatpush.msra.mxu0 %v1274
    %3263 = vmatmul.f32.gmra.mxu0 %v684
    %v3264 = vpop.f32.mrf.mxu0
    %v3265 = vadd.f32 %v3245, %v3264
    %3266 = vdwg.mxu0
    %3267 = vmatpush.msra.mxu0 %v1646
    %3268 = vmatpush.msra.mxu0 %v1634
    %3269 = vmatpush.msra.mxu0 %v1622
    %3270 = vmatpush.msra.mxu0 %v1610
    %3271 = vmatpush.msra.mxu0 %v1598
    %3272 = vmatpush.msra.mxu0 %v1586
    %3273 = vmatpush.msra.mxu0 %v1574
    %3274 = vmatpush.msra.mxu0 %v1562
    %3275 = vmatpush.msra.mxu0 %v1550
    %3276 = vmatpush.msra.mxu0 %v1538
    %3277 = vmatpush.msra.mxu0 %v1526
    %3278 = vmatpush.msra.mxu0 %v1514
    %3279 = vmatpush.msra.mxu0 %v1502
    %3280 = vmatpush.msra.mxu0 %v1490
    %3281 = vmatpush.msra.mxu0 %v1478
    %3282 = vmatpush.msra.mxu0 %v1466
    %3283 = vmatmul.f32.gmra.mxu0 %v685
    %v3284 = vpop.f32.mrf.mxu0
    %v3285 = vadd.f32 %v3265, %v3284
    %3286 = vdwg.mxu0
    %3287 = vmatpush.msra.mxu0 %v1838
    %3288 = vmatpush.msra.mxu0 %v1826
    %3289 = vmatpush.msra.mxu0 %v1814
    %3290 = vmatpush.msra.mxu0 %v1802
    %3291 = vmatpush.msra.mxu0 %v1790
    %3292 = vmatpush.msra.mxu0 %v1778
    %3293 = vmatpush.msra.mxu0 %v1766
    %3294 = vmatpush.msra.mxu0 %v1754
    %3295 = vmatpush.msra.mxu0 %v1742
    %3296 = vmatpush.msra.mxu0 %v1730
    %3297 = vmatpush.msra.mxu0 %v1718
    %3298 = vmatpush.msra.mxu0 %v1706
    %3299 = vmatpush.msra.mxu0 %v1694
    %3300 = vmatpush.msra.mxu0 %v1682
    %3301 = vmatpush.msra.mxu0 %v1670
    %3302 = vmatpush.msra.mxu0 %v1658
    %3303 = vmatmul.f32.gmra.mxu0 %v686
    %v3304 = vpop.f32.mrf.mxu0
    %v3305 = vadd.f32 %v3285, %v3304
    %3306 = vdwg.mxu0
    %v3307 = vmul.f32 %v1985, 0.088388346
    %v3308 = vmul.f32 %v2105, 0.088388346
    %v3309 = vmul.f32 %v2225, 0.088388346
    %v3310 = vmul.f32 %v2345, 0.088388346
    %v3311 = vmul.f32 %v3307, %v2465
    %v3312 = vsel %vm673, %v3311, 0.0
    %3313 = vadd.xlane.f32.xlu0 %v3312
    %v3314 = vpop.xlane.xlu0 %3313
    %v3316 = vrot.slane %v2465, 2
    %v3318 = vmul.f32 %v3307, %v3316
    %v3319 = vsel %vm673, %v3318, 0.0
    %3320 = vadd.xlane.f32.xlu0 %v3319
    %v3321 = vpop.xlane.xlu0 %3320
    %v3322 = vrot.slane %v2465, 4
    %v3324 = vmul.f32 %v3307, %v3322
    %v3325 = vsel %vm673, %v3324, 0.0
    %3326 = vadd.xlane.f32.xlu0 %v3325
    %v3327 = vpop.xlane.xlu0 %3326
    %vm3328 = vcmask 7168
    %v3329 = vsel %vm3328, %v3314, %v3321
    %vm3330 = vcmask 15360
    %v3331 = vsel %vm3330, %v3329, %v3327
    %vm3332 = vcmask 17408
    %v3333 = vsel %vm3332, %v3331, -inf
    %3334 = vmax.xlane.f32.xlu0 %v3333
    %v3335 = vpop.xlane.xlu0 %3334
    %v3336 = vsub.f32 %v3331, %v3335
    %v3337 = vmul.f32 %v3336, 1.442695
    %v3338 = vpow.pop %v3337
    %v3339 = vsel %vm3332, %v3338, 0.0
    %3340 = vadd.xlane.f32.xlu0 %v3339
    %v3341 = vpop.xlane.xlu0 %3340
    %v3342 = vrcp.pop %v3341
    %v3343 = vmul.f32 %v3341, %v3342
    %v3344 = vsub.f32 1.0, %v3343
    %v3345 = vmul.f32 %v3342, %v3344
    %v3346 = vadd.f32 %v3342, %v3345
    %vm3347 = vweird.f32 %v3341
    %vm3348 = vweird.f32 %v3342
    %vm3349 = vmor %vm3347, %vm3348
    %v3350 = vsel %vm3349, %v3342, %v3346
    %v3351 = vand.u32 2147483647, %v3341
    %vm3352 = vcmp.eq.f32.partialorder %v3351, 8.507059e+37
    %v3353 = vand.u32 %v3341, 2147483648
    %v3354 = vor.u32 1.1754944e-38, %v3353
    %v3355 = vsel %vm3352, %v3354, %v3350
    %v3356 = vmul.f32 %v3338, %v3355
    %3358 = vset.pattern.permute.xlu0 0
    %3359 = vperm.xlu0 %3358, %v3356
    %v3360 = vpop.permute.xlu0 %3359
    %v3362 = vmul.f32 %v3360, %v2945
    %v3363 = vadd.f32 %v3362, 0.0
    %3364 = vset.pattern.permute.xlu0 1
    %3365 = vperm.xlu0 %3364, %v3356
    %v3366 = vpop.permute.xlu0 %3365
    %v3369 = vrot.slane %v2945, 2
    %v3371 = vmul.f32 %v3366, %v3369
    %v3372 = vadd.f32 %v3363, %v3371
    %3373 = vset.pattern.permute.xlu0 2
    %3374 = vperm.xlu0 %3373, %v3356
    %v3375 = vpop.permute.xlu0 %3374
    %v3377 = vrot.slane %v2945, 4
    %v3379 = vmul.f32 %v3375, %v3377
    %v3380 = vadd.f32 %v3372, %v3379
    %v3381 = vmul.f32 %v3308, %v2585
    %v3382 = vsel %vm673, %v3381, 0.0
    %3383 = vadd.xlane.f32.xlu0 %v3382
    %v3384 = vpop.xlane.xlu0 %3383
    %v3386 = vrot.slane %v2585, 2
    %v3388 = vmul.f32 %v3308, %v3386
    %v3389 = vsel %vm673, %v3388, 0.0
    %3390 = vadd.xlane.f32.xlu0 %v3389
    %v3391 = vpop.xlane.xlu0 %3390
    %v3392 = vrot.slane %v2585, 4
    %v3394 = vmul.f32 %v3308, %v3392
    %v3395 = vsel %vm673, %v3394, 0.0
    %3396 = vadd.xlane.f32.xlu0 %v3395
    %v3397 = vpop.xlane.xlu0 %3396
    %v3398 = vsel %vm3328, %v3384, %v3391
    %v3399 = vsel %vm3330, %v3398, %v3397
    %v3400 = vsel %vm3332, %v3399, -inf
    %3401 = vmax.xlane.f32.xlu0 %v3400
    %v3402 = vpop.xlane.xlu0 %3401
    %v3403 = vsub.f32 %v3399, %v3402
    %v3404 = vmul.f32 %v3403, 1.442695
    %v3405 = vpow.pop %v3404
    %v3406 = vsel %vm3332, %v3405, 0.0
    %3407 = vadd.xlane.f32.xlu0 %v3406
    %v3408 = vpop.xlane.xlu0 %3407
    %v3409 = vrcp.pop %v3408
    %v3410 = vmul.f32 %v3408, %v3409
    %v3411 = vsub.f32 1.0, %v3410
    %v3412 = vmul.f32 %v3409, %v3411
    %v3413 = vadd.f32 %v3409, %v3412
    %vm3414 = vweird.f32 %v3408
    %vm3415 = vweird.f32 %v3409
    %vm3416 = vmor %vm3414, %vm3415
    %v3417 = vsel %vm3416, %v3409, %v3413
    %v3418 = vand.u32 2147483647, %v3408
    %vm3419 = vcmp.eq.f32.partialorder %v3418, 8.507059e+37
    %v3420 = vand.u32 %v3408, 2147483648
    %v3421 = vor.u32 1.1754944e-38, %v3420
    %v3422 = vsel %vm3419, %v3421, %v3417
    %v3423 = vmul.f32 %v3405, %v3422
    %3425 = vset.pattern.permute.xlu0 0
    %3426 = vperm.xlu0 %3425, %v3423
    %v3427 = vpop.permute.xlu0 %3426
    %v3429 = vmul.f32 %v3427, %v3065
    %v3430 = vadd.f32 %v3429, 0.0
    %3431 = vset.pattern.permute.xlu0 1
    %3432 = vperm.xlu0 %3431, %v3423
    %v3433 = vpop.permute.xlu0 %3432
    %v3436 = vrot.slane %v3065, 2
    %v3438 = vmul.f32 %v3433, %v3436
    %v3439 = vadd.f32 %v3430, %v3438
    %3440 = vset.pattern.permute.xlu0 2
    %3441 = vperm.xlu0 %3440, %v3423
    %v3442 = vpop.permute.xlu0 %3441
    %v3444 = vrot.slane %v3065, 4
    %v3446 = vmul.f32 %v3442, %v3444
    %v3447 = vadd.f32 %v3439, %v3446
    %v3448 = vmul.f32 %v3309, %v2705
    %v3449 = vsel %vm673, %v3448, 0.0
    %3450 = vadd.xlane.f32.xlu0 %v3449
    %v3451 = vpop.xlane.xlu0 %3450
    %v3453 = vrot.slane %v2705, 2
    %v3455 = vmul.f32 %v3309, %v3453
    %v3456 = vsel %vm673, %v3455, 0.0
    %3457 = vadd.xlane.f32.xlu0 %v3456
    %v3458 = vpop.xlane.xlu0 %3457
    %v3459 = vrot.slane %v2705, 4
    %v3461 = vmul.f32 %v3309, %v3459
    %v3462 = vsel %vm673, %v3461, 0.0
    %3463 = vadd.xlane.f32.xlu0 %v3462
    %v3464 = vpop.xlane.xlu0 %3463
    %v3465 = vsel %vm3328, %v3451, %v3458
    %v3466 = vsel %vm3330, %v3465, %v3464
    %v3467 = vsel %vm3332, %v3466, -inf
    %3468 = vmax.xlane.f32.xlu0 %v3467
    %v3469 = vpop.xlane.xlu0 %3468
    %v3470 = vsub.f32 %v3466, %v3469
    %v3471 = vmul.f32 %v3470, 1.442695
    %v3472 = vpow.pop %v3471
    %v3473 = vsel %vm3332, %v3472, 0.0
    %3474 = vadd.xlane.f32.xlu0 %v3473
    %v3475 = vpop.xlane.xlu0 %3474
    %v3476 = vrcp.pop %v3475
    %v3477 = vmul.f32 %v3475, %v3476
    %v3478 = vsub.f32 1.0, %v3477
    %v3479 = vmul.f32 %v3476, %v3478
    %v3480 = vadd.f32 %v3476, %v3479
    %vm3481 = vweird.f32 %v3475
    %vm3482 = vweird.f32 %v3476
    %vm3483 = vmor %vm3481, %vm3482
    %v3484 = vsel %vm3483, %v3476, %v3480
    %v3485 = vand.u32 2147483647, %v3475
    %vm3486 = vcmp.eq.f32.partialorder %v3485, 8.507059e+37
    %v3487 = vand.u32 %v3475, 2147483648
    %v3488 = vor.u32 1.1754944e-38, %v3487
    %v3489 = vsel %vm3486, %v3488, %v3484
    %v3490 = vmul.f32 %v3472, %v3489
    %3492 = vset.pattern.permute.xlu0 0
    %3493 = vperm.xlu0 %3492, %v3490
    %v3494 = vpop.permute.xlu0 %3493
    %v3496 = vmul.f32 %v3494, %v3185
    %v3497 = vadd.f32 %v3496, 0.0
    %3498 = vset.pattern.permute.xlu0 1
    %3499 = vperm.xlu0 %3498, %v3490
    %v3500 = vpop.permute.xlu0 %3499
    %v3503 = vrot.slane %v3185, 2
    %v3505 = vmul.f32 %v3500, %v3503
    %v3506 = vadd.f32 %v3497, %v3505
    %3507 = vset.pattern.permute.xlu0 2
    %3508 = vperm.xlu0 %3507, %v3490
    %v3509 = vpop.permute.xlu0 %3508
    %v3511 = vrot.slane %v3185, 4
    %v3513 = vmul.f32 %v3509, %v3511
    %v3514 = vadd.f32 %v3506, %v3513
    %v3515 = vmul.f32 %v3310, %v2825
    %v3516 = vsel %vm673, %v3515, 0.0
    %3517 = vadd.xlane.f32.xlu0 %v3516
    %v3518 = vpop.xlane.xlu0 %3517
    %v3520 = vrot.slane %v2825, 2
    %v3522 = vmul.f32 %v3310, %v3520
    %v3523 = vsel %vm673, %v3522, 0.0
    %3524 = vadd.xlane.f32.xlu0 %v3523
    %v3525 = vpop.xlane.xlu0 %3524
    %v3526 = vrot.slane %v2825, 4
    %v3528 = vmul.f32 %v3310, %v3526
    %v3529 = vsel %vm673, %v3528, 0.0
    %3530 = vadd.xlane.f32.xlu0 %v3529
    %v3531 = vpop.xlane.xlu0 %3530
    %v3532 = vsel %vm3328, %v3518, %v3525
    %v3533 = vsel %vm3330, %v3532, %v3531
    %v3534 = vsel %vm3332, %v3533, -inf
    %3535 = vmax.xlane.f32.xlu0 %v3534
    %v3536 = vpop.xlane.xlu0 %3535
    %v3537 = vsub.f32 %v3533, %v3536
    %v3538 = vmul.f32 %v3537, 1.442695
    %v3539 = vpow.pop %v3538
    %v3540 = vsel %vm3332, %v3539, 0.0
    %3541 = vadd.xlane.f32.xlu0 %v3540
    %v3542 = vpop.xlane.xlu0 %3541
    %v3543 = vrcp.pop %v3542
    %v3544 = vmul.f32 %v3542, %v3543
    %v3545 = vsub.f32 1.0, %v3544
    %v3546 = vmul.f32 %v3543, %v3545
    %v3547 = vadd.f32 %v3543, %v3546
    %vm3548 = vweird.f32 %v3542
    %vm3549 = vweird.f32 %v3543
    %vm3550 = vmor %vm3548, %vm3549
    %v3551 = vsel %vm3550, %v3543, %v3547
    %v3552 = vand.u32 2147483647, %v3542
    %vm3553 = vcmp.eq.f32.partialorder %v3552, 8.507059e+37
    %v3554 = vand.u32 %v3542, 2147483648
    %v3555 = vor.u32 1.1754944e-38, %v3554
    %v3556 = vsel %vm3553, %v3555, %v3551
    %v3557 = vmul.f32 %v3539, %v3556
    %3559 = vset.pattern.permute.xlu0 0
    %3560 = vperm.xlu0 %3559, %v3557
    %v3561 = vpop.permute.xlu0 %3560
    %v3563 = vmul.f32 %v3561, %v3305
    %v3564 = vadd.f32 %v3563, 0.0
    %3565 = vset.pattern.permute.xlu0 1
    %3566 = vperm.xlu0 %3565, %v3557
    %v3567 = vpop.permute.xlu0 %3566
    %v3570 = vrot.slane %v3305, 2
    %v3572 = vmul.f32 %v3567, %v3570
    %v3573 = vadd.f32 %v3564, %v3572
    %3574 = vset.pattern.permute.xlu0 2
    %3575 = vperm.xlu0 %3574, %v3557
    %v3576 = vpop.permute.xlu0 %3575
    %v3578 = vrot.slane %v3305, 4
    %v3580 = vmul.f32 %v3576, %v3578
    %v3581 = vadd.f32 %v3573, %v3580
    %v3582 = vrot.slane %v2465, 6
    %v3584 = vmul.f32 %v3307, %v3582
    %vm3585 = vcmask 1043458
    %v3586 = vsel %vm3585, %v3584, 0.0
    %3587 = vadd.xlane.f32.xlu0 %v3586
    %v3588 = vpop.xlane.xlu0 %3587
    %v3589 = vsel %vm3585, %v3311, 0.0
    %3590 = vadd.xlane.f32.xlu0 %v3589
    %v3591 = vpop.xlane.xlu0 %3590
    %v3592 = vsel %vm3585, %v3318, 0.0
    %3593 = vadd.xlane.f32.xlu0 %v3592
    %v3594 = vpop.xlane.xlu0 %3593
    %v3595 = vsel %vm3328, %v3588, %v3591
    %v3596 = vsel %vm3330, %v3595, %v3594
    %vm3597 = vcmask 19458
    %v3598 = vsel %vm3597, %v3596, -inf
    %3599 = vmax.xlane.f32.xlu0 %v3598
    %v3600 = vpop.xlane.xlu0 %3599
    %v3601 = vsub.f32 %v3596, %v3600
    %v3602 = vmul.f32 %v3601, 1.442695
    %v3603 = vpow.pop %v3602
    %v3604 = vsel %vm3597, %v3603, 0.0
    %3605 = vadd.xlane.f32.xlu0 %v3604
    %v3606 = vpop.xlane.xlu0 %3605
    %v3607 = vrcp.pop %v3606
    %v3608 = vmul.f32 %v3606, %v3607
    %v3609 = vsub.f32 1.0, %v3608
    %v3610 = vmul.f32 %v3607, %v3609
    %v3611 = vadd.f32 %v3607, %v3610
    %vm3612 = vweird.f32 %v3606
    %vm3613 = vweird.f32 %v3607
    %vm3614 = vmor %vm3612, %vm3613
    %v3615 = vsel %vm3614, %v3607, %v3611
    %v3616 = vand.u32 2147483647, %v3606
    %vm3617 = vcmp.eq.f32.partialorder %v3616, 8.507059e+37
    %v3618 = vand.u32 %v3606, 2147483648
    %v3619 = vor.u32 1.1754944e-38, %v3618
    %v3620 = vsel %vm3617, %v3619, %v3615
    %v3621 = vmul.f32 %v3603, %v3620
    %3623 = vset.pattern.permute.xlu0 0
    %3624 = vperm.xlu0 %3623, %v3621
    %v3625 = vpop.permute.xlu0 %3624
    %v3627 = vrot.slane %v2945, 6
    %v3629 = vmul.f32 %v3625, %v3627
    %v3630 = vadd.f32 %v3629, 0.0
    %3631 = vset.pattern.permute.xlu0 1
    %3632 = vperm.xlu0 %3631, %v3621
    %v3633 = vpop.permute.xlu0 %3632
    %v3635 = vmul.f32 %v3633, %v2945
    %v3636 = vadd.f32 %v3630, %v3635
    %3637 = vset.pattern.permute.xlu0 2
    %3638 = vperm.xlu0 %3637, %v3621
    %v3639 = vpop.permute.xlu0 %3638
    %v3641 = vmul.f32 %v3639, %v3369
    %v3642 = vadd.f32 %v3636, %v3641
    %v3643 = vrot.slane %v2585, 6
    %v3645 = vmul.f32 %v3308, %v3643
    %v3646 = vsel %vm3585, %v3645, 0.0
    %3647 = vadd.xlane.f32.xlu0 %v3646
    %v3648 = vpop.xlane.xlu0 %3647
    %v3649 = vsel %vm3585, %v3381, 0.0
    %3650 = vadd.xlane.f32.xlu0 %v3649
    %v3651 = vpop.xlane.xlu0 %3650
    %v3652 = vsel %vm3585, %v3388, 0.0
    %3653 = vadd.xlane.f32.xlu0 %v3652
    %v3654 = vpop.xlane.xlu0 %3653
    %v3655 = vsel %vm3328, %v3648, %v3651
    %v3656 = vsel %vm3330, %v3655, %v3654
    %v3657 = vsel %vm3597, %v3656, -inf
    %3658 = vmax.xlane.f32.xlu0 %v3657
    %v3659 = vpop.xlane.xlu0 %3658
    %v3660 = vsub.f32 %v3656, %v3659
    %v3661 = vmul.f32 %v3660, 1.442695
    %v3662 = vpow.pop %v3661
    %v3663 = vsel %vm3597, %v3662, 0.0
    %3664 = vadd.xlane.f32.xlu0 %v3663
    %v3665 = vpop.xlane.xlu0 %3664
    %v3666 = vrcp.pop %v3665
    %v3667 = vmul.f32 %v3665, %v3666
    %v3668 = vsub.f32 1.0, %v3667
    %v3669 = vmul.f32 %v3666, %v3668
    %v3670 = vadd.f32 %v3666, %v3669
    %vm3671 = vweird.f32 %v3665
    %vm3672 = vweird.f32 %v3666
    %vm3673 = vmor %vm3671, %vm3672
    %v3674 = vsel %vm3673, %v3666, %v3670
    %v3675 = vand.u32 2147483647, %v3665
    %vm3676 = vcmp.eq.f32.partialorder %v3675, 8.507059e+37
    %v3677 = vand.u32 %v3665, 2147483648
    %v3678 = vor.u32 1.1754944e-38, %v3677
    %v3679 = vsel %vm3676, %v3678, %v3674
    %v3680 = vmul.f32 %v3662, %v3679
    %3682 = vset.pattern.permute.xlu0 0
    %3683 = vperm.xlu0 %3682, %v3680
    %v3684 = vpop.permute.xlu0 %3683
    %v3686 = vrot.slane %v3065, 6
    %v3688 = vmul.f32 %v3684, %v3686
    %v3689 = vadd.f32 %v3688, 0.0
    %3690 = vset.pattern.permute.xlu0 1
    %3691 = vperm.xlu0 %3690, %v3680
    %v3692 = vpop.permute.xlu0 %3691
    %v3694 = vmul.f32 %v3692, %v3065
    %v3695 = vadd.f32 %v3689, %v3694
    %3696 = vset.pattern.permute.xlu0 2
    %3697 = vperm.xlu0 %3696, %v3680
    %v3698 = vpop.permute.xlu0 %3697
    %v3700 = vmul.f32 %v3698, %v3436
    %v3701 = vadd.f32 %v3695, %v3700
    %v3702 = vrot.slane %v2705, 6
    %v3704 = vmul.f32 %v3309, %v3702
    %v3705 = vsel %vm3585, %v3704, 0.0
    %3706 = vadd.xlane.f32.xlu0 %v3705
    %v3707 = vpop.xlane.xlu0 %3706
    %v3708 = vsel %vm3585, %v3448, 0.0
    %3709 = vadd.xlane.f32.xlu0 %v3708
    %v3710 = vpop.xlane.xlu0 %3709
    %v3711 = vsel %vm3585, %v3455, 0.0
    %3712 = vadd.xlane.f32.xlu0 %v3711
    %v3713 = vpop.xlane.xlu0 %3712
    %v3714 = vsel %vm3328, %v3707, %v3710
    %v3715 = vsel %vm3330, %v3714, %v3713
    %v3716 = vsel %vm3597, %v3715, -inf
    %3717 = vmax.xlane.f32.xlu0 %v3716
    %v3718 = vpop.xlane.xlu0 %3717
    %v3719 = vsub.f32 %v3715, %v3718
    %v3720 = vmul.f32 %v3719, 1.442695
    %v3721 = vpow.pop %v3720
    %v3722 = vsel %vm3597, %v3721, 0.0
    %3723 = vadd.xlane.f32.xlu0 %v3722
    %v3724 = vpop.xlane.xlu0 %3723
    %v3725 = vrcp.pop %v3724
    %v3726 = vmul.f32 %v3724, %v3725
    %v3727 = vsub.f32 1.0, %v3726
    %v3728 = vmul.f32 %v3725, %v3727
    %v3729 = vadd.f32 %v3725, %v3728
    %vm3730 = vweird.f32 %v3724
    %vm3731 = vweird.f32 %v3725
    %vm3732 = vmor %vm3730, %vm3731
    %v3733 = vsel %vm3732, %v3725, %v3729
    %v3734 = vand.u32 2147483647, %v3724
    %vm3735 = vcmp.eq.f32.partialorder %v3734, 8.507059e+37
    %v3736 = vand.u32 %v3724, 2147483648
    %v3737 = vor.u32 1.1754944e-38, %v3736
    %v3738 = vsel %vm3735, %v3737, %v3733
    %v3739 = vmul.f32 %v3721, %v3738
    %3741 = vset.pattern.permute.xlu0 0
    %3742 = vperm.xlu0 %3741, %v3739
    %v3743 = vpop.permute.xlu0 %3742
    %v3745 = vrot.slane %v3185, 6
    %v3747 = vmul.f32 %v3743, %v3745
    %v3748 = vadd.f32 %v3747, 0.0
    %3749 = vset.pattern.permute.xlu0 1
    %3750 = vperm.xlu0 %3749, %v3739
    %v3751 = vpop.permute.xlu0 %3750
    %v3753 = vmul.f32 %v3751, %v3185
    %v3754 = vadd.f32 %v3748, %v3753
    %3755 = vset.pattern.permute.xlu0 2
    %3756 = vperm.xlu0 %3755, %v3739
    %v3757 = vpop.permute.xlu0 %3756
    %v3759 = vmul.f32 %v3757, %v3503
    %v3760 = vadd.f32 %v3754, %v3759
    %v3761 = vrot.slane %v2825, 6
    %v3763 = vmul.f32 %v3310, %v3761
    %v3764 = vsel %vm3585, %v3763, 0.0
    %3765 = vadd.xlane.f32.xlu0 %v3764
    %v3766 = vpop.xlane.xlu0 %3765
    %v3767 = vsel %vm3585, %v3515, 0.0
    %3768 = vadd.xlane.f32.xlu0 %v3767
    %v3769 = vpop.xlane.xlu0 %3768
    %v3770 = vsel %vm3585, %v3522, 0.0
    %3771 = vadd.xlane.f32.xlu0 %v3770
    %v3772 = vpop.xlane.xlu0 %3771
    %v3773 = vsel %vm3328, %v3766, %v3769
    %v3774 = vsel %vm3330, %v3773, %v3772
    %v3775 = vsel %vm3597, %v3774, -inf
    %3776 = vmax.xlane.f32.xlu0 %v3775
    %v3777 = vpop.xlane.xlu0 %3776
    %v3778 = vsub.f32 %v3774, %v3777
    %v3779 = vmul.f32 %v3778, 1.442695
    %v3780 = vpow.pop %v3779
    %v3781 = vsel %vm3597, %v3780, 0.0
    %3782 = vadd.xlane.f32.xlu0 %v3781
    %v3783 = vpop.xlane.xlu0 %3782
    %v3784 = vrcp.pop %v3783
    %v3785 = vmul.f32 %v3783, %v3784
    %v3786 = vsub.f32 1.0, %v3785
    %v3787 = vmul.f32 %v3784, %v3786
    %v3788 = vadd.f32 %v3784, %v3787
    %vm3789 = vweird.f32 %v3783
    %vm3790 = vweird.f32 %v3784
    %vm3791 = vmor %vm3789, %vm3790
    %v3792 = vsel %vm3791, %v3784, %v3788
    %v3793 = vand.u32 2147483647, %v3783
    %vm3794 = vcmp.eq.f32.partialorder %v3793, 8.507059e+37
    %v3795 = vand.u32 %v3783, 2147483648
    %v3796 = vor.u32 1.1754944e-38, %v3795
    %v3797 = vsel %vm3794, %v3796, %v3792
    %v3798 = vmul.f32 %v3780, %v3797
    %3800 = vset.pattern.permute.xlu0 0
    %3801 = vperm.xlu0 %3800, %v3798
    %v3802 = vpop.permute.xlu0 %3801
    %v3804 = vrot.slane %v3305, 6
    %v3806 = vmul.f32 %v3802, %v3804
    %v3807 = vadd.f32 %v3806, 0.0
    %3808 = vset.pattern.permute.xlu0 1
    %3809 = vperm.xlu0 %3808, %v3798
    %v3810 = vpop.permute.xlu0 %3809
    %v3812 = vmul.f32 %v3810, %v3305
    %v3813 = vadd.f32 %v3807, %v3812
    %3814 = vset.pattern.permute.xlu0 2
    %3815 = vperm.xlu0 %3814, %v3798
    %v3816 = vpop.permute.xlu0 %3815
    %v3818 = vmul.f32 %v3816, %v3570
    %v3819 = vadd.f32 %v3813, %v3818
    %vm3820 = vcmask 1045508
    %v3821 = vsel %vm3820, %v3324, 0.0
    %3822 = vadd.xlane.f32.xlu0 %v3821
    %v3823 = vpop.xlane.xlu0 %3822
    %v3824 = vsel %vm3820, %v3584, 0.0
    %3825 = vadd.xlane.f32.xlu0 %v3824
    %v3826 = vpop.xlane.xlu0 %3825
    %v3827 = vsel %vm3820, %v3311, 0.0
    %3828 = vadd.xlane.f32.xlu0 %v3827
    %v3829 = vpop.xlane.xlu0 %3828
    %v3830 = vsel %vm3328, %v3823, %v3826
    %v3831 = vsel %vm3330, %v3830, %v3829
    %vm3832 = vcmask 21508
    %v3833 = vsel %vm3832, %v3831, -inf
    %3834 = vmax.xlane.f32.xlu0 %v3833
    %v3835 = vpop.xlane.xlu0 %3834
    %v3836 = vsub.f32 %v3831, %v3835
    %v3837 = vmul.f32 %v3836, 1.442695
    %v3838 = vpow.pop %v3837
    %v3839 = vsel %vm3832, %v3838, 0.0
    %3840 = vadd.xlane.f32.xlu0 %v3839
    %v3841 = vpop.xlane.xlu0 %3840
    %v3842 = vrcp.pop %v3841
    %v3843 = vmul.f32 %v3841, %v3842
    %v3844 = vsub.f32 1.0, %v3843
    %v3845 = vmul.f32 %v3842, %v3844
    %v3846 = vadd.f32 %v3842, %v3845
    %vm3847 = vweird.f32 %v3841
    %vm3848 = vweird.f32 %v3842
    %vm3849 = vmor %vm3847, %vm3848
    %v3850 = vsel %vm3849, %v3842, %v3846
    %v3851 = vand.u32 2147483647, %v3841
    %vm3852 = vcmp.eq.f32.partialorder %v3851, 8.507059e+37
    %v3853 = vand.u32 %v3841, 2147483648
    %v3854 = vor.u32 1.1754944e-38, %v3853
    %v3855 = vsel %vm3852, %v3854, %v3850
    %v3856 = vmul.f32 %v3838, %v3855
    %3858 = vset.pattern.permute.xlu0 0
    %3859 = vperm.xlu0 %3858, %v3856
    %v3860 = vpop.permute.xlu0 %3859
    %v3862 = vmul.f32 %v3860, %v3377
    %v3863 = vadd.f32 %v3862, 0.0
    %3864 = vset.pattern.permute.xlu0 1
    %3865 = vperm.xlu0 %3864, %v3856
    %v3866 = vpop.permute.xlu0 %3865
    %v3868 = vmul.f32 %v3866, %v3627
    %v3869 = vadd.f32 %v3863, %v3868
    %3870 = vset.pattern.permute.xlu0 2
    %3871 = vperm.xlu0 %3870, %v3856
    %v3872 = vpop.permute.xlu0 %3871
    %v3874 = vmul.f32 %v3872, %v2945
    %v3875 = vadd.f32 %v3869, %v3874
    %v3876 = vsel %vm3820, %v3394, 0.0
    %3877 = vadd.xlane.f32.xlu0 %v3876
    %v3878 = vpop.xlane.xlu0 %3877
    %v3879 = vsel %vm3820, %v3645, 0.0
    %3880 = vadd.xlane.f32.xlu0 %v3879
    %v3881 = vpop.xlane.xlu0 %3880
    %v3882 = vsel %vm3820, %v3381, 0.0
    %3883 = vadd.xlane.f32.xlu0 %v3882
    %v3884 = vpop.xlane.xlu0 %3883
    %v3885 = vsel %vm3328, %v3878, %v3881
    %v3886 = vsel %vm3330, %v3885, %v3884
    %v3887 = vsel %vm3832, %v3886, -inf
    %3888 = vmax.xlane.f32.xlu0 %v3887
    %v3889 = vpop.xlane.xlu0 %3888
    %v3890 = vsub.f32 %v3886, %v3889
    %v3891 = vmul.f32 %v3890, 1.442695
    %v3892 = vpow.pop %v3891
    %v3893 = vsel %vm3832, %v3892, 0.0
    %3894 = vadd.xlane.f32.xlu0 %v3893
    %v3895 = vpop.xlane.xlu0 %3894
    %v3896 = vrcp.pop %v3895
    %v3897 = vmul.f32 %v3895, %v3896
    %v3898 = vsub.f32 1.0, %v3897
    %v3899 = vmul.f32 %v3896, %v3898
    %v3900 = vadd.f32 %v3896, %v3899
    %vm3901 = vweird.f32 %v3895
    %vm3902 = vweird.f32 %v3896
    %vm3903 = vmor %vm3901, %vm3902
    %v3904 = vsel %vm3903, %v3896, %v3900
    %v3905 = vand.u32 2147483647, %v3895
    %vm3906 = vcmp.eq.f32.partialorder %v3905, 8.507059e+37
    %v3907 = vand.u32 %v3895, 2147483648
    %v3908 = vor.u32 1.1754944e-38, %v3907
    %v3909 = vsel %vm3906, %v3908, %v3904
    %v3910 = vmul.f32 %v3892, %v3909
    %3912 = vset.pattern.permute.xlu0 0
    %3913 = vperm.xlu0 %3912, %v3910
    %v3914 = vpop.permute.xlu0 %3913
    %v3916 = vmul.f32 %v3914, %v3444
    %v3917 = vadd.f32 %v3916, 0.0
    %3918 = vset.pattern.permute.xlu0 1
    %3919 = vperm.xlu0 %3918, %v3910
    %v3920 = vpop.permute.xlu0 %3919
    %v3922 = vmul.f32 %v3920, %v3686
    %v3923 = vadd.f32 %v3917, %v3922
    %3924 = vset.pattern.permute.xlu0 2
    %3925 = vperm.xlu0 %3924, %v3910
    %v3926 = vpop.permute.xlu0 %3925
    %v3928 = vmul.f32 %v3926, %v3065
    %v3929 = vadd.f32 %v3923, %v3928
    %v3930 = vsel %vm3820, %v3461, 0.0
    %3931 = vadd.xlane.f32.xlu0 %v3930
    %v3932 = vpop.xlane.xlu0 %3931
    %v3933 = vsel %vm3820, %v3704, 0.0
    %3934 = vadd.xlane.f32.xlu0 %v3933
    %v3935 = vpop.xlane.xlu0 %3934
    %v3936 = vsel %vm3820, %v3448, 0.0
    %3937 = vadd.xlane.f32.xlu0 %v3936
    %v3938 = vpop.xlane.xlu0 %3937
    %v3939 = vsel %vm3328, %v3932, %v3935
    %v3940 = vsel %vm3330, %v3939, %v3938
    %v3941 = vsel %vm3832, %v3940, -inf
    %3942 = vmax.xlane.f32.xlu0 %v3941
    %v3943 = vpop.xlane.xlu0 %3942
    %v3944 = vsub.f32 %v3940, %v3943
    %v3945 = vmul.f32 %v3944, 1.442695
    %v3946 = vpow.pop %v3945
    %v3947 = vsel %vm3832, %v3946, 0.0
    %3948 = vadd.xlane.f32.xlu0 %v3947
    %v3949 = vpop.xlane.xlu0 %3948
    %v3950 = vrcp.pop %v3949
    %v3951 = vmul.f32 %v3949, %v3950
    %v3952 = vsub.f32 1.0, %v3951
    %v3953 = vmul.f32 %v3950, %v3952
    %v3954 = vadd.f32 %v3950, %v3953
    %vm3955 = vweird.f32 %v3949
    %vm3956 = vweird.f32 %v3950
    %vm3957 = vmor %vm3955, %vm3956
    %v3958 = vsel %vm3957, %v3950, %v3954
    %v3959 = vand.u32 2147483647, %v3949
    %vm3960 = vcmp.eq.f32.partialorder %v3959, 8.507059e+37
    %v3961 = vand.u32 %v3949, 2147483648
    %v3962 = vor.u32 1.1754944e-38, %v3961
    %v3963 = vsel %vm3960, %v3962, %v3958
    %v3964 = vmul.f32 %v3946, %v3963
    %3966 = vset.pattern.permute.xlu0 0
    %3967 = vperm.xlu0 %3966, %v3964
    %v3968 = vpop.permute.xlu0 %3967
    %v3970 = vmul.f32 %v3968, %v3511
    %v3971 = vadd.f32 %v3970, 0.0
    %3972 = vset.pattern.permute.xlu0 1
    %3973 = vperm.xlu0 %3972, %v3964
    %v3974 = vpop.permute.xlu0 %3973
    %v3976 = vmul.f32 %v3974, %v3745
    %v3977 = vadd.f32 %v3971, %v3976
    %3978 = vset.pattern.permute.xlu0 2
    %3979 = vperm.xlu0 %3978, %v3964
    %v3980 = vpop.permute.xlu0 %3979
    %v3982 = vmul.f32 %v3980, %v3185
    %v3983 = vadd.f32 %v3977, %v3982
    %v3984 = vsel %vm3820, %v3528, 0.0
    %3985 = vadd.xlane.f32.xlu0 %v3984
    %v3986 = vpop.xlane.xlu0 %3985
    %v3987 = vsel %vm3820, %v3763, 0.0
    %3988 = vadd.xlane.f32.xlu0 %v3987
    %v3989 = vpop.xlane.xlu0 %3988
    %v3990 = vsel %vm3820, %v3515, 0.0
    %3991 = vadd.xlane.f32.xlu0 %v3990
    %v3992 = vpop.xlane.xlu0 %3991
    %v3993 = vsel %vm3328, %v3986, %v3989
    %v3994 = vsel %vm3330, %v3993, %v3992
    %v3995 = vsel %vm3832, %v3994, -inf
    %3996 = vmax.xlane.f32.xlu0 %v3995
    %v3997 = vpop.xlane.xlu0 %3996
    %v3998 = vsub.f32 %v3994, %v3997
    %v3999 = vmul.f32 %v3998, 1.442695
    %v4000 = vpow.pop %v3999
    %v4001 = vsel %vm3832, %v4000, 0.0
    %4002 = vadd.xlane.f32.xlu0 %v4001
    %v4003 = vpop.xlane.xlu0 %4002
    %v4004 = vrcp.pop %v4003
    %v4005 = vmul.f32 %v4003, %v4004
    %v4006 = vsub.f32 1.0, %v4005
    %v4007 = vmul.f32 %v4004, %v4006
    %v4008 = vadd.f32 %v4004, %v4007
    %vm4009 = vweird.f32 %v4003
    %vm4010 = vweird.f32 %v4004
    %vm4011 = vmor %vm4009, %vm4010
    %v4012 = vsel %vm4011, %v4004, %v4008
    %v4013 = vand.u32 2147483647, %v4003
    %vm4014 = vcmp.eq.f32.partialorder %v4013, 8.507059e+37
    %v4015 = vand.u32 %v4003, 2147483648
    %v4016 = vor.u32 1.1754944e-38, %v4015
    %v4017 = vsel %vm4014, %v4016, %v4012
    %v4018 = vmul.f32 %v4000, %v4017
    %4020 = vset.pattern.permute.xlu0 0
    %4021 = vperm.xlu0 %4020, %v4018
    %v4022 = vpop.permute.xlu0 %4021
    %v4024 = vmul.f32 %v4022, %v3578
    %v4025 = vadd.f32 %v4024, 0.0
    %4026 = vset.pattern.permute.xlu0 1
    %4027 = vperm.xlu0 %4026, %v4018
    %v4028 = vpop.permute.xlu0 %4027
    %v4030 = vmul.f32 %v4028, %v3804
    %v4031 = vadd.f32 %v4025, %v4030
    %4032 = vset.pattern.permute.xlu0 2
    %4033 = vperm.xlu0 %4032, %v4018
    %v4034 = vpop.permute.xlu0 %4033
    %v4036 = vmul.f32 %v4034, %v3305
    %v4037 = vadd.f32 %v4031, %v4036
    %v4038 = vsel %vm673, %v3380, %v3642
    %v4039 = vsel %vm673, %v3447, %v3701
    %v4040 = vsel %vm673, %v3514, %v3760
    %v4041 = vsel %vm673, %v3581, %v3819
    %v4042 = vsel %vm680, %v4038, %v3875
    %v4043 = vsel %vm680, %v4039, %v3929
    %v4044 = vsel %vm680, %v4040, %v3983
    %v4045 = vsel %vm680, %v4041, %v4037
    %v4046 = vld [vmem:[#allocation13] sm:$0xff]
    %v4047 = vld [vmem:[#allocation13 + $0x8] sm:$0xff]
    %v4048 = vld [vmem:[#allocation13 + $0x10] sm:$0xff]
    %v4049 = vld [vmem:[#allocation13 + $0x18] sm:$0xff]
    %v4050 = vld [vmem:[#allocation13 + $0x20] sm:$0xff]
    %v4051 = vld [vmem:[#allocation13 + $0x28] sm:$0xff]
    %v4052 = vld [vmem:[#allocation13 + $0x30] sm:$0xff]
    %v4053 = vld [vmem:[#allocation13 + $0x38] sm:$0xff]
    %v4054 = vld [vmem:[#allocation13 + $0x40] sm:$0xff]
    %v4055 = vld [vmem:[#allocation13 + $0x48] sm:$0xff]
    %v4056 = vld [vmem:[#allocation13 + $0x50] sm:$0xff]
    %v4057 = vld [vmem:[#allocation13 + $0x58] sm:$0xff]
    %v4058 = vld [vmem:[#allocation13 + $0x60] sm:$0xff]
    %v4059 = vld [vmem:[#allocation13 + $0x68] sm:$0xff]
    %v4060 = vld [vmem:[#allocation13 + $0x70] sm:$0xff]
    %v4061 = vld [vmem:[#allocation13 + $0x78] sm:$0xff]
    %v4062 = vld [vmem:[#allocation13 + $0x80] sm:$0xff]
    %v4063 = vld [vmem:[#allocation13 + $0x88] sm:$0xff]
    %v4064 = vld [vmem:[#allocation13 + $0x90] sm:$0xff]
    %v4065 = vld [vmem:[#allocation13 + $0x98] sm:$0xff]
    %v4066 = vld [vmem:[#allocation13 + $0xa0] sm:$0xff]
    %v4067 = vld [vmem:[#allocation13 + $0xa8] sm:$0xff]
    %v4068 = vld [vmem:[#allocation13 + $0xb0] sm:$0xff]
    %v4069 = vld [vmem:[#allocation13 + $0xb8] sm:$0xff]
    %v4070 = vld [vmem:[#allocation13 + $0xc0] sm:$0xff]
    %v4071 = vld [vmem:[#allocation13 + $0xc8] sm:$0xff]
    %v4072 = vld [vmem:[#allocation13 + $0xd0] sm:$0xff]
    %v4073 = vld [vmem:[#allocation13 + $0xd8] sm:$0xff]
    %v4074 = vld [vmem:[#allocation13 + $0xe0] sm:$0xff]
    %v4075 = vld [vmem:[#allocation13 + $0xe8] sm:$0xff]
    %v4076 = vld [vmem:[#allocation13 + $0xf0] sm:$0xff]
    %v4077 = vld [vmem:[#allocation13 + $0xf8] sm:$0xff]
    %v4078 = vld [vmem:[#allocation13 + $0x100] sm:$0xff]
    %v4079 = vld [vmem:[#allocation13 + $0x108] sm:$0xff]
    %v4080 = vld [vmem:[#allocation13 + $0x110] sm:$0xff]
    %v4081 = vld [vmem:[#allocation13 + $0x118] sm:$0xff]
    %v4082 = vld [vmem:[#allocation13 + $0x120] sm:$0xff]
    %v4083 = vld [vmem:[#allocation13 + $0x128] sm:$0xff]
    %v4084 = vld [vmem:[#allocation13 + $0x130] sm:$0xff]
    %v4085 = vld [vmem:[#allocation13 + $0x138] sm:$0xff]
    %v4086 = vld [vmem:[#allocation13 + $0x140] sm:$0xff]
    %v4087 = vld [vmem:[#allocation13 + $0x148] sm:$0xff]
    %v4088 = vld [vmem:[#allocation13 + $0x150] sm:$0xff]
    %v4089 = vld [vmem:[#allocation13 + $0x158] sm:$0xff]
    %v4090 = vld [vmem:[#allocation13 + $0x160] sm:$0xff]
    %v4091 = vld [vmem:[#allocation13 + $0x168] sm:$0xff]
    %v4092 = vld [vmem:[#allocation13 + $0x170] sm:$0xff]
    %v4093 = vld [vmem:[#allocation13 + $0x178] sm:$0xff]
    %v4094 = vld [vmem:[#allocation13 + $0x180] sm:$0xff]
    %v4095 = vld [vmem:[#allocation13 + $0x188] sm:$0xff]
    %v4096 = vld [vmem:[#allocation13 + $0x190] sm:$0xff]
    %v4097 = vld [vmem:[#allocation13 + $0x198] sm:$0xff]
    %v4098 = vld [vmem:[#allocation13 + $0x1a0] sm:$0xff]
    %v4099 = vld [vmem:[#allocation13 + $0x1a8] sm:$0xff]
    %v4100 = vld [vmem:[#allocation13 + $0x1b0] sm:$0xff]
    %v4101 = vld [vmem:[#allocation13 + $0x1b8] sm:$0xff]
    %v4102 = vld [vmem:[#allocation13 + $0x1c0] sm:$0xff]
    %v4103 = vld [vmem:[#allocation13 + $0x1c8] sm:$0xff]
    %v4104 = vld [vmem:[#allocation13 + $0x1d0] sm:$0xff]
    %v4105 = vld [vmem:[#allocation13 + $0x1d8] sm:$0xff]
    %v4106 = vld [vmem:[#allocation13 + $0x1e0] sm:$0xff]
    %v4107 = vld [vmem:[#allocation13 + $0x1e8] sm:$0xff]
    %v4108 = vld [vmem:[#allocation13 + $0x1f0] sm:$0xff]
    %v4109 = vld [vmem:[#allocation13 + $0x1f8] sm:$0xff]
    %v4110 = vld [vmem:[#allocation13 + $0x200] sm:$0xff]
    %v4111 = vld [vmem:[#allocation13 + $0x208] sm:$0xff]
    %v4112 = vld [vmem:[#allocation13 + $0x210] sm:$0xff]
    %v4113 = vld [vmem:[#allocation13 + $0x218] sm:$0xff]
    %v4114 = vld [vmem:[#allocation13 + $0x220] sm:$0xff]
    %v4115 = vld [vmem:[#allocation13 + $0x228] sm:$0xff]
    %v4116 = vld [vmem:[#allocation13 + $0x230] sm:$0xff]
    %v4117 = vld [vmem:[#allocation13 + $0x238] sm:$0xff]
    %v4118 = vld [vmem:[#allocation13 + $0x240] sm:$0xff]
    %v4119 = vld [vmem:[#allocation13 + $0x248] sm:$0xff]
    %v4120 = vld [vmem:[#allocation13 + $0x250] sm:$0xff]
    %v4121 = vld [vmem:[#allocation13 + $0x258] sm:$0xff]
    %v4122 = vld [vmem:[#allocation13 + $0x260] sm:$0xff]
    %v4123 = vld [vmem:[#allocation13 + $0x268] sm:$0xff]
    %v4124 = vld [vmem:[#allocation13 + $0x270] sm:$0xff]
    %v4125 = vld [vmem:[#allocation13 + $0x278] sm:$0xff]
    %v4126 = vld [vmem:[#allocation13 + $0x280] sm:$0xff]
    %v4127 = vld [vmem:[#allocation13 + $0x288] sm:$0xff]
    %v4128 = vld [vmem:[#allocation13 + $0x290] sm:$0xff]
    %v4129 = vld [vmem:[#allocation13 + $0x298] sm:$0xff]
    %v4130 = vld [vmem:[#allocation13 + $0x2a0] sm:$0xff]
    %v4131 = vld [vmem:[#allocation13 + $0x2a8] sm:$0xff]
    %v4132 = vld [vmem:[#allocation13 + $0x2b0] sm:$0xff]
    %v4133 = vld [vmem:[#allocation13 + $0x2b8] sm:$0xff]
    %v4134 = vld [vmem:[#allocation13 + $0x2c0] sm:$0xff]
    %v4135 = vld [vmem:[#allocation13 + $0x2c8] sm:$0xff]
    %v4136 = vld [vmem:[#allocation13 + $0x2d0] sm:$0xff]
    %v4137 = vld [vmem:[#allocation13 + $0x2d8] sm:$0xff]
    %v4138 = vld [vmem:[#allocation13 + $0x2e0] sm:$0xff]
    %v4139 = vld [vmem:[#allocation13 + $0x2e8] sm:$0xff]
    %v4140 = vld [vmem:[#allocation13 + $0x2f0] sm:$0xff]
    %v4141 = vld [vmem:[#allocation13 + $0x2f8] sm:$0xff]
    %v4142 = vld [vmem:[#allocation13 + $0x300] sm:$0xff]
    %v4143 = vld [vmem:[#allocation13 + $0x308] sm:$0xff]
    %v4144 = vld [vmem:[#allocation13 + $0x310] sm:$0xff]
    %v4145 = vld [vmem:[#allocation13 + $0x318] sm:$0xff]
    %v4146 = vld [vmem:[#allocation13 + $0x320] sm:$0xff]
    %v4147 = vld [vmem:[#allocation13 + $0x328] sm:$0xff]
    %v4148 = vld [vmem:[#allocation13 + $0x330] sm:$0xff]
    %v4149 = vld [vmem:[#allocation13 + $0x338] sm:$0xff]
    %v4150 = vld [vmem:[#allocation13 + $0x340] sm:$0xff]
    %v4151 = vld [vmem:[#allocation13 + $0x348] sm:$0xff]
    %v4152 = vld [vmem:[#allocation13 + $0x350] sm:$0xff]
    %v4153 = vld [vmem:[#allocation13 + $0x358] sm:$0xff]
    %v4154 = vld [vmem:[#allocation13 + $0x360] sm:$0xff]
    %v4155 = vld [vmem:[#allocation13 + $0x368] sm:$0xff]
    %v4156 = vld [vmem:[#allocation13 + $0x370] sm:$0xff]
    %v4157 = vld [vmem:[#allocation13 + $0x378] sm:$0xff]
    %v4158 = vld [vmem:[#allocation13 + $0x380] sm:$0xff]
    %v4159 = vld [vmem:[#allocation13 + $0x388] sm:$0xff]
    %v4160 = vld [vmem:[#allocation13 + $0x390] sm:$0xff]
    %v4161 = vld [vmem:[#allocation13 + $0x398] sm:$0xff]
    %v4162 = vld [vmem:[#allocation13 + $0x3a0] sm:$0xff]
    %v4163 = vld [vmem:[#allocation13 + $0x3a8] sm:$0xff]
    %v4164 = vld [vmem:[#allocation13 + $0x3b0] sm:$0xff]
    %v4165 = vld [vmem:[#allocation13 + $0x3b8] sm:$0xff]
    %v4166 = vld [vmem:[#allocation13 + $0x3c0] sm:$0xff]
    %v4167 = vld [vmem:[#allocation13 + $0x3c8] sm:$0xff]
    %v4168 = vld [vmem:[#allocation13 + $0x3d0] sm:$0xff]
    %v4169 = vld [vmem:[#allocation13 + $0x3d8] sm:$0xff]
    %v4170 = vld [vmem:[#allocation13 + $0x3e0] sm:$0xff]
    %v4171 = vld [vmem:[#allocation13 + $0x3e8] sm:$0xff]
    %v4172 = vld [vmem:[#allocation13 + $0x3f0] sm:$0xff]
    %v4173 = vld [vmem:[#allocation13 + $0x3f8] sm:$0xff]
    %v4174 = vld [vmem:[#allocation13 + $0x400] sm:$0xff]
    %v4175 = vld [vmem:[#allocation13 + $0x408] sm:$0xff]
    %v4176 = vld [vmem:[#allocation13 + $0x410] sm:$0xff]
    %v4177 = vld [vmem:[#allocation13 + $0x418] sm:$0xff]
    %v4178 = vld [vmem:[#allocation13 + $0x420] sm:$0xff]
    %v4179 = vld [vmem:[#allocation13 + $0x428] sm:$0xff]
    %v4180 = vld [vmem:[#allocation13 + $0x430] sm:$0xff]
    %v4181 = vld [vmem:[#allocation13 + $0x438] sm:$0xff]
    %v4182 = vld [vmem:[#allocation13 + $0x440] sm:$0xff]
    %v4183 = vld [vmem:[#allocation13 + $0x448] sm:$0xff]
    %v4184 = vld [vmem:[#allocation13 + $0x450] sm:$0xff]
    %v4185 = vld [vmem:[#allocation13 + $0x458] sm:$0xff]
    %v4186 = vld [vmem:[#allocation13 + $0x460] sm:$0xff]
    %v4187 = vld [vmem:[#allocation13 + $0x468] sm:$0xff]
    %v4188 = vld [vmem:[#allocation13 + $0x470] sm:$0xff]
    %v4189 = vld [vmem:[#allocation13 + $0x478] sm:$0xff]
    %v4190 = vld [vmem:[#allocation13 + $0x480] sm:$0xff]
    %v4191 = vld [vmem:[#allocation13 + $0x488] sm:$0xff]
    %v4192 = vld [vmem:[#allocation13 + $0x490] sm:$0xff]
    %v4193 = vld [vmem:[#allocation13 + $0x498] sm:$0xff]
    %v4194 = vld [vmem:[#allocation13 + $0x4a0] sm:$0xff]
    %v4195 = vld [vmem:[#allocation13 + $0x4a8] sm:$0xff]
    %v4196 = vld [vmem:[#allocation13 + $0x4b0] sm:$0xff]
    %v4197 = vld [vmem:[#allocation13 + $0x4b8] sm:$0xff]
    %v4198 = vld [vmem:[#allocation13 + $0x4c0] sm:$0xff]
    %v4199 = vld [vmem:[#allocation13 + $0x4c8] sm:$0xff]
    %v4200 = vld [vmem:[#allocation13 + $0x4d0] sm:$0xff]
    %v4201 = vld [vmem:[#allocation13 + $0x4d8] sm:$0xff]
    %v4202 = vld [vmem:[#allocation13 + $0x4e0] sm:$0xff]
    %v4203 = vld [vmem:[#allocation13 + $0x4e8] sm:$0xff]
    %v4204 = vld [vmem:[#allocation13 + $0x4f0] sm:$0xff]
    %v4205 = vld [vmem:[#allocation13 + $0x4f8] sm:$0xff]
    %v4206 = vld [vmem:[#allocation13 + $0x500] sm:$0xff]
    %v4207 = vld [vmem:[#allocation13 + $0x508] sm:$0xff]
    %v4208 = vld [vmem:[#allocation13 + $0x510] sm:$0xff]
    %v4209 = vld [vmem:[#allocation13 + $0x518] sm:$0xff]
    %v4210 = vld [vmem:[#allocation13 + $0x520] sm:$0xff]
    %v4211 = vld [vmem:[#allocation13 + $0x528] sm:$0xff]
    %v4212 = vld [vmem:[#allocation13 + $0x530] sm:$0xff]
    %v4213 = vld [vmem:[#allocation13 + $0x538] sm:$0xff]
    %v4214 = vld [vmem:[#allocation13 + $0x540] sm:$0xff]
    %v4215 = vld [vmem:[#allocation13 + $0x548] sm:$0xff]
    %v4216 = vld [vmem:[#allocation13 + $0x550] sm:$0xff]
    %v4217 = vld [vmem:[#allocation13 + $0x558] sm:$0xff]
    %v4218 = vld [vmem:[#allocation13 + $0x560] sm:$0xff]
    %v4219 = vld [vmem:[#allocation13 + $0x568] sm:$0xff]
    %v4220 = vld [vmem:[#allocation13 + $0x570] sm:$0xff]
    %v4221 = vld [vmem:[#allocation13 + $0x578] sm:$0xff]
    %v4222 = vld [vmem:[#allocation13 + $0x580] sm:$0xff]
    %v4223 = vld [vmem:[#allocation13 + $0x588] sm:$0xff]
    %v4224 = vld [vmem:[#allocation13 + $0x590] sm:$0xff]
    %v4225 = vld [vmem:[#allocation13 + $0x598] sm:$0xff]
    %v4226 = vld [vmem:[#allocation13 + $0x5a0] sm:$0xff]
    %v4227 = vld [vmem:[#allocation13 + $0x5a8] sm:$0xff]
    %v4228 = vld [vmem:[#allocation13 + $0x5b0] sm:$0xff]
    %v4229 = vld [vmem:[#allocation13 + $0x5b8] sm:$0xff]
    %v4230 = vld [vmem:[#allocation13 + $0x5c0] sm:$0xff]
    %v4231 = vld [vmem:[#allocation13 + $0x5c8] sm:$0xff]
    %v4232 = vld [vmem:[#allocation13 + $0x5d0] sm:$0xff]
    %v4233 = vld [vmem:[#allocation13 + $0x5d8] sm:$0xff]
    %v4234 = vld [vmem:[#allocation13 + $0x5e0] sm:$0xff]
    %v4235 = vld [vmem:[#allocation13 + $0x5e8] sm:$0xff]
    %v4236 = vld [vmem:[#allocation13 + $0x5f0] sm:$0xff]
    %v4237 = vld [vmem:[#allocation13 + $0x5f8] sm:$0xff]
    %v4238 = vld [vmem:[#allocation13 + $0x600] sm:$0xff]
    %v4239 = vld [vmem:[#allocation13 + $0x608] sm:$0xff]
    %v4240 = vld [vmem:[#allocation13 + $0x610] sm:$0xff]
    %v4241 = vld [vmem:[#allocation13 + $0x618] sm:$0xff]
    %v4242 = vld [vmem:[#allocation13 + $0x620] sm:$0xff]
    %v4243 = vld [vmem:[#allocation13 + $0x628] sm:$0xff]
    %v4244 = vld [vmem:[#allocation13 + $0x630] sm:$0xff]
    %v4245 = vld [vmem:[#allocation13 + $0x638] sm:$0xff]
    %v4246 = vld [vmem:[#allocation13 + $0x640] sm:$0xff]
    %v4247 = vld [vmem:[#allocation13 + $0x648] sm:$0xff]
    %v4248 = vld [vmem:[#allocation13 + $0x650] sm:$0xff]
    %v4249 = vld [vmem:[#allocation13 + $0x658] sm:$0xff]
    %v4250 = vld [vmem:[#allocation13 + $0x660] sm:$0xff]
    %v4251 = vld [vmem:[#allocation13 + $0x668] sm:$0xff]
    %v4252 = vld [vmem:[#allocation13 + $0x670] sm:$0xff]
    %v4253 = vld [vmem:[#allocation13 + $0x678] sm:$0xff]
    %v4254 = vld [vmem:[#allocation13 + $0x680] sm:$0xff]
    %v4255 = vld [vmem:[#allocation13 + $0x688] sm:$0xff]
    %v4256 = vld [vmem:[#allocation13 + $0x690] sm:$0xff]
    %v4257 = vld [vmem:[#allocation13 + $0x698] sm:$0xff]
    %v4258 = vld [vmem:[#allocation13 + $0x6a0] sm:$0xff]
    %v4259 = vld [vmem:[#allocation13 + $0x6a8] sm:$0xff]
    %v4260 = vld [vmem:[#allocation13 + $0x6b0] sm:$0xff]
    %v4261 = vld [vmem:[#allocation13 + $0x6b8] sm:$0xff]
    %v4262 = vld [vmem:[#allocation13 + $0x6c0] sm:$0xff]
    %v4263 = vld [vmem:[#allocation13 + $0x6c8] sm:$0xff]
    %v4264 = vld [vmem:[#allocation13 + $0x6d0] sm:$0xff]
    %v4265 = vld [vmem:[#allocation13 + $0x6d8] sm:$0xff]
    %v4266 = vld [vmem:[#allocation13 + $0x6e0] sm:$0xff]
    %v4267 = vld [vmem:[#allocation13 + $0x6e8] sm:$0xff]
    %v4268 = vld [vmem:[#allocation13 + $0x6f0] sm:$0xff]
    %v4269 = vld [vmem:[#allocation13 + $0x6f8] sm:$0xff]
    %v4270 = vld [vmem:[#allocation13 + $0x700] sm:$0xff]
    %v4271 = vld [vmem:[#allocation13 + $0x708] sm:$0xff]
    %v4272 = vld [vmem:[#allocation13 + $0x710] sm:$0xff]
    %v4273 = vld [vmem:[#allocation13 + $0x718] sm:$0xff]
    %v4274 = vld [vmem:[#allocation13 + $0x720] sm:$0xff]
    %v4275 = vld [vmem:[#allocation13 + $0x728] sm:$0xff]
    %v4276 = vld [vmem:[#allocation13 + $0x730] sm:$0xff]
    %v4277 = vld [vmem:[#allocation13 + $0x738] sm:$0xff]
    %v4278 = vld [vmem:[#allocation13 + $0x740] sm:$0xff]
    %v4279 = vld [vmem:[#allocation13 + $0x748] sm:$0xff]
    %v4280 = vld [vmem:[#allocation13 + $0x750] sm:$0xff]
    %v4281 = vld [vmem:[#allocation13 + $0x758] sm:$0xff]
    %v4282 = vld [vmem:[#allocation13 + $0x760] sm:$0xff]
    %v4283 = vld [vmem:[#allocation13 + $0x768] sm:$0xff]
    %v4284 = vld [vmem:[#allocation13 + $0x770] sm:$0xff]
    %v4285 = vld [vmem:[#allocation13 + $0x778] sm:$0xff]
    %v4286 = vld [vmem:[#allocation13 + $0x780] sm:$0xff]
    %v4287 = vld [vmem:[#allocation13 + $0x788] sm:$0xff]
    %v4288 = vld [vmem:[#allocation13 + $0x790] sm:$0xff]
    %v4289 = vld [vmem:[#allocation13 + $0x798] sm:$0xff]
    %v4290 = vld [vmem:[#allocation13 + $0x7a0] sm:$0xff]
    %v4291 = vld [vmem:[#allocation13 + $0x7a8] sm:$0xff]
    %v4292 = vld [vmem:[#allocation13 + $0x7b0] sm:$0xff]
    %v4293 = vld [vmem:[#allocation13 + $0x7b8] sm:$0xff]
    %v4294 = vld [vmem:[#allocation13 + $0x7c0] sm:$0xff]
    %v4295 = vld [vmem:[#allocation13 + $0x7c8] sm:$0xff]
    %v4296 = vld [vmem:[#allocation13 + $0x7d0] sm:$0xff]
    %v4297 = vld [vmem:[#allocation13 + $0x7d8] sm:$0xff]
    %v4298 = vld [vmem:[#allocation13 + $0x7e0] sm:$0xff]
    %v4299 = vld [vmem:[#allocation13 + $0x7e8] sm:$0xff]
    %v4300 = vld [vmem:[#allocation13 + $0x7f0] sm:$0xff]
    %v4301 = vld [vmem:[#allocation13 + $0x7f8] sm:$0xff]
    %v4302 = vld [vmem:[#allocation13 + $0x800] sm:$0xff]
    %v4303 = vld [vmem:[#allocation13 + $0x808] sm:$0xff]
    %v4304 = vld [vmem:[#allocation13 + $0x810] sm:$0xff]
    %v4305 = vld [vmem:[#allocation13 + $0x818] sm:$0xff]
    %v4306 = vld [vmem:[#allocation13 + $0x820] sm:$0xff]
    %v4307 = vld [vmem:[#allocation13 + $0x828] sm:$0xff]
    %v4308 = vld [vmem:[#allocation13 + $0x830] sm:$0xff]
    %v4309 = vld [vmem:[#allocation13 + $0x838] sm:$0xff]
    %v4310 = vld [vmem:[#allocation13 + $0x840] sm:$0xff]
    %v4311 = vld [vmem:[#allocation13 + $0x848] sm:$0xff]
    %v4312 = vld [vmem:[#allocation13 + $0x850] sm:$0xff]
    %v4313 = vld [vmem:[#allocation13 + $0x858] sm:$0xff]
    %v4314 = vld [vmem:[#allocation13 + $0x860] sm:$0xff]
    %v4315 = vld [vmem:[#allocation13 + $0x868] sm:$0xff]
    %v4316 = vld [vmem:[#allocation13 + $0x870] sm:$0xff]
    %v4317 = vld [vmem:[#allocation13 + $0x878] sm:$0xff]
    %v4318 = vld [vmem:[#allocation13 + $0x880] sm:$0xff]
    %v4319 = vld [vmem:[#allocation13 + $0x888] sm:$0xff]
    %v4320 = vld [vmem:[#allocation13 + $0x890] sm:$0xff]
    %v4321 = vld [vmem:[#allocation13 + $0x898] sm:$0xff]
    %v4322 = vld [vmem:[#allocation13 + $0x8a0] sm:$0xff]
    %v4323 = vld [vmem:[#allocation13 + $0x8a8] sm:$0xff]
    %v4324 = vld [vmem:[#allocation13 + $0x8b0] sm:$0xff]
    %v4325 = vld [vmem:[#allocation13 + $0x8b8] sm:$0xff]
    %v4326 = vld [vmem:[#allocation13 + $0x8c0] sm:$0xff]
    %v4327 = vld [vmem:[#allocation13 + $0x8c8] sm:$0xff]
    %v4328 = vld [vmem:[#allocation13 + $0x8d0] sm:$0xff]
    %v4329 = vld [vmem:[#allocation13 + $0x8d8] sm:$0xff]
    %v4330 = vld [vmem:[#allocation13 + $0x8e0] sm:$0xff]
    %v4331 = vld [vmem:[#allocation13 + $0x8e8] sm:$0xff]
    %v4332 = vld [vmem:[#allocation13 + $0x8f0] sm:$0xff]
    %v4333 = vld [vmem:[#allocation13 + $0x8f8] sm:$0xff]
    %v4334 = vld [vmem:[#allocation13 + $0x900] sm:$0xff]
    %v4335 = vld [vmem:[#allocation13 + $0x908] sm:$0xff]
    %v4336 = vld [vmem:[#allocation13 + $0x910] sm:$0xff]
    %v4337 = vld [vmem:[#allocation13 + $0x918] sm:$0xff]
    %v4338 = vld [vmem:[#allocation13 + $0x920] sm:$0xff]
    %v4339 = vld [vmem:[#allocation13 + $0x928] sm:$0xff]
    %v4340 = vld [vmem:[#allocation13 + $0x930] sm:$0xff]
    %v4341 = vld [vmem:[#allocation13 + $0x938] sm:$0xff]
    %v4342 = vld [vmem:[#allocation13 + $0x940] sm:$0xff]
    %v4343 = vld [vmem:[#allocation13 + $0x948] sm:$0xff]
    %v4344 = vld [vmem:[#allocation13 + $0x950] sm:$0xff]
    %v4345 = vld [vmem:[#allocation13 + $0x958] sm:$0xff]
    %v4346 = vld [vmem:[#allocation13 + $0x960] sm:$0xff]
    %v4347 = vld [vmem:[#allocation13 + $0x968] sm:$0xff]
    %v4348 = vld [vmem:[#allocation13 + $0x970] sm:$0xff]
    %v4349 = vld [vmem:[#allocation13 + $0x978] sm:$0xff]
    %v4350 = vld [vmem:[#allocation13 + $0x980] sm:$0xff]
    %v4351 = vld [vmem:[#allocation13 + $0x988] sm:$0xff]
    %v4352 = vld [vmem:[#allocation13 + $0x990] sm:$0xff]
    %v4353 = vld [vmem:[#allocation13 + $0x998] sm:$0xff]
    %v4354 = vld [vmem:[#allocation13 + $0x9a0] sm:$0xff]
    %v4355 = vld [vmem:[#allocation13 + $0x9a8] sm:$0xff]
    %v4356 = vld [vmem:[#allocation13 + $0x9b0] sm:$0xff]
    %v4357 = vld [vmem:[#allocation13 + $0x9b8] sm:$0xff]
    %v4358 = vld [vmem:[#allocation13 + $0x9c0] sm:$0xff]
    %v4359 = vld [vmem:[#allocation13 + $0x9c8] sm:$0xff]
    %v4360 = vld [vmem:[#allocation13 + $0x9d0] sm:$0xff]
    %v4361 = vld [vmem:[#allocation13 + $0x9d8] sm:$0xff]
    %v4362 = vld [vmem:[#allocation13 + $0x9e0] sm:$0xff]
    %v4363 = vld [vmem:[#allocation13 + $0x9e8] sm:$0xff]
    %v4364 = vld [vmem:[#allocation13 + $0x9f0] sm:$0xff]
    %v4365 = vld [vmem:[#allocation13 + $0x9f8] sm:$0xff]
    %v4366 = vld [vmem:[#allocation13 + $0xa00] sm:$0xff]
    %v4367 = vld [vmem:[#allocation13 + $0xa08] sm:$0xff]
    %v4368 = vld [vmem:[#allocation13 + $0xa10] sm:$0xff]
    %v4369 = vld [vmem:[#allocation13 + $0xa18] sm:$0xff]
    %v4370 = vld [vmem:[#allocation13 + $0xa20] sm:$0xff]
    %v4371 = vld [vmem:[#allocation13 + $0xa28] sm:$0xff]
    %v4372 = vld [vmem:[#allocation13 + $0xa30] sm:$0xff]
    %v4373 = vld [vmem:[#allocation13 + $0xa38] sm:$0xff]
    %v4374 = vld [vmem:[#allocation13 + $0xa40] sm:$0xff]
    %v4375 = vld [vmem:[#allocation13 + $0xa48] sm:$0xff]
    %v4376 = vld [vmem:[#allocation13 + $0xa50] sm:$0xff]
    %v4377 = vld [vmem:[#allocation13 + $0xa58] sm:$0xff]
    %v4378 = vld [vmem:[#allocation13 + $0xa60] sm:$0xff]
    %v4379 = vld [vmem:[#allocation13 + $0xa68] sm:$0xff]
    %v4380 = vld [vmem:[#allocation13 + $0xa70] sm:$0xff]
    %v4381 = vld [vmem:[#allocation13 + $0xa78] sm:$0xff]
    %v4382 = vld [vmem:[#allocation13 + $0xa80] sm:$0xff]
    %v4383 = vld [vmem:[#allocation13 + $0xa88] sm:$0xff]
    %v4384 = vld [vmem:[#allocation13 + $0xa90] sm:$0xff]
    %v4385 = vld [vmem:[#allocation13 + $0xa98] sm:$0xff]
    %v4386 = vld [vmem:[#allocation13 + $0xaa0] sm:$0xff]
    %v4387 = vld [vmem:[#allocation13 + $0xaa8] sm:$0xff]
    %v4388 = vld [vmem:[#allocation13 + $0xab0] sm:$0xff]
    %v4389 = vld [vmem:[#allocation13 + $0xab8] sm:$0xff]
    %v4390 = vld [vmem:[#allocation13 + $0xac0] sm:$0xff]
    %v4391 = vld [vmem:[#allocation13 + $0xac8] sm:$0xff]
    %v4392 = vld [vmem:[#allocation13 + $0xad0] sm:$0xff]
    %v4393 = vld [vmem:[#allocation13 + $0xad8] sm:$0xff]
    %v4394 = vld [vmem:[#allocation13 + $0xae0] sm:$0xff]
    %v4395 = vld [vmem:[#allocation13 + $0xae8] sm:$0xff]
    %v4396 = vld [vmem:[#allocation13 + $0xaf0] sm:$0xff]
    %v4397 = vld [vmem:[#allocation13 + $0xaf8] sm:$0xff]
    %v4398 = vld [vmem:[#allocation13 + $0xb00] sm:$0xff]
    %v4399 = vld [vmem:[#allocation13 + $0xb08] sm:$0xff]
    %v4400 = vld [vmem:[#allocation13 + $0xb10] sm:$0xff]
    %v4401 = vld [vmem:[#allocation13 + $0xb18] sm:$0xff]
    %v4402 = vld [vmem:[#allocation13 + $0xb20] sm:$0xff]
    %v4403 = vld [vmem:[#allocation13 + $0xb28] sm:$0xff]
    %v4404 = vld [vmem:[#allocation13 + $0xb30] sm:$0xff]
    %v4405 = vld [vmem:[#allocation13 + $0xb38] sm:$0xff]
    %v4406 = vld [vmem:[#allocation13 + $0xb40] sm:$0xff]
    %v4407 = vld [vmem:[#allocation13 + $0xb48] sm:$0xff]
    %v4408 = vld [vmem:[#allocation13 + $0xb50] sm:$0xff]
    %v4409 = vld [vmem:[#allocation13 + $0xb58] sm:$0xff]
    %v4410 = vld [vmem:[#allocation13 + $0xb60] sm:$0xff]
    %v4411 = vld [vmem:[#allocation13 + $0xb68] sm:$0xff]
    %v4412 = vld [vmem:[#allocation13 + $0xb70] sm:$0xff]
    %v4413 = vld [vmem:[#allocation13 + $0xb78] sm:$0xff]
    %v4414 = vld [vmem:[#allocation13 + $0xb80] sm:$0xff]
    %v4415 = vld [vmem:[#allocation13 + $0xb88] sm:$0xff]
    %v4416 = vld [vmem:[#allocation13 + $0xb90] sm:$0xff]
    %v4417 = vld [vmem:[#allocation13 + $0xb98] sm:$0xff]
    %v4418 = vld [vmem:[#allocation13 + $0xba0] sm:$0xff]
    %v4419 = vld [vmem:[#allocation13 + $0xba8] sm:$0xff]
    %v4420 = vld [vmem:[#allocation13 + $0xbb0] sm:$0xff]
    %v4421 = vld [vmem:[#allocation13 + $0xbb8] sm:$0xff]
    %v4422 = vld [vmem:[#allocation13 + $0xbc0] sm:$0xff]
    %v4423 = vld [vmem:[#allocation13 + $0xbc8] sm:$0xff]
    %v4424 = vld [vmem:[#allocation13 + $0xbd0] sm:$0xff]
    %v4425 = vld [vmem:[#allocation13 + $0xbd8] sm:$0xff]
    %v4426 = vld [vmem:[#allocation13 + $0xbe0] sm:$0xff]
    %v4427 = vld [vmem:[#allocation13 + $0xbe8] sm:$0xff]
    %v4428 = vld [vmem:[#allocation13 + $0xbf0] sm:$0xff]
    %v4429 = vld [vmem:[#allocation13 + $0xbf8] sm:$0xff]
    %v4430 = vld [vmem:[#allocation14] sm:$0x3f]
    %v4432 = vperm.slane %v4430, 0
    %v4433 = vperm.slane %v4430, 1
    %v4434 = vperm.slane %v4430, 2
    %v4435 = vperm.slane %v4430, 3
    %v4436 = vperm.slane %v4430, 4
    %v4437 = vperm.slane %v4430, 5
    %4444 = vmatpush.msra.mxu0 %v4136
    %4445 = vmatpush.msra.mxu0 %v4130
    %4446 = vmatpush.msra.mxu0 %v4124
    %4447 = vmatpush.msra.mxu0 %v4118
    %4448 = vmatpush.msra.mxu0 %v4112
    %4449 = vmatpush.msra.mxu0 %v4106
    %4450 = vmatpush.msra.mxu0 %v4100
    %4451 = vmatpush.msra.mxu0 %v4094
    %4452 = vmatpush.msra.mxu0 %v4088
    %4453 = vmatpush.msra.mxu0 %v4082
    %4454 = vmatpush.msra.mxu0 %v4076
    %4455 = vmatpush.msra.mxu0 %v4070
    %4456 = vmatpush.msra.mxu0 %v4064
    %4457 = vmatpush.msra.mxu0 %v4058
    %4458 = vmatpush.msra.mxu0 %v4052
    %4459 = vmatpush.msra.mxu0 %v4046
    %4460 = vmatmul.f32.gmra.mxu0 %v4042
    %v4461 = vpop.f32.mrf.mxu0
    %v4462 = vadd.f32 %v4432, %v4461
    %4463 = vdwg.mxu0
    %4464 = vmatpush.msra.mxu0 %v4232
    %4465 = vmatpush.msra.mxu0 %v4226
    %4466 = vmatpush.msra.mxu0 %v4220
    %4467 = vmatpush.msra.mxu0 %v4214
    %4468 = vmatpush.msra.mxu0 %v4208
    %4469 = vmatpush.msra.mxu0 %v4202
    %4470 = vmatpush.msra.mxu0 %v4196
    %4471 = vmatpush.msra.mxu0 %v4190
    %4472 = vmatpush.msra.mxu0 %v4184
    %4473 = vmatpush.msra.mxu0 %v4178
    %4474 = vmatpush.msra.mxu0 %v4172
    %4475 = vmatpush.msra.mxu0 %v4166
    %4476 = vmatpush.msra.mxu0 %v4160
    %4477 = vmatpush.msra.mxu0 %v4154
    %4478 = vmatpush.msra.mxu0 %v4148
    %4479 = vmatpush.msra.mxu0 %v4142
    %4480 = vmatmul.f32.gmra.mxu0 %v4043
    %v4481 = vpop.f32.mrf.mxu0
    %v4482 = vadd.f32 %v4462, %v4481
    %4483 = vdwg.mxu0
    %4484 = vmatpush.msra.mxu0 %v4328
    %4485 = vmatpush.msra.mxu0 %v4322
    %4486 = vmatpush.msra.mxu0 %v4316
    %4487 = vmatpush.msra.mxu0 %v4310
    %4488 = vmatpush.msra.mxu0 %v4304
    %4489 = vmatpush.msra.mxu0 %v4298
    %4490 = vmatpush.msra.mxu0 %v4292
    %4491 = vmatpush.msra.mxu0 %v4286
    %4492 = vmatpush.msra.mxu0 %v4280
    %4493 = vmatpush.msra.mxu0 %v4274
    %4494 = vmatpush.msra.mxu0 %v4268
    %4495 = vmatpush.msra.mxu0 %v4262
    %4496 = vmatpush.msra.mxu0 %v4256
    %4497 = vmatpush.msra.mxu0 %v4250
    %4498 = vmatpush.msra.mxu0 %v4244
    %4499 = vmatpush.msra.mxu0 %v4238
    %4500 = vmatmul.f32.gmra.mxu0 %v4044
    %v4501 = vpop.f32.mrf.mxu0
    %v4502 = vadd.f32 %v4482, %v4501
    %4503 = vdwg.mxu0
    %4504 = vmatpush.msra.mxu0 %v4424
    %4505 = vmatpush.msra.mxu0 %v4418
    %4506 = vmatpush.msra.mxu0 %v4412
    %4507 = vmatpush.msra.mxu0 %v4406
    %4508 = vmatpush.msra.mxu0 %v4400
    %4509 = vmatpush.msra.mxu0 %v4394
    %4510 = vmatpush.msra.mxu0 %v4388
    %4511 = vmatpush.msra.mxu0 %v4382
    %4512 = vmatpush.msra.mxu0 %v4376
    %4513 = vmatpush.msra.mxu0 %v4370
    %4514 = vmatpush.msra.mxu0 %v4364
    %4515 = vmatpush.msra.mxu0 %v4358
    %4516 = vmatpush.msra.mxu0 %v4352
    %4517 = vmatpush.msra.mxu0 %v4346
    %4518 = vmatpush.msra.mxu0 %v4340
    %4519 = vmatpush.msra.mxu0 %v4334
    %4520 = vmatmul.f32.gmra.mxu0 %v4045
    %v4521 = vpop.f32.mrf.mxu0
    %v4522 = vadd.f32 %v4502, %v4521
    %4523 = vdwg.mxu0
    %4524 = vmatpush.msra.mxu0 %v4137
    %4525 = vmatpush.msra.mxu0 %v4131
    %4526 = vmatpush.msra.mxu0 %v4125
    %4527 = vmatpush.msra.mxu0 %v4119
    %4528 = vmatpush.msra.mxu0 %v4113
    %4529 = vmatpush.msra.mxu0 %v4107
    %4530 = vmatpush.msra.mxu0 %v4101
    %4531 = vmatpush.msra.mxu0 %v4095
    %4532 = vmatpush.msra.mxu0 %v4089
    %4533 = vmatpush.msra.mxu0 %v4083
    %4534 = vmatpush.msra.mxu0 %v4077
    %4535 = vmatpush.msra.mxu0 %v4071
    %4536 = vmatpush.msra.mxu0 %v4065
    %4537 = vmatpush.msra.mxu0 %v4059
    %4538 = vmatpush.msra.mxu0 %v4053
    %4539 = vmatpush.msra.mxu0 %v4047
    %4540 = vmatmul.f32.gmra.mxu0 %v4042
    %v4541 = vpop.f32.mrf.mxu0
    %v4542 = vadd.f32 %v4433, %v4541
    %4543 = vdwg.mxu0
    %4544 = vmatpush.msra.mxu0 %v4233
    %4545 = vmatpush.msra.mxu0 %v4227
    %4546 = vmatpush.msra.mxu0 %v4221
    %4547 = vmatpush.msra.mxu0 %v4215
    %4548 = vmatpush.msra.mxu0 %v4209
    %4549 = vmatpush.msra.mxu0 %v4203
    %4550 = vmatpush.msra.mxu0 %v4197
    %4551 = vmatpush.msra.mxu0 %v4191
    %4552 = vmatpush.msra.mxu0 %v4185
    %4553 = vmatpush.msra.mxu0 %v4179
    %4554 = vmatpush.msra.mxu0 %v4173
    %4555 = vmatpush.msra.mxu0 %v4167
    %4556 = vmatpush.msra.mxu0 %v4161
    %4557 = vmatpush.msra.mxu0 %v4155
    %4558 = vmatpush.msra.mxu0 %v4149
    %4559 = vmatpush.msra.mxu0 %v4143
    %4560 = vmatmul.f32.gmra.mxu0 %v4043
    %v4561 = vpop.f32.mrf.mxu0
    %v4562 = vadd.f32 %v4542, %v4561
    %4563 = vdwg.mxu0
    %4564 = vmatpush.msra.mxu0 %v4329
    %4565 = vmatpush.msra.mxu0 %v4323
    %4566 = vmatpush.msra.mxu0 %v4317
    %4567 = vmatpush.msra.mxu0 %v4311
    %4568 = vmatpush.msra.mxu0 %v4305
    %4569 = vmatpush.msra.mxu0 %v4299
    %4570 = vmatpush.msra.mxu0 %v4293
    %4571 = vmatpush.msra.mxu0 %v4287
    %4572 = vmatpush.msra.mxu0 %v4281
    %4573 = vmatpush.msra.mxu0 %v4275
    %4574 = vmatpush.msra.mxu0 %v4269
    %4575 = vmatpush.msra.mxu0 %v4263
    %4576 = vmatpush.msra.mxu0 %v4257
    %4577 = vmatpush.msra.mxu0 %v4251
    %4578 = vmatpush.msra.mxu0 %v4245
    %4579 = vmatpush.msra.mxu0 %v4239
    %4580 = vmatmul.f32.gmra.mxu0 %v4044
    %v4581 = vpop.f32.mrf.mxu0
    %v4582 = vadd.f32 %v4562, %v4581
    %4583 = vdwg.mxu0
    %4584 = vmatpush.msra.mxu0 %v4425
    %4585 = vmatpush.msra.mxu0 %v4419
    %4586 = vmatpush.msra.mxu0 %v4413
    %4587 = vmatpush.msra.mxu0 %v4407
    %4588 = vmatpush.msra.mxu0 %v4401
    %4589 = vmatpush.msra.mxu0 %v4395
    %4590 = vmatpush.msra.mxu0 %v4389
    %4591 = vmatpush.msra.mxu0 %v4383
    %4592 = vmatpush.msra.mxu0 %v4377
    %4593 = vmatpush.msra.mxu0 %v4371
    %4594 = vmatpush.msra.mxu0 %v4365
    %4595 = vmatpush.msra.mxu0 %v4359
    %4596 = vmatpush.msra.mxu0 %v4353
    %4597 = vmatpush.msra.mxu0 %v4347
    %4598 = vmatpush.msra.mxu0 %v4341
    %4599 = vmatpush.msra.mxu0 %v4335
    %4600 = vmatmul.f32.gmra.mxu0 %v4045
    %v4601 = vpop.f32.mrf.mxu0
    %v4602 = vadd.f32 %v4582, %v4601
    %4603 = vdwg.mxu0
    %4604 = vmatpush.msra.mxu0 %v4138
    %4605 = vmatpush.msra.mxu0 %v4132
    %4606 = vmatpush.msra.mxu0 %v4126
    %4607 = vmatpush.msra.mxu0 %v4120
    %4608 = vmatpush.msra.mxu0 %v4114
    %4609 = vmatpush.msra.mxu0 %v4108
    %4610 = vmatpush.msra.mxu0 %v4102
    %4611 = vmatpush.msra.mxu0 %v4096
    %4612 = vmatpush.msra.mxu0 %v4090
    %4613 = vmatpush.msra.mxu0 %v4084
    %4614 = vmatpush.msra.mxu0 %v4078
    %4615 = vmatpush.msra.mxu0 %v4072
    %4616 = vmatpush.msra.mxu0 %v4066
    %4617 = vmatpush.msra.mxu0 %v4060
    %4618 = vmatpush.msra.mxu0 %v4054
    %4619 = vmatpush.msra.mxu0 %v4048
    %4620 = vmatmul.f32.gmra.mxu0 %v4042
    %v4621 = vpop.f32.mrf.mxu0
    %v4622 = vadd.f32 %v4434, %v4621
    %4623 = vdwg.mxu0
    %4624 = vmatpush.msra.mxu0 %v4234
    %4625 = vmatpush.msra.mxu0 %v4228
    %4626 = vmatpush.msra.mxu0 %v4222
    %4627 = vmatpush.msra.mxu0 %v4216
    %4628 = vmatpush.msra.mxu0 %v4210
    %4629 = vmatpush.msra.mxu0 %v4204
    %4630 = vmatpush.msra.mxu0 %v4198
    %4631 = vmatpush.msra.mxu0 %v4192
    %4632 = vmatpush.msra.mxu0 %v4186
    %4633 = vmatpush.msra.mxu0 %v4180
    %4634 = vmatpush.msra.mxu0 %v4174
    %4635 = vmatpush.msra.mxu0 %v4168
    %4636 = vmatpush.msra.mxu0 %v4162
    %4637 = vmatpush.msra.mxu0 %v4156
    %4638 = vmatpush.msra.mxu0 %v4150
    %4639 = vmatpush.msra.mxu0 %v4144
    %4640 = vmatmul.f32.gmra.mxu0 %v4043
    %v4641 = vpop.f32.mrf.mxu0
    %v4642 = vadd.f32 %v4622, %v4641
    %4643 = vdwg.mxu0
    %4644 = vmatpush.msra.mxu0 %v4330
    %4645 = vmatpush.msra.mxu0 %v4324
    %4646 = vmatpush.msra.mxu0 %v4318
    %4647 = vmatpush.msra.mxu0 %v4312
    %4648 = vmatpush.msra.mxu0 %v4306
    %4649 = vmatpush.msra.mxu0 %v4300
    %4650 = vmatpush.msra.mxu0 %v4294
    %4651 = vmatpush.msra.mxu0 %v4288
    %4652 = vmatpush.msra.mxu0 %v4282
    %4653 = vmatpush.msra.mxu0 %v4276
    %4654 = vmatpush.msra.mxu0 %v4270
    %4655 = vmatpush.msra.mxu0 %v4264
    %4656 = vmatpush.msra.mxu0 %v4258
    %4657 = vmatpush.msra.mxu0 %v4252
    %4658 = vmatpush.msra.mxu0 %v4246
    %4659 = vmatpush.msra.mxu0 %v4240
    %4660 = vmatmul.f32.gmra.mxu0 %v4044
    %v4661 = vpop.f32.mrf.mxu0
    %v4662 = vadd.f32 %v4642, %v4661
    %4663 = vdwg.mxu0
    %4664 = vmatpush.msra.mxu0 %v4426
    %4665 = vmatpush.msra.mxu0 %v4420
    %4666 = vmatpush.msra.mxu0 %v4414
    %4667 = vmatpush.msra.mxu0 %v4408
    %4668 = vmatpush.msra.mxu0 %v4402
    %4669 = vmatpush.msra.mxu0 %v4396
    %4670 = vmatpush.msra.mxu0 %v4390
    %4671 = vmatpush.msra.mxu0 %v4384
    %4672 = vmatpush.msra.mxu0 %v4378
    %4673 = vmatpush.msra.mxu0 %v4372
    %4674 = vmatpush.msra.mxu0 %v4366
    %4675 = vmatpush.msra.mxu0 %v4360
    %4676 = vmatpush.msra.mxu0 %v4354
    %4677 = vmatpush.msra.mxu0 %v4348
    %4678 = vmatpush.msra.mxu0 %v4342
    %4679 = vmatpush.msra.mxu0 %v4336
    %4680 = vmatmul.f32.gmra.mxu0 %v4045
    %v4681 = vpop.f32.mrf.mxu0
    %v4682 = vadd.f32 %v4662, %v4681
    %4683 = vdwg.mxu0
    %4684 = vmatpush.msra.mxu0 %v4139
    %4685 = vmatpush.msra.mxu0 %v4133
    %4686 = vmatpush.msra.mxu0 %v4127
    %4687 = vmatpush.msra.mxu0 %v4121
    %4688 = vmatpush.msra.mxu0 %v4115
    %4689 = vmatpush.msra.mxu0 %v4109
    %4690 = vmatpush.msra.mxu0 %v4103
    %4691 = vmatpush.msra.mxu0 %v4097
    %4692 = vmatpush.msra.mxu0 %v4091
    %4693 = vmatpush.msra.mxu0 %v4085
    %4694 = vmatpush.msra.mxu0 %v4079
    %4695 = vmatpush.msra.mxu0 %v4073
    %4696 = vmatpush.msra.mxu0 %v4067
    %4697 = vmatpush.msra.mxu0 %v4061
    %4698 = vmatpush.msra.mxu0 %v4055
    %4699 = vmatpush.msra.mxu0 %v4049
    %4700 = vmatmul.f32.gmra.mxu0 %v4042
    %v4701 = vpop.f32.mrf.mxu0
    %v4702 = vadd.f32 %v4435, %v4701
    %4703 = vdwg.mxu0
    %4704 = vmatpush.msra.mxu0 %v4235
    %4705 = vmatpush.msra.mxu0 %v4229
    %4706 = vmatpush.msra.mxu0 %v4223
    %4707 = vmatpush.msra.mxu0 %v4217
    %4708 = vmatpush.msra.mxu0 %v4211
    %4709 = vmatpush.msra.mxu0 %v4205
    %4710 = vmatpush.msra.mxu0 %v4199
    %4711 = vmatpush.msra.mxu0 %v4193
    %4712 = vmatpush.msra.mxu0 %v4187
    %4713 = vmatpush.msra.mxu0 %v4181
    %4714 = vmatpush.msra.mxu0 %v4175
    %4715 = vmatpush.msra.mxu0 %v4169
    %4716 = vmatpush.msra.mxu0 %v4163
    %4717 = vmatpush.msra.mxu0 %v4157
    %4718 = vmatpush.msra.mxu0 %v4151
    %4719 = vmatpush.msra.mxu0 %v4145
    %4720 = vmatmul.f32.gmra.mxu0 %v4043
    %v4721 = vpop.f32.mrf.mxu0
    %v4722 = vadd.f32 %v4702, %v4721
    %4723 = vdwg.mxu0
    %4724 = vmatpush.msra.mxu0 %v4331
    %4725 = vmatpush.msra.mxu0 %v4325
    %4726 = vmatpush.msra.mxu0 %v4319
    %4727 = vmatpush.msra.mxu0 %v4313
    %4728 = vmatpush.msra.mxu0 %v4307
    %4729 = vmatpush.msra.mxu0 %v4301
    %4730 = vmatpush.msra.mxu0 %v4295
    %4731 = vmatpush.msra.mxu0 %v4289
    %4732 = vmatpush.msra.mxu0 %v4283
    %4733 = vmatpush.msra.mxu0 %v4277
    %4734 = vmatpush.msra.mxu0 %v4271
    %4735 = vmatpush.msra.mxu0 %v4265
    %4736 = vmatpush.msra.mxu0 %v4259
    %4737 = vmatpush.msra.mxu0 %v4253
    %4738 = vmatpush.msra.mxu0 %v4247
    %4739 = vmatpush.msra.mxu0 %v4241
    %4740 = vmatmul.f32.gmra.mxu0 %v4044
    %v4741 = vpop.f32.mrf.mxu0
    %v4742 = vadd.f32 %v4722, %v4741
    %4743 = vdwg.mxu0
    %4744 = vmatpush.msra.mxu0 %v4427
    %4745 = vmatpush.msra.mxu0 %v4421
    %4746 = vmatpush.msra.mxu0 %v4415
    %4747 = vmatpush.msra.mxu0 %v4409
    %4748 = vmatpush.msra.mxu0 %v4403
    %4749 = vmatpush.msra.mxu0 %v4397
    %4750 = vmatpush.msra.mxu0 %v4391
    %4751 = vmatpush.msra.mxu0 %v4385
    %4752 = vmatpush.msra.mxu0 %v4379
    %4753 = vmatpush.msra.mxu0 %v4373
    %4754 = vmatpush.msra.mxu0 %v4367
    %4755 = vmatpush.msra.mxu0 %v4361
    %4756 = vmatpush.msra.mxu0 %v4355
    %4757 = vmatpush.msra.mxu0 %v4349
    %4758 = vmatpush.msra.mxu0 %v4343
    %4759 = vmatpush.msra.mxu0 %v4337
    %4760 = vmatmul.f32.gmra.mxu0 %v4045
    %v4761 = vpop.f32.mrf.mxu0
    %v4762 = vadd.f32 %v4742, %v4761
    %4763 = vdwg.mxu0
    %4764 = vmatpush.msra.mxu0 %v4140
    %4765 = vmatpush.msra.mxu0 %v4134
    %4766 = vmatpush.msra.mxu0 %v4128
    %4767 = vmatpush.msra.mxu0 %v4122
    %4768 = vmatpush.msra.mxu0 %v4116
    %4769 = vmatpush.msra.mxu0 %v4110
    %4770 = vmatpush.msra.mxu0 %v4104
    %4771 = vmatpush.msra.mxu0 %v4098
    %4772 = vmatpush.msra.mxu0 %v4092
    %4773 = vmatpush.msra.mxu0 %v4086
    %4774 = vmatpush.msra.mxu0 %v4080
    %4775 = vmatpush.msra.mxu0 %v4074
    %4776 = vmatpush.msra.mxu0 %v4068
    %4777 = vmatpush.msra.mxu0 %v4062
    %4778 = vmatpush.msra.mxu0 %v4056
    %4779 = vmatpush.msra.mxu0 %v4050
    %4780 = vmatmul.f32.gmra.mxu0 %v4042
    %v4781 = vpop.f32.mrf.mxu0
    %v4782 = vadd.f32 %v4436, %v4781
    %4783 = vdwg.mxu0
    %4784 = vmatpush.msra.mxu0 %v4236
    %4785 = vmatpush.msra.mxu0 %v4230
    %4786 = vmatpush.msra.mxu0 %v4224
    %4787 = vmatpush.msra.mxu0 %v4218
    %4788 = vmatpush.msra.mxu0 %v4212
    %4789 = vmatpush.msra.mxu0 %v4206
    %4790 = vmatpush.msra.mxu0 %v4200
    %4791 = vmatpush.msra.mxu0 %v4194
    %4792 = vmatpush.msra.mxu0 %v4188
    %4793 = vmatpush.msra.mxu0 %v4182
    %4794 = vmatpush.msra.mxu0 %v4176
    %4795 = vmatpush.msra.mxu0 %v4170
    %4796 = vmatpush.msra.mxu0 %v4164
    %4797 = vmatpush.msra.mxu0 %v4158
    %4798 = vmatpush.msra.mxu0 %v4152
    %4799 = vmatpush.msra.mxu0 %v4146
    %4800 = vmatmul.f32.gmra.mxu0 %v4043
    %v4801 = vpop.f32.mrf.mxu0
    %v4802 = vadd.f32 %v4782, %v4801
    %4803 = vdwg.mxu0
    %4804 = vmatpush.msra.mxu0 %v4332
    %4805 = vmatpush.msra.mxu0 %v4326
    %4806 = vmatpush.msra.mxu0 %v4320
    %4807 = vmatpush.msra.mxu0 %v4314
    %4808 = vmatpush.msra.mxu0 %v4308
    %4809 = vmatpush.msra.mxu0 %v4302
    %4810 = vmatpush.msra.mxu0 %v4296
    %4811 = vmatpush.msra.mxu0 %v4290
    %4812 = vmatpush.msra.mxu0 %v4284
    %4813 = vmatpush.msra.mxu0 %v4278
    %4814 = vmatpush.msra.mxu0 %v4272
    %4815 = vmatpush.msra.mxu0 %v4266
    %4816 = vmatpush.msra.mxu0 %v4260
    %4817 = vmatpush.msra.mxu0 %v4254
    %4818 = vmatpush.msra.mxu0 %v4248
    %4819 = vmatpush.msra.mxu0 %v4242
    %4820 = vmatmul.f32.gmra.mxu0 %v4044
    %v4821 = vpop.f32.mrf.mxu0
    %v4822 = vadd.f32 %v4802, %v4821
    %4823 = vdwg.mxu0
    %4824 = vmatpush.msra.mxu0 %v4428
    %4825 = vmatpush.msra.mxu0 %v4422
    %4826 = vmatpush.msra.mxu0 %v4416
    %4827 = vmatpush.msra.mxu0 %v4410
    %4828 = vmatpush.msra.mxu0 %v4404
    %4829 = vmatpush.msra.mxu0 %v4398
    %4830 = vmatpush.msra.mxu0 %v4392
    %4831 = vmatpush.msra.mxu0 %v4386
    %4832 = vmatpush.msra.mxu0 %v4380
    %4833 = vmatpush.msra.mxu0 %v4374
    %4834 = vmatpush.msra.mxu0 %v4368
    %4835 = vmatpush.msra.mxu0 %v4362
    %4836 = vmatpush.msra.mxu0 %v4356
    %4837 = vmatpush.msra.mxu0 %v4350
    %4838 = vmatpush.msra.mxu0 %v4344
    %4839 = vmatpush.msra.mxu0 %v4338
    %4840 = vmatmul.f32.gmra.mxu0 %v4045
    %v4841 = vpop.f32.mrf.mxu0
    %v4842 = vadd.f32 %v4822, %v4841
    %4843 = vdwg.mxu0
    %4844 = vmatpush.msra.mxu0 %v4141
    %4845 = vmatpush.msra.mxu0 %v4135
    %4846 = vmatpush.msra.mxu0 %v4129
    %4847 = vmatpush.msra.mxu0 %v4123
    %4848 = vmatpush.msra.mxu0 %v4117
    %4849 = vmatpush.msra.mxu0 %v4111
    %4850 = vmatpush.msra.mxu0 %v4105
    %4851 = vmatpush.msra.mxu0 %v4099
    %4852 = vmatpush.msra.mxu0 %v4093
    %4853 = vmatpush.msra.mxu0 %v4087
    %4854 = vmatpush.msra.mxu0 %v4081
    %4855 = vmatpush.msra.mxu0 %v4075
    %4856 = vmatpush.msra.mxu0 %v4069
    %4857 = vmatpush.msra.mxu0 %v4063
    %4858 = vmatpush.msra.mxu0 %v4057
    %4859 = vmatpush.msra.mxu0 %v4051
    %4860 = vmatmul.f32.gmra.mxu0 %v4042
    %v4861 = vpop.f32.mrf.mxu0
    %v4862 = vadd.f32 %v4437, %v4861
    %4863 = vdwg.mxu0
    %4864 = vmatpush.msra.mxu0 %v4237
    %4865 = vmatpush.msra.mxu0 %v4231
    %4866 = vmatpush.msra.mxu0 %v4225
    %4867 = vmatpush.msra.mxu0 %v4219
    %4868 = vmatpush.msra.mxu0 %v4213
    %4869 = vmatpush.msra.mxu0 %v4207
    %4870 = vmatpush.msra.mxu0 %v4201
    %4871 = vmatpush.msra.mxu0 %v4195
    %4872 = vmatpush.msra.mxu0 %v4189
    %4873 = vmatpush.msra.mxu0 %v4183
    %4874 = vmatpush.msra.mxu0 %v4177
    %4875 = vmatpush.msra.mxu0 %v4171
    %4876 = vmatpush.msra.mxu0 %v4165
    %4877 = vmatpush.msra.mxu0 %v4159
    %4878 = vmatpush.msra.mxu0 %v4153
    %4879 = vmatpush.msra.mxu0 %v4147
    %4880 = vmatmul.f32.gmra.mxu0 %v4043
    %v4881 = vpop.f32.mrf.mxu0
    %v4882 = vadd.f32 %v4862, %v4881
    %4883 = vdwg.mxu0
    %4884 = vmatpush.msra.mxu0 %v4333
    %4885 = vmatpush.msra.mxu0 %v4327
    %4886 = vmatpush.msra.mxu0 %v4321
    %4887 = vmatpush.msra.mxu0 %v4315
    %4888 = vmatpush.msra.mxu0 %v4309
    %4889 = vmatpush.msra.mxu0 %v4303
    %4890 = vmatpush.msra.mxu0 %v4297
    %4891 = vmatpush.msra.mxu0 %v4291
    %4892 = vmatpush.msra.mxu0 %v4285
    %4893 = vmatpush.msra.mxu0 %v4279
    %4894 = vmatpush.msra.mxu0 %v4273
    %4895 = vmatpush.msra.mxu0 %v4267
    %4896 = vmatpush.msra.mxu0 %v4261
    %4897 = vmatpush.msra.mxu0 %v4255
    %4898 = vmatpush.msra.mxu0 %v4249
    %4899 = vmatpush.msra.mxu0 %v4243
    %4900 = vmatmul.f32.gmra.mxu0 %v4044
    %v4901 = vpop.f32.mrf.mxu0
    %v4902 = vadd.f32 %v4882, %v4901
    %4903 = vdwg.mxu0
    %4904 = vmatpush.msra.mxu0 %v4429
    %4905 = vmatpush.msra.mxu0 %v4423
    %4906 = vmatpush.msra.mxu0 %v4417
    %4907 = vmatpush.msra.mxu0 %v4411
    %4908 = vmatpush.msra.mxu0 %v4405
    %4909 = vmatpush.msra.mxu0 %v4399
    %4910 = vmatpush.msra.mxu0 %v4393
    %4911 = vmatpush.msra.mxu0 %v4387
    %4912 = vmatpush.msra.mxu0 %v4381
    %4913 = vmatpush.msra.mxu0 %v4375
    %4914 = vmatpush.msra.mxu0 %v4369
    %4915 = vmatpush.msra.mxu0 %v4363
    %4916 = vmatpush.msra.mxu0 %v4357
    %4917 = vmatpush.msra.mxu0 %v4351
    %4918 = vmatpush.msra.mxu0 %v4345
    %4919 = vmatpush.msra.mxu0 %v4339
    %4920 = vmatmul.f32.gmra.mxu0 %v4045
    %v4921 = vpop.f32.mrf.mxu0
    %v4922 = vadd.f32 %v4902, %v4921
    %4923 = vdwg.mxu0
    %v4924 = vld [vmem:[#allocation17] sm:$0x3f]
    %v4926 = vperm.slane %v4924, 0
    %v4927 = vperm.slane %v4924, 1
    %v4928 = vperm.slane %v4924, 2
    %v4929 = vperm.slane %v4924, 3
    %v4930 = vperm.slane %v4924, 4
    %v4931 = vperm.slane %v4924, 5
    %v4938 = vadd.f32 %v4926, 0.0
    %v4939 = vadd.f32 %v4927, 0.0
    %v4940 = vadd.f32 %v4928, 0.0
    %v4941 = vadd.f32 %v4929, 0.0
    %v4942 = vadd.f32 %v4930, 0.0
    %v4943 = vadd.f32 %v4931, 0.0
    %v4944 = vld [vmem:[#allocation16] sm:$0xff]
    %v4945 = vld [vmem:[#allocation16 + $0x8] sm:$0xff]
    %v4946 = vld [vmem:[#allocation16 + $0x10] sm:$0xff]
    %v4947 = vld [vmem:[#allocation16 + $0x18] sm:$0xff]
    %v4948 = vld [vmem:[#allocation16 + $0x20] sm:$0xff]
    %v4949 = vld [vmem:[#allocation16 + $0x28] sm:$0xff]
    %v4950 = vld [vmem:[#allocation16 + $0x30] sm:$0xff]
    %v4951 = vld [vmem:[#allocation16 + $0x38] sm:$0xff]
    %v4952 = vld [vmem:[#allocation16 + $0x40] sm:$0xff]
    %v4953 = vld [vmem:[#allocation16 + $0x48] sm:$0xff]
    %v4954 = vld [vmem:[#allocation16 + $0x50] sm:$0xff]
    %v4955 = vld [vmem:[#allocation16 + $0x58] sm:$0xff]
    %v4956 = vld [vmem:[#allocation16 + $0x60] sm:$0xff]
    %v4957 = vld [vmem:[#allocation16 + $0x68] sm:$0xff]
    %v4958 = vld [vmem:[#allocation16 + $0x70] sm:$0xff]
    %v4959 = vld [vmem:[#allocation16 + $0x78] sm:$0xff]
    %v4960 = vld [vmem:[#allocation16 + $0x80] sm:$0xff]
    %v4961 = vld [vmem:[#allocation16 + $0x88] sm:$0xff]
    %v4962 = vld [vmem:[#allocation16 + $0x90] sm:$0xff]
    %v4963 = vld [vmem:[#allocation16 + $0x98] sm:$0xff]
    %v4964 = vld [vmem:[#allocation16 + $0xa0] sm:$0xff]
    %v4965 = vld [vmem:[#allocation16 + $0xa8] sm:$0xff]
    %v4966 = vld [vmem:[#allocation16 + $0xb0] sm:$0xff]
    %v4967 = vld [vmem:[#allocation16 + $0xb8] sm:$0xff]
    %v4968 = vld [vmem:[#allocation16 + $0xc0] sm:$0xff]
    %v4969 = vld [vmem:[#allocation16 + $0xc8] sm:$0xff]
    %v4970 = vld [vmem:[#allocation16 + $0xd0] sm:$0xff]
    %v4971 = vld [vmem:[#allocation16 + $0xd8] sm:$0xff]
    %v4972 = vld [vmem:[#allocation16 + $0xe0] sm:$0xff]
    %v4973 = vld [vmem:[#allocation16 + $0xe8] sm:$0xff]
    %v4974 = vld [vmem:[#allocation16 + $0xf0] sm:$0xff]
    %v4975 = vld [vmem:[#allocation16 + $0xf8] sm:$0xff]
    %v4976 = vld [vmem:[#allocation16 + $0x100] sm:$0xff]
    %v4977 = vld [vmem:[#allocation16 + $0x108] sm:$0xff]
    %v4978 = vld [vmem:[#allocation16 + $0x110] sm:$0xff]
    %v4979 = vld [vmem:[#allocation16 + $0x118] sm:$0xff]
    %v4980 = vld [vmem:[#allocation16 + $0x120] sm:$0xff]
    %v4981 = vld [vmem:[#allocation16 + $0x128] sm:$0xff]
    %v4982 = vld [vmem:[#allocation16 + $0x130] sm:$0xff]
    %v4983 = vld [vmem:[#allocation16 + $0x138] sm:$0xff]
    %v4984 = vld [vmem:[#allocation16 + $0x140] sm:$0xff]
    %v4985 = vld [vmem:[#allocation16 + $0x148] sm:$0xff]
    %v4986 = vld [vmem:[#allocation16 + $0x150] sm:$0xff]
    %v4987 = vld [vmem:[#allocation16 + $0x158] sm:$0xff]
    %v4988 = vld [vmem:[#allocation16 + $0x160] sm:$0xff]
    %v4989 = vld [vmem:[#allocation16 + $0x168] sm:$0xff]
    %v4990 = vld [vmem:[#allocation16 + $0x170] sm:$0xff]
    %v4991 = vld [vmem:[#allocation16 + $0x178] sm:$0xff]
    %v4992 = vld [vmem:[#allocation16 + $0x180] sm:$0xff]
    %v4993 = vld [vmem:[#allocation16 + $0x188] sm:$0xff]
    %v4994 = vld [vmem:[#allocation16 + $0x190] sm:$0xff]
    %v4995 = vld [vmem:[#allocation16 + $0x198] sm:$0xff]
    %v4996 = vld [vmem:[#allocation16 + $0x1a0] sm:$0xff]
    %v4997 = vld [vmem:[#allocation16 + $0x1a8] sm:$0xff]
    %v4998 = vld [vmem:[#allocation16 + $0x1b0] sm:$0xff]
    %v4999 = vld [vmem:[#allocation16 + $0x1b8] sm:$0xff]
    %v5000 = vld [vmem:[#allocation16 + $0x1c0] sm:$0xff]
    %v5001 = vld [vmem:[#allocation16 + $0x1c8] sm:$0xff]
    %v5002 = vld [vmem:[#allocation16 + $0x1d0] sm:$0xff]
    %v5003 = vld [vmem:[#allocation16 + $0x1d8] sm:$0xff]
    %v5004 = vld [vmem:[#allocation16 + $0x1e0] sm:$0xff]
    %v5005 = vld [vmem:[#allocation16 + $0x1e8] sm:$0xff]
    %v5006 = vld [vmem:[#allocation16 + $0x1f0] sm:$0xff]
    %v5007 = vld [vmem:[#allocation16 + $0x1f8] sm:$0xff]
    %v5008 = vld [vmem:[#allocation16 + $0x200] sm:$0xff]
    %v5009 = vld [vmem:[#allocation16 + $0x208] sm:$0xff]
    %v5010 = vld [vmem:[#allocation16 + $0x210] sm:$0xff]
    %v5011 = vld [vmem:[#allocation16 + $0x218] sm:$0xff]
    %v5012 = vld [vmem:[#allocation16 + $0x220] sm:$0xff]
    %v5013 = vld [vmem:[#allocation16 + $0x228] sm:$0xff]
    %v5014 = vld [vmem:[#allocation16 + $0x230] sm:$0xff]
    %v5015 = vld [vmem:[#allocation16 + $0x238] sm:$0xff]
    %v5016 = vld [vmem:[#allocation16 + $0x240] sm:$0xff]
    %v5017 = vld [vmem:[#allocation16 + $0x248] sm:$0xff]
    %v5018 = vld [vmem:[#allocation16 + $0x250] sm:$0xff]
    %v5019 = vld [vmem:[#allocation16 + $0x258] sm:$0xff]
    %v5020 = vld [vmem:[#allocation16 + $0x260] sm:$0xff]
    %v5021 = vld [vmem:[#allocation16 + $0x268] sm:$0xff]
    %v5022 = vld [vmem:[#allocation16 + $0x270] sm:$0xff]
    %v5023 = vld [vmem:[#allocation16 + $0x278] sm:$0xff]
    %v5024 = vld [vmem:[#allocation16 + $0x280] sm:$0xff]
    %v5025 = vld [vmem:[#allocation16 + $0x288] sm:$0xff]
    %v5026 = vld [vmem:[#allocation16 + $0x290] sm:$0xff]
    %v5027 = vld [vmem:[#allocation16 + $0x298] sm:$0xff]
    %v5028 = vld [vmem:[#allocation16 + $0x2a0] sm:$0xff]
    %v5029 = vld [vmem:[#allocation16 + $0x2a8] sm:$0xff]
    %v5030 = vld [vmem:[#allocation16 + $0x2b0] sm:$0xff]
    %v5031 = vld [vmem:[#allocation16 + $0x2b8] sm:$0xff]
    %v5032 = vld [vmem:[#allocation16 + $0x2c0] sm:$0xff]
    %v5033 = vld [vmem:[#allocation16 + $0x2c8] sm:$0xff]
    %v5034 = vld [vmem:[#allocation16 + $0x2d0] sm:$0xff]
    %v5035 = vld [vmem:[#allocation16 + $0x2d8] sm:$0xff]
    %v5036 = vld [vmem:[#allocation16 + $0x2e0] sm:$0xff]
    %v5037 = vld [vmem:[#allocation16 + $0x2e8] sm:$0xff]
    %v5038 = vld [vmem:[#allocation16 + $0x2f0] sm:$0xff]
    %v5039 = vld [vmem:[#allocation16 + $0x2f8] sm:$0xff]
    %v5040 = vld [vmem:[#allocation16 + $0x300] sm:$0xff]
    %v5041 = vld [vmem:[#allocation16 + $0x308] sm:$0xff]
    %v5042 = vld [vmem:[#allocation16 + $0x310] sm:$0xff]
    %v5043 = vld [vmem:[#allocation16 + $0x318] sm:$0xff]
    %v5044 = vld [vmem:[#allocation16 + $0x320] sm:$0xff]
    %v5045 = vld [vmem:[#allocation16 + $0x328] sm:$0xff]
    %v5046 = vld [vmem:[#allocation16 + $0x330] sm:$0xff]
    %v5047 = vld [vmem:[#allocation16 + $0x338] sm:$0xff]
    %v5048 = vld [vmem:[#allocation16 + $0x340] sm:$0xff]
    %v5049 = vld [vmem:[#allocation16 + $0x348] sm:$0xff]
    %v5050 = vld [vmem:[#allocation16 + $0x350] sm:$0xff]
    %v5051 = vld [vmem:[#allocation16 + $0x358] sm:$0xff]
    %v5052 = vld [vmem:[#allocation16 + $0x360] sm:$0xff]
    %v5053 = vld [vmem:[#allocation16 + $0x368] sm:$0xff]
    %v5054 = vld [vmem:[#allocation16 + $0x370] sm:$0xff]
    %v5055 = vld [vmem:[#allocation16 + $0x378] sm:$0xff]
    %v5056 = vld [vmem:[#allocation16 + $0x380] sm:$0xff]
    %v5057 = vld [vmem:[#allocation16 + $0x388] sm:$0xff]
    %v5058 = vld [vmem:[#allocation16 + $0x390] sm:$0xff]
    %v5059 = vld [vmem:[#allocation16 + $0x398] sm:$0xff]
    %v5060 = vld [vmem:[#allocation16 + $0x3a0] sm:$0xff]
    %v5061 = vld [vmem:[#allocation16 + $0x3a8] sm:$0xff]
    %v5062 = vld [vmem:[#allocation16 + $0x3b0] sm:$0xff]
    %v5063 = vld [vmem:[#allocation16 + $0x3b8] sm:$0xff]
    %v5064 = vld [vmem:[#allocation16 + $0x3c0] sm:$0xff]
    %v5065 = vld [vmem:[#allocation16 + $0x3c8] sm:$0xff]
    %v5066 = vld [vmem:[#allocation16 + $0x3d0] sm:$0xff]
    %v5067 = vld [vmem:[#allocation16 + $0x3d8] sm:$0xff]
    %v5068 = vld [vmem:[#allocation16 + $0x3e0] sm:$0xff]
    %v5069 = vld [vmem:[#allocation16 + $0x3e8] sm:$0xff]
    %v5070 = vld [vmem:[#allocation16 + $0x3f0] sm:$0xff]
    %v5071 = vld [vmem:[#allocation16 + $0x3f8] sm:$0xff]
    %v5072 = vld [vmem:[#allocation16 + $0x400] sm:$0xff]
    %v5073 = vld [vmem:[#allocation16 + $0x408] sm:$0xff]
    %v5074 = vld [vmem:[#allocation16 + $0x410] sm:$0xff]
    %v5075 = vld [vmem:[#allocation16 + $0x418] sm:$0xff]
    %v5076 = vld [vmem:[#allocation16 + $0x420] sm:$0xff]
    %v5077 = vld [vmem:[#allocation16 + $0x428] sm:$0xff]
    %v5078 = vld [vmem:[#allocation16 + $0x430] sm:$0xff]
    %v5079 = vld [vmem:[#allocation16 + $0x438] sm:$0xff]
    %v5080 = vld [vmem:[#allocation16 + $0x440] sm:$0xff]
    %v5081 = vld [vmem:[#allocation16 + $0x448] sm:$0xff]
    %v5082 = vld [vmem:[#allocation16 + $0x450] sm:$0xff]
    %v5083 = vld [vmem:[#allocation16 + $0x458] sm:$0xff]
    %v5084 = vld [vmem:[#allocation16 + $0x460] sm:$0xff]
    %v5085 = vld [vmem:[#allocation16 + $0x468] sm:$0xff]
    %v5086 = vld [vmem:[#allocation16 + $0x470] sm:$0xff]
    %v5087 = vld [vmem:[#allocation16 + $0x478] sm:$0xff]
    %v5088 = vld [vmem:[#allocation16 + $0x480] sm:$0xff]
    %v5089 = vld [vmem:[#allocation16 + $0x488] sm:$0xff]
    %v5090 = vld [vmem:[#allocation16 + $0x490] sm:$0xff]
    %v5091 = vld [vmem:[#allocation16 + $0x498] sm:$0xff]
    %v5092 = vld [vmem:[#allocation16 + $0x4a0] sm:$0xff]
    %v5093 = vld [vmem:[#allocation16 + $0x4a8] sm:$0xff]
    %v5094 = vld [vmem:[#allocation16 + $0x4b0] sm:$0xff]
    %v5095 = vld [vmem:[#allocation16 + $0x4b8] sm:$0xff]
    %v5096 = vld [vmem:[#allocation16 + $0x4c0] sm:$0xff]
    %v5097 = vld [vmem:[#allocation16 + $0x4c8] sm:$0xff]
    %v5098 = vld [vmem:[#allocation16 + $0x4d0] sm:$0xff]
    %v5099 = vld [vmem:[#allocation16 + $0x4d8] sm:$0xff]
    %v5100 = vld [vmem:[#allocation16 + $0x4e0] sm:$0xff]
    %v5101 = vld [vmem:[#allocation16 + $0x4e8] sm:$0xff]
    %v5102 = vld [vmem:[#allocation16 + $0x4f0] sm:$0xff]
    %v5103 = vld [vmem:[#allocation16 + $0x4f8] sm:$0xff]
    %v5104 = vld [vmem:[#allocation16 + $0x500] sm:$0xff]
    %v5105 = vld [vmem:[#allocation16 + $0x508] sm:$0xff]
    %v5106 = vld [vmem:[#allocation16 + $0x510] sm:$0xff]
    %v5107 = vld [vmem:[#allocation16 + $0x518] sm:$0xff]
    %v5108 = vld [vmem:[#allocation16 + $0x520] sm:$0xff]
    %v5109 = vld [vmem:[#allocation16 + $0x528] sm:$0xff]
    %v5110 = vld [vmem:[#allocation16 + $0x530] sm:$0xff]
    %v5111 = vld [vmem:[#allocation16 + $0x538] sm:$0xff]
    %v5112 = vld [vmem:[#allocation16 + $0x540] sm:$0xff]
    %v5113 = vld [vmem:[#allocation16 + $0x548] sm:$0xff]
    %v5114 = vld [vmem:[#allocation16 + $0x550] sm:$0xff]
    %v5115 = vld [vmem:[#allocation16 + $0x558] sm:$0xff]
    %v5116 = vld [vmem:[#allocation16 + $0x560] sm:$0xff]
    %v5117 = vld [vmem:[#allocation16 + $0x568] sm:$0xff]
    %v5118 = vld [vmem:[#allocation16 + $0x570] sm:$0xff]
    %v5119 = vld [vmem:[#allocation16 + $0x578] sm:$0xff]
    %v5120 = vld [vmem:[#allocation16 + $0x580] sm:$0xff]
    %v5121 = vld [vmem:[#allocation16 + $0x588] sm:$0xff]
    %v5122 = vld [vmem:[#allocation16 + $0x590] sm:$0xff]
    %v5123 = vld [vmem:[#allocation16 + $0x598] sm:$0xff]
    %v5124 = vld [vmem:[#allocation16 + $0x5a0] sm:$0xff]
    %v5125 = vld [vmem:[#allocation16 + $0x5a8] sm:$0xff]
    %v5126 = vld [vmem:[#allocation16 + $0x5b0] sm:$0xff]
    %v5127 = vld [vmem:[#allocation16 + $0x5b8] sm:$0xff]
    %v5128 = vld [vmem:[#allocation16 + $0x5c0] sm:$0xff]
    %v5129 = vld [vmem:[#allocation16 + $0x5c8] sm:$0xff]
    %v5130 = vld [vmem:[#allocation16 + $0x5d0] sm:$0xff]
    %v5131 = vld [vmem:[#allocation16 + $0x5d8] sm:$0xff]
    %v5132 = vld [vmem:[#allocation16 + $0x5e0] sm:$0xff]
    %v5133 = vld [vmem:[#allocation16 + $0x5e8] sm:$0xff]
    %v5134 = vld [vmem:[#allocation16 + $0x5f0] sm:$0xff]
    %v5135 = vld [vmem:[#allocation16 + $0x5f8] sm:$0xff]
    %v5136 = vld [vmem:[#allocation16 + $0x600] sm:$0xff]
    %v5137 = vld [vmem:[#allocation16 + $0x608] sm:$0xff]
    %v5138 = vld [vmem:[#allocation16 + $0x610] sm:$0xff]
    %v5139 = vld [vmem:[#allocation16 + $0x618] sm:$0xff]
    %v5140 = vld [vmem:[#allocation16 + $0x620] sm:$0xff]
    %v5141 = vld [vmem:[#allocation16 + $0x628] sm:$0xff]
    %v5142 = vld [vmem:[#allocation16 + $0x630] sm:$0xff]
    %v5143 = vld [vmem:[#allocation16 + $0x638] sm:$0xff]
    %v5144 = vld [vmem:[#allocation16 + $0x640] sm:$0xff]
    %v5145 = vld [vmem:[#allocation16 + $0x648] sm:$0xff]
    %v5146 = vld [vmem:[#allocation16 + $0x650] sm:$0xff]
    %v5147 = vld [vmem:[#allocation16 + $0x658] sm:$0xff]
    %v5148 = vld [vmem:[#allocation16 + $0x660] sm:$0xff]
    %v5149 = vld [vmem:[#allocation16 + $0x668] sm:$0xff]
    %v5150 = vld [vmem:[#allocation16 + $0x670] sm:$0xff]
    %v5151 = vld [vmem:[#allocation16 + $0x678] sm:$0xff]
    %v5152 = vld [vmem:[#allocation16 + $0x680] sm:$0xff]
    %v5153 = vld [vmem:[#allocation16 + $0x688] sm:$0xff]
    %v5154 = vld [vmem:[#allocation16 + $0x690] sm:$0xff]
    %v5155 = vld [vmem:[#allocation16 + $0x698] sm:$0xff]
    %v5156 = vld [vmem:[#allocation16 + $0x6a0] sm:$0xff]
    %v5157 = vld [vmem:[#allocation16 + $0x6a8] sm:$0xff]
    %v5158 = vld [vmem:[#allocation16 + $0x6b0] sm:$0xff]
    %v5159 = vld [vmem:[#allocation16 + $0x6b8] sm:$0xff]
    %v5160 = vld [vmem:[#allocation16 + $0x6c0] sm:$0xff]
    %v5161 = vld [vmem:[#allocation16 + $0x6c8] sm:$0xff]
    %v5162 = vld [vmem:[#allocation16 + $0x6d0] sm:$0xff]
    %v5163 = vld [vmem:[#allocation16 + $0x6d8] sm:$0xff]
    %v5164 = vld [vmem:[#allocation16 + $0x6e0] sm:$0xff]
    %v5165 = vld [vmem:[#allocation16 + $0x6e8] sm:$0xff]
    %v5166 = vld [vmem:[#allocation16 + $0x6f0] sm:$0xff]
    %v5167 = vld [vmem:[#allocation16 + $0x6f8] sm:$0xff]
    %v5168 = vld [vmem:[#allocation16 + $0x700] sm:$0xff]
    %v5169 = vld [vmem:[#allocation16 + $0x708] sm:$0xff]
    %v5170 = vld [vmem:[#allocation16 + $0x710] sm:$0xff]
    %v5171 = vld [vmem:[#allocation16 + $0x718] sm:$0xff]
    %v5172 = vld [vmem:[#allocation16 + $0x720] sm:$0xff]
    %v5173 = vld [vmem:[#allocation16 + $0x728] sm:$0xff]
    %v5174 = vld [vmem:[#allocation16 + $0x730] sm:$0xff]
    %v5175 = vld [vmem:[#allocation16 + $0x738] sm:$0xff]
    %v5176 = vld [vmem:[#allocation16 + $0x740] sm:$0xff]
    %v5177 = vld [vmem:[#allocation16 + $0x748] sm:$0xff]
    %v5178 = vld [vmem:[#allocation16 + $0x750] sm:$0xff]
    %v5179 = vld [vmem:[#allocation16 + $0x758] sm:$0xff]
    %v5180 = vld [vmem:[#allocation16 + $0x760] sm:$0xff]
    %v5181 = vld [vmem:[#allocation16 + $0x768] sm:$0xff]
    %v5182 = vld [vmem:[#allocation16 + $0x770] sm:$0xff]
    %v5183 = vld [vmem:[#allocation16 + $0x778] sm:$0xff]
    %v5184 = vld [vmem:[#allocation16 + $0x780] sm:$0xff]
    %v5185 = vld [vmem:[#allocation16 + $0x788] sm:$0xff]
    %v5186 = vld [vmem:[#allocation16 + $0x790] sm:$0xff]
    %v5187 = vld [vmem:[#allocation16 + $0x798] sm:$0xff]
    %v5188 = vld [vmem:[#allocation16 + $0x7a0] sm:$0xff]
    %v5189 = vld [vmem:[#allocation16 + $0x7a8] sm:$0xff]
    %v5190 = vld [vmem:[#allocation16 + $0x7b0] sm:$0xff]
    %v5191 = vld [vmem:[#allocation16 + $0x7b8] sm:$0xff]
    %v5192 = vld [vmem:[#allocation16 + $0x7c0] sm:$0xff]
    %v5193 = vld [vmem:[#allocation16 + $0x7c8] sm:$0xff]
    %v5194 = vld [vmem:[#allocation16 + $0x7d0] sm:$0xff]
    %v5195 = vld [vmem:[#allocation16 + $0x7d8] sm:$0xff]
    %v5196 = vld [vmem:[#allocation16 + $0x7e0] sm:$0xff]
    %v5197 = vld [vmem:[#allocation16 + $0x7e8] sm:$0xff]
    %v5198 = vld [vmem:[#allocation16 + $0x7f0] sm:$0xff]
    %v5199 = vld [vmem:[#allocation16 + $0x7f8] sm:$0xff]
    %v5200 = vld [vmem:[#allocation16 + $0x800] sm:$0xff]
    %v5201 = vld [vmem:[#allocation16 + $0x808] sm:$0xff]
    %v5202 = vld [vmem:[#allocation16 + $0x810] sm:$0xff]
    %v5203 = vld [vmem:[#allocation16 + $0x818] sm:$0xff]
    %v5204 = vld [vmem:[#allocation16 + $0x820] sm:$0xff]
    %v5205 = vld [vmem:[#allocation16 + $0x828] sm:$0xff]
    %v5206 = vld [vmem:[#allocation16 + $0x830] sm:$0xff]
    %v5207 = vld [vmem:[#allocation16 + $0x838] sm:$0xff]
    %v5208 = vld [vmem:[#allocation16 + $0x840] sm:$0xff]
    %v5209 = vld [vmem:[#allocation16 + $0x848] sm:$0xff]
    %v5210 = vld [vmem:[#allocation16 + $0x850] sm:$0xff]
    %v5211 = vld [vmem:[#allocation16 + $0x858] sm:$0xff]
    %v5212 = vld [vmem:[#allocation16 + $0x860] sm:$0xff]
    %v5213 = vld [vmem:[#allocation16 + $0x868] sm:$0xff]
    %v5214 = vld [vmem:[#allocation16 + $0x870] sm:$0xff]
    %v5215 = vld [vmem:[#allocation16 + $0x878] sm:$0xff]
    %v5216 = vld [vmem:[#allocation16 + $0x880] sm:$0xff]
    %v5217 = vld [vmem:[#allocation16 + $0x888] sm:$0xff]
    %v5218 = vld [vmem:[#allocation16 + $0x890] sm:$0xff]
    %v5219 = vld [vmem:[#allocation16 + $0x898] sm:$0xff]
    %v5220 = vld [vmem:[#allocation16 + $0x8a0] sm:$0xff]
    %v5221 = vld [vmem:[#allocation16 + $0x8a8] sm:$0xff]
    %v5222 = vld [vmem:[#allocation16 + $0x8b0] sm:$0xff]
    %v5223 = vld [vmem:[#allocation16 + $0x8b8] sm:$0xff]
    %v5224 = vld [vmem:[#allocation16 + $0x8c0] sm:$0xff]
    %v5225 = vld [vmem:[#allocation16 + $0x8c8] sm:$0xff]
    %v5226 = vld [vmem:[#allocation16 + $0x8d0] sm:$0xff]
    %v5227 = vld [vmem:[#allocation16 + $0x8d8] sm:$0xff]
    %v5228 = vld [vmem:[#allocation16 + $0x8e0] sm:$0xff]
    %v5229 = vld [vmem:[#allocation16 + $0x8e8] sm:$0xff]
    %v5230 = vld [vmem:[#allocation16 + $0x8f0] sm:$0xff]
    %v5231 = vld [vmem:[#allocation16 + $0x8f8] sm:$0xff]
    %v5232 = vld [vmem:[#allocation16 + $0x900] sm:$0xff]
    %v5233 = vld [vmem:[#allocation16 + $0x908] sm:$0xff]
    %v5234 = vld [vmem:[#allocation16 + $0x910] sm:$0xff]
    %v5235 = vld [vmem:[#allocation16 + $0x918] sm:$0xff]
    %v5236 = vld [vmem:[#allocation16 + $0x920] sm:$0xff]
    %v5237 = vld [vmem:[#allocation16 + $0x928] sm:$0xff]
    %v5238 = vld [vmem:[#allocation16 + $0x930] sm:$0xff]
    %v5239 = vld [vmem:[#allocation16 + $0x938] sm:$0xff]
    %v5240 = vld [vmem:[#allocation16 + $0x940] sm:$0xff]
    %v5241 = vld [vmem:[#allocation16 + $0x948] sm:$0xff]
    %v5242 = vld [vmem:[#allocation16 + $0x950] sm:$0xff]
    %v5243 = vld [vmem:[#allocation16 + $0x958] sm:$0xff]
    %v5244 = vld [vmem:[#allocation16 + $0x960] sm:$0xff]
    %v5245 = vld [vmem:[#allocation16 + $0x968] sm:$0xff]
    %v5246 = vld [vmem:[#allocation16 + $0x970] sm:$0xff]
    %v5247 = vld [vmem:[#allocation16 + $0x978] sm:$0xff]
    %v5248 = vld [vmem:[#allocation16 + $0x980] sm:$0xff]
    %v5249 = vld [vmem:[#allocation16 + $0x988] sm:$0xff]
    %v5250 = vld [vmem:[#allocation16 + $0x990] sm:$0xff]
    %v5251 = vld [vmem:[#allocation16 + $0x998] sm:$0xff]
    %v5252 = vld [vmem:[#allocation16 + $0x9a0] sm:$0xff]
    %v5253 = vld [vmem:[#allocation16 + $0x9a8] sm:$0xff]
    %v5254 = vld [vmem:[#allocation16 + $0x9b0] sm:$0xff]
    %v5255 = vld [vmem:[#allocation16 + $0x9b8] sm:$0xff]
    %v5256 = vld [vmem:[#allocation16 + $0x9c0] sm:$0xff]
    %v5257 = vld [vmem:[#allocation16 + $0x9c8] sm:$0xff]
    %v5258 = vld [vmem:[#allocation16 + $0x9d0] sm:$0xff]
    %v5259 = vld [vmem:[#allocation16 + $0x9d8] sm:$0xff]
    %v5260 = vld [vmem:[#allocation16 + $0x9e0] sm:$0xff]
    %v5261 = vld [vmem:[#allocation16 + $0x9e8] sm:$0xff]
    %v5262 = vld [vmem:[#allocation16 + $0x9f0] sm:$0xff]
    %v5263 = vld [vmem:[#allocation16 + $0x9f8] sm:$0xff]
    %v5264 = vld [vmem:[#allocation16 + $0xa00] sm:$0xff]
    %v5265 = vld [vmem:[#allocation16 + $0xa08] sm:$0xff]
    %v5266 = vld [vmem:[#allocation16 + $0xa10] sm:$0xff]
    %v5267 = vld [vmem:[#allocation16 + $0xa18] sm:$0xff]
    %v5268 = vld [vmem:[#allocation16 + $0xa20] sm:$0xff]
    %v5269 = vld [vmem:[#allocation16 + $0xa28] sm:$0xff]
    %v5270 = vld [vmem:[#allocation16 + $0xa30] sm:$0xff]
    %v5271 = vld [vmem:[#allocation16 + $0xa38] sm:$0xff]
    %v5272 = vld [vmem:[#allocation16 + $0xa40] sm:$0xff]
    %v5273 = vld [vmem:[#allocation16 + $0xa48] sm:$0xff]
    %v5274 = vld [vmem:[#allocation16 + $0xa50] sm:$0xff]
    %v5275 = vld [vmem:[#allocation16 + $0xa58] sm:$0xff]
    %v5276 = vld [vmem:[#allocation16 + $0xa60] sm:$0xff]
    %v5277 = vld [vmem:[#allocation16 + $0xa68] sm:$0xff]
    %v5278 = vld [vmem:[#allocation16 + $0xa70] sm:$0xff]
    %v5279 = vld [vmem:[#allocation16 + $0xa78] sm:$0xff]
    %v5280 = vld [vmem:[#allocation16 + $0xa80] sm:$0xff]
    %v5281 = vld [vmem:[#allocation16 + $0xa88] sm:$0xff]
    %v5282 = vld [vmem:[#allocation16 + $0xa90] sm:$0xff]
    %v5283 = vld [vmem:[#allocation16 + $0xa98] sm:$0xff]
    %v5284 = vld [vmem:[#allocation16 + $0xaa0] sm:$0xff]
    %v5285 = vld [vmem:[#allocation16 + $0xaa8] sm:$0xff]
    %v5286 = vld [vmem:[#allocation16 + $0xab0] sm:$0xff]
    %v5287 = vld [vmem:[#allocation16 + $0xab8] sm:$0xff]
    %v5288 = vld [vmem:[#allocation16 + $0xac0] sm:$0xff]
    %v5289 = vld [vmem:[#allocation16 + $0xac8] sm:$0xff]
    %v5290 = vld [vmem:[#allocation16 + $0xad0] sm:$0xff]
    %v5291 = vld [vmem:[#allocation16 + $0xad8] sm:$0xff]
    %v5292 = vld [vmem:[#allocation16 + $0xae0] sm:$0xff]
    %v5293 = vld [vmem:[#allocation16 + $0xae8] sm:$0xff]
    %v5294 = vld [vmem:[#allocation16 + $0xaf0] sm:$0xff]
    %v5295 = vld [vmem:[#allocation16 + $0xaf8] sm:$0xff]
    %v5296 = vld [vmem:[#allocation16 + $0xb00] sm:$0xff]
    %v5297 = vld [vmem:[#allocation16 + $0xb08] sm:$0xff]
    %v5298 = vld [vmem:[#allocation16 + $0xb10] sm:$0xff]
    %v5299 = vld [vmem:[#allocation16 + $0xb18] sm:$0xff]
    %v5300 = vld [vmem:[#allocation16 + $0xb20] sm:$0xff]
    %v5301 = vld [vmem:[#allocation16 + $0xb28] sm:$0xff]
    %v5302 = vld [vmem:[#allocation16 + $0xb30] sm:$0xff]
    %v5303 = vld [vmem:[#allocation16 + $0xb38] sm:$0xff]
    %v5304 = vld [vmem:[#allocation16 + $0xb40] sm:$0xff]
    %v5305 = vld [vmem:[#allocation16 + $0xb48] sm:$0xff]
    %v5306 = vld [vmem:[#allocation16 + $0xb50] sm:$0xff]
    %v5307 = vld [vmem:[#allocation16 + $0xb58] sm:$0xff]
    %v5308 = vld [vmem:[#allocation16 + $0xb60] sm:$0xff]
    %v5309 = vld [vmem:[#allocation16 + $0xb68] sm:$0xff]
    %v5310 = vld [vmem:[#allocation16 + $0xb70] sm:$0xff]
    %v5311 = vld [vmem:[#allocation16 + $0xb78] sm:$0xff]
    %v5312 = vld [vmem:[#allocation16 + $0xb80] sm:$0xff]
    %v5313 = vld [vmem:[#allocation16 + $0xb88] sm:$0xff]
    %v5314 = vld [vmem:[#allocation16 + $0xb90] sm:$0xff]
    %v5315 = vld [vmem:[#allocation16 + $0xb98] sm:$0xff]
    %v5316 = vld [vmem:[#allocation16 + $0xba0] sm:$0xff]
    %v5317 = vld [vmem:[#allocation16 + $0xba8] sm:$0xff]
    %v5318 = vld [vmem:[#allocation16 + $0xbb0] sm:$0xff]
    %v5319 = vld [vmem:[#allocation16 + $0xbb8] sm:$0xff]
    %v5320 = vld [vmem:[#allocation16 + $0xbc0] sm:$0xff]
    %v5321 = vld [vmem:[#allocation16 + $0xbc8] sm:$0xff]
    %v5322 = vld [vmem:[#allocation16 + $0xbd0] sm:$0xff]
    %v5323 = vld [vmem:[#allocation16 + $0xbd8] sm:$0xff]
    %v5324 = vld [vmem:[#allocation16 + $0xbe0] sm:$0xff]
    %v5325 = vld [vmem:[#allocation16 + $0xbe8] sm:$0xff]
    %v5326 = vld [vmem:[#allocation16 + $0xbf0] sm:$0xff]
    %v5327 = vld [vmem:[#allocation16 + $0xbf8] sm:$0xff]
    %v5328 = vld [vmem:[#allocation16 + $0xc00] sm:$0xff]
    %v5329 = vld [vmem:[#allocation16 + $0xc08] sm:$0xff]
    %v5330 = vld [vmem:[#allocation16 + $0xc10] sm:$0xff]
    %v5331 = vld [vmem:[#allocation16 + $0xc18] sm:$0xff]
    %v5332 = vld [vmem:[#allocation16 + $0xc20] sm:$0xff]
    %v5333 = vld [vmem:[#allocation16 + $0xc28] sm:$0xff]
    %v5334 = vld [vmem:[#allocation16 + $0xc30] sm:$0xff]
    %v5335 = vld [vmem:[#allocation16 + $0xc38] sm:$0xff]
    %v5336 = vld [vmem:[#allocation16 + $0xc40] sm:$0xff]
    %v5337 = vld [vmem:[#allocation16 + $0xc48] sm:$0xff]
    %v5338 = vld [vmem:[#allocation16 + $0xc50] sm:$0xff]
    %v5339 = vld [vmem:[#allocation16 + $0xc58] sm:$0xff]
    %v5340 = vld [vmem:[#allocation16 + $0xc60] sm:$0xff]
    %v5341 = vld [vmem:[#allocation16 + $0xc68] sm:$0xff]
    %v5342 = vld [vmem:[#allocation16 + $0xc70] sm:$0xff]
    %v5343 = vld [vmem:[#allocation16 + $0xc78] sm:$0xff]
    %v5344 = vld [vmem:[#allocation16 + $0xc80] sm:$0xff]
    %v5345 = vld [vmem:[#allocation16 + $0xc88] sm:$0xff]
    %v5346 = vld [vmem:[#allocation16 + $0xc90] sm:$0xff]
    %v5347 = vld [vmem:[#allocation16 + $0xc98] sm:$0xff]
    %v5348 = vld [vmem:[#allocation16 + $0xca0] sm:$0xff]
    %v5349 = vld [vmem:[#allocation16 + $0xca8] sm:$0xff]
    %v5350 = vld [vmem:[#allocation16 + $0xcb0] sm:$0xff]
    %v5351 = vld [vmem:[#allocation16 + $0xcb8] sm:$0xff]
    %v5352 = vld [vmem:[#allocation16 + $0xcc0] sm:$0xff]
    %v5353 = vld [vmem:[#allocation16 + $0xcc8] sm:$0xff]
    %v5354 = vld [vmem:[#allocation16 + $0xcd0] sm:$0xff]
    %v5355 = vld [vmem:[#allocation16 + $0xcd8] sm:$0xff]
    %v5356 = vld [vmem:[#allocation16 + $0xce0] sm:$0xff]
    %v5357 = vld [vmem:[#allocation16 + $0xce8] sm:$0xff]
    %v5358 = vld [vmem:[#allocation16 + $0xcf0] sm:$0xff]
    %v5359 = vld [vmem:[#allocation16 + $0xcf8] sm:$0xff]
    %v5360 = vld [vmem:[#allocation16 + $0xd00] sm:$0xff]
    %v5361 = vld [vmem:[#allocation16 + $0xd08] sm:$0xff]
    %v5362 = vld [vmem:[#allocation16 + $0xd10] sm:$0xff]
    %v5363 = vld [vmem:[#allocation16 + $0xd18] sm:$0xff]
    %v5364 = vld [vmem:[#allocation16 + $0xd20] sm:$0xff]
    %v5365 = vld [vmem:[#allocation16 + $0xd28] sm:$0xff]
    %v5366 = vld [vmem:[#allocation16 + $0xd30] sm:$0xff]
    %v5367 = vld [vmem:[#allocation16 + $0xd38] sm:$0xff]
    %v5368 = vld [vmem:[#allocation16 + $0xd40] sm:$0xff]
    %v5369 = vld [vmem:[#allocation16 + $0xd48] sm:$0xff]
    %v5370 = vld [vmem:[#allocation16 + $0xd50] sm:$0xff]
    %v5371 = vld [vmem:[#allocation16 + $0xd58] sm:$0xff]
    %v5372 = vld [vmem:[#allocation16 + $0xd60] sm:$0xff]
    %v5373 = vld [vmem:[#allocation16 + $0xd68] sm:$0xff]
    %v5374 = vld [vmem:[#allocation16 + $0xd70] sm:$0xff]
    %v5375 = vld [vmem:[#allocation16 + $0xd78] sm:$0xff]
    %v5376 = vld [vmem:[#allocation16 + $0xd80] sm:$0xff]
    %v5377 = vld [vmem:[#allocation16 + $0xd88] sm:$0xff]
    %v5378 = vld [vmem:[#allocation16 + $0xd90] sm:$0xff]
    %v5379 = vld [vmem:[#allocation16 + $0xd98] sm:$0xff]
    %v5380 = vld [vmem:[#allocation16 + $0xda0] sm:$0xff]
    %v5381 = vld [vmem:[#allocation16 + $0xda8] sm:$0xff]
    %v5382 = vld [vmem:[#allocation16 + $0xdb0] sm:$0xff]
    %v5383 = vld [vmem:[#allocation16 + $0xdb8] sm:$0xff]
    %v5384 = vld [vmem:[#allocation16 + $0xdc0] sm:$0xff]
    %v5385 = vld [vmem:[#allocation16 + $0xdc8] sm:$0xff]
    %v5386 = vld [vmem:[#allocation16 + $0xdd0] sm:$0xff]
    %v5387 = vld [vmem:[#allocation16 + $0xdd8] sm:$0xff]
    %v5388 = vld [vmem:[#allocation16 + $0xde0] sm:$0xff]
    %v5389 = vld [vmem:[#allocation16 + $0xde8] sm:$0xff]
    %v5390 = vld [vmem:[#allocation16 + $0xdf0] sm:$0xff]
    %v5391 = vld [vmem:[#allocation16 + $0xdf8] sm:$0xff]
    %v5392 = vld [vmem:[#allocation16 + $0xe00] sm:$0xff]
    %v5393 = vld [vmem:[#allocation16 + $0xe08] sm:$0xff]
    %v5394 = vld [vmem:[#allocation16 + $0xe10] sm:$0xff]
    %v5395 = vld [vmem:[#allocation16 + $0xe18] sm:$0xff]
    %v5396 = vld [vmem:[#allocation16 + $0xe20] sm:$0xff]
    %v5397 = vld [vmem:[#allocation16 + $0xe28] sm:$0xff]
    %v5398 = vld [vmem:[#allocation16 + $0xe30] sm:$0xff]
    %v5399 = vld [vmem:[#allocation16 + $0xe38] sm:$0xff]
    %v5400 = vld [vmem:[#allocation16 + $0xe40] sm:$0xff]
    %v5401 = vld [vmem:[#allocation16 + $0xe48] sm:$0xff]
    %v5402 = vld [vmem:[#allocation16 + $0xe50] sm:$0xff]
    %v5403 = vld [vmem:[#allocation16 + $0xe58] sm:$0xff]
    %v5404 = vld [vmem:[#allocation16 + $0xe60] sm:$0xff]
    %v5405 = vld [vmem:[#allocation16 + $0xe68] sm:$0xff]
    %v5406 = vld [vmem:[#allocation16 + $0xe70] sm:$0xff]
    %v5407 = vld [vmem:[#allocation16 + $0xe78] sm:$0xff]
    %v5408 = vld [vmem:[#allocation16 + $0xe80] sm:$0xff]
    %v5409 = vld [vmem:[#allocation16 + $0xe88] sm:$0xff]
    %v5410 = vld [vmem:[#allocation16 + $0xe90] sm:$0xff]
    %v5411 = vld [vmem:[#allocation16 + $0xe98] sm:$0xff]
    %v5412 = vld [vmem:[#allocation16 + $0xea0] sm:$0xff]
    %v5413 = vld [vmem:[#allocation16 + $0xea8] sm:$0xff]
    %v5414 = vld [vmem:[#allocation16 + $0xeb0] sm:$0xff]
    %v5415 = vld [vmem:[#allocation16 + $0xeb8] sm:$0xff]
    %v5416 = vld [vmem:[#allocation16 + $0xec0] sm:$0xff]
    %v5417 = vld [vmem:[#allocation16 + $0xec8] sm:$0xff]
    %v5418 = vld [vmem:[#allocation16 + $0xed0] sm:$0xff]
    %v5419 = vld [vmem:[#allocation16 + $0xed8] sm:$0xff]
    %v5420 = vld [vmem:[#allocation16 + $0xee0] sm:$0xff]
    %v5421 = vld [vmem:[#allocation16 + $0xee8] sm:$0xff]
    %v5422 = vld [vmem:[#allocation16 + $0xef0] sm:$0xff]
    %v5423 = vld [vmem:[#allocation16 + $0xef8] sm:$0xff]
    %v5424 = vld [vmem:[#allocation16 + $0xf00] sm:$0xff]
    %v5425 = vld [vmem:[#allocation16 + $0xf08] sm:$0xff]
    %v5426 = vld [vmem:[#allocation16 + $0xf10] sm:$0xff]
    %v5427 = vld [vmem:[#allocation16 + $0xf18] sm:$0xff]
    %v5428 = vld [vmem:[#allocation16 + $0xf20] sm:$0xff]
    %v5429 = vld [vmem:[#allocation16 + $0xf28] sm:$0xff]
    %v5430 = vld [vmem:[#allocation16 + $0xf30] sm:$0xff]
    %v5431 = vld [vmem:[#allocation16 + $0xf38] sm:$0xff]
    %v5432 = vld [vmem:[#allocation16 + $0xf40] sm:$0xff]
    %v5433 = vld [vmem:[#allocation16 + $0xf48] sm:$0xff]
    %v5434 = vld [vmem:[#allocation16 + $0xf50] sm:$0xff]
    %v5435 = vld [vmem:[#allocation16 + $0xf58] sm:$0xff]
    %v5436 = vld [vmem:[#allocation16 + $0xf60] sm:$0xff]
    %v5437 = vld [vmem:[#allocation16 + $0xf68] sm:$0xff]
    %v5438 = vld [vmem:[#allocation16 + $0xf70] sm:$0xff]
    %v5439 = vld [vmem:[#allocation16 + $0xf78] sm:$0xff]
    %v5440 = vld [vmem:[#allocation16 + $0xf80] sm:$0xff]
    %v5441 = vld [vmem:[#allocation16 + $0xf88] sm:$0xff]
    %v5442 = vld [vmem:[#allocation16 + $0xf90] sm:$0xff]
    %v5443 = vld [vmem:[#allocation16 + $0xf98] sm:$0xff]
    %v5444 = vld [vmem:[#allocation16 + $0xfa0] sm:$0xff]
    %v5445 = vld [vmem:[#allocation16 + $0xfa8] sm:$0xff]
    %v5446 = vld [vmem:[#allocation16 + $0xfb0] sm:$0xff]
    %v5447 = vld [vmem:[#allocation16 + $0xfb8] sm:$0xff]
    %v5448 = vld [vmem:[#allocation16 + $0xfc0] sm:$0xff]
    %v5449 = vld [vmem:[#allocation16 + $0xfc8] sm:$0xff]
    %v5450 = vld [vmem:[#allocation16 + $0xfd0] sm:$0xff]
    %v5451 = vld [vmem:[#allocation16 + $0xfd8] sm:$0xff]
    %v5452 = vld [vmem:[#allocation16 + $0xfe0] sm:$0xff]
    %v5453 = vld [vmem:[#allocation16 + $0xfe8] sm:$0xff]
    %v5454 = vld [vmem:[#allocation16 + $0xff0] sm:$0xff]
    %v5455 = vld [vmem:[#allocation16 + $0xff8] sm:$0xff]
    %v5456 = vld [vmem:[#allocation16 + $0x1000] sm:$0xff]
    %v5457 = vld [vmem:[#allocation16 + $0x1008] sm:$0xff]
    %v5458 = vld [vmem:[#allocation16 + $0x1010] sm:$0xff]
    %v5459 = vld [vmem:[#allocation16 + $0x1018] sm:$0xff]
    %v5460 = vld [vmem:[#allocation16 + $0x1020] sm:$0xff]
    %v5461 = vld [vmem:[#allocation16 + $0x1028] sm:$0xff]
    %v5462 = vld [vmem:[#allocation16 + $0x1030] sm:$0xff]
    %v5463 = vld [vmem:[#allocation16 + $0x1038] sm:$0xff]
    %v5464 = vld [vmem:[#allocation16 + $0x1040] sm:$0xff]
    %v5465 = vld [vmem:[#allocation16 + $0x1048] sm:$0xff]
    %v5466 = vld [vmem:[#allocation16 + $0x1050] sm:$0xff]
    %v5467 = vld [vmem:[#allocation16 + $0x1058] sm:$0xff]
    %v5468 = vld [vmem:[#allocation16 + $0x1060] sm:$0xff]
    %v5469 = vld [vmem:[#allocation16 + $0x1068] sm:$0xff]
    %v5470 = vld [vmem:[#allocation16 + $0x1070] sm:$0xff]
    %v5471 = vld [vmem:[#allocation16 + $0x1078] sm:$0xff]
    %v5472 = vld [vmem:[#allocation16 + $0x1080] sm:$0xff]
    %v5473 = vld [vmem:[#allocation16 + $0x1088] sm:$0xff]
    %v5474 = vld [vmem:[#allocation16 + $0x1090] sm:$0xff]
    %v5475 = vld [vmem:[#allocation16 + $0x1098] sm:$0xff]
    %v5476 = vld [vmem:[#allocation16 + $0x10a0] sm:$0xff]
    %v5477 = vld [vmem:[#allocation16 + $0x10a8] sm:$0xff]
    %v5478 = vld [vmem:[#allocation16 + $0x10b0] sm:$0xff]
    %v5479 = vld [vmem:[#allocation16 + $0x10b8] sm:$0xff]
    %v5480 = vld [vmem:[#allocation16 + $0x10c0] sm:$0xff]
    %v5481 = vld [vmem:[#allocation16 + $0x10c8] sm:$0xff]
    %v5482 = vld [vmem:[#allocation16 + $0x10d0] sm:$0xff]
    %v5483 = vld [vmem:[#allocation16 + $0x10d8] sm:$0xff]
    %v5484 = vld [vmem:[#allocation16 + $0x10e0] sm:$0xff]
    %v5485 = vld [vmem:[#allocation16 + $0x10e8] sm:$0xff]
    %v5486 = vld [vmem:[#allocation16 + $0x10f0] sm:$0xff]
    %v5487 = vld [vmem:[#allocation16 + $0x10f8] sm:$0xff]
    %v5488 = vld [vmem:[#allocation16 + $0x1100] sm:$0xff]
    %v5489 = vld [vmem:[#allocation16 + $0x1108] sm:$0xff]
    %v5490 = vld [vmem:[#allocation16 + $0x1110] sm:$0xff]
    %v5491 = vld [vmem:[#allocation16 + $0x1118] sm:$0xff]
    %v5492 = vld [vmem:[#allocation16 + $0x1120] sm:$0xff]
    %v5493 = vld [vmem:[#allocation16 + $0x1128] sm:$0xff]
    %v5494 = vld [vmem:[#allocation16 + $0x1130] sm:$0xff]
    %v5495 = vld [vmem:[#allocation16 + $0x1138] sm:$0xff]
    %v5496 = vld [vmem:[#allocation16 + $0x1140] sm:$0xff]
    %v5497 = vld [vmem:[#allocation16 + $0x1148] sm:$0xff]
    %v5498 = vld [vmem:[#allocation16 + $0x1150] sm:$0xff]
    %v5499 = vld [vmem:[#allocation16 + $0x1158] sm:$0xff]
    %v5500 = vld [vmem:[#allocation16 + $0x1160] sm:$0xff]
    %v5501 = vld [vmem:[#allocation16 + $0x1168] sm:$0xff]
    %v5502 = vld [vmem:[#allocation16 + $0x1170] sm:$0xff]
    %v5503 = vld [vmem:[#allocation16 + $0x1178] sm:$0xff]
    %v5504 = vld [vmem:[#allocation16 + $0x1180] sm:$0xff]
    %v5505 = vld [vmem:[#allocation16 + $0x1188] sm:$0xff]
    %v5506 = vld [vmem:[#allocation16 + $0x1190] sm:$0xff]
    %v5507 = vld [vmem:[#allocation16 + $0x1198] sm:$0xff]
    %v5508 = vld [vmem:[#allocation16 + $0x11a0] sm:$0xff]
    %v5509 = vld [vmem:[#allocation16 + $0x11a8] sm:$0xff]
    %v5510 = vld [vmem:[#allocation16 + $0x11b0] sm:$0xff]
    %v5511 = vld [vmem:[#allocation16 + $0x11b8] sm:$0xff]
    %v5512 = vld [vmem:[#allocation16 + $0x11c0] sm:$0xff]
    %v5513 = vld [vmem:[#allocation16 + $0x11c8] sm:$0xff]
    %v5514 = vld [vmem:[#allocation16 + $0x11d0] sm:$0xff]
    %v5515 = vld [vmem:[#allocation16 + $0x11d8] sm:$0xff]
    %v5516 = vld [vmem:[#allocation16 + $0x11e0] sm:$0xff]
    %v5517 = vld [vmem:[#allocation16 + $0x11e8] sm:$0xff]
    %v5518 = vld [vmem:[#allocation16 + $0x11f0] sm:$0xff]
    %v5519 = vld [vmem:[#allocation16 + $0x11f8] sm:$0xff]
    %5520 = vmatpush.msra.mxu0 %v5034
    %5521 = vmatpush.msra.mxu0 %v5028
    %5522 = vmatpush.msra.mxu0 %v5022
    %5523 = vmatpush.msra.mxu0 %v5016
    %5524 = vmatpush.msra.mxu0 %v5010
    %5525 = vmatpush.msra.mxu0 %v5004
    %5526 = vmatpush.msra.mxu0 %v4998
    %5527 = vmatpush.msra.mxu0 %v4992
    %5528 = vmatpush.msra.mxu0 %v4986
    %5529 = vmatpush.msra.mxu0 %v4980
    %5530 = vmatpush.msra.mxu0 %v4974
    %5531 = vmatpush.msra.mxu0 %v4968
    %5532 = vmatpush.msra.mxu0 %v4962
    %5533 = vmatpush.msra.mxu0 %v4956
    %5534 = vmatpush.msra.mxu0 %v4950
    %5535 = vmatpush.msra.mxu0 %v4944
    %5536 = vmatmul.f32.gmra.mxu0 %v4522
    %v5537 = vpop.f32.mrf.mxu0
    %v5538 = vadd.f32 0.0, %v5537
    %5539 = vdwg.mxu0
    %5540 = vmatpush.msra.mxu0 %v5130
    %5541 = vmatpush.msra.mxu0 %v5124
    %5542 = vmatpush.msra.mxu0 %v5118
    %5543 = vmatpush.msra.mxu0 %v5112
    %5544 = vmatpush.msra.mxu0 %v5106
    %5545 = vmatpush.msra.mxu0 %v5100
    %5546 = vmatpush.msra.mxu0 %v5094
    %5547 = vmatpush.msra.mxu0 %v5088
    %5548 = vmatpush.msra.mxu0 %v5082
    %5549 = vmatpush.msra.mxu0 %v5076
    %5550 = vmatpush.msra.mxu0 %v5070
    %5551 = vmatpush.msra.mxu0 %v5064
    %5552 = vmatpush.msra.mxu0 %v5058
    %5553 = vmatpush.msra.mxu0 %v5052
    %5554 = vmatpush.msra.mxu0 %v5046
    %5555 = vmatpush.msra.mxu0 %v5040
    %5556 = vmatmul.f32.gmra.mxu0 %v4602
    %v5557 = vpop.f32.mrf.mxu0
    %v5558 = vadd.f32 %v5538, %v5557
    %5559 = vdwg.mxu0
    %5560 = vmatpush.msra.mxu0 %v5226
    %5561 = vmatpush.msra.mxu0 %v5220
    %5562 = vmatpush.msra.mxu0 %v5214
    %5563 = vmatpush.msra.mxu0 %v5208
    %5564 = vmatpush.msra.mxu0 %v5202
    %5565 = vmatpush.msra.mxu0 %v5196
    %5566 = vmatpush.msra.mxu0 %v5190
    %5567 = vmatpush.msra.mxu0 %v5184
    %5568 = vmatpush.msra.mxu0 %v5178
    %5569 = vmatpush.msra.mxu0 %v5172
    %5570 = vmatpush.msra.mxu0 %v5166
    %5571 = vmatpush.msra.mxu0 %v5160
    %5572 = vmatpush.msra.mxu0 %v5154
    %5573 = vmatpush.msra.mxu0 %v5148
    %5574 = vmatpush.msra.mxu0 %v5142
    %5575 = vmatpush.msra.mxu0 %v5136
    %5576 = vmatmul.f32.gmra.mxu0 %v4682
    %v5577 = vpop.f32.mrf.mxu0
    %v5578 = vadd.f32 %v5558, %v5577
    %5579 = vdwg.mxu0
    %5580 = vmatpush.msra.mxu0 %v5322
    %5581 = vmatpush.msra.mxu0 %v5316
    %5582 = vmatpush.msra.mxu0 %v5310
    %5583 = vmatpush.msra.mxu0 %v5304
    %5584 = vmatpush.msra.mxu0 %v5298
    %5585 = vmatpush.msra.mxu0 %v5292
    %5586 = vmatpush.msra.mxu0 %v5286
    %5587 = vmatpush.msra.mxu0 %v5280
    %5588 = vmatpush.msra.mxu0 %v5274
    %5589 = vmatpush.msra.mxu0 %v5268
    %5590 = vmatpush.msra.mxu0 %v5262
    %5591 = vmatpush.msra.mxu0 %v5256
    %5592 = vmatpush.msra.mxu0 %v5250
    %5593 = vmatpush.msra.mxu0 %v5244
    %5594 = vmatpush.msra.mxu0 %v5238
    %5595 = vmatpush.msra.mxu0 %v5232
    %5596 = vmatmul.f32.gmra.mxu0 %v4762
    %v5597 = vpop.f32.mrf.mxu0
    %v5598 = vadd.f32 %v5578, %v5597
    %5599 = vdwg.mxu0
    %5600 = vmatpush.msra.mxu0 %v5418
    %5601 = vmatpush.msra.mxu0 %v5412
    %5602 = vmatpush.msra.mxu0 %v5406
    %5603 = vmatpush.msra.mxu0 %v5400
    %5604 = vmatpush.msra.mxu0 %v5394
    %5605 = vmatpush.msra.mxu0 %v5388
    %5606 = vmatpush.msra.mxu0 %v5382
    %5607 = vmatpush.msra.mxu0 %v5376
    %5608 = vmatpush.msra.mxu0 %v5370
    %5609 = vmatpush.msra.mxu0 %v5364
    %5610 = vmatpush.msra.mxu0 %v5358
    %5611 = vmatpush.msra.mxu0 %v5352
    %5612 = vmatpush.msra.mxu0 %v5346
    %5613 = vmatpush.msra.mxu0 %v5340
    %5614 = vmatpush.msra.mxu0 %v5334
    %5615 = vmatpush.msra.mxu0 %v5328
    %5616 = vmatmul.f32.gmra.mxu0 %v4842
    %v5617 = vpop.f32.mrf.mxu0
    %v5618 = vadd.f32 %v5598, %v5617
    %5619 = vdwg.mxu0
    %5620 = vmatpush.msra.mxu0 %v5514
    %5621 = vmatpush.msra.mxu0 %v5508
    %5622 = vmatpush.msra.mxu0 %v5502
    %5623 = vmatpush.msra.mxu0 %v5496
    %5624 = vmatpush.msra.mxu0 %v5490
    %5625 = vmatpush.msra.mxu0 %v5484
    %5626 = vmatpush.msra.mxu0 %v5478
    %5627 = vmatpush.msra.mxu0 %v5472
    %5628 = vmatpush.msra.mxu0 %v5466
    %5629 = vmatpush.msra.mxu0 %v5460
    %5630 = vmatpush.msra.mxu0 %v5454
    %5631 = vmatpush.msra.mxu0 %v5448
    %5632 = vmatpush.msra.mxu0 %v5442
    %5633 = vmatpush.msra.mxu0 %v5436
    %5634 = vmatpush.msra.mxu0 %v5430
    %5635 = vmatpush.msra.mxu0 %v5424
    %5636 = vmatmul.f32.gmra.mxu0 %v4922
    %v5637 = vpop.f32.mrf.mxu0
    %v5638 = vadd.f32 %v5618, %v5637
    %5639 = vdwg.mxu0
    %5640 = vmatpush.msra.mxu0 %v5035
    %5641 = vmatpush.msra.mxu0 %v5029
    %5642 = vmatpush.msra.mxu0 %v5023
    %5643 = vmatpush.msra.mxu0 %v5017
    %5644 = vmatpush.msra.mxu0 %v5011
    %5645 = vmatpush.msra.mxu0 %v5005
    %5646 = vmatpush.msra.mxu0 %v4999
    %5647 = vmatpush.msra.mxu0 %v4993
    %5648 = vmatpush.msra.mxu0 %v4987
    %5649 = vmatpush.msra.mxu0 %v4981
    %5650 = vmatpush.msra.mxu0 %v4975
    %5651 = vmatpush.msra.mxu0 %v4969
    %5652 = vmatpush.msra.mxu0 %v4963
    %5653 = vmatpush.msra.mxu0 %v4957
    %5654 = vmatpush.msra.mxu0 %v4951
    %5655 = vmatpush.msra.mxu0 %v4945
    %5656 = vmatmul.f32.gmra.mxu0 %v4522
    %v5657 = vpop.f32.mrf.mxu0
    %v5658 = vadd.f32 0.0, %v5657
    %5659 = vdwg.mxu0
    %5660 = vmatpush.msra.mxu0 %v5131
    %5661 = vmatpush.msra.mxu0 %v5125
    %5662 = vmatpush.msra.mxu0 %v5119
    %5663 = vmatpush.msra.mxu0 %v5113
    %5664 = vmatpush.msra.mxu0 %v5107
    %5665 = vmatpush.msra.mxu0 %v5101
    %5666 = vmatpush.msra.mxu0 %v5095
    %5667 = vmatpush.msra.mxu0 %v5089
    %5668 = vmatpush.msra.mxu0 %v5083
    %5669 = vmatpush.msra.mxu0 %v5077
    %5670 = vmatpush.msra.mxu0 %v5071
    %5671 = vmatpush.msra.mxu0 %v5065
    %5672 = vmatpush.msra.mxu0 %v5059
    %5673 = vmatpush.msra.mxu0 %v5053
    %5674 = vmatpush.msra.mxu0 %v5047
    %5675 = vmatpush.msra.mxu0 %v5041
    %5676 = vmatmul.f32.gmra.mxu0 %v4602
    %v5677 = vpop.f32.mrf.mxu0
    %v5678 = vadd.f32 %v5658, %v5677
    %5679 = vdwg.mxu0
    %5680 = vmatpush.msra.mxu0 %v5227
    %5681 = vmatpush.msra.mxu0 %v5221
    %5682 = vmatpush.msra.mxu0 %v5215
    %5683 = vmatpush.msra.mxu0 %v5209
    %5684 = vmatpush.msra.mxu0 %v5203
    %5685 = vmatpush.msra.mxu0 %v5197
    %5686 = vmatpush.msra.mxu0 %v5191
    %5687 = vmatpush.msra.mxu0 %v5185
    %5688 = vmatpush.msra.mxu0 %v5179
    %5689 = vmatpush.msra.mxu0 %v5173
    %5690 = vmatpush.msra.mxu0 %v5167
    %5691 = vmatpush.msra.mxu0 %v5161
    %5692 = vmatpush.msra.mxu0 %v5155
    %5693 = vmatpush.msra.mxu0 %v5149
    %5694 = vmatpush.msra.mxu0 %v5143
    %5695 = vmatpush.msra.mxu0 %v5137
    %5696 = vmatmul.f32.gmra.mxu0 %v4682
    %v5697 = vpop.f32.mrf.mxu0
    %v5698 = vadd.f32 %v5678, %v5697
    %5699 = vdwg.mxu0
    %5700 = vmatpush.msra.mxu0 %v5323
    %5701 = vmatpush.msra.mxu0 %v5317
    %5702 = vmatpush.msra.mxu0 %v5311
    %5703 = vmatpush.msra.mxu0 %v5305
    %5704 = vmatpush.msra.mxu0 %v5299
    %5705 = vmatpush.msra.mxu0 %v5293
    %5706 = vmatpush.msra.mxu0 %v5287
    %5707 = vmatpush.msra.mxu0 %v5281
    %5708 = vmatpush.msra.mxu0 %v5275
    %5709 = vmatpush.msra.mxu0 %v5269
    %5710 = vmatpush.msra.mxu0 %v5263
    %5711 = vmatpush.msra.mxu0 %v5257
    %5712 = vmatpush.msra.mxu0 %v5251
    %5713 = vmatpush.msra.mxu0 %v5245
    %5714 = vmatpush.msra.mxu0 %v5239
    %5715 = vmatpush.msra.mxu0 %v5233
    %5716 = vmatmul.f32.gmra.mxu0 %v4762
    %v5717 = vpop.f32.mrf.mxu0
    %v5718 = vadd.f32 %v5698, %v5717
    %5719 = vdwg.mxu0
    %5720 = vmatpush.msra.mxu0 %v5419
    %5721 = vmatpush.msra.mxu0 %v5413
    %5722 = vmatpush.msra.mxu0 %v5407
    %5723 = vmatpush.msra.mxu0 %v5401
    %5724 = vmatpush.msra.mxu0 %v5395
    %5725 = vmatpush.msra.mxu0 %v5389
    %5726 = vmatpush.msra.mxu0 %v5383
    %5727 = vmatpush.msra.mxu0 %v5377
    %5728 = vmatpush.msra.mxu0 %v5371
    %5729 = vmatpush.msra.mxu0 %v5365
    %5730 = vmatpush.msra.mxu0 %v5359
    %5731 = vmatpush.msra.mxu0 %v5353
    %5732 = vmatpush.msra.mxu0 %v5347
    %5733 = vmatpush.msra.mxu0 %v5341
    %5734 = vmatpush.msra.mxu0 %v5335
    %5735 = vmatpush.msra.mxu0 %v5329
    %5736 = vmatmul.f32.gmra.mxu0 %v4842
    %v5737 = vpop.f32.mrf.mxu0
    %v5738 = vadd.f32 %v5718, %v5737
    %5739 = vdwg.mxu0
    %5740 = vmatpush.msra.mxu0 %v5515
    %5741 = vmatpush.msra.mxu0 %v5509
    %5742 = vmatpush.msra.mxu0 %v5503
    %5743 = vmatpush.msra.mxu0 %v5497
    %5744 = vmatpush.msra.mxu0 %v5491
    %5745 = vmatpush.msra.mxu0 %v5485
    %5746 = vmatpush.msra.mxu0 %v5479
    %5747 = vmatpush.msra.mxu0 %v5473
    %5748 = vmatpush.msra.mxu0 %v5467
    %5749 = vmatpush.msra.mxu0 %v5461
    %5750 = vmatpush.msra.mxu0 %v5455
    %5751 = vmatpush.msra.mxu0 %v5449
    %5752 = vmatpush.msra.mxu0 %v5443
    %5753 = vmatpush.msra.mxu0 %v5437
    %5754 = vmatpush.msra.mxu0 %v5431
    %5755 = vmatpush.msra.mxu0 %v5425
    %5756 = vmatmul.f32.gmra.mxu0 %v4922
    %v5757 = vpop.f32.mrf.mxu0
    %v5758 = vadd.f32 %v5738, %v5757
    %5759 = vdwg.mxu0
    %5760 = vmatpush.msra.mxu0 %v5036
    %5761 = vmatpush.msra.mxu0 %v5030
    %5762 = vmatpush.msra.mxu0 %v5024
    %5763 = vmatpush.msra.mxu0 %v5018
    %5764 = vmatpush.msra.mxu0 %v5012
    %5765 = vmatpush.msra.mxu0 %v5006
    %5766 = vmatpush.msra.mxu0 %v5000
    %5767 = vmatpush.msra.mxu0 %v4994
    %5768 = vmatpush.msra.mxu0 %v4988
    %5769 = vmatpush.msra.mxu0 %v4982
    %5770 = vmatpush.msra.mxu0 %v4976
    %5771 = vmatpush.msra.mxu0 %v4970
    %5772 = vmatpush.msra.mxu0 %v4964
    %5773 = vmatpush.msra.mxu0 %v4958
    %5774 = vmatpush.msra.mxu0 %v4952
    %5775 = vmatpush.msra.mxu0 %v4946
    %5776 = vmatmul.f32.gmra.mxu0 %v4522
    %v5777 = vpop.f32.mrf.mxu0
    %v5778 = vadd.f32 0.0, %v5777
    %5779 = vdwg.mxu0
    %5780 = vmatpush.msra.mxu0 %v5132
    %5781 = vmatpush.msra.mxu0 %v5126
    %5782 = vmatpush.msra.mxu0 %v5120
    %5783 = vmatpush.msra.mxu0 %v5114
    %5784 = vmatpush.msra.mxu0 %v5108
    %5785 = vmatpush.msra.mxu0 %v5102
    %5786 = vmatpush.msra.mxu0 %v5096
    %5787 = vmatpush.msra.mxu0 %v5090
    %5788 = vmatpush.msra.mxu0 %v5084
    %5789 = vmatpush.msra.mxu0 %v5078
    %5790 = vmatpush.msra.mxu0 %v5072
    %5791 = vmatpush.msra.mxu0 %v5066
    %5792 = vmatpush.msra.mxu0 %v5060
    %5793 = vmatpush.msra.mxu0 %v5054
    %5794 = vmatpush.msra.mxu0 %v5048
    %5795 = vmatpush.msra.mxu0 %v5042
    %5796 = vmatmul.f32.gmra.mxu0 %v4602
    %v5797 = vpop.f32.mrf.mxu0
    %v5798 = vadd.f32 %v5778, %v5797
    %5799 = vdwg.mxu0
    %5800 = vmatpush.msra.mxu0 %v5228
    %5801 = vmatpush.msra.mxu0 %v5222
    %5802 = vmatpush.msra.mxu0 %v5216
    %5803 = vmatpush.msra.mxu0 %v5210
    %5804 = vmatpush.msra.mxu0 %v5204
    %5805 = vmatpush.msra.mxu0 %v5198
    %5806 = vmatpush.msra.mxu0 %v5192
    %5807 = vmatpush.msra.mxu0 %v5186
    %5808 = vmatpush.msra.mxu0 %v5180
    %5809 = vmatpush.msra.mxu0 %v5174
    %5810 = vmatpush.msra.mxu0 %v5168
    %5811 = vmatpush.msra.mxu0 %v5162
    %5812 = vmatpush.msra.mxu0 %v5156
    %5813 = vmatpush.msra.mxu0 %v5150
    %5814 = vmatpush.msra.mxu0 %v5144
    %5815 = vmatpush.msra.mxu0 %v5138
    %5816 = vmatmul.f32.gmra.mxu0 %v4682
    %v5817 = vpop.f32.mrf.mxu0
    %v5818 = vadd.f32 %v5798, %v5817
    %5819 = vdwg.mxu0
    %5820 = vmatpush.msra.mxu0 %v5324
    %5821 = vmatpush.msra.mxu0 %v5318
    %5822 = vmatpush.msra.mxu0 %v5312
    %5823 = vmatpush.msra.mxu0 %v5306
    %5824 = vmatpush.msra.mxu0 %v5300
    %5825 = vmatpush.msra.mxu0 %v5294
    %5826 = vmatpush.msra.mxu0 %v5288
    %5827 = vmatpush.msra.mxu0 %v5282
    %5828 = vmatpush.msra.mxu0 %v5276
    %5829 = vmatpush.msra.mxu0 %v5270
    %5830 = vmatpush.msra.mxu0 %v5264
    %5831 = vmatpush.msra.mxu0 %v5258
    %5832 = vmatpush.msra.mxu0 %v5252
    %5833 = vmatpush.msra.mxu0 %v5246
    %5834 = vmatpush.msra.mxu0 %v5240
    %5835 = vmatpush.msra.mxu0 %v5234
    %5836 = vmatmul.f32.gmra.mxu0 %v4762
    %v5837 = vpop.f32.mrf.mxu0
    %v5838 = vadd.f32 %v5818, %v5837
    %5839 = vdwg.mxu0
    %5840 = vmatpush.msra.mxu0 %v5420
    %5841 = vmatpush.msra.mxu0 %v5414
    %5842 = vmatpush.msra.mxu0 %v5408
    %5843 = vmatpush.msra.mxu0 %v5402
    %5844 = vmatpush.msra.mxu0 %v5396
    %5845 = vmatpush.msra.mxu0 %v5390
    %5846 = vmatpush.msra.mxu0 %v5384
    %5847 = vmatpush.msra.mxu0 %v5378
    %5848 = vmatpush.msra.mxu0 %v5372
    %5849 = vmatpush.msra.mxu0 %v5366
    %5850 = vmatpush.msra.mxu0 %v5360
    %5851 = vmatpush.msra.mxu0 %v5354
    %5852 = vmatpush.msra.mxu0 %v5348
    %5853 = vmatpush.msra.mxu0 %v5342
    %5854 = vmatpush.msra.mxu0 %v5336
    %5855 = vmatpush.msra.mxu0 %v5330
    %5856 = vmatmul.f32.gmra.mxu0 %v4842
    %v5857 = vpop.f32.mrf.mxu0
    %v5858 = vadd.f32 %v5838, %v5857
    %5859 = vdwg.mxu0
    %5860 = vmatpush.msra.mxu0 %v5516
    %5861 = vmatpush.msra.mxu0 %v5510
    %5862 = vmatpush.msra.mxu0 %v5504
    %5863 = vmatpush.msra.mxu0 %v5498
    %5864 = vmatpush.msra.mxu0 %v5492
    %5865 = vmatpush.msra.mxu0 %v5486
    %5866 = vmatpush.msra.mxu0 %v5480
    %5867 = vmatpush.msra.mxu0 %v5474
    %5868 = vmatpush.msra.mxu0 %v5468
    %5869 = vmatpush.msra.mxu0 %v5462
    %5870 = vmatpush.msra.mxu0 %v5456
    %5871 = vmatpush.msra.mxu0 %v5450
    %5872 = vmatpush.msra.mxu0 %v5444
    %5873 = vmatpush.msra.mxu0 %v5438
    %5874 = vmatpush.msra.mxu0 %v5432
    %5875 = vmatpush.msra.mxu0 %v5426
    %5876 = vmatmul.f32.gmra.mxu0 %v4922
    %v5877 = vpop.f32.mrf.mxu0
    %v5878 = vadd.f32 %v5858, %v5877
    %5879 = vdwg.mxu0
    %5880 = vmatpush.msra.mxu0 %v5037
    %5881 = vmatpush.msra.mxu0 %v5031
    %5882 = vmatpush.msra.mxu0 %v5025
    %5883 = vmatpush.msra.mxu0 %v5019
    %5884 = vmatpush.msra.mxu0 %v5013
    %5885 = vmatpush.msra.mxu0 %v5007
    %5886 = vmatpush.msra.mxu0 %v5001
    %5887 = vmatpush.msra.mxu0 %v4995
    %5888 = vmatpush.msra.mxu0 %v4989
    %5889 = vmatpush.msra.mxu0 %v4983
    %5890 = vmatpush.msra.mxu0 %v4977
    %5891 = vmatpush.msra.mxu0 %v4971
    %5892 = vmatpush.msra.mxu0 %v4965
    %5893 = vmatpush.msra.mxu0 %v4959
    %5894 = vmatpush.msra.mxu0 %v4953
    %5895 = vmatpush.msra.mxu0 %v4947
    %5896 = vmatmul.f32.gmra.mxu0 %v4522
    %v5897 = vpop.f32.mrf.mxu0
    %v5898 = vadd.f32 0.0, %v5897
    %5899 = vdwg.mxu0
    %5900 = vmatpush.msra.mxu0 %v5133
    %5901 = vmatpush.msra.mxu0 %v5127
    %5902 = vmatpush.msra.mxu0 %v5121
    %5903 = vmatpush.msra.mxu0 %v5115
    %5904 = vmatpush.msra.mxu0 %v5109
    %5905 = vmatpush.msra.mxu0 %v5103
    %5906 = vmatpush.msra.mxu0 %v5097
    %5907 = vmatpush.msra.mxu0 %v5091
    %5908 = vmatpush.msra.mxu0 %v5085
    %5909 = vmatpush.msra.mxu0 %v5079
    %5910 = vmatpush.msra.mxu0 %v5073
    %5911 = vmatpush.msra.mxu0 %v5067
    %5912 = vmatpush.msra.mxu0 %v5061
    %5913 = vmatpush.msra.mxu0 %v5055
    %5914 = vmatpush.msra.mxu0 %v5049
    %5915 = vmatpush.msra.mxu0 %v5043
    %5916 = vmatmul.f32.gmra.mxu0 %v4602
    %v5917 = vpop.f32.mrf.mxu0
    %v5918 = vadd.f32 %v5898, %v5917
    %5919 = vdwg.mxu0
    %5920 = vmatpush.msra.mxu0 %v5229
    %5921 = vmatpush.msra.mxu0 %v5223
    %5922 = vmatpush.msra.mxu0 %v5217
    %5923 = vmatpush.msra.mxu0 %v5211
    %5924 = vmatpush.msra.mxu0 %v5205
    %5925 = vmatpush.msra.mxu0 %v5199
    %5926 = vmatpush.msra.mxu0 %v5193
    %5927 = vmatpush.msra.mxu0 %v5187
    %5928 = vmatpush.msra.mxu0 %v5181
    %5929 = vmatpush.msra.mxu0 %v5175
    %5930 = vmatpush.msra.mxu0 %v5169
    %5931 = vmatpush.msra.mxu0 %v5163
    %5932 = vmatpush.msra.mxu0 %v5157
    %5933 = vmatpush.msra.mxu0 %v5151
    %5934 = vmatpush.msra.mxu0 %v5145
    %5935 = vmatpush.msra.mxu0 %v5139
    %5936 = vmatmul.f32.gmra.mxu0 %v4682
    %v5937 = vpop.f32.mrf.mxu0
    %v5938 = vadd.f32 %v5918, %v5937
    %5939 = vdwg.mxu0
    %5940 = vmatpush.msra.mxu0 %v5325
    %5941 = vmatpush.msra.mxu0 %v5319
    %5942 = vmatpush.msra.mxu0 %v5313
    %5943 = vmatpush.msra.mxu0 %v5307
    %5944 = vmatpush.msra.mxu0 %v5301
    %5945 = vmatpush.msra.mxu0 %v5295
    %5946 = vmatpush.msra.mxu0 %v5289
    %5947 = vmatpush.msra.mxu0 %v5283
    %5948 = vmatpush.msra.mxu0 %v5277
    %5949 = vmatpush.msra.mxu0 %v5271
    %5950 = vmatpush.msra.mxu0 %v5265
    %5951 = vmatpush.msra.mxu0 %v5259
    %5952 = vmatpush.msra.mxu0 %v5253
    %5953 = vmatpush.msra.mxu0 %v5247
    %5954 = vmatpush.msra.mxu0 %v5241
    %5955 = vmatpush.msra.mxu0 %v5235
    %5956 = vmatmul.f32.gmra.mxu0 %v4762
    %v5957 = vpop.f32.mrf.mxu0
    %v5958 = vadd.f32 %v5938, %v5957
    %5959 = vdwg.mxu0
    %5960 = vmatpush.msra.mxu0 %v5421
    %5961 = vmatpush.msra.mxu0 %v5415
    %5962 = vmatpush.msra.mxu0 %v5409
    %5963 = vmatpush.msra.mxu0 %v5403
    %5964 = vmatpush.msra.mxu0 %v5397
    %5965 = vmatpush.msra.mxu0 %v5391
    %5966 = vmatpush.msra.mxu0 %v5385
    %5967 = vmatpush.msra.mxu0 %v5379
    %5968 = vmatpush.msra.mxu0 %v5373
    %5969 = vmatpush.msra.mxu0 %v5367
    %5970 = vmatpush.msra.mxu0 %v5361
    %5971 = vmatpush.msra.mxu0 %v5355
    %5972 = vmatpush.msra.mxu0 %v5349
    %5973 = vmatpush.msra.mxu0 %v5343
    %5974 = vmatpush.msra.mxu0 %v5337
    %5975 = vmatpush.msra.mxu0 %v5331
    %5976 = vmatmul.f32.gmra.mxu0 %v4842
    %v5977 = vpop.f32.mrf.mxu0
    %v5978 = vadd.f32 %v5958, %v5977
    %5979 = vdwg.mxu0
    %5980 = vmatpush.msra.mxu0 %v5517
    %5981 = vmatpush.msra.mxu0 %v5511
    %5982 = vmatpush.msra.mxu0 %v5505
    %5983 = vmatpush.msra.mxu0 %v5499
    %5984 = vmatpush.msra.mxu0 %v5493
    %5985 = vmatpush.msra.mxu0 %v5487
    %5986 = vmatpush.msra.mxu0 %v5481
    %5987 = vmatpush.msra.mxu0 %v5475
    %5988 = vmatpush.msra.mxu0 %v5469
    %5989 = vmatpush.msra.mxu0 %v5463
    %5990 = vmatpush.msra.mxu0 %v5457
    %5991 = vmatpush.msra.mxu0 %v5451
    %5992 = vmatpush.msra.mxu0 %v5445
    %5993 = vmatpush.msra.mxu0 %v5439
    %5994 = vmatpush.msra.mxu0 %v5433
    %5995 = vmatpush.msra.mxu0 %v5427
    %5996 = vmatmul.f32.gmra.mxu0 %v4922
    %v5997 = vpop.f32.mrf.mxu0
    %v5998 = vadd.f32 %v5978, %v5997
    %5999 = vdwg.mxu0
    %6000 = vmatpush.msra.mxu0 %v5038
    %6001 = vmatpush.msra.mxu0 %v5032
    %6002 = vmatpush.msra.mxu0 %v5026
    %6003 = vmatpush.msra.mxu0 %v5020
    %6004 = vmatpush.msra.mxu0 %v5014
    %6005 = vmatpush.msra.mxu0 %v5008
    %6006 = vmatpush.msra.mxu0 %v5002
    %6007 = vmatpush.msra.mxu0 %v4996
    %6008 = vmatpush.msra.mxu0 %v4990
    %6009 = vmatpush.msra.mxu0 %v4984
    %6010 = vmatpush.msra.mxu0 %v4978
    %6011 = vmatpush.msra.mxu0 %v4972
    %6012 = vmatpush.msra.mxu0 %v4966
    %6013 = vmatpush.msra.mxu0 %v4960
    %6014 = vmatpush.msra.mxu0 %v4954
    %6015 = vmatpush.msra.mxu0 %v4948
    %6016 = vmatmul.f32.gmra.mxu0 %v4522
    %v6017 = vpop.f32.mrf.mxu0
    %v6018 = vadd.f32 0.0, %v6017
    %6019 = vdwg.mxu0
    %6020 = vmatpush.msra.mxu0 %v5134
    %6021 = vmatpush.msra.mxu0 %v5128
    %6022 = vmatpush.msra.mxu0 %v5122
    %6023 = vmatpush.msra.mxu0 %v5116
    %6024 = vmatpush.msra.mxu0 %v5110
    %6025 = vmatpush.msra.mxu0 %v5104
    %6026 = vmatpush.msra.mxu0 %v5098
    %6027 = vmatpush.msra.mxu0 %v5092
    %6028 = vmatpush.msra.mxu0 %v5086
    %6029 = vmatpush.msra.mxu0 %v5080
    %6030 = vmatpush.msra.mxu0 %v5074
    %6031 = vmatpush.msra.mxu0 %v5068
    %6032 = vmatpush.msra.mxu0 %v5062
    %6033 = vmatpush.msra.mxu0 %v5056
    %6034 = vmatpush.msra.mxu0 %v5050
    %6035 = vmatpush.msra.mxu0 %v5044
    %6036 = vmatmul.f32.gmra.mxu0 %v4602
    %v6037 = vpop.f32.mrf.mxu0
    %v6038 = vadd.f32 %v6018, %v6037
    %6039 = vdwg.mxu0
    %6040 = vmatpush.msra.mxu0 %v5230
    %6041 = vmatpush.msra.mxu0 %v5224
    %6042 = vmatpush.msra.mxu0 %v5218
    %6043 = vmatpush.msra.mxu0 %v5212
    %6044 = vmatpush.msra.mxu0 %v5206
    %6045 = vmatpush.msra.mxu0 %v5200
    %6046 = vmatpush.msra.mxu0 %v5194
    %6047 = vmatpush.msra.mxu0 %v5188
    %6048 = vmatpush.msra.mxu0 %v5182
    %6049 = vmatpush.msra.mxu0 %v5176
    %6050 = vmatpush.msra.mxu0 %v5170
    %6051 = vmatpush.msra.mxu0 %v5164
    %6052 = vmatpush.msra.mxu0 %v5158
    %6053 = vmatpush.msra.mxu0 %v5152
    %6054 = vmatpush.msra.mxu0 %v5146
    %6055 = vmatpush.msra.mxu0 %v5140
    %6056 = vmatmul.f32.gmra.mxu0 %v4682
    %v6057 = vpop.f32.mrf.mxu0
    %v6058 = vadd.f32 %v6038, %v6057
    %6059 = vdwg.mxu0
    %6060 = vmatpush.msra.mxu0 %v5326
    %6061 = vmatpush.msra.mxu0 %v5320
    %6062 = vmatpush.msra.mxu0 %v5314
    %6063 = vmatpush.msra.mxu0 %v5308
    %6064 = vmatpush.msra.mxu0 %v5302
    %6065 = vmatpush.msra.mxu0 %v5296
    %6066 = vmatpush.msra.mxu0 %v5290
    %6067 = vmatpush.msra.mxu0 %v5284
    %6068 = vmatpush.msra.mxu0 %v5278
    %6069 = vmatpush.msra.mxu0 %v5272
    %6070 = vmatpush.msra.mxu0 %v5266
    %6071 = vmatpush.msra.mxu0 %v5260
    %6072 = vmatpush.msra.mxu0 %v5254
    %6073 = vmatpush.msra.mxu0 %v5248
    %6074 = vmatpush.msra.mxu0 %v5242
    %6075 = vmatpush.msra.mxu0 %v5236
    %6076 = vmatmul.f32.gmra.mxu0 %v4762
    %v6077 = vpop.f32.mrf.mxu0
    %v6078 = vadd.f32 %v6058, %v6077
    %6079 = vdwg.mxu0
    %6080 = vmatpush.msra.mxu0 %v5422
    %6081 = vmatpush.msra.mxu0 %v5416
    %6082 = vmatpush.msra.mxu0 %v5410
    %6083 = vmatpush.msra.mxu0 %v5404
    %6084 = vmatpush.msra.mxu0 %v5398
    %6085 = vmatpush.msra.mxu0 %v5392
    %6086 = vmatpush.msra.mxu0 %v5386
    %6087 = vmatpush.msra.mxu0 %v5380
    %6088 = vmatpush.msra.mxu0 %v5374
    %6089 = vmatpush.msra.mxu0 %v5368
    %6090 = vmatpush.msra.mxu0 %v5362
    %6091 = vmatpush.msra.mxu0 %v5356
    %6092 = vmatpush.msra.mxu0 %v5350
    %6093 = vmatpush.msra.mxu0 %v5344
    %6094 = vmatpush.msra.mxu0 %v5338
    %6095 = vmatpush.msra.mxu0 %v5332
    %6096 = vmatmul.f32.gmra.mxu0 %v4842
    %v6097 = vpop.f32.mrf.mxu0
    %v6098 = vadd.f32 %v6078, %v6097
    %6099 = vdwg.mxu0
    %6100 = vmatpush.msra.mxu0 %v5518
    %6101 = vmatpush.msra.mxu0 %v5512
    %6102 = vmatpush.msra.mxu0 %v5506
    %6103 = vmatpush.msra.mxu0 %v5500
    %6104 = vmatpush.msra.mxu0 %v5494
    %6105 = vmatpush.msra.mxu0 %v5488
    %6106 = vmatpush.msra.mxu0 %v5482
    %6107 = vmatpush.msra.mxu0 %v5476
    %6108 = vmatpush.msra.mxu0 %v5470
    %6109 = vmatpush.msra.mxu0 %v5464
    %6110 = vmatpush.msra.mxu0 %v5458
    %6111 = vmatpush.msra.mxu0 %v5452
    %6112 = vmatpush.msra.mxu0 %v5446
    %6113 = vmatpush.msra.mxu0 %v5440
    %6114 = vmatpush.msra.mxu0 %v5434
    %6115 = vmatpush.msra.mxu0 %v5428
    %6116 = vmatmul.f32.gmra.mxu0 %v4922
    %v6117 = vpop.f32.mrf.mxu0
    %v6118 = vadd.f32 %v6098, %v6117
    %6119 = vdwg.mxu0
    %6120 = vmatpush.msra.mxu0 %v5039
    %6121 = vmatpush.msra.mxu0 %v5033
    %6122 = vmatpush.msra.mxu0 %v5027
    %6123 = vmatpush.msra.mxu0 %v5021
    %6124 = vmatpush.msra.mxu0 %v5015
    %6125 = vmatpush.msra.mxu0 %v5009
    %6126 = vmatpush.msra.mxu0 %v5003
    %6127 = vmatpush.msra.mxu0 %v4997
    %6128 = vmatpush.msra.mxu0 %v4991
    %6129 = vmatpush.msra.mxu0 %v4985
    %6130 = vmatpush.msra.mxu0 %v4979
    %6131 = vmatpush.msra.mxu0 %v4973
    %6132 = vmatpush.msra.mxu0 %v4967
    %6133 = vmatpush.msra.mxu0 %v4961
    %6134 = vmatpush.msra.mxu0 %v4955
    %6135 = vmatpush.msra.mxu0 %v4949
    %6136 = vmatmul.f32.gmra.mxu0 %v4522
    %v6137 = vpop.f32.mrf.mxu0
    %v6138 = vadd.f32 0.0, %v6137
    %6139 = vdwg.mxu0
    %6140 = vmatpush.msra.mxu0 %v5135
    %6141 = vmatpush.msra.mxu0 %v5129
    %6142 = vmatpush.msra.mxu0 %v5123
    %6143 = vmatpush.msra.mxu0 %v5117
    %6144 = vmatpush.msra.mxu0 %v5111
    %6145 = vmatpush.msra.mxu0 %v5105
    %6146 = vmatpush.msra.mxu0 %v5099
    %6147 = vmatpush.msra.mxu0 %v5093
    %6148 = vmatpush.msra.mxu0 %v5087
    %6149 = vmatpush.msra.mxu0 %v5081
    %6150 = vmatpush.msra.mxu0 %v5075
    %6151 = vmatpush.msra.mxu0 %v5069
    %6152 = vmatpush.msra.mxu0 %v5063
    %6153 = vmatpush.msra.mxu0 %v5057
    %6154 = vmatpush.msra.mxu0 %v5051
    %6155 = vmatpush.msra.mxu0 %v5045
    %6156 = vmatmul.f32.gmra.mxu0 %v4602
    %v6157 = vpop.f32.mrf.mxu0
    %v6158 = vadd.f32 %v6138, %v6157
    %6159 = vdwg.mxu0
    %6160 = vmatpush.msra.mxu0 %v5231
    %6161 = vmatpush.msra.mxu0 %v5225
    %6162 = vmatpush.msra.mxu0 %v5219
    %6163 = vmatpush.msra.mxu0 %v5213
    %6164 = vmatpush.msra.mxu0 %v5207
    %6165 = vmatpush.msra.mxu0 %v5201
    %6166 = vmatpush.msra.mxu0 %v5195
    %6167 = vmatpush.msra.mxu0 %v5189
    %6168 = vmatpush.msra.mxu0 %v5183
    %6169 = vmatpush.msra.mxu0 %v5177
    %6170 = vmatpush.msra.mxu0 %v5171
    %6171 = vmatpush.msra.mxu0 %v5165
    %6172 = vmatpush.msra.mxu0 %v5159
    %6173 = vmatpush.msra.mxu0 %v5153
    %6174 = vmatpush.msra.mxu0 %v5147
    %6175 = vmatpush.msra.mxu0 %v5141
    %6176 = vmatmul.f32.gmra.mxu0 %v4682
    %v6177 = vpop.f32.mrf.mxu0
    %v6178 = vadd.f32 %v6158, %v6177
    %6179 = vdwg.mxu0
    %6180 = vmatpush.msra.mxu0 %v5327
    %6181 = vmatpush.msra.mxu0 %v5321
    %6182 = vmatpush.msra.mxu0 %v5315
    %6183 = vmatpush.msra.mxu0 %v5309
    %6184 = vmatpush.msra.mxu0 %v5303
    %6185 = vmatpush.msra.mxu0 %v5297
    %6186 = vmatpush.msra.mxu0 %v5291
    %6187 = vmatpush.msra.mxu0 %v5285
    %6188 = vmatpush.msra.mxu0 %v5279
    %6189 = vmatpush.msra.mxu0 %v5273
    %6190 = vmatpush.msra.mxu0 %v5267
    %6191 = vmatpush.msra.mxu0 %v5261
    %6192 = vmatpush.msra.mxu0 %v5255
    %6193 = vmatpush.msra.mxu0 %v5249
    %6194 = vmatpush.msra.mxu0 %v5243
    %6195 = vmatpush.msra.mxu0 %v5237
    %6196 = vmatmul.f32.gmra.mxu0 %v4762
    %v6197 = vpop.f32.mrf.mxu0
    %v6198 = vadd.f32 %v6178, %v6197
    %6199 = vdwg.mxu0
    %6200 = vmatpush.msra.mxu0 %v5423
    %6201 = vmatpush.msra.mxu0 %v5417
    %6202 = vmatpush.msra.mxu0 %v5411
    %6203 = vmatpush.msra.mxu0 %v5405
    %6204 = vmatpush.msra.mxu0 %v5399
    %6205 = vmatpush.msra.mxu0 %v5393
    %6206 = vmatpush.msra.mxu0 %v5387
    %6207 = vmatpush.msra.mxu0 %v5381
    %6208 = vmatpush.msra.mxu0 %v5375
    %6209 = vmatpush.msra.mxu0 %v5369
    %6210 = vmatpush.msra.mxu0 %v5363
    %6211 = vmatpush.msra.mxu0 %v5357
    %6212 = vmatpush.msra.mxu0 %v5351
    %6213 = vmatpush.msra.mxu0 %v5345
    %6214 = vmatpush.msra.mxu0 %v5339
    %6215 = vmatpush.msra.mxu0 %v5333
    %6216 = vmatmul.f32.gmra.mxu0 %v4842
    %v6217 = vpop.f32.mrf.mxu0
    %v6218 = vadd.f32 %v6198, %v6217
    %6219 = vdwg.mxu0
    %6220 = vmatpush.msra.mxu0 %v5519
    %6221 = vmatpush.msra.mxu0 %v5513
    %6222 = vmatpush.msra.mxu0 %v5507
    %6223 = vmatpush.msra.mxu0 %v5501
    %6224 = vmatpush.msra.mxu0 %v5495
    %6225 = vmatpush.msra.mxu0 %v5489
    %6226 = vmatpush.msra.mxu0 %v5483
    %6227 = vmatpush.msra.mxu0 %v5477
    %6228 = vmatpush.msra.mxu0 %v5471
    %6229 = vmatpush.msra.mxu0 %v5465
    %6230 = vmatpush.msra.mxu0 %v5459
    %6231 = vmatpush.msra.mxu0 %v5453
    %6232 = vmatpush.msra.mxu0 %v5447
    %6233 = vmatpush.msra.mxu0 %v5441
    %6234 = vmatpush.msra.mxu0 %v5435
    %6235 = vmatpush.msra.mxu0 %v5429
    %6236 = vmatmul.f32.gmra.mxu0 %v4922
    %v6237 = vpop.f32.mrf.mxu0
    %v6238 = vadd.f32 %v6218, %v6237
    %6239 = vdwg.mxu0
    %v6240 = vadd.f32 %v4938, %v5638
    %v6241 = vadd.f32 %v4939, %v5758
    %v6242 = vadd.f32 %v4940, %v5878
    %v6243 = vadd.f32 %v4941, %v5998
    %v6244 = vadd.f32 %v4942, %v6118
    %v6245 = vadd.f32 %v4943, %v6238
    %s6246 = scalar_lea.vmem [#allocation16], 4608
    %v6247 = vld [vmem:[%s6246] sm:$0xff]
    %v6248 = vld [vmem:[%s6246 + $0x8] sm:$0xff]
    %v6249 = vld [vmem:[%s6246 + $0x10] sm:$0xff]
    %v6250 = vld [vmem:[%s6246 + $0x18] sm:$0xff]
    %v6251 = vld [vmem:[%s6246 + $0x20] sm:$0xff]
    %v6252 = vld [vmem:[%s6246 + $0x28] sm:$0xff]
    %v6253 = vld [vmem:[%s6246 + $0x30] sm:$0xff]
    %v6254 = vld [vmem:[%s6246 + $0x38] sm:$0xff]
    %v6255 = vld [vmem:[%s6246 + $0x40] sm:$0xff]
    %v6256 = vld [vmem:[%s6246 + $0x48] sm:$0xff]
    %v6257 = vld [vmem:[%s6246 + $0x50] sm:$0xff]
    %v6258 = vld [vmem:[%s6246 + $0x58] sm:$0xff]
    %v6259 = vld [vmem:[%s6246 + $0x60] sm:$0xff]
    %v6260 = vld [vmem:[%s6246 + $0x68] sm:$0xff]
    %v6261 = vld [vmem:[%s6246 + $0x70] sm:$0xff]
    %v6262 = vld [vmem:[%s6246 + $0x78] sm:$0xff]
    %v6263 = vld [vmem:[%s6246 + $0x80] sm:$0xff]
    %v6264 = vld [vmem:[%s6246 + $0x88] sm:$0xff]
    %v6265 = vld [vmem:[%s6246 + $0x90] sm:$0xff]
    %v6266 = vld [vmem:[%s6246 + $0x98] sm:$0xff]
    %v6267 = vld [vmem:[%s6246 + $0xa0] sm:$0xff]
    %v6268 = vld [vmem:[%s6246 + $0xa8] sm:$0xff]
    %v6269 = vld [vmem:[%s6246 + $0xb0] sm:$0xff]
    %v6270 = vld [vmem:[%s6246 + $0xb8] sm:$0xff]
    %v6271 = vld [vmem:[%s6246 + $0xc0] sm:$0xff]
    %v6272 = vld [vmem:[%s6246 + $0xc8] sm:$0xff]
    %v6273 = vld [vmem:[%s6246 + $0xd0] sm:$0xff]
    %v6274 = vld [vmem:[%s6246 + $0xd8] sm:$0xff]
    %v6275 = vld [vmem:[%s6246 + $0xe0] sm:$0xff]
    %v6276 = vld [vmem:[%s6246 + $0xe8] sm:$0xff]
    %v6277 = vld [vmem:[%s6246 + $0xf0] sm:$0xff]
    %v6278 = vld [vmem:[%s6246 + $0xf8] sm:$0xff]
    %v6279 = vld [vmem:[%s6246 + $0x100] sm:$0xff]
    %v6280 = vld [vmem:[%s6246 + $0x108] sm:$0xff]
    %v6281 = vld [vmem:[%s6246 + $0x110] sm:$0xff]
    %v6282 = vld [vmem:[%s6246 + $0x118] sm:$0xff]
    %v6283 = vld [vmem:[%s6246 + $0x120] sm:$0xff]
    %v6284 = vld [vmem:[%s6246 + $0x128] sm:$0xff]
    %v6285 = vld [vmem:[%s6246 + $0x130] sm:$0xff]
    %v6286 = vld [vmem:[%s6246 + $0x138] sm:$0xff]
    %v6287 = vld [vmem:[%s6246 + $0x140] sm:$0xff]
    %v6288 = vld [vmem:[%s6246 + $0x148] sm:$0xff]
    %v6289 = vld [vmem:[%s6246 + $0x150] sm:$0xff]
    %v6290 = vld [vmem:[%s6246 + $0x158] sm:$0xff]
    %v6291 = vld [vmem:[%s6246 + $0x160] sm:$0xff]
    %v6292 = vld [vmem:[%s6246 + $0x168] sm:$0xff]
    %v6293 = vld [vmem:[%s6246 + $0x170] sm:$0xff]
    %v6294 = vld [vmem:[%s6246 + $0x178] sm:$0xff]
    %v6295 = vld [vmem:[%s6246 + $0x180] sm:$0xff]
    %v6296 = vld [vmem:[%s6246 + $0x188] sm:$0xff]
    %v6297 = vld [vmem:[%s6246 + $0x190] sm:$0xff]
    %v6298 = vld [vmem:[%s6246 + $0x198] sm:$0xff]
    %v6299 = vld [vmem:[%s6246 + $0x1a0] sm:$0xff]
    %v6300 = vld [vmem:[%s6246 + $0x1a8] sm:$0xff]
    %v6301 = vld [vmem:[%s6246 + $0x1b0] sm:$0xff]
    %v6302 = vld [vmem:[%s6246 + $0x1b8] sm:$0xff]
    %v6303 = vld [vmem:[%s6246 + $0x1c0] sm:$0xff]
    %v6304 = vld [vmem:[%s6246 + $0x1c8] sm:$0xff]
    %v6305 = vld [vmem:[%s6246 + $0x1d0] sm:$0xff]
    %v6306 = vld [vmem:[%s6246 + $0x1d8] sm:$0xff]
    %v6307 = vld [vmem:[%s6246 + $0x1e0] sm:$0xff]
    %v6308 = vld [vmem:[%s6246 + $0x1e8] sm:$0xff]
    %v6309 = vld [vmem:[%s6246 + $0x1f0] sm:$0xff]
    %v6310 = vld [vmem:[%s6246 + $0x1f8] sm:$0xff]
    %v6311 = vld [vmem:[%s6246 + $0x200] sm:$0xff]
    %v6312 = vld [vmem:[%s6246 + $0x208] sm:$0xff]
    %v6313 = vld [vmem:[%s6246 + $0x210] sm:$0xff]
    %v6314 = vld [vmem:[%s6246 + $0x218] sm:$0xff]
    %v6315 = vld [vmem:[%s6246 + $0x220] sm:$0xff]
    %v6316 = vld [vmem:[%s6246 + $0x228] sm:$0xff]
    %v6317 = vld [vmem:[%s6246 + $0x230] sm:$0xff]
    %v6318 = vld [vmem:[%s6246 + $0x238] sm:$0xff]
    %v6319 = vld [vmem:[%s6246 + $0x240] sm:$0xff]
    %v6320 = vld [vmem:[%s6246 + $0x248] sm:$0xff]
    %v6321 = vld [vmem:[%s6246 + $0x250] sm:$0xff]
    %v6322 = vld [vmem:[%s6246 + $0x258] sm:$0xff]
    %v6323 = vld [vmem:[%s6246 + $0x260] sm:$0xff]
    %v6324 = vld [vmem:[%s6246 + $0x268] sm:$0xff]
    %v6325 = vld [vmem:[%s6246 + $0x270] sm:$0xff]
    %v6326 = vld [vmem:[%s6246 + $0x278] sm:$0xff]
    %v6327 = vld [vmem:[%s6246 + $0x280] sm:$0xff]
    %v6328 = vld [vmem:[%s6246 + $0x288] sm:$0xff]
    %v6329 = vld [vmem:[%s6246 + $0x290] sm:$0xff]
    %v6330 = vld [vmem:[%s6246 + $0x298] sm:$0xff]
    %v6331 = vld [vmem:[%s6246 + $0x2a0] sm:$0xff]
    %v6332 = vld [vmem:[%s6246 + $0x2a8] sm:$0xff]
    %v6333 = vld [vmem:[%s6246 + $0x2b0] sm:$0xff]
    %v6334 = vld [vmem:[%s6246 + $0x2b8] sm:$0xff]
    %v6335 = vld [vmem:[%s6246 + $0x2c0] sm:$0xff]
    %v6336 = vld [vmem:[%s6246 + $0x2c8] sm:$0xff]
    %v6337 = vld [vmem:[%s6246 + $0x2d0] sm:$0xff]
    %v6338 = vld [vmem:[%s6246 + $0x2d8] sm:$0xff]
    %v6339 = vld [vmem:[%s6246 + $0x2e0] sm:$0xff]
    %v6340 = vld [vmem:[%s6246 + $0x2e8] sm:$0xff]
    %v6341 = vld [vmem:[%s6246 + $0x2f0] sm:$0xff]
    %v6342 = vld [vmem:[%s6246 + $0x2f8] sm:$0xff]
    %v6343 = vld [vmem:[%s6246 + $0x300] sm:$0xff]
    %v6344 = vld [vmem:[%s6246 + $0x308] sm:$0xff]
    %v6345 = vld [vmem:[%s6246 + $0x310] sm:$0xff]
    %v6346 = vld [vmem:[%s6246 + $0x318] sm:$0xff]
    %v6347 = vld [vmem:[%s6246 + $0x320] sm:$0xff]
    %v6348 = vld [vmem:[%s6246 + $0x328] sm:$0xff]
    %v6349 = vld [vmem:[%s6246 + $0x330] sm:$0xff]
    %v6350 = vld [vmem:[%s6246 + $0x338] sm:$0xff]
    %v6351 = vld [vmem:[%s6246 + $0x340] sm:$0xff]
    %v6352 = vld [vmem:[%s6246 + $0x348] sm:$0xff]
    %v6353 = vld [vmem:[%s6246 + $0x350] sm:$0xff]
    %v6354 = vld [vmem:[%s6246 + $0x358] sm:$0xff]
    %v6355 = vld [vmem:[%s6246 + $0x360] sm:$0xff]
    %v6356 = vld [vmem:[%s6246 + $0x368] sm:$0xff]
    %v6357 = vld [vmem:[%s6246 + $0x370] sm:$0xff]
    %v6358 = vld [vmem:[%s6246 + $0x378] sm:$0xff]
    %v6359 = vld [vmem:[%s6246 + $0x380] sm:$0xff]
    %v6360 = vld [vmem:[%s6246 + $0x388] sm:$0xff]
    %v6361 = vld [vmem:[%s6246 + $0x390] sm:$0xff]
    %v6362 = vld [vmem:[%s6246 + $0x398] sm:$0xff]
    %v6363 = vld [vmem:[%s6246 + $0x3a0] sm:$0xff]
    %v6364 = vld [vmem:[%s6246 + $0x3a8] sm:$0xff]
    %v6365 = vld [vmem:[%s6246 + $0x3b0] sm:$0xff]
    %v6366 = vld [vmem:[%s6246 + $0x3b8] sm:$0xff]
    %v6367 = vld [vmem:[%s6246 + $0x3c0] sm:$0xff]
    %v6368 = vld [vmem:[%s6246 + $0x3c8] sm:$0xff]
    %v6369 = vld [vmem:[%s6246 + $0x3d0] sm:$0xff]
    %v6370 = vld [vmem:[%s6246 + $0x3d8] sm:$0xff]
    %v6371 = vld [vmem:[%s6246 + $0x3e0] sm:$0xff]
    %v6372 = vld [vmem:[%s6246 + $0x3e8] sm:$0xff]
    %v6373 = vld [vmem:[%s6246 + $0x3f0] sm:$0xff]
    %v6374 = vld [vmem:[%s6246 + $0x3f8] sm:$0xff]
    %v6375 = vld [vmem:[%s6246 + $0x400] sm:$0xff]
    %v6376 = vld [vmem:[%s6246 + $0x408] sm:$0xff]
    %v6377 = vld [vmem:[%s6246 + $0x410] sm:$0xff]
    %v6378 = vld [vmem:[%s6246 + $0x418] sm:$0xff]
    %v6379 = vld [vmem:[%s6246 + $0x420] sm:$0xff]
    %v6380 = vld [vmem:[%s6246 + $0x428] sm:$0xff]
    %v6381 = vld [vmem:[%s6246 + $0x430] sm:$0xff]
    %v6382 = vld [vmem:[%s6246 + $0x438] sm:$0xff]
    %v6383 = vld [vmem:[%s6246 + $0x440] sm:$0xff]
    %v6384 = vld [vmem:[%s6246 + $0x448] sm:$0xff]
    %v6385 = vld [vmem:[%s6246 + $0x450] sm:$0xff]
    %v6386 = vld [vmem:[%s6246 + $0x458] sm:$0xff]
    %v6387 = vld [vmem:[%s6246 + $0x460] sm:$0xff]
    %v6388 = vld [vmem:[%s6246 + $0x468] sm:$0xff]
    %v6389 = vld [vmem:[%s6246 + $0x470] sm:$0xff]
    %v6390 = vld [vmem:[%s6246 + $0x478] sm:$0xff]
    %v6391 = vld [vmem:[%s6246 + $0x480] sm:$0xff]
    %v6392 = vld [vmem:[%s6246 + $0x488] sm:$0xff]
    %v6393 = vld [vmem:[%s6246 + $0x490] sm:$0xff]
    %v6394 = vld [vmem:[%s6246 + $0x498] sm:$0xff]
    %v6395 = vld [vmem:[%s6246 + $0x4a0] sm:$0xff]
    %v6396 = vld [vmem:[%s6246 + $0x4a8] sm:$0xff]
    %v6397 = vld [vmem:[%s6246 + $0x4b0] sm:$0xff]
    %v6398 = vld [vmem:[%s6246 + $0x4b8] sm:$0xff]
    %v6399 = vld [vmem:[%s6246 + $0x4c0] sm:$0xff]
    %v6400 = vld [vmem:[%s6246 + $0x4c8] sm:$0xff]
    %v6401 = vld [vmem:[%s6246 + $0x4d0] sm:$0xff]
    %v6402 = vld [vmem:[%s6246 + $0x4d8] sm:$0xff]
    %v6403 = vld [vmem:[%s6246 + $0x4e0] sm:$0xff]
    %v6404 = vld [vmem:[%s6246 + $0x4e8] sm:$0xff]
    %v6405 = vld [vmem:[%s6246 + $0x4f0] sm:$0xff]
    %v6406 = vld [vmem:[%s6246 + $0x4f8] sm:$0xff]
    %v6407 = vld [vmem:[%s6246 + $0x500] sm:$0xff]
    %v6408 = vld [vmem:[%s6246 + $0x508] sm:$0xff]
    %v6409 = vld [vmem:[%s6246 + $0x510] sm:$0xff]
    %v6410 = vld [vmem:[%s6246 + $0x518] sm:$0xff]
    %v6411 = vld [vmem:[%s6246 + $0x520] sm:$0xff]
    %v6412 = vld [vmem:[%s6246 + $0x528] sm:$0xff]
    %v6413 = vld [vmem:[%s6246 + $0x530] sm:$0xff]
    %v6414 = vld [vmem:[%s6246 + $0x538] sm:$0xff]
    %v6415 = vld [vmem:[%s6246 + $0x540] sm:$0xff]
    %v6416 = vld [vmem:[%s6246 + $0x548] sm:$0xff]
    %v6417 = vld [vmem:[%s6246 + $0x550] sm:$0xff]
    %v6418 = vld [vmem:[%s6246 + $0x558] sm:$0xff]
    %v6419 = vld [vmem:[%s6246 + $0x560] sm:$0xff]
    %v6420 = vld [vmem:[%s6246 + $0x568] sm:$0xff]
    %v6421 = vld [vmem:[%s6246 + $0x570] sm:$0xff]
    %v6422 = vld [vmem:[%s6246 + $0x578] sm:$0xff]
    %v6423 = vld [vmem:[%s6246 + $0x580] sm:$0xff]
    %v6424 = vld [vmem:[%s6246 + $0x588] sm:$0xff]
    %v6425 = vld [vmem:[%s6246 + $0x590] sm:$0xff]
    %v6426 = vld [vmem:[%s6246 + $0x598] sm:$0xff]
    %v6427 = vld [vmem:[%s6246 + $0x5a0] sm:$0xff]
    %v6428 = vld [vmem:[%s6246 + $0x5a8] sm:$0xff]
    %v6429 = vld [vmem:[%s6246 + $0x5b0] sm:$0xff]
    %v6430 = vld [vmem:[%s6246 + $0x5b8] sm:$0xff]
    %v6431 = vld [vmem:[%s6246 + $0x5c0] sm:$0xff]
    %v6432 = vld [vmem:[%s6246 + $0x5c8] sm:$0xff]
    %v6433 = vld [vmem:[%s6246 + $0x5d0] sm:$0xff]
    %v6434 = vld [vmem:[%s6246 + $0x5d8] sm:$0xff]
    %v6435 = vld [vmem:[%s6246 + $0x5e0] sm:$0xff]
    %v6436 = vld [vmem:[%s6246 + $0x5e8] sm:$0xff]
    %v6437 = vld [vmem:[%s6246 + $0x5f0] sm:$0xff]
    %v6438 = vld [vmem:[%s6246 + $0x5f8] sm:$0xff]
    %v6439 = vld [vmem:[%s6246 + $0x600] sm:$0xff]
    %v6440 = vld [vmem:[%s6246 + $0x608] sm:$0xff]
    %v6441 = vld [vmem:[%s6246 + $0x610] sm:$0xff]
    %v6442 = vld [vmem:[%s6246 + $0x618] sm:$0xff]
    %v6443 = vld [vmem:[%s6246 + $0x620] sm:$0xff]
    %v6444 = vld [vmem:[%s6246 + $0x628] sm:$0xff]
    %v6445 = vld [vmem:[%s6246 + $0x630] sm:$0xff]
    %v6446 = vld [vmem:[%s6246 + $0x638] sm:$0xff]
    %v6447 = vld [vmem:[%s6246 + $0x640] sm:$0xff]
    %v6448 = vld [vmem:[%s6246 + $0x648] sm:$0xff]
    %v6449 = vld [vmem:[%s6246 + $0x650] sm:$0xff]
    %v6450 = vld [vmem:[%s6246 + $0x658] sm:$0xff]
    %v6451 = vld [vmem:[%s6246 + $0x660] sm:$0xff]
    %v6452 = vld [vmem:[%s6246 + $0x668] sm:$0xff]
    %v6453 = vld [vmem:[%s6246 + $0x670] sm:$0xff]
    %v6454 = vld [vmem:[%s6246 + $0x678] sm:$0xff]
    %v6455 = vld [vmem:[%s6246 + $0x680] sm:$0xff]
    %v6456 = vld [vmem:[%s6246 + $0x688] sm:$0xff]
    %v6457 = vld [vmem:[%s6246 + $0x690] sm:$0xff]
    %v6458 = vld [vmem:[%s6246 + $0x698] sm:$0xff]
    %v6459 = vld [vmem:[%s6246 + $0x6a0] sm:$0xff]
    %v6460 = vld [vmem:[%s6246 + $0x6a8] sm:$0xff]
    %v6461 = vld [vmem:[%s6246 + $0x6b0] sm:$0xff]
    %v6462 = vld [vmem:[%s6246 + $0x6b8] sm:$0xff]
    %v6463 = vld [vmem:[%s6246 + $0x6c0] sm:$0xff]
    %v6464 = vld [vmem:[%s6246 + $0x6c8] sm:$0xff]
    %v6465 = vld [vmem:[%s6246 + $0x6d0] sm:$0xff]
    %v6466 = vld [vmem:[%s6246 + $0x6d8] sm:$0xff]
    %v6467 = vld [vmem:[%s6246 + $0x6e0] sm:$0xff]
    %v6468 = vld [vmem:[%s6246 + $0x6e8] sm:$0xff]
    %v6469 = vld [vmem:[%s6246 + $0x6f0] sm:$0xff]
    %v6470 = vld [vmem:[%s6246 + $0x6f8] sm:$0xff]
    %v6471 = vld [vmem:[%s6246 + $0x700] sm:$0xff]
    %v6472 = vld [vmem:[%s6246 + $0x708] sm:$0xff]
    %v6473 = vld [vmem:[%s6246 + $0x710] sm:$0xff]
    %v6474 = vld [vmem:[%s6246 + $0x718] sm:$0xff]
    %v6475 = vld [vmem:[%s6246 + $0x720] sm:$0xff]
    %v6476 = vld [vmem:[%s6246 + $0x728] sm:$0xff]
    %v6477 = vld [vmem:[%s6246 + $0x730] sm:$0xff]
    %v6478 = vld [vmem:[%s6246 + $0x738] sm:$0xff]
    %v6479 = vld [vmem:[%s6246 + $0x740] sm:$0xff]
    %v6480 = vld [vmem:[%s6246 + $0x748] sm:$0xff]
    %v6481 = vld [vmem:[%s6246 + $0x750] sm:$0xff]
    %v6482 = vld [vmem:[%s6246 + $0x758] sm:$0xff]
    %v6483 = vld [vmem:[%s6246 + $0x760] sm:$0xff]
    %v6484 = vld [vmem:[%s6246 + $0x768] sm:$0xff]
    %v6485 = vld [vmem:[%s6246 + $0x770] sm:$0xff]
    %v6486 = vld [vmem:[%s6246 + $0x778] sm:$0xff]
    %v6487 = vld [vmem:[%s6246 + $0x780] sm:$0xff]
    %v6488 = vld [vmem:[%s6246 + $0x788] sm:$0xff]
    %v6489 = vld [vmem:[%s6246 + $0x790] sm:$0xff]
    %v6490 = vld [vmem:[%s6246 + $0x798] sm:$0xff]
    %v6491 = vld [vmem:[%s6246 + $0x7a0] sm:$0xff]
    %v6492 = vld [vmem:[%s6246 + $0x7a8] sm:$0xff]
    %v6493 = vld [vmem:[%s6246 + $0x7b0] sm:$0xff]
    %v6494 = vld [vmem:[%s6246 + $0x7b8] sm:$0xff]
    %v6495 = vld [vmem:[%s6246 + $0x7c0] sm:$0xff]
    %v6496 = vld [vmem:[%s6246 + $0x7c8] sm:$0xff]
    %v6497 = vld [vmem:[%s6246 + $0x7d0] sm:$0xff]
    %v6498 = vld [vmem:[%s6246 + $0x7d8] sm:$0xff]
    %v6499 = vld [vmem:[%s6246 + $0x7e0] sm:$0xff]
    %v6500 = vld [vmem:[%s6246 + $0x7e8] sm:$0xff]
    %v6501 = vld [vmem:[%s6246 + $0x7f0] sm:$0xff]
    %v6502 = vld [vmem:[%s6246 + $0x7f8] sm:$0xff]
    %v6503 = vld [vmem:[%s6246 + $0x800] sm:$0xff]
    %v6504 = vld [vmem:[%s6246 + $0x808] sm:$0xff]
    %v6505 = vld [vmem:[%s6246 + $0x810] sm:$0xff]
    %v6506 = vld [vmem:[%s6246 + $0x818] sm:$0xff]
    %v6507 = vld [vmem:[%s6246 + $0x820] sm:$0xff]
    %v6508 = vld [vmem:[%s6246 + $0x828] sm:$0xff]
    %v6509 = vld [vmem:[%s6246 + $0x830] sm:$0xff]
    %v6510 = vld [vmem:[%s6246 + $0x838] sm:$0xff]
    %v6511 = vld [vmem:[%s6246 + $0x840] sm:$0xff]
    %v6512 = vld [vmem:[%s6246 + $0x848] sm:$0xff]
    %v6513 = vld [vmem:[%s6246 + $0x850] sm:$0xff]
    %v6514 = vld [vmem:[%s6246 + $0x858] sm:$0xff]
    %v6515 = vld [vmem:[%s6246 + $0x860] sm:$0xff]
    %v6516 = vld [vmem:[%s6246 + $0x868] sm:$0xff]
    %v6517 = vld [vmem:[%s6246 + $0x870] sm:$0xff]
    %v6518 = vld [vmem:[%s6246 + $0x878] sm:$0xff]
    %v6519 = vld [vmem:[%s6246 + $0x880] sm:$0xff]
    %v6520 = vld [vmem:[%s6246 + $0x888] sm:$0xff]
    %v6521 = vld [vmem:[%s6246 + $0x890] sm:$0xff]
    %v6522 = vld [vmem:[%s6246 + $0x898] sm:$0xff]
    %v6523 = vld [vmem:[%s6246 + $0x8a0] sm:$0xff]
    %v6524 = vld [vmem:[%s6246 + $0x8a8] sm:$0xff]
    %v6525 = vld [vmem:[%s6246 + $0x8b0] sm:$0xff]
    %v6526 = vld [vmem:[%s6246 + $0x8b8] sm:$0xff]
    %v6527 = vld [vmem:[%s6246 + $0x8c0] sm:$0xff]
    %v6528 = vld [vmem:[%s6246 + $0x8c8] sm:$0xff]
    %v6529 = vld [vmem:[%s6246 + $0x8d0] sm:$0xff]
    %v6530 = vld [vmem:[%s6246 + $0x8d8] sm:$0xff]
    %v6531 = vld [vmem:[%s6246 + $0x8e0] sm:$0xff]
    %v6532 = vld [vmem:[%s6246 + $0x8e8] sm:$0xff]
    %v6533 = vld [vmem:[%s6246 + $0x8f0] sm:$0xff]
    %v6534 = vld [vmem:[%s6246 + $0x8f8] sm:$0xff]
    %v6535 = vld [vmem:[%s6246 + $0x900] sm:$0xff]
    %v6536 = vld [vmem:[%s6246 + $0x908] sm:$0xff]
    %v6537 = vld [vmem:[%s6246 + $0x910] sm:$0xff]
    %v6538 = vld [vmem:[%s6246 + $0x918] sm:$0xff]
    %v6539 = vld [vmem:[%s6246 + $0x920] sm:$0xff]
    %v6540 = vld [vmem:[%s6246 + $0x928] sm:$0xff]
    %v6541 = vld [vmem:[%s6246 + $0x930] sm:$0xff]
    %v6542 = vld [vmem:[%s6246 + $0x938] sm:$0xff]
    %v6543 = vld [vmem:[%s6246 + $0x940] sm:$0xff]
    %v6544 = vld [vmem:[%s6246 + $0x948] sm:$0xff]
    %v6545 = vld [vmem:[%s6246 + $0x950] sm:$0xff]
    %v6546 = vld [vmem:[%s6246 + $0x958] sm:$0xff]
    %v6547 = vld [vmem:[%s6246 + $0x960] sm:$0xff]
    %v6548 = vld [vmem:[%s6246 + $0x968] sm:$0xff]
    %v6549 = vld [vmem:[%s6246 + $0x970] sm:$0xff]
    %v6550 = vld [vmem:[%s6246 + $0x978] sm:$0xff]
    %v6551 = vld [vmem:[%s6246 + $0x980] sm:$0xff]
    %v6552 = vld [vmem:[%s6246 + $0x988] sm:$0xff]
    %v6553 = vld [vmem:[%s6246 + $0x990] sm:$0xff]
    %v6554 = vld [vmem:[%s6246 + $0x998] sm:$0xff]
    %v6555 = vld [vmem:[%s6246 + $0x9a0] sm:$0xff]
    %v6556 = vld [vmem:[%s6246 + $0x9a8] sm:$0xff]
    %v6557 = vld [vmem:[%s6246 + $0x9b0] sm:$0xff]
    %v6558 = vld [vmem:[%s6246 + $0x9b8] sm:$0xff]
    %v6559 = vld [vmem:[%s6246 + $0x9c0] sm:$0xff]
    %v6560 = vld [vmem:[%s6246 + $0x9c8] sm:$0xff]
    %v6561 = vld [vmem:[%s6246 + $0x9d0] sm:$0xff]
    %v6562 = vld [vmem:[%s6246 + $0x9d8] sm:$0xff]
    %v6563 = vld [vmem:[%s6246 + $0x9e0] sm:$0xff]
    %v6564 = vld [vmem:[%s6246 + $0x9e8] sm:$0xff]
    %v6565 = vld [vmem:[%s6246 + $0x9f0] sm:$0xff]
    %v6566 = vld [vmem:[%s6246 + $0x9f8] sm:$0xff]
    %v6567 = vld [vmem:[%s6246 + $0xa00] sm:$0xff]
    %v6568 = vld [vmem:[%s6246 + $0xa08] sm:$0xff]
    %v6569 = vld [vmem:[%s6246 + $0xa10] sm:$0xff]
    %v6570 = vld [vmem:[%s6246 + $0xa18] sm:$0xff]
    %v6571 = vld [vmem:[%s6246 + $0xa20] sm:$0xff]
    %v6572 = vld [vmem:[%s6246 + $0xa28] sm:$0xff]
    %v6573 = vld [vmem:[%s6246 + $0xa30] sm:$0xff]
    %v6574 = vld [vmem:[%s6246 + $0xa38] sm:$0xff]
    %v6575 = vld [vmem:[%s6246 + $0xa40] sm:$0xff]
    %v6576 = vld [vmem:[%s6246 + $0xa48] sm:$0xff]
    %v6577 = vld [vmem:[%s6246 + $0xa50] sm:$0xff]
    %v6578 = vld [vmem:[%s6246 + $0xa58] sm:$0xff]
    %v6579 = vld [vmem:[%s6246 + $0xa60] sm:$0xff]
    %v6580 = vld [vmem:[%s6246 + $0xa68] sm:$0xff]
    %v6581 = vld [vmem:[%s6246 + $0xa70] sm:$0xff]
    %v6582 = vld [vmem:[%s6246 + $0xa78] sm:$0xff]
    %v6583 = vld [vmem:[%s6246 + $0xa80] sm:$0xff]
    %v6584 = vld [vmem:[%s6246 + $0xa88] sm:$0xff]
    %v6585 = vld [vmem:[%s6246 + $0xa90] sm:$0xff]
    %v6586 = vld [vmem:[%s6246 + $0xa98] sm:$0xff]
    %v6587 = vld [vmem:[%s6246 + $0xaa0] sm:$0xff]
    %v6588 = vld [vmem:[%s6246 + $0xaa8] sm:$0xff]
    %v6589 = vld [vmem:[%s6246 + $0xab0] sm:$0xff]
    %v6590 = vld [vmem:[%s6246 + $0xab8] sm:$0xff]
    %v6591 = vld [vmem:[%s6246 + $0xac0] sm:$0xff]
    %v6592 = vld [vmem:[%s6246 + $0xac8] sm:$0xff]
    %v6593 = vld [vmem:[%s6246 + $0xad0] sm:$0xff]
    %v6594 = vld [vmem:[%s6246 + $0xad8] sm:$0xff]
    %v6595 = vld [vmem:[%s6246 + $0xae0] sm:$0xff]
    %v6596 = vld [vmem:[%s6246 + $0xae8] sm:$0xff]
    %v6597 = vld [vmem:[%s6246 + $0xaf0] sm:$0xff]
    %v6598 = vld [vmem:[%s6246 + $0xaf8] sm:$0xff]
    %v6599 = vld [vmem:[%s6246 + $0xb00] sm:$0xff]
    %v6600 = vld [vmem:[%s6246 + $0xb08] sm:$0xff]
    %v6601 = vld [vmem:[%s6246 + $0xb10] sm:$0xff]
    %v6602 = vld [vmem:[%s6246 + $0xb18] sm:$0xff]
    %v6603 = vld [vmem:[%s6246 + $0xb20] sm:$0xff]
    %v6604 = vld [vmem:[%s6246 + $0xb28] sm:$0xff]
    %v6605 = vld [vmem:[%s6246 + $0xb30] sm:$0xff]
    %v6606 = vld [vmem:[%s6246 + $0xb38] sm:$0xff]
    %v6607 = vld [vmem:[%s6246 + $0xb40] sm:$0xff]
    %v6608 = vld [vmem:[%s6246 + $0xb48] sm:$0xff]
    %v6609 = vld [vmem:[%s6246 + $0xb50] sm:$0xff]
    %v6610 = vld [vmem:[%s6246 + $0xb58] sm:$0xff]
    %v6611 = vld [vmem:[%s6246 + $0xb60] sm:$0xff]
    %v6612 = vld [vmem:[%s6246 + $0xb68] sm:$0xff]
    %v6613 = vld [vmem:[%s6246 + $0xb70] sm:$0xff]
    %v6614 = vld [vmem:[%s6246 + $0xb78] sm:$0xff]
    %v6615 = vld [vmem:[%s6246 + $0xb80] sm:$0xff]
    %v6616 = vld [vmem:[%s6246 + $0xb88] sm:$0xff]
    %v6617 = vld [vmem:[%s6246 + $0xb90] sm:$0xff]
    %v6618 = vld [vmem:[%s6246 + $0xb98] sm:$0xff]
    %v6619 = vld [vmem:[%s6246 + $0xba0] sm:$0xff]
    %v6620 = vld [vmem:[%s6246 + $0xba8] sm:$0xff]
    %v6621 = vld [vmem:[%s6246 + $0xbb0] sm:$0xff]
    %v6622 = vld [vmem:[%s6246 + $0xbb8] sm:$0xff]
    %v6623 = vld [vmem:[%s6246 + $0xbc0] sm:$0xff]
    %v6624 = vld [vmem:[%s6246 + $0xbc8] sm:$0xff]
    %v6625 = vld [vmem:[%s6246 + $0xbd0] sm:$0xff]
    %v6626 = vld [vmem:[%s6246 + $0xbd8] sm:$0xff]
    %v6627 = vld [vmem:[%s6246 + $0xbe0] sm:$0xff]
    %v6628 = vld [vmem:[%s6246 + $0xbe8] sm:$0xff]
    %v6629 = vld [vmem:[%s6246 + $0xbf0] sm:$0xff]
    %v6630 = vld [vmem:[%s6246 + $0xbf8] sm:$0xff]
    %v6631 = vld [vmem:[%s6246 + $0xc00] sm:$0xff]
    %v6632 = vld [vmem:[%s6246 + $0xc08] sm:$0xff]
    %v6633 = vld [vmem:[%s6246 + $0xc10] sm:$0xff]
    %v6634 = vld [vmem:[%s6246 + $0xc18] sm:$0xff]
    %v6635 = vld [vmem:[%s6246 + $0xc20] sm:$0xff]
    %v6636 = vld [vmem:[%s6246 + $0xc28] sm:$0xff]
    %v6637 = vld [vmem:[%s6246 + $0xc30] sm:$0xff]
    %v6638 = vld [vmem:[%s6246 + $0xc38] sm:$0xff]
    %v6639 = vld [vmem:[%s6246 + $0xc40] sm:$0xff]
    %v6640 = vld [vmem:[%s6246 + $0xc48] sm:$0xff]
    %v6641 = vld [vmem:[%s6246 + $0xc50] sm:$0xff]
    %v6642 = vld [vmem:[%s6246 + $0xc58] sm:$0xff]
    %v6643 = vld [vmem:[%s6246 + $0xc60] sm:$0xff]
    %v6644 = vld [vmem:[%s6246 + $0xc68] sm:$0xff]
    %v6645 = vld [vmem:[%s6246 + $0xc70] sm:$0xff]
    %v6646 = vld [vmem:[%s6246 + $0xc78] sm:$0xff]
    %v6647 = vld [vmem:[%s6246 + $0xc80] sm:$0xff]
    %v6648 = vld [vmem:[%s6246 + $0xc88] sm:$0xff]
    %v6649 = vld [vmem:[%s6246 + $0xc90] sm:$0xff]
    %v6650 = vld [vmem:[%s6246 + $0xc98] sm:$0xff]
    %v6651 = vld [vmem:[%s6246 + $0xca0] sm:$0xff]
    %v6652 = vld [vmem:[%s6246 + $0xca8] sm:$0xff]
    %v6653 = vld [vmem:[%s6246 + $0xcb0] sm:$0xff]
    %v6654 = vld [vmem:[%s6246 + $0xcb8] sm:$0xff]
    %v6655 = vld [vmem:[%s6246 + $0xcc0] sm:$0xff]
    %v6656 = vld [vmem:[%s6246 + $0xcc8] sm:$0xff]
    %v6657 = vld [vmem:[%s6246 + $0xcd0] sm:$0xff]
    %v6658 = vld [vmem:[%s6246 + $0xcd8] sm:$0xff]
    %v6659 = vld [vmem:[%s6246 + $0xce0] sm:$0xff]
    %v6660 = vld [vmem:[%s6246 + $0xce8] sm:$0xff]
    %v6661 = vld [vmem:[%s6246 + $0xcf0] sm:$0xff]
    %v6662 = vld [vmem:[%s6246 + $0xcf8] sm:$0xff]
    %v6663 = vld [vmem:[%s6246 + $0xd00] sm:$0xff]
    %v6664 = vld [vmem:[%s6246 + $0xd08] sm:$0xff]
    %v6665 = vld [vmem:[%s6246 + $0xd10] sm:$0xff]
    %v6666 = vld [vmem:[%s6246 + $0xd18] sm:$0xff]
    %v6667 = vld [vmem:[%s6246 + $0xd20] sm:$0xff]
    %v6668 = vld [vmem:[%s6246 + $0xd28] sm:$0xff]
    %v6669 = vld [vmem:[%s6246 + $0xd30] sm:$0xff]
    %v6670 = vld [vmem:[%s6246 + $0xd38] sm:$0xff]
    %v6671 = vld [vmem:[%s6246 + $0xd40] sm:$0xff]
    %v6672 = vld [vmem:[%s6246 + $0xd48] sm:$0xff]
    %v6673 = vld [vmem:[%s6246 + $0xd50] sm:$0xff]
    %v6674 = vld [vmem:[%s6246 + $0xd58] sm:$0xff]
    %v6675 = vld [vmem:[%s6246 + $0xd60] sm:$0xff]
    %v6676 = vld [vmem:[%s6246 + $0xd68] sm:$0xff]
    %v6677 = vld [vmem:[%s6246 + $0xd70] sm:$0xff]
    %v6678 = vld [vmem:[%s6246 + $0xd78] sm:$0xff]
    %v6679 = vld [vmem:[%s6246 + $0xd80] sm:$0xff]
    %v6680 = vld [vmem:[%s6246 + $0xd88] sm:$0xff]
    %v6681 = vld [vmem:[%s6246 + $0xd90] sm:$0xff]
    %v6682 = vld [vmem:[%s6246 + $0xd98] sm:$0xff]
    %v6683 = vld [vmem:[%s6246 + $0xda0] sm:$0xff]
    %v6684 = vld [vmem:[%s6246 + $0xda8] sm:$0xff]
    %v6685 = vld [vmem:[%s6246 + $0xdb0] sm:$0xff]
    %v6686 = vld [vmem:[%s6246 + $0xdb8] sm:$0xff]
    %v6687 = vld [vmem:[%s6246 + $0xdc0] sm:$0xff]
    %v6688 = vld [vmem:[%s6246 + $0xdc8] sm:$0xff]
    %v6689 = vld [vmem:[%s6246 + $0xdd0] sm:$0xff]
    %v6690 = vld [vmem:[%s6246 + $0xdd8] sm:$0xff]
    %v6691 = vld [vmem:[%s6246 + $0xde0] sm:$0xff]
    %v6692 = vld [vmem:[%s6246 + $0xde8] sm:$0xff]
    %v6693 = vld [vmem:[%s6246 + $0xdf0] sm:$0xff]
    %v6694 = vld [vmem:[%s6246 + $0xdf8] sm:$0xff]
    %v6695 = vld [vmem:[%s6246 + $0xe00] sm:$0xff]
    %v6696 = vld [vmem:[%s6246 + $0xe08] sm:$0xff]
    %v6697 = vld [vmem:[%s6246 + $0xe10] sm:$0xff]
    %v6698 = vld [vmem:[%s6246 + $0xe18] sm:$0xff]
    %v6699 = vld [vmem:[%s6246 + $0xe20] sm:$0xff]
    %v6700 = vld [vmem:[%s6246 + $0xe28] sm:$0xff]
    %v6701 = vld [vmem:[%s6246 + $0xe30] sm:$0xff]
    %v6702 = vld [vmem:[%s6246 + $0xe38] sm:$0xff]
    %v6703 = vld [vmem:[%s6246 + $0xe40] sm:$0xff]
    %v6704 = vld [vmem:[%s6246 + $0xe48] sm:$0xff]
    %v6705 = vld [vmem:[%s6246 + $0xe50] sm:$0xff]
    %v6706 = vld [vmem:[%s6246 + $0xe58] sm:$0xff]
    %v6707 = vld [vmem:[%s6246 + $0xe60] sm:$0xff]
    %v6708 = vld [vmem:[%s6246 + $0xe68] sm:$0xff]
    %v6709 = vld [vmem:[%s6246 + $0xe70] sm:$0xff]
    %v6710 = vld [vmem:[%s6246 + $0xe78] sm:$0xff]
    %v6711 = vld [vmem:[%s6246 + $0xe80] sm:$0xff]
    %v6712 = vld [vmem:[%s6246 + $0xe88] sm:$0xff]
    %v6713 = vld [vmem:[%s6246 + $0xe90] sm:$0xff]
    %v6714 = vld [vmem:[%s6246 + $0xe98] sm:$0xff]
    %v6715 = vld [vmem:[%s6246 + $0xea0] sm:$0xff]
    %v6716 = vld [vmem:[%s6246 + $0xea8] sm:$0xff]
    %v6717 = vld [vmem:[%s6246 + $0xeb0] sm:$0xff]
    %v6718 = vld [vmem:[%s6246 + $0xeb8] sm:$0xff]
    %v6719 = vld [vmem:[%s6246 + $0xec0] sm:$0xff]
    %v6720 = vld [vmem:[%s6246 + $0xec8] sm:$0xff]
    %v6721 = vld [vmem:[%s6246 + $0xed0] sm:$0xff]
    %v6722 = vld [vmem:[%s6246 + $0xed8] sm:$0xff]
    %v6723 = vld [vmem:[%s6246 + $0xee0] sm:$0xff]
    %v6724 = vld [vmem:[%s6246 + $0xee8] sm:$0xff]
    %v6725 = vld [vmem:[%s6246 + $0xef0] sm:$0xff]
    %v6726 = vld [vmem:[%s6246 + $0xef8] sm:$0xff]
    %v6727 = vld [vmem:[%s6246 + $0xf00] sm:$0xff]
    %v6728 = vld [vmem:[%s6246 + $0xf08] sm:$0xff]
    %v6729 = vld [vmem:[%s6246 + $0xf10] sm:$0xff]
    %v6730 = vld [vmem:[%s6246 + $0xf18] sm:$0xff]
    %v6731 = vld [vmem:[%s6246 + $0xf20] sm:$0xff]
    %v6732 = vld [vmem:[%s6246 + $0xf28] sm:$0xff]
    %v6733 = vld [vmem:[%s6246 + $0xf30] sm:$0xff]
    %v6734 = vld [vmem:[%s6246 + $0xf38] sm:$0xff]
    %v6735 = vld [vmem:[%s6246 + $0xf40] sm:$0xff]
    %v6736 = vld [vmem:[%s6246 + $0xf48] sm:$0xff]
    %v6737 = vld [vmem:[%s6246 + $0xf50] sm:$0xff]
    %v6738 = vld [vmem:[%s6246 + $0xf58] sm:$0xff]
    %v6739 = vld [vmem:[%s6246 + $0xf60] sm:$0xff]
    %v6740 = vld [vmem:[%s6246 + $0xf68] sm:$0xff]
    %v6741 = vld [vmem:[%s6246 + $0xf70] sm:$0xff]
    %v6742 = vld [vmem:[%s6246 + $0xf78] sm:$0xff]
    %v6743 = vld [vmem:[%s6246 + $0xf80] sm:$0xff]
    %v6744 = vld [vmem:[%s6246 + $0xf88] sm:$0xff]
    %v6745 = vld [vmem:[%s6246 + $0xf90] sm:$0xff]
    %v6746 = vld [vmem:[%s6246 + $0xf98] sm:$0xff]
    %v6747 = vld [vmem:[%s6246 + $0xfa0] sm:$0xff]
    %v6748 = vld [vmem:[%s6246 + $0xfa8] sm:$0xff]
    %v6749 = vld [vmem:[%s6246 + $0xfb0] sm:$0xff]
    %v6750 = vld [vmem:[%s6246 + $0xfb8] sm:$0xff]
    %v6751 = vld [vmem:[%s6246 + $0xfc0] sm:$0xff]
    %v6752 = vld [vmem:[%s6246 + $0xfc8] sm:$0xff]
    %v6753 = vld [vmem:[%s6246 + $0xfd0] sm:$0xff]
    %v6754 = vld [vmem:[%s6246 + $0xfd8] sm:$0xff]
    %v6755 = vld [vmem:[%s6246 + $0xfe0] sm:$0xff]
    %v6756 = vld [vmem:[%s6246 + $0xfe8] sm:$0xff]
    %v6757 = vld [vmem:[%s6246 + $0xff0] sm:$0xff]
    %v6758 = vld [vmem:[%s6246 + $0xff8] sm:$0xff]
    %v6759 = vld [vmem:[%s6246 + $0x1000] sm:$0xff]
    %v6760 = vld [vmem:[%s6246 + $0x1008] sm:$0xff]
    %v6761 = vld [vmem:[%s6246 + $0x1010] sm:$0xff]
    %v6762 = vld [vmem:[%s6246 + $0x1018] sm:$0xff]
    %v6763 = vld [vmem:[%s6246 + $0x1020] sm:$0xff]
    %v6764 = vld [vmem:[%s6246 + $0x1028] sm:$0xff]
    %v6765 = vld [vmem:[%s6246 + $0x1030] sm:$0xff]
    %v6766 = vld [vmem:[%s6246 + $0x1038] sm:$0xff]
    %v6767 = vld [vmem:[%s6246 + $0x1040] sm:$0xff]
    %v6768 = vld [vmem:[%s6246 + $0x1048] sm:$0xff]
    %v6769 = vld [vmem:[%s6246 + $0x1050] sm:$0xff]
    %v6770 = vld [vmem:[%s6246 + $0x1058] sm:$0xff]
    %v6771 = vld [vmem:[%s6246 + $0x1060] sm:$0xff]
    %v6772 = vld [vmem:[%s6246 + $0x1068] sm:$0xff]
    %v6773 = vld [vmem:[%s6246 + $0x1070] sm:$0xff]
    %v6774 = vld [vmem:[%s6246 + $0x1078] sm:$0xff]
    %v6775 = vld [vmem:[%s6246 + $0x1080] sm:$0xff]
    %v6776 = vld [vmem:[%s6246 + $0x1088] sm:$0xff]
    %v6777 = vld [vmem:[%s6246 + $0x1090] sm:$0xff]
    %v6778 = vld [vmem:[%s6246 + $0x1098] sm:$0xff]
    %v6779 = vld [vmem:[%s6246 + $0x10a0] sm:$0xff]
    %v6780 = vld [vmem:[%s6246 + $0x10a8] sm:$0xff]
    %v6781 = vld [vmem:[%s6246 + $0x10b0] sm:$0xff]
    %v6782 = vld [vmem:[%s6246 + $0x10b8] sm:$0xff]
    %v6783 = vld [vmem:[%s6246 + $0x10c0] sm:$0xff]
    %v6784 = vld [vmem:[%s6246 + $0x10c8] sm:$0xff]
    %v6785 = vld [vmem:[%s6246 + $0x10d0] sm:$0xff]
    %v6786 = vld [vmem:[%s6246 + $0x10d8] sm:$0xff]
    %v6787 = vld [vmem:[%s6246 + $0x10e0] sm:$0xff]
    %v6788 = vld [vmem:[%s6246 + $0x10e8] sm:$0xff]
    %v6789 = vld [vmem:[%s6246 + $0x10f0] sm:$0xff]
    %v6790 = vld [vmem:[%s6246 + $0x10f8] sm:$0xff]
    %v6791 = vld [vmem:[%s6246 + $0x1100] sm:$0xff]
    %v6792 = vld [vmem:[%s6246 + $0x1108] sm:$0xff]
    %v6793 = vld [vmem:[%s6246 + $0x1110] sm:$0xff]
    %v6794 = vld [vmem:[%s6246 + $0x1118] sm:$0xff]
    %v6795 = vld [vmem:[%s6246 + $0x1120] sm:$0xff]
    %v6796 = vld [vmem:[%s6246 + $0x1128] sm:$0xff]
    %v6797 = vld [vmem:[%s6246 + $0x1130] sm:$0xff]
    %v6798 = vld [vmem:[%s6246 + $0x1138] sm:$0xff]
    %v6799 = vld [vmem:[%s6246 + $0x1140] sm:$0xff]
    %v6800 = vld [vmem:[%s6246 + $0x1148] sm:$0xff]
    %v6801 = vld [vmem:[%s6246 + $0x1150] sm:$0xff]
    %v6802 = vld [vmem:[%s6246 + $0x1158] sm:$0xff]
    %v6803 = vld [vmem:[%s6246 + $0x1160] sm:$0xff]
    %v6804 = vld [vmem:[%s6246 + $0x1168] sm:$0xff]
    %v6805 = vld [vmem:[%s6246 + $0x1170] sm:$0xff]
    %v6806 = vld [vmem:[%s6246 + $0x1178] sm:$0xff]
    %v6807 = vld [vmem:[%s6246 + $0x1180] sm:$0xff]
    %v6808 = vld [vmem:[%s6246 + $0x1188] sm:$0xff]
    %v6809 = vld [vmem:[%s6246 + $0x1190] sm:$0xff]
    %v6810 = vld [vmem:[%s6246 + $0x1198] sm:$0xff]
    %v6811 = vld [vmem:[%s6246 + $0x11a0] sm:$0xff]
    %v6812 = vld [vmem:[%s6246 + $0x11a8] sm:$0xff]
    %v6813 = vld [vmem:[%s6246 + $0x11b0] sm:$0xff]
    %v6814 = vld [vmem:[%s6246 + $0x11b8] sm:$0xff]
    %v6815 = vld [vmem:[%s6246 + $0x11c0] sm:$0xff]
    %v6816 = vld [vmem:[%s6246 + $0x11c8] sm:$0xff]
    %v6817 = vld [vmem:[%s6246 + $0x11d0] sm:$0xff]
    %v6818 = vld [vmem:[%s6246 + $0x11d8] sm:$0xff]
    %v6819 = vld [vmem:[%s6246 + $0x11e0] sm:$0xff]
    %v6820 = vld [vmem:[%s6246 + $0x11e8] sm:$0xff]
    %v6821 = vld [vmem:[%s6246 + $0x11f0] sm:$0xff]
    %v6822 = vld [vmem:[%s6246 + $0x11f8] sm:$0xff]
    %v6829 = vrot.slane %v4522, 2
    %v6830 = vrot.slane %v4602, 2
    %v6831 = vrot.slane %v4682, 2
    %v6832 = vrot.slane %v4762, 2
    %v6833 = vrot.slane %v4842, 2
    %v6834 = vrot.slane %v4922, 2
    %6841 = vmatpush.msra.mxu0 %v6337
    %6842 = vmatpush.msra.mxu0 %v6331
    %6843 = vmatpush.msra.mxu0 %v6325
    %6844 = vmatpush.msra.mxu0 %v6319
    %6845 = vmatpush.msra.mxu0 %v6313
    %6846 = vmatpush.msra.mxu0 %v6307
    %6847 = vmatpush.msra.mxu0 %v6301
    %6848 = vmatpush.msra.mxu0 %v6295
    %6849 = vmatpush.msra.mxu0 %v6289
    %6850 = vmatpush.msra.mxu0 %v6283
    %6851 = vmatpush.msra.mxu0 %v6277
    %6852 = vmatpush.msra.mxu0 %v6271
    %6853 = vmatpush.msra.mxu0 %v6265
    %6854 = vmatpush.msra.mxu0 %v6259
    %6855 = vmatpush.msra.mxu0 %v6253
    %6856 = vmatpush.msra.mxu0 %v6247
    %6857 = vmatmul.f32.gmra.mxu0 %v6829
    %v6858 = vpop.f32.mrf.mxu0
    %v6859 = vadd.f32 0.0, %v6858
    %6860 = vdwg.mxu0
    %6861 = vmatpush.msra.mxu0 %v6433
    %6862 = vmatpush.msra.mxu0 %v6427
    %6863 = vmatpush.msra.mxu0 %v6421
    %6864 = vmatpush.msra.mxu0 %v6415
    %6865 = vmatpush.msra.mxu0 %v6409
    %6866 = vmatpush.msra.mxu0 %v6403
    %6867 = vmatpush.msra.mxu0 %v6397
    %6868 = vmatpush.msra.mxu0 %v6391
    %6869 = vmatpush.msra.mxu0 %v6385
    %6870 = vmatpush.msra.mxu0 %v6379
    %6871 = vmatpush.msra.mxu0 %v6373
    %6872 = vmatpush.msra.mxu0 %v6367
    %6873 = vmatpush.msra.mxu0 %v6361
    %6874 = vmatpush.msra.mxu0 %v6355
    %6875 = vmatpush.msra.mxu0 %v6349
    %6876 = vmatpush.msra.mxu0 %v6343
    %6877 = vmatmul.f32.gmra.mxu0 %v6830
    %v6878 = vpop.f32.mrf.mxu0
    %v6879 = vadd.f32 %v6859, %v6878
    %6880 = vdwg.mxu0
    %6881 = vmatpush.msra.mxu0 %v6529
    %6882 = vmatpush.msra.mxu0 %v6523
    %6883 = vmatpush.msra.mxu0 %v6517
    %6884 = vmatpush.msra.mxu0 %v6511
    %6885 = vmatpush.msra.mxu0 %v6505
    %6886 = vmatpush.msra.mxu0 %v6499
    %6887 = vmatpush.msra.mxu0 %v6493
    %6888 = vmatpush.msra.mxu0 %v6487
    %6889 = vmatpush.msra.mxu0 %v6481
    %6890 = vmatpush.msra.mxu0 %v6475
    %6891 = vmatpush.msra.mxu0 %v6469
    %6892 = vmatpush.msra.mxu0 %v6463
    %6893 = vmatpush.msra.mxu0 %v6457
    %6894 = vmatpush.msra.mxu0 %v6451
    %6895 = vmatpush.msra.mxu0 %v6445
    %6896 = vmatpush.msra.mxu0 %v6439
    %6897 = vmatmul.f32.gmra.mxu0 %v6831
    %v6898 = vpop.f32.mrf.mxu0
    %v6899 = vadd.f32 %v6879, %v6898
    %6900 = vdwg.mxu0
    %6901 = vmatpush.msra.mxu0 %v6625
    %6902 = vmatpush.msra.mxu0 %v6619
    %6903 = vmatpush.msra.mxu0 %v6613
    %6904 = vmatpush.msra.mxu0 %v6607
    %6905 = vmatpush.msra.mxu0 %v6601
    %6906 = vmatpush.msra.mxu0 %v6595
    %6907 = vmatpush.msra.mxu0 %v6589
    %6908 = vmatpush.msra.mxu0 %v6583
    %6909 = vmatpush.msra.mxu0 %v6577
    %6910 = vmatpush.msra.mxu0 %v6571
    %6911 = vmatpush.msra.mxu0 %v6565
    %6912 = vmatpush.msra.mxu0 %v6559
    %6913 = vmatpush.msra.mxu0 %v6553
    %6914 = vmatpush.msra.mxu0 %v6547
    %6915 = vmatpush.msra.mxu0 %v6541
    %6916 = vmatpush.msra.mxu0 %v6535
    %6917 = vmatmul.f32.gmra.mxu0 %v6832
    %v6918 = vpop.f32.mrf.mxu0
    %v6919 = vadd.f32 %v6899, %v6918
    %6920 = vdwg.mxu0
    %6921 = vmatpush.msra.mxu0 %v6721
    %6922 = vmatpush.msra.mxu0 %v6715
    %6923 = vmatpush.msra.mxu0 %v6709
    %6924 = vmatpush.msra.mxu0 %v6703
    %6925 = vmatpush.msra.mxu0 %v6697
    %6926 = vmatpush.msra.mxu0 %v6691
    %6927 = vmatpush.msra.mxu0 %v6685
    %6928 = vmatpush.msra.mxu0 %v6679
    %6929 = vmatpush.msra.mxu0 %v6673
    %6930 = vmatpush.msra.mxu0 %v6667
    %6931 = vmatpush.msra.mxu0 %v6661
    %6932 = vmatpush.msra.mxu0 %v6655
    %6933 = vmatpush.msra.mxu0 %v6649
    %6934 = vmatpush.msra.mxu0 %v6643
    %6935 = vmatpush.msra.mxu0 %v6637
    %6936 = vmatpush.msra.mxu0 %v6631
    %6937 = vmatmul.f32.gmra.mxu0 %v6833
    %v6938 = vpop.f32.mrf.mxu0
    %v6939 = vadd.f32 %v6919, %v6938
    %6940 = vdwg.mxu0
    %6941 = vmatpush.msra.mxu0 %v6817
    %6942 = vmatpush.msra.mxu0 %v6811
    %6943 = vmatpush.msra.mxu0 %v6805
    %6944 = vmatpush.msra.mxu0 %v6799
    %6945 = vmatpush.msra.mxu0 %v6793
    %6946 = vmatpush.msra.mxu0 %v6787
    %6947 = vmatpush.msra.mxu0 %v6781
    %6948 = vmatpush.msra.mxu0 %v6775
    %6949 = vmatpush.msra.mxu0 %v6769
    %6950 = vmatpush.msra.mxu0 %v6763
    %6951 = vmatpush.msra.mxu0 %v6757
    %6952 = vmatpush.msra.mxu0 %v6751
    %6953 = vmatpush.msra.mxu0 %v6745
    %6954 = vmatpush.msra.mxu0 %v6739
    %6955 = vmatpush.msra.mxu0 %v6733
    %6956 = vmatpush.msra.mxu0 %v6727
    %6957 = vmatmul.f32.gmra.mxu0 %v6834
    %v6958 = vpop.f32.mrf.mxu0
    %v6959 = vadd.f32 %v6939, %v6958
    %6960 = vdwg.mxu0
    %6961 = vmatpush.msra.mxu0 %v6338
    %6962 = vmatpush.msra.mxu0 %v6332
    %6963 = vmatpush.msra.mxu0 %v6326
    %6964 = vmatpush.msra.mxu0 %v6320
    %6965 = vmatpush.msra.mxu0 %v6314
    %6966 = vmatpush.msra.mxu0 %v6308
    %6967 = vmatpush.msra.mxu0 %v6302
    %6968 = vmatpush.msra.mxu0 %v6296
    %6969 = vmatpush.msra.mxu0 %v6290
    %6970 = vmatpush.msra.mxu0 %v6284
    %6971 = vmatpush.msra.mxu0 %v6278
    %6972 = vmatpush.msra.mxu0 %v6272
    %6973 = vmatpush.msra.mxu0 %v6266
    %6974 = vmatpush.msra.mxu0 %v6260
    %6975 = vmatpush.msra.mxu0 %v6254
    %6976 = vmatpush.msra.mxu0 %v6248
    %6977 = vmatmul.f32.gmra.mxu0 %v6829
    %v6978 = vpop.f32.mrf.mxu0
    %v6979 = vadd.f32 0.0, %v6978
    %6980 = vdwg.mxu0
    %6981 = vmatpush.msra.mxu0 %v6434
    %6982 = vmatpush.msra.mxu0 %v6428
    %6983 = vmatpush.msra.mxu0 %v6422
    %6984 = vmatpush.msra.mxu0 %v6416
    %6985 = vmatpush.msra.mxu0 %v6410
    %6986 = vmatpush.msra.mxu0 %v6404
    %6987 = vmatpush.msra.mxu0 %v6398
    %6988 = vmatpush.msra.mxu0 %v6392
    %6989 = vmatpush.msra.mxu0 %v6386
    %6990 = vmatpush.msra.mxu0 %v6380
    %6991 = vmatpush.msra.mxu0 %v6374
    %6992 = vmatpush.msra.mxu0 %v6368
    %6993 = vmatpush.msra.mxu0 %v6362
    %6994 = vmatpush.msra.mxu0 %v6356
    %6995 = vmatpush.msra.mxu0 %v6350
    %6996 = vmatpush.msra.mxu0 %v6344
    %6997 = vmatmul.f32.gmra.mxu0 %v6830
    %v6998 = vpop.f32.mrf.mxu0
    %v6999 = vadd.f32 %v6979, %v6998
    %7000 = vdwg.mxu0
    %7001 = vmatpush.msra.mxu0 %v6530
    %7002 = vmatpush.msra.mxu0 %v6524
    %7003 = vmatpush.msra.mxu0 %v6518
    %7004 = vmatpush.msra.mxu0 %v6512
    %7005 = vmatpush.msra.mxu0 %v6506
    %7006 = vmatpush.msra.mxu0 %v6500
    %7007 = vmatpush.msra.mxu0 %v6494
    %7008 = vmatpush.msra.mxu0 %v6488
    %7009 = vmatpush.msra.mxu0 %v6482
    %7010 = vmatpush.msra.mxu0 %v6476
    %7011 = vmatpush.msra.mxu0 %v6470
    %7012 = vmatpush.msra.mxu0 %v6464
    %7013 = vmatpush.msra.mxu0 %v6458
    %7014 = vmatpush.msra.mxu0 %v6452
    %7015 = vmatpush.msra.mxu0 %v6446
    %7016 = vmatpush.msra.mxu0 %v6440
    %7017 = vmatmul.f32.gmra.mxu0 %v6831
    %v7018 = vpop.f32.mrf.mxu0
    %v7019 = vadd.f32 %v6999, %v7018
    %7020 = vdwg.mxu0
    %7021 = vmatpush.msra.mxu0 %v6626
    %7022 = vmatpush.msra.mxu0 %v6620
    %7023 = vmatpush.msra.mxu0 %v6614
    %7024 = vmatpush.msra.mxu0 %v6608
    %7025 = vmatpush.msra.mxu0 %v6602
    %7026 = vmatpush.msra.mxu0 %v6596
    %7027 = vmatpush.msra.mxu0 %v6590
    %7028 = vmatpush.msra.mxu0 %v6584
    %7029 = vmatpush.msra.mxu0 %v6578
    %7030 = vmatpush.msra.mxu0 %v6572
    %7031 = vmatpush.msra.mxu0 %v6566
    %7032 = vmatpush.msra.mxu0 %v6560
    %7033 = vmatpush.msra.mxu0 %v6554
    %7034 = vmatpush.msra.mxu0 %v6548
    %7035 = vmatpush.msra.mxu0 %v6542
    %7036 = vmatpush.msra.mxu0 %v6536
    %7037 = vmatmul.f32.gmra.mxu0 %v6832
    %v7038 = vpop.f32.mrf.mxu0
    %v7039 = vadd.f32 %v7019, %v7038
    %7040 = vdwg.mxu0
    %7041 = vmatpush.msra.mxu0 %v6722
    %7042 = vmatpush.msra.mxu0 %v6716
    %7043 = vmatpush.msra.mxu0 %v6710
    %7044 = vmatpush.msra.mxu0 %v6704
    %7045 = vmatpush.msra.mxu0 %v6698
    %7046 = vmatpush.msra.mxu0 %v6692
    %7047 = vmatpush.msra.mxu0 %v6686
    %7048 = vmatpush.msra.mxu0 %v6680
    %7049 = vmatpush.msra.mxu0 %v6674
    %7050 = vmatpush.msra.mxu0 %v6668
    %7051 = vmatpush.msra.mxu0 %v6662
    %7052 = vmatpush.msra.mxu0 %v6656
    %7053 = vmatpush.msra.mxu0 %v6650
    %7054 = vmatpush.msra.mxu0 %v6644
    %7055 = vmatpush.msra.mxu0 %v6638
    %7056 = vmatpush.msra.mxu0 %v6632
    %7057 = vmatmul.f32.gmra.mxu0 %v6833
    %v7058 = vpop.f32.mrf.mxu0
    %v7059 = vadd.f32 %v7039, %v7058
    %7060 = vdwg.mxu0
    %7061 = vmatpush.msra.mxu0 %v6818
    %7062 = vmatpush.msra.mxu0 %v6812
    %7063 = vmatpush.msra.mxu0 %v6806
    %7064 = vmatpush.msra.mxu0 %v6800
    %7065 = vmatpush.msra.mxu0 %v6794
    %7066 = vmatpush.msra.mxu0 %v6788
    %7067 = vmatpush.msra.mxu0 %v6782
    %7068 = vmatpush.msra.mxu0 %v6776
    %7069 = vmatpush.msra.mxu0 %v6770
    %7070 = vmatpush.msra.mxu0 %v6764
    %7071 = vmatpush.msra.mxu0 %v6758
    %7072 = vmatpush.msra.mxu0 %v6752
    %7073 = vmatpush.msra.mxu0 %v6746
    %7074 = vmatpush.msra.mxu0 %v6740
    %7075 = vmatpush.msra.mxu0 %v6734
    %7076 = vmatpush.msra.mxu0 %v6728
    %7077 = vmatmul.f32.gmra.mxu0 %v6834
    %v7078 = vpop.f32.mrf.mxu0
    %v7079 = vadd.f32 %v7059, %v7078
    %7080 = vdwg.mxu0
    %7081 = vmatpush.msra.mxu0 %v6339
    %7082 = vmatpush.msra.mxu0 %v6333
    %7083 = vmatpush.msra.mxu0 %v6327
    %7084 = vmatpush.msra.mxu0 %v6321
    %7085 = vmatpush.msra.mxu0 %v6315
    %7086 = vmatpush.msra.mxu0 %v6309
    %7087 = vmatpush.msra.mxu0 %v6303
    %7088 = vmatpush.msra.mxu0 %v6297
    %7089 = vmatpush.msra.mxu0 %v6291
    %7090 = vmatpush.msra.mxu0 %v6285
    %7091 = vmatpush.msra.mxu0 %v6279
    %7092 = vmatpush.msra.mxu0 %v6273
    %7093 = vmatpush.msra.mxu0 %v6267
    %7094 = vmatpush.msra.mxu0 %v6261
    %7095 = vmatpush.msra.mxu0 %v6255
    %7096 = vmatpush.msra.mxu0 %v6249
    %7097 = vmatmul.f32.gmra.mxu0 %v6829
    %v7098 = vpop.f32.mrf.mxu0
    %v7099 = vadd.f32 0.0, %v7098
    %7100 = vdwg.mxu0
    %7101 = vmatpush.msra.mxu0 %v6435
    %7102 = vmatpush.msra.mxu0 %v6429
    %7103 = vmatpush.msra.mxu0 %v6423
    %7104 = vmatpush.msra.mxu0 %v6417
    %7105 = vmatpush.msra.mxu0 %v6411
    %7106 = vmatpush.msra.mxu0 %v6405
    %7107 = vmatpush.msra.mxu0 %v6399
    %7108 = vmatpush.msra.mxu0 %v6393
    %7109 = vmatpush.msra.mxu0 %v6387
    %7110 = vmatpush.msra.mxu0 %v6381
    %7111 = vmatpush.msra.mxu0 %v6375
    %7112 = vmatpush.msra.mxu0 %v6369
    %7113 = vmatpush.msra.mxu0 %v6363
    %7114 = vmatpush.msra.mxu0 %v6357
    %7115 = vmatpush.msra.mxu0 %v6351
    %7116 = vmatpush.msra.mxu0 %v6345
    %7117 = vmatmul.f32.gmra.mxu0 %v6830
    %v7118 = vpop.f32.mrf.mxu0
    %v7119 = vadd.f32 %v7099, %v7118
    %7120 = vdwg.mxu0
    %7121 = vmatpush.msra.mxu0 %v6531
    %7122 = vmatpush.msra.mxu0 %v6525
    %7123 = vmatpush.msra.mxu0 %v6519
    %7124 = vmatpush.msra.mxu0 %v6513
    %7125 = vmatpush.msra.mxu0 %v6507
    %7126 = vmatpush.msra.mxu0 %v6501
    %7127 = vmatpush.msra.mxu0 %v6495
    %7128 = vmatpush.msra.mxu0 %v6489
    %7129 = vmatpush.msra.mxu0 %v6483
    %7130 = vmatpush.msra.mxu0 %v6477
    %7131 = vmatpush.msra.mxu0 %v6471
    %7132 = vmatpush.msra.mxu0 %v6465
    %7133 = vmatpush.msra.mxu0 %v6459
    %7134 = vmatpush.msra.mxu0 %v6453
    %7135 = vmatpush.msra.mxu0 %v6447
    %7136 = vmatpush.msra.mxu0 %v6441
    %7137 = vmatmul.f32.gmra.mxu0 %v6831
    %v7138 = vpop.f32.mrf.mxu0
    %v7139 = vadd.f32 %v7119, %v7138
    %7140 = vdwg.mxu0
    %7141 = vmatpush.msra.mxu0 %v6627
    %7142 = vmatpush.msra.mxu0 %v6621
    %7143 = vmatpush.msra.mxu0 %v6615
    %7144 = vmatpush.msra.mxu0 %v6609
    %7145 = vmatpush.msra.mxu0 %v6603
    %7146 = vmatpush.msra.mxu0 %v6597
    %7147 = vmatpush.msra.mxu0 %v6591
    %7148 = vmatpush.msra.mxu0 %v6585
    %7149 = vmatpush.msra.mxu0 %v6579
    %7150 = vmatpush.msra.mxu0 %v6573
    %7151 = vmatpush.msra.mxu0 %v6567
    %7152 = vmatpush.msra.mxu0 %v6561
    %7153 = vmatpush.msra.mxu0 %v6555
    %7154 = vmatpush.msra.mxu0 %v6549
    %7155 = vmatpush.msra.mxu0 %v6543
    %7156 = vmatpush.msra.mxu0 %v6537
    %7157 = vmatmul.f32.gmra.mxu0 %v6832
    %v7158 = vpop.f32.mrf.mxu0
    %v7159 = vadd.f32 %v7139, %v7158
    %7160 = vdwg.mxu0
    %7161 = vmatpush.msra.mxu0 %v6723
    %7162 = vmatpush.msra.mxu0 %v6717
    %7163 = vmatpush.msra.mxu0 %v6711
    %7164 = vmatpush.msra.mxu0 %v6705
    %7165 = vmatpush.msra.mxu0 %v6699
    %7166 = vmatpush.msra.mxu0 %v6693
    %7167 = vmatpush.msra.mxu0 %v6687
    %7168 = vmatpush.msra.mxu0 %v6681
    %7169 = vmatpush.msra.mxu0 %v6675
    %7170 = vmatpush.msra.mxu0 %v6669
    %7171 = vmatpush.msra.mxu0 %v6663
    %7172 = vmatpush.msra.mxu0 %v6657
    %7173 = vmatpush.msra.mxu0 %v6651
    %7174 = vmatpush.msra.mxu0 %v6645
    %7175 = vmatpush.msra.mxu0 %v6639
    %7176 = vmatpush.msra.mxu0 %v6633
    %7177 = vmatmul.f32.gmra.mxu0 %v6833
    %v7178 = vpop.f32.mrf.mxu0
    %v7179 = vadd.f32 %v7159, %v7178
    %7180 = vdwg.mxu0
    %7181 = vmatpush.msra.mxu0 %v6819
    %7182 = vmatpush.msra.mxu0 %v6813
    %7183 = vmatpush.msra.mxu0 %v6807
    %7184 = vmatpush.msra.mxu0 %v6801
    %7185 = vmatpush.msra.mxu0 %v6795
    %7186 = vmatpush.msra.mxu0 %v6789
    %7187 = vmatpush.msra.mxu0 %v6783
    %7188 = vmatpush.msra.mxu0 %v6777
    %7189 = vmatpush.msra.mxu0 %v6771
    %7190 = vmatpush.msra.mxu0 %v6765
    %7191 = vmatpush.msra.mxu0 %v6759
    %7192 = vmatpush.msra.mxu0 %v6753
    %7193 = vmatpush.msra.mxu0 %v6747
    %7194 = vmatpush.msra.mxu0 %v6741
    %7195 = vmatpush.msra.mxu0 %v6735
    %7196 = vmatpush.msra.mxu0 %v6729
    %7197 = vmatmul.f32.gmra.mxu0 %v6834
    %v7198 = vpop.f32.mrf.mxu0
    %v7199 = vadd.f32 %v7179, %v7198
    %7200 = vdwg.mxu0
    %7201 = vmatpush.msra.mxu0 %v6340
    %7202 = vmatpush.msra.mxu0 %v6334
    %7203 = vmatpush.msra.mxu0 %v6328
    %7204 = vmatpush.msra.mxu0 %v6322
    %7205 = vmatpush.msra.mxu0 %v6316
    %7206 = vmatpush.msra.mxu0 %v6310
    %7207 = vmatpush.msra.mxu0 %v6304
    %7208 = vmatpush.msra.mxu0 %v6298
    %7209 = vmatpush.msra.mxu0 %v6292
    %7210 = vmatpush.msra.mxu0 %v6286
    %7211 = vmatpush.msra.mxu0 %v6280
    %7212 = vmatpush.msra.mxu0 %v6274
    %7213 = vmatpush.msra.mxu0 %v6268
    %7214 = vmatpush.msra.mxu0 %v6262
    %7215 = vmatpush.msra.mxu0 %v6256
    %7216 = vmatpush.msra.mxu0 %v6250
    %7217 = vmatmul.f32.gmra.mxu0 %v6829
    %v7218 = vpop.f32.mrf.mxu0
    %v7219 = vadd.f32 0.0, %v7218
    %7220 = vdwg.mxu0
    %7221 = vmatpush.msra.mxu0 %v6436
    %7222 = vmatpush.msra.mxu0 %v6430
    %7223 = vmatpush.msra.mxu0 %v6424
    %7224 = vmatpush.msra.mxu0 %v6418
    %7225 = vmatpush.msra.mxu0 %v6412
    %7226 = vmatpush.msra.mxu0 %v6406
    %7227 = vmatpush.msra.mxu0 %v6400
    %7228 = vmatpush.msra.mxu0 %v6394
    %7229 = vmatpush.msra.mxu0 %v6388
    %7230 = vmatpush.msra.mxu0 %v6382
    %7231 = vmatpush.msra.mxu0 %v6376
    %7232 = vmatpush.msra.mxu0 %v6370
    %7233 = vmatpush.msra.mxu0 %v6364
    %7234 = vmatpush.msra.mxu0 %v6358
    %7235 = vmatpush.msra.mxu0 %v6352
    %7236 = vmatpush.msra.mxu0 %v6346
    %7237 = vmatmul.f32.gmra.mxu0 %v6830
    %v7238 = vpop.f32.mrf.mxu0
    %v7239 = vadd.f32 %v7219, %v7238
    %7240 = vdwg.mxu0
    %7241 = vmatpush.msra.mxu0 %v6532
    %7242 = vmatpush.msra.mxu0 %v6526
    %7243 = vmatpush.msra.mxu0 %v6520
    %7244 = vmatpush.msra.mxu0 %v6514
    %7245 = vmatpush.msra.mxu0 %v6508
    %7246 = vmatpush.msra.mxu0 %v6502
    %7247 = vmatpush.msra.mxu0 %v6496
    %7248 = vmatpush.msra.mxu0 %v6490
    %7249 = vmatpush.msra.mxu0 %v6484
    %7250 = vmatpush.msra.mxu0 %v6478
    %7251 = vmatpush.msra.mxu0 %v6472
    %7252 = vmatpush.msra.mxu0 %v6466
    %7253 = vmatpush.msra.mxu0 %v6460
    %7254 = vmatpush.msra.mxu0 %v6454
    %7255 = vmatpush.msra.mxu0 %v6448
    %7256 = vmatpush.msra.mxu0 %v6442
    %7257 = vmatmul.f32.gmra.mxu0 %v6831
    %v7258 = vpop.f32.mrf.mxu0
    %v7259 = vadd.f32 %v7239, %v7258
    %7260 = vdwg.mxu0
    %7261 = vmatpush.msra.mxu0 %v6628
    %7262 = vmatpush.msra.mxu0 %v6622
    %7263 = vmatpush.msra.mxu0 %v6616
    %7264 = vmatpush.msra.mxu0 %v6610
    %7265 = vmatpush.msra.mxu0 %v6604
    %7266 = vmatpush.msra.mxu0 %v6598
    %7267 = vmatpush.msra.mxu0 %v6592
    %7268 = vmatpush.msra.mxu0 %v6586
    %7269 = vmatpush.msra.mxu0 %v6580
    %7270 = vmatpush.msra.mxu0 %v6574
    %7271 = vmatpush.msra.mxu0 %v6568
    %7272 = vmatpush.msra.mxu0 %v6562
    %7273 = vmatpush.msra.mxu0 %v6556
    %7274 = vmatpush.msra.mxu0 %v6550
    %7275 = vmatpush.msra.mxu0 %v6544
    %7276 = vmatpush.msra.mxu0 %v6538
    %7277 = vmatmul.f32.gmra.mxu0 %v6832
    %v7278 = vpop.f32.mrf.mxu0
    %v7279 = vadd.f32 %v7259, %v7278
    %7280 = vdwg.mxu0
    %7281 = vmatpush.msra.mxu0 %v6724
    %7282 = vmatpush.msra.mxu0 %v6718
    %7283 = vmatpush.msra.mxu0 %v6712
    %7284 = vmatpush.msra.mxu0 %v6706
    %7285 = vmatpush.msra.mxu0 %v6700
    %7286 = vmatpush.msra.mxu0 %v6694
    %7287 = vmatpush.msra.mxu0 %v6688
    %7288 = vmatpush.msra.mxu0 %v6682
    %7289 = vmatpush.msra.mxu0 %v6676
    %7290 = vmatpush.msra.mxu0 %v6670
    %7291 = vmatpush.msra.mxu0 %v6664
    %7292 = vmatpush.msra.mxu0 %v6658
    %7293 = vmatpush.msra.mxu0 %v6652
    %7294 = vmatpush.msra.mxu0 %v6646
    %7295 = vmatpush.msra.mxu0 %v6640
    %7296 = vmatpush.msra.mxu0 %v6634
    %7297 = vmatmul.f32.gmra.mxu0 %v6833
    %v7298 = vpop.f32.mrf.mxu0
    %v7299 = vadd.f32 %v7279, %v7298
    %7300 = vdwg.mxu0
    %7301 = vmatpush.msra.mxu0 %v6820
    %7302 = vmatpush.msra.mxu0 %v6814
    %7303 = vmatpush.msra.mxu0 %v6808
    %7304 = vmatpush.msra.mxu0 %v6802
    %7305 = vmatpush.msra.mxu0 %v6796
    %7306 = vmatpush.msra.mxu0 %v6790
    %7307 = vmatpush.msra.mxu0 %v6784
    %7308 = vmatpush.msra.mxu0 %v6778
    %7309 = vmatpush.msra.mxu0 %v6772
    %7310 = vmatpush.msra.mxu0 %v6766
    %7311 = vmatpush.msra.mxu0 %v6760
    %7312 = vmatpush.msra.mxu0 %v6754
    %7313 = vmatpush.msra.mxu0 %v6748
    %7314 = vmatpush.msra.mxu0 %v6742
    %7315 = vmatpush.msra.mxu0 %v6736
    %7316 = vmatpush.msra.mxu0 %v6730
    %7317 = vmatmul.f32.gmra.mxu0 %v6834
    %v7318 = vpop.f32.mrf.mxu0
    %v7319 = vadd.f32 %v7299, %v7318
    %7320 = vdwg.mxu0
    %7321 = vmatpush.msra.mxu0 %v6341
    %7322 = vmatpush.msra.mxu0 %v6335
    %7323 = vmatpush.msra.mxu0 %v6329
    %7324 = vmatpush.msra.mxu0 %v6323
    %7325 = vmatpush.msra.mxu0 %v6317
    %7326 = vmatpush.msra.mxu0 %v6311
    %7327 = vmatpush.msra.mxu0 %v6305
    %7328 = vmatpush.msra.mxu0 %v6299
    %7329 = vmatpush.msra.mxu0 %v6293
    %7330 = vmatpush.msra.mxu0 %v6287
    %7331 = vmatpush.msra.mxu0 %v6281
    %7332 = vmatpush.msra.mxu0 %v6275
    %7333 = vmatpush.msra.mxu0 %v6269
    %7334 = vmatpush.msra.mxu0 %v6263
    %7335 = vmatpush.msra.mxu0 %v6257
    %7336 = vmatpush.msra.mxu0 %v6251
    %7337 = vmatmul.f32.gmra.mxu0 %v6829
    %v7338 = vpop.f32.mrf.mxu0
    %v7339 = vadd.f32 0.0, %v7338
    %7340 = vdwg.mxu0
    %7341 = vmatpush.msra.mxu0 %v6437
    %7342 = vmatpush.msra.mxu0 %v6431
    %7343 = vmatpush.msra.mxu0 %v6425
    %7344 = vmatpush.msra.mxu0 %v6419
    %7345 = vmatpush.msra.mxu0 %v6413
    %7346 = vmatpush.msra.mxu0 %v6407
    %7347 = vmatpush.msra.mxu0 %v6401
    %7348 = vmatpush.msra.mxu0 %v6395
    %7349 = vmatpush.msra.mxu0 %v6389
    %7350 = vmatpush.msra.mxu0 %v6383
    %7351 = vmatpush.msra.mxu0 %v6377
    %7352 = vmatpush.msra.mxu0 %v6371
    %7353 = vmatpush.msra.mxu0 %v6365
    %7354 = vmatpush.msra.mxu0 %v6359
    %7355 = vmatpush.msra.mxu0 %v6353
    %7356 = vmatpush.msra.mxu0 %v6347
    %7357 = vmatmul.f32.gmra.mxu0 %v6830
    %v7358 = vpop.f32.mrf.mxu0
    %v7359 = vadd.f32 %v7339, %v7358
    %7360 = vdwg.mxu0
    %7361 = vmatpush.msra.mxu0 %v6533
    %7362 = vmatpush.msra.mxu0 %v6527
    %7363 = vmatpush.msra.mxu0 %v6521
    %7364 = vmatpush.msra.mxu0 %v6515
    %7365 = vmatpush.msra.mxu0 %v6509
    %7366 = vmatpush.msra.mxu0 %v6503
    %7367 = vmatpush.msra.mxu0 %v6497
    %7368 = vmatpush.msra.mxu0 %v6491
    %7369 = vmatpush.msra.mxu0 %v6485
    %7370 = vmatpush.msra.mxu0 %v6479
    %7371 = vmatpush.msra.mxu0 %v6473
    %7372 = vmatpush.msra.mxu0 %v6467
    %7373 = vmatpush.msra.mxu0 %v6461
    %7374 = vmatpush.msra.mxu0 %v6455
    %7375 = vmatpush.msra.mxu0 %v6449
    %7376 = vmatpush.msra.mxu0 %v6443
    %7377 = vmatmul.f32.gmra.mxu0 %v6831
    %v7378 = vpop.f32.mrf.mxu0
    %v7379 = vadd.f32 %v7359, %v7378
    %7380 = vdwg.mxu0
    %7381 = vmatpush.msra.mxu0 %v6629
    %7382 = vmatpush.msra.mxu0 %v6623
    %7383 = vmatpush.msra.mxu0 %v6617
    %7384 = vmatpush.msra.mxu0 %v6611
    %7385 = vmatpush.msra.mxu0 %v6605
    %7386 = vmatpush.msra.mxu0 %v6599
    %7387 = vmatpush.msra.mxu0 %v6593
    %7388 = vmatpush.msra.mxu0 %v6587
    %7389 = vmatpush.msra.mxu0 %v6581
    %7390 = vmatpush.msra.mxu0 %v6575
    %7391 = vmatpush.msra.mxu0 %v6569
    %7392 = vmatpush.msra.mxu0 %v6563
    %7393 = vmatpush.msra.mxu0 %v6557
    %7394 = vmatpush.msra.mxu0 %v6551
    %7395 = vmatpush.msra.mxu0 %v6545
    %7396 = vmatpush.msra.mxu0 %v6539
    %7397 = vmatmul.f32.gmra.mxu0 %v6832
    %v7398 = vpop.f32.mrf.mxu0
    %v7399 = vadd.f32 %v7379, %v7398
    %7400 = vdwg.mxu0
    %7401 = vmatpush.msra.mxu0 %v6725
    %7402 = vmatpush.msra.mxu0 %v6719
    %7403 = vmatpush.msra.mxu0 %v6713
    %7404 = vmatpush.msra.mxu0 %v6707
    %7405 = vmatpush.msra.mxu0 %v6701
    %7406 = vmatpush.msra.mxu0 %v6695
    %7407 = vmatpush.msra.mxu0 %v6689
    %7408 = vmatpush.msra.mxu0 %v6683
    %7409 = vmatpush.msra.mxu0 %v6677
    %7410 = vmatpush.msra.mxu0 %v6671
    %7411 = vmatpush.msra.mxu0 %v6665
    %7412 = vmatpush.msra.mxu0 %v6659
    %7413 = vmatpush.msra.mxu0 %v6653
    %7414 = vmatpush.msra.mxu0 %v6647
    %7415 = vmatpush.msra.mxu0 %v6641
    %7416 = vmatpush.msra.mxu0 %v6635
    %7417 = vmatmul.f32.gmra.mxu0 %v6833
    %v7418 = vpop.f32.mrf.mxu0
    %v7419 = vadd.f32 %v7399, %v7418
    %7420 = vdwg.mxu0
    %7421 = vmatpush.msra.mxu0 %v6821
    %7422 = vmatpush.msra.mxu0 %v6815
    %7423 = vmatpush.msra.mxu0 %v6809
    %7424 = vmatpush.msra.mxu0 %v6803
    %7425 = vmatpush.msra.mxu0 %v6797
    %7426 = vmatpush.msra.mxu0 %v6791
    %7427 = vmatpush.msra.mxu0 %v6785
    %7428 = vmatpush.msra.mxu0 %v6779
    %7429 = vmatpush.msra.mxu0 %v6773
    %7430 = vmatpush.msra.mxu0 %v6767
    %7431 = vmatpush.msra.mxu0 %v6761
    %7432 = vmatpush.msra.mxu0 %v6755
    %7433 = vmatpush.msra.mxu0 %v6749
    %7434 = vmatpush.msra.mxu0 %v6743
    %7435 = vmatpush.msra.mxu0 %v6737
    %7436 = vmatpush.msra.mxu0 %v6731
    %7437 = vmatmul.f32.gmra.mxu0 %v6834
    %v7438 = vpop.f32.mrf.mxu0
    %v7439 = vadd.f32 %v7419, %v7438
    %7440 = vdwg.mxu0
    %7441 = vmatpush.msra.mxu0 %v6342
    %7442 = vmatpush.msra.mxu0 %v6336
    %7443 = vmatpush.msra.mxu0 %v6330
    %7444 = vmatpush.msra.mxu0 %v6324
    %7445 = vmatpush.msra.mxu0 %v6318
    %7446 = vmatpush.msra.mxu0 %v6312
    %7447 = vmatpush.msra.mxu0 %v6306
    %7448 = vmatpush.msra.mxu0 %v6300
    %7449 = vmatpush.msra.mxu0 %v6294
    %7450 = vmatpush.msra.mxu0 %v6288
    %7451 = vmatpush.msra.mxu0 %v6282
    %7452 = vmatpush.msra.mxu0 %v6276
    %7453 = vmatpush.msra.mxu0 %v6270
    %7454 = vmatpush.msra.mxu0 %v6264
    %7455 = vmatpush.msra.mxu0 %v6258
    %7456 = vmatpush.msra.mxu0 %v6252
    %7457 = vmatmul.f32.gmra.mxu0 %v6829
    %v7458 = vpop.f32.mrf.mxu0
    %v7459 = vadd.f32 0.0, %v7458
    %7460 = vdwg.mxu0
    %7461 = vmatpush.msra.mxu0 %v6438
    %7462 = vmatpush.msra.mxu0 %v6432
    %7463 = vmatpush.msra.mxu0 %v6426
    %7464 = vmatpush.msra.mxu0 %v6420
    %7465 = vmatpush.msra.mxu0 %v6414
    %7466 = vmatpush.msra.mxu0 %v6408
    %7467 = vmatpush.msra.mxu0 %v6402
    %7468 = vmatpush.msra.mxu0 %v6396
    %7469 = vmatpush.msra.mxu0 %v6390
    %7470 = vmatpush.msra.mxu0 %v6384
    %7471 = vmatpush.msra.mxu0 %v6378
    %7472 = vmatpush.msra.mxu0 %v6372
    %7473 = vmatpush.msra.mxu0 %v6366
    %7474 = vmatpush.msra.mxu0 %v6360
    %7475 = vmatpush.msra.mxu0 %v6354
    %7476 = vmatpush.msra.mxu0 %v6348
    %7477 = vmatmul.f32.gmra.mxu0 %v6830
    %v7478 = vpop.f32.mrf.mxu0
    %v7479 = vadd.f32 %v7459, %v7478
    %7480 = vdwg.mxu0
    %7481 = vmatpush.msra.mxu0 %v6534
    %7482 = vmatpush.msra.mxu0 %v6528
    %7483 = vmatpush.msra.mxu0 %v6522
    %7484 = vmatpush.msra.mxu0 %v6516
    %7485 = vmatpush.msra.mxu0 %v6510
    %7486 = vmatpush.msra.mxu0 %v6504
    %7487 = vmatpush.msra.mxu0 %v6498
    %7488 = vmatpush.msra.mxu0 %v6492
    %7489 = vmatpush.msra.mxu0 %v6486
    %7490 = vmatpush.msra.mxu0 %v6480
    %7491 = vmatpush.msra.mxu0 %v6474
    %7492 = vmatpush.msra.mxu0 %v6468
    %7493 = vmatpush.msra.mxu0 %v6462
    %7494 = vmatpush.msra.mxu0 %v6456
    %7495 = vmatpush.msra.mxu0 %v6450
    %7496 = vmatpush.msra.mxu0 %v6444
    %7497 = vmatmul.f32.gmra.mxu0 %v6831
    %v7498 = vpop.f32.mrf.mxu0
    %v7499 = vadd.f32 %v7479, %v7498
    %7500 = vdwg.mxu0
    %7501 = vmatpush.msra.mxu0 %v6630
    %7502 = vmatpush.msra.mxu0 %v6624
    %7503 = vmatpush.msra.mxu0 %v6618
    %7504 = vmatpush.msra.mxu0 %v6612
    %7505 = vmatpush.msra.mxu0 %v6606
    %7506 = vmatpush.msra.mxu0 %v6600
    %7507 = vmatpush.msra.mxu0 %v6594
    %7508 = vmatpush.msra.mxu0 %v6588
    %7509 = vmatpush.msra.mxu0 %v6582
    %7510 = vmatpush.msra.mxu0 %v6576
    %7511 = vmatpush.msra.mxu0 %v6570
    %7512 = vmatpush.msra.mxu0 %v6564
    %7513 = vmatpush.msra.mxu0 %v6558
    %7514 = vmatpush.msra.mxu0 %v6552
    %7515 = vmatpush.msra.mxu0 %v6546
    %7516 = vmatpush.msra.mxu0 %v6540
    %7517 = vmatmul.f32.gmra.mxu0 %v6832
    %v7518 = vpop.f32.mrf.mxu0
    %v7519 = vadd.f32 %v7499, %v7518
    %7520 = vdwg.mxu0
    %7521 = vmatpush.msra.mxu0 %v6726
    %7522 = vmatpush.msra.mxu0 %v6720
    %7523 = vmatpush.msra.mxu0 %v6714
    %7524 = vmatpush.msra.mxu0 %v6708
    %7525 = vmatpush.msra.mxu0 %v6702
    %7526 = vmatpush.msra.mxu0 %v6696
    %7527 = vmatpush.msra.mxu0 %v6690
    %7528 = vmatpush.msra.mxu0 %v6684
    %7529 = vmatpush.msra.mxu0 %v6678
    %7530 = vmatpush.msra.mxu0 %v6672
    %7531 = vmatpush.msra.mxu0 %v6666
    %7532 = vmatpush.msra.mxu0 %v6660
    %7533 = vmatpush.msra.mxu0 %v6654
    %7534 = vmatpush.msra.mxu0 %v6648
    %7535 = vmatpush.msra.mxu0 %v6642
    %7536 = vmatpush.msra.mxu0 %v6636
    %7537 = vmatmul.f32.gmra.mxu0 %v6833
    %v7538 = vpop.f32.mrf.mxu0
    %v7539 = vadd.f32 %v7519, %v7538
    %7540 = vdwg.mxu0
    %7541 = vmatpush.msra.mxu0 %v6822
    %7542 = vmatpush.msra.mxu0 %v6816
    %7543 = vmatpush.msra.mxu0 %v6810
    %7544 = vmatpush.msra.mxu0 %v6804
    %7545 = vmatpush.msra.mxu0 %v6798
    %7546 = vmatpush.msra.mxu0 %v6792
    %7547 = vmatpush.msra.mxu0 %v6786
    %7548 = vmatpush.msra.mxu0 %v6780
    %7549 = vmatpush.msra.mxu0 %v6774
    %7550 = vmatpush.msra.mxu0 %v6768
    %7551 = vmatpush.msra.mxu0 %v6762
    %7552 = vmatpush.msra.mxu0 %v6756
    %7553 = vmatpush.msra.mxu0 %v6750
    %7554 = vmatpush.msra.mxu0 %v6744
    %7555 = vmatpush.msra.mxu0 %v6738
    %7556 = vmatpush.msra.mxu0 %v6732
    %7557 = vmatmul.f32.gmra.mxu0 %v6834
    %v7558 = vpop.f32.mrf.mxu0
    %v7559 = vadd.f32 %v7539, %v7558
    %7560 = vdwg.mxu0
    %v7561 = vadd.f32 %v6240, %v6959
    %v7562 = vadd.f32 %v6241, %v7079
    %v7563 = vadd.f32 %v6242, %v7199
    %v7564 = vadd.f32 %v6243, %v7319
    %v7565 = vadd.f32 %v6244, %v7439
    %v7566 = vadd.f32 %v6245, %v7559
    %s7567 = scalar_lea.vmem [#allocation16], 9216
    %v7568 = vld [vmem:[%s7567] sm:$0xff]
    %v7569 = vld [vmem:[%s7567 + $0x8] sm:$0xff]
    %v7570 = vld [vmem:[%s7567 + $0x10] sm:$0xff]
    %v7571 = vld [vmem:[%s7567 + $0x18] sm:$0xff]
    %v7572 = vld [vmem:[%s7567 + $0x20] sm:$0xff]
    %v7573 = vld [vmem:[%s7567 + $0x28] sm:$0xff]
    %v7574 = vld [vmem:[%s7567 + $0x30] sm:$0xff]
    %v7575 = vld [vmem:[%s7567 + $0x38] sm:$0xff]
    %v7576 = vld [vmem:[%s7567 + $0x40] sm:$0xff]
    %v7577 = vld [vmem:[%s7567 + $0x48] sm:$0xff]
    %v7578 = vld [vmem:[%s7567 + $0x50] sm:$0xff]
    %v7579 = vld [vmem:[%s7567 + $0x58] sm:$0xff]
    %v7580 = vld [vmem:[%s7567 + $0x60] sm:$0xff]
    %v7581 = vld [vmem:[%s7567 + $0x68] sm:$0xff]
    %v7582 = vld [vmem:[%s7567 + $0x70] sm:$0xff]
    %v7583 = vld [vmem:[%s7567 + $0x78] sm:$0xff]
    %v7584 = vld [vmem:[%s7567 + $0x80] sm:$0xff]
    %v7585 = vld [vmem:[%s7567 + $0x88] sm:$0xff]
    %v7586 = vld [vmem:[%s7567 + $0x90] sm:$0xff]
    %v7587 = vld [vmem:[%s7567 + $0x98] sm:$0xff]
    %v7588 = vld [vmem:[%s7567 + $0xa0] sm:$0xff]
    %v7589 = vld [vmem:[%s7567 + $0xa8] sm:$0xff]
    %v7590 = vld [vmem:[%s7567 + $0xb0] sm:$0xff]
    %v7591 = vld [vmem:[%s7567 + $0xb8] sm:$0xff]
    %v7592 = vld [vmem:[%s7567 + $0xc0] sm:$0xff]
    %v7593 = vld [vmem:[%s7567 + $0xc8] sm:$0xff]
    %v7594 = vld [vmem:[%s7567 + $0xd0] sm:$0xff]
    %v7595 = vld [vmem:[%s7567 + $0xd8] sm:$0xff]
    %v7596 = vld [vmem:[%s7567 + $0xe0] sm:$0xff]
    %v7597 = vld [vmem:[%s7567 + $0xe8] sm:$0xff]
    %v7598 = vld [vmem:[%s7567 + $0xf0] sm:$0xff]
    %v7599 = vld [vmem:[%s7567 + $0xf8] sm:$0xff]
    %v7600 = vld [vmem:[%s7567 + $0x100] sm:$0xff]
    %v7601 = vld [vmem:[%s7567 + $0x108] sm:$0xff]
    %v7602 = vld [vmem:[%s7567 + $0x110] sm:$0xff]
    %v7603 = vld [vmem:[%s7567 + $0x118] sm:$0xff]
    %v7604 = vld [vmem:[%s7567 + $0x120] sm:$0xff]
    %v7605 = vld [vmem:[%s7567 + $0x128] sm:$0xff]
    %v7606 = vld [vmem:[%s7567 + $0x130] sm:$0xff]
    %v7607 = vld [vmem:[%s7567 + $0x138] sm:$0xff]
    %v7608 = vld [vmem:[%s7567 + $0x140] sm:$0xff]
    %v7609 = vld [vmem:[%s7567 + $0x148] sm:$0xff]
    %v7610 = vld [vmem:[%s7567 + $0x150] sm:$0xff]
    %v7611 = vld [vmem:[%s7567 + $0x158] sm:$0xff]
    %v7612 = vld [vmem:[%s7567 + $0x160] sm:$0xff]
    %v7613 = vld [vmem:[%s7567 + $0x168] sm:$0xff]
    %v7614 = vld [vmem:[%s7567 + $0x170] sm:$0xff]
    %v7615 = vld [vmem:[%s7567 + $0x178] sm:$0xff]
    %v7616 = vld [vmem:[%s7567 + $0x180] sm:$0xff]
    %v7617 = vld [vmem:[%s7567 + $0x188] sm:$0xff]
    %v7618 = vld [vmem:[%s7567 + $0x190] sm:$0xff]
    %v7619 = vld [vmem:[%s7567 + $0x198] sm:$0xff]
    %v7620 = vld [vmem:[%s7567 + $0x1a0] sm:$0xff]
    %v7621 = vld [vmem:[%s7567 + $0x1a8] sm:$0xff]
    %v7622 = vld [vmem:[%s7567 + $0x1b0] sm:$0xff]
    %v7623 = vld [vmem:[%s7567 + $0x1b8] sm:$0xff]
    %v7624 = vld [vmem:[%s7567 + $0x1c0] sm:$0xff]
    %v7625 = vld [vmem:[%s7567 + $0x1c8] sm:$0xff]
    %v7626 = vld [vmem:[%s7567 + $0x1d0] sm:$0xff]
    %v7627 = vld [vmem:[%s7567 + $0x1d8] sm:$0xff]
    %v7628 = vld [vmem:[%s7567 + $0x1e0] sm:$0xff]
    %v7629 = vld [vmem:[%s7567 + $0x1e8] sm:$0xff]
    %v7630 = vld [vmem:[%s7567 + $0x1f0] sm:$0xff]
    %v7631 = vld [vmem:[%s7567 + $0x1f8] sm:$0xff]
    %v7632 = vld [vmem:[%s7567 + $0x200] sm:$0xff]
    %v7633 = vld [vmem:[%s7567 + $0x208] sm:$0xff]
    %v7634 = vld [vmem:[%s7567 + $0x210] sm:$0xff]
    %v7635 = vld [vmem:[%s7567 + $0x218] sm:$0xff]
    %v7636 = vld [vmem:[%s7567 + $0x220] sm:$0xff]
    %v7637 = vld [vmem:[%s7567 + $0x228] sm:$0xff]
    %v7638 = vld [vmem:[%s7567 + $0x230] sm:$0xff]
    %v7639 = vld [vmem:[%s7567 + $0x238] sm:$0xff]
    %v7640 = vld [vmem:[%s7567 + $0x240] sm:$0xff]
    %v7641 = vld [vmem:[%s7567 + $0x248] sm:$0xff]
    %v7642 = vld [vmem:[%s7567 + $0x250] sm:$0xff]
    %v7643 = vld [vmem:[%s7567 + $0x258] sm:$0xff]
    %v7644 = vld [vmem:[%s7567 + $0x260] sm:$0xff]
    %v7645 = vld [vmem:[%s7567 + $0x268] sm:$0xff]
    %v7646 = vld [vmem:[%s7567 + $0x270] sm:$0xff]
    %v7647 = vld [vmem:[%s7567 + $0x278] sm:$0xff]
    %v7648 = vld [vmem:[%s7567 + $0x280] sm:$0xff]
    %v7649 = vld [vmem:[%s7567 + $0x288] sm:$0xff]
    %v7650 = vld [vmem:[%s7567 + $0x290] sm:$0xff]
    %v7651 = vld [vmem:[%s7567 + $0x298] sm:$0xff]
    %v7652 = vld [vmem:[%s7567 + $0x2a0] sm:$0xff]
    %v7653 = vld [vmem:[%s7567 + $0x2a8] sm:$0xff]
    %v7654 = vld [vmem:[%s7567 + $0x2b0] sm:$0xff]
    %v7655 = vld [vmem:[%s7567 + $0x2b8] sm:$0xff]
    %v7656 = vld [vmem:[%s7567 + $0x2c0] sm:$0xff]
    %v7657 = vld [vmem:[%s7567 + $0x2c8] sm:$0xff]
    %v7658 = vld [vmem:[%s7567 + $0x2d0] sm:$0xff]
    %v7659 = vld [vmem:[%s7567 + $0x2d8] sm:$0xff]
    %v7660 = vld [vmem:[%s7567 + $0x2e0] sm:$0xff]
    %v7661 = vld [vmem:[%s7567 + $0x2e8] sm:$0xff]
    %v7662 = vld [vmem:[%s7567 + $0x2f0] sm:$0xff]
    %v7663 = vld [vmem:[%s7567 + $0x2f8] sm:$0xff]
    %v7664 = vld [vmem:[%s7567 + $0x300] sm:$0xff]
    %v7665 = vld [vmem:[%s7567 + $0x308] sm:$0xff]
    %v7666 = vld [vmem:[%s7567 + $0x310] sm:$0xff]
    %v7667 = vld [vmem:[%s7567 + $0x318] sm:$0xff]
    %v7668 = vld [vmem:[%s7567 + $0x320] sm:$0xff]
    %v7669 = vld [vmem:[%s7567 + $0x328] sm:$0xff]
    %v7670 = vld [vmem:[%s7567 + $0x330] sm:$0xff]
    %v7671 = vld [vmem:[%s7567 + $0x338] sm:$0xff]
    %v7672 = vld [vmem:[%s7567 + $0x340] sm:$0xff]
    %v7673 = vld [vmem:[%s7567 + $0x348] sm:$0xff]
    %v7674 = vld [vmem:[%s7567 + $0x350] sm:$0xff]
    %v7675 = vld [vmem:[%s7567 + $0x358] sm:$0xff]
    %v7676 = vld [vmem:[%s7567 + $0x360] sm:$0xff]
    %v7677 = vld [vmem:[%s7567 + $0x368] sm:$0xff]
    %v7678 = vld [vmem:[%s7567 + $0x370] sm:$0xff]
    %v7679 = vld [vmem:[%s7567 + $0x378] sm:$0xff]
    %v7680 = vld [vmem:[%s7567 + $0x380] sm:$0xff]
    %v7681 = vld [vmem:[%s7567 + $0x388] sm:$0xff]
    %v7682 = vld [vmem:[%s7567 + $0x390] sm:$0xff]
    %v7683 = vld [vmem:[%s7567 + $0x398] sm:$0xff]
    %v7684 = vld [vmem:[%s7567 + $0x3a0] sm:$0xff]
    %v7685 = vld [vmem:[%s7567 + $0x3a8] sm:$0xff]
    %v7686 = vld [vmem:[%s7567 + $0x3b0] sm:$0xff]
    %v7687 = vld [vmem:[%s7567 + $0x3b8] sm:$0xff]
    %v7688 = vld [vmem:[%s7567 + $0x3c0] sm:$0xff]
    %v7689 = vld [vmem:[%s7567 + $0x3c8] sm:$0xff]
    %v7690 = vld [vmem:[%s7567 + $0x3d0] sm:$0xff]
    %v7691 = vld [vmem:[%s7567 + $0x3d8] sm:$0xff]
    %v7692 = vld [vmem:[%s7567 + $0x3e0] sm:$0xff]
    %v7693 = vld [vmem:[%s7567 + $0x3e8] sm:$0xff]
    %v7694 = vld [vmem:[%s7567 + $0x3f0] sm:$0xff]
    %v7695 = vld [vmem:[%s7567 + $0x3f8] sm:$0xff]
    %v7696 = vld [vmem:[%s7567 + $0x400] sm:$0xff]
    %v7697 = vld [vmem:[%s7567 + $0x408] sm:$0xff]
    %v7698 = vld [vmem:[%s7567 + $0x410] sm:$0xff]
    %v7699 = vld [vmem:[%s7567 + $0x418] sm:$0xff]
    %v7700 = vld [vmem:[%s7567 + $0x420] sm:$0xff]
    %v7701 = vld [vmem:[%s7567 + $0x428] sm:$0xff]
    %v7702 = vld [vmem:[%s7567 + $0x430] sm:$0xff]
    %v7703 = vld [vmem:[%s7567 + $0x438] sm:$0xff]
    %v7704 = vld [vmem:[%s7567 + $0x440] sm:$0xff]
    %v7705 = vld [vmem:[%s7567 + $0x448] sm:$0xff]
    %v7706 = vld [vmem:[%s7567 + $0x450] sm:$0xff]
    %v7707 = vld [vmem:[%s7567 + $0x458] sm:$0xff]
    %v7708 = vld [vmem:[%s7567 + $0x460] sm:$0xff]
    %v7709 = vld [vmem:[%s7567 + $0x468] sm:$0xff]
    %v7710 = vld [vmem:[%s7567 + $0x470] sm:$0xff]
    %v7711 = vld [vmem:[%s7567 + $0x478] sm:$0xff]
    %v7712 = vld [vmem:[%s7567 + $0x480] sm:$0xff]
    %v7713 = vld [vmem:[%s7567 + $0x488] sm:$0xff]
    %v7714 = vld [vmem:[%s7567 + $0x490] sm:$0xff]
    %v7715 = vld [vmem:[%s7567 + $0x498] sm:$0xff]
    %v7716 = vld [vmem:[%s7567 + $0x4a0] sm:$0xff]
    %v7717 = vld [vmem:[%s7567 + $0x4a8] sm:$0xff]
    %v7718 = vld [vmem:[%s7567 + $0x4b0] sm:$0xff]
    %v7719 = vld [vmem:[%s7567 + $0x4b8] sm:$0xff]
    %v7720 = vld [vmem:[%s7567 + $0x4c0] sm:$0xff]
    %v7721 = vld [vmem:[%s7567 + $0x4c8] sm:$0xff]
    %v7722 = vld [vmem:[%s7567 + $0x4d0] sm:$0xff]
    %v7723 = vld [vmem:[%s7567 + $0x4d8] sm:$0xff]
    %v7724 = vld [vmem:[%s7567 + $0x4e0] sm:$0xff]
    %v7725 = vld [vmem:[%s7567 + $0x4e8] sm:$0xff]
    %v7726 = vld [vmem:[%s7567 + $0x4f0] sm:$0xff]
    %v7727 = vld [vmem:[%s7567 + $0x4f8] sm:$0xff]
    %v7728 = vld [vmem:[%s7567 + $0x500] sm:$0xff]
    %v7729 = vld [vmem:[%s7567 + $0x508] sm:$0xff]
    %v7730 = vld [vmem:[%s7567 + $0x510] sm:$0xff]
    %v7731 = vld [vmem:[%s7567 + $0x518] sm:$0xff]
    %v7732 = vld [vmem:[%s7567 + $0x520] sm:$0xff]
    %v7733 = vld [vmem:[%s7567 + $0x528] sm:$0xff]
    %v7734 = vld [vmem:[%s7567 + $0x530] sm:$0xff]
    %v7735 = vld [vmem:[%s7567 + $0x538] sm:$0xff]
    %v7736 = vld [vmem:[%s7567 + $0x540] sm:$0xff]
    %v7737 = vld [vmem:[%s7567 + $0x548] sm:$0xff]
    %v7738 = vld [vmem:[%s7567 + $0x550] sm:$0xff]
    %v7739 = vld [vmem:[%s7567 + $0x558] sm:$0xff]
    %v7740 = vld [vmem:[%s7567 + $0x560] sm:$0xff]
    %v7741 = vld [vmem:[%s7567 + $0x568] sm:$0xff]
    %v7742 = vld [vmem:[%s7567 + $0x570] sm:$0xff]
    %v7743 = vld [vmem:[%s7567 + $0x578] sm:$0xff]
    %v7744 = vld [vmem:[%s7567 + $0x580] sm:$0xff]
    %v7745 = vld [vmem:[%s7567 + $0x588] sm:$0xff]
    %v7746 = vld [vmem:[%s7567 + $0x590] sm:$0xff]
    %v7747 = vld [vmem:[%s7567 + $0x598] sm:$0xff]
    %v7748 = vld [vmem:[%s7567 + $0x5a0] sm:$0xff]
    %v7749 = vld [vmem:[%s7567 + $0x5a8] sm:$0xff]
    %v7750 = vld [vmem:[%s7567 + $0x5b0] sm:$0xff]
    %v7751 = vld [vmem:[%s7567 + $0x5b8] sm:$0xff]
    %v7752 = vld [vmem:[%s7567 + $0x5c0] sm:$0xff]
    %v7753 = vld [vmem:[%s7567 + $0x5c8] sm:$0xff]
    %v7754 = vld [vmem:[%s7567 + $0x5d0] sm:$0xff]
    %v7755 = vld [vmem:[%s7567 + $0x5d8] sm:$0xff]
    %v7756 = vld [vmem:[%s7567 + $0x5e0] sm:$0xff]
    %v7757 = vld [vmem:[%s7567 + $0x5e8] sm:$0xff]
    %v7758 = vld [vmem:[%s7567 + $0x5f0] sm:$0xff]
    %v7759 = vld [vmem:[%s7567 + $0x5f8] sm:$0xff]
    %v7760 = vld [vmem:[%s7567 + $0x600] sm:$0xff]
    %v7761 = vld [vmem:[%s7567 + $0x608] sm:$0xff]
    %v7762 = vld [vmem:[%s7567 + $0x610] sm:$0xff]
    %v7763 = vld [vmem:[%s7567 + $0x618] sm:$0xff]
    %v7764 = vld [vmem:[%s7567 + $0x620] sm:$0xff]
    %v7765 = vld [vmem:[%s7567 + $0x628] sm:$0xff]
    %v7766 = vld [vmem:[%s7567 + $0x630] sm:$0xff]
    %v7767 = vld [vmem:[%s7567 + $0x638] sm:$0xff]
    %v7768 = vld [vmem:[%s7567 + $0x640] sm:$0xff]
    %v7769 = vld [vmem:[%s7567 + $0x648] sm:$0xff]
    %v7770 = vld [vmem:[%s7567 + $0x650] sm:$0xff]
    %v7771 = vld [vmem:[%s7567 + $0x658] sm:$0xff]
    %v7772 = vld [vmem:[%s7567 + $0x660] sm:$0xff]
    %v7773 = vld [vmem:[%s7567 + $0x668] sm:$0xff]
    %v7774 = vld [vmem:[%s7567 + $0x670] sm:$0xff]
    %v7775 = vld [vmem:[%s7567 + $0x678] sm:$0xff]
    %v7776 = vld [vmem:[%s7567 + $0x680] sm:$0xff]
    %v7777 = vld [vmem:[%s7567 + $0x688] sm:$0xff]
    %v7778 = vld [vmem:[%s7567 + $0x690] sm:$0xff]
    %v7779 = vld [vmem:[%s7567 + $0x698] sm:$0xff]
    %v7780 = vld [vmem:[%s7567 + $0x6a0] sm:$0xff]
    %v7781 = vld [vmem:[%s7567 + $0x6a8] sm:$0xff]
    %v7782 = vld [vmem:[%s7567 + $0x6b0] sm:$0xff]
    %v7783 = vld [vmem:[%s7567 + $0x6b8] sm:$0xff]
    %v7784 = vld [vmem:[%s7567 + $0x6c0] sm:$0xff]
    %v7785 = vld [vmem:[%s7567 + $0x6c8] sm:$0xff]
    %v7786 = vld [vmem:[%s7567 + $0x6d0] sm:$0xff]
    %v7787 = vld [vmem:[%s7567 + $0x6d8] sm:$0xff]
    %v7788 = vld [vmem:[%s7567 + $0x6e0] sm:$0xff]
    %v7789 = vld [vmem:[%s7567 + $0x6e8] sm:$0xff]
    %v7790 = vld [vmem:[%s7567 + $0x6f0] sm:$0xff]
    %v7791 = vld [vmem:[%s7567 + $0x6f8] sm:$0xff]
    %v7792 = vld [vmem:[%s7567 + $0x700] sm:$0xff]
    %v7793 = vld [vmem:[%s7567 + $0x708] sm:$0xff]
    %v7794 = vld [vmem:[%s7567 + $0x710] sm:$0xff]
    %v7795 = vld [vmem:[%s7567 + $0x718] sm:$0xff]
    %v7796 = vld [vmem:[%s7567 + $0x720] sm:$0xff]
    %v7797 = vld [vmem:[%s7567 + $0x728] sm:$0xff]
    %v7798 = vld [vmem:[%s7567 + $0x730] sm:$0xff]
    %v7799 = vld [vmem:[%s7567 + $0x738] sm:$0xff]
    %v7800 = vld [vmem:[%s7567 + $0x740] sm:$0xff]
    %v7801 = vld [vmem:[%s7567 + $0x748] sm:$0xff]
    %v7802 = vld [vmem:[%s7567 + $0x750] sm:$0xff]
    %v7803 = vld [vmem:[%s7567 + $0x758] sm:$0xff]
    %v7804 = vld [vmem:[%s7567 + $0x760] sm:$0xff]
    %v7805 = vld [vmem:[%s7567 + $0x768] sm:$0xff]
    %v7806 = vld [vmem:[%s7567 + $0x770] sm:$0xff]
    %v7807 = vld [vmem:[%s7567 + $0x778] sm:$0xff]
    %v7808 = vld [vmem:[%s7567 + $0x780] sm:$0xff]
    %v7809 = vld [vmem:[%s7567 + $0x788] sm:$0xff]
    %v7810 = vld [vmem:[%s7567 + $0x790] sm:$0xff]
    %v7811 = vld [vmem:[%s7567 + $0x798] sm:$0xff]
    %v7812 = vld [vmem:[%s7567 + $0x7a0] sm:$0xff]
    %v7813 = vld [vmem:[%s7567 + $0x7a8] sm:$0xff]
    %v7814 = vld [vmem:[%s7567 + $0x7b0] sm:$0xff]
    %v7815 = vld [vmem:[%s7567 + $0x7b8] sm:$0xff]
    %v7816 = vld [vmem:[%s7567 + $0x7c0] sm:$0xff]
    %v7817 = vld [vmem:[%s7567 + $0x7c8] sm:$0xff]
    %v7818 = vld [vmem:[%s7567 + $0x7d0] sm:$0xff]
    %v7819 = vld [vmem:[%s7567 + $0x7d8] sm:$0xff]
    %v7820 = vld [vmem:[%s7567 + $0x7e0] sm:$0xff]
    %v7821 = vld [vmem:[%s7567 + $0x7e8] sm:$0xff]
    %v7822 = vld [vmem:[%s7567 + $0x7f0] sm:$0xff]
    %v7823 = vld [vmem:[%s7567 + $0x7f8] sm:$0xff]
    %v7824 = vld [vmem:[%s7567 + $0x800] sm:$0xff]
    %v7825 = vld [vmem:[%s7567 + $0x808] sm:$0xff]
    %v7826 = vld [vmem:[%s7567 + $0x810] sm:$0xff]
    %v7827 = vld [vmem:[%s7567 + $0x818] sm:$0xff]
    %v7828 = vld [vmem:[%s7567 + $0x820] sm:$0xff]
    %v7829 = vld [vmem:[%s7567 + $0x828] sm:$0xff]
    %v7830 = vld [vmem:[%s7567 + $0x830] sm:$0xff]
    %v7831 = vld [vmem:[%s7567 + $0x838] sm:$0xff]
    %v7832 = vld [vmem:[%s7567 + $0x840] sm:$0xff]
    %v7833 = vld [vmem:[%s7567 + $0x848] sm:$0xff]
    %v7834 = vld [vmem:[%s7567 + $0x850] sm:$0xff]
    %v7835 = vld [vmem:[%s7567 + $0x858] sm:$0xff]
    %v7836 = vld [vmem:[%s7567 + $0x860] sm:$0xff]
    %v7837 = vld [vmem:[%s7567 + $0x868] sm:$0xff]
    %v7838 = vld [vmem:[%s7567 + $0x870] sm:$0xff]
    %v7839 = vld [vmem:[%s7567 + $0x878] sm:$0xff]
    %v7840 = vld [vmem:[%s7567 + $0x880] sm:$0xff]
    %v7841 = vld [vmem:[%s7567 + $0x888] sm:$0xff]
    %v7842 = vld [vmem:[%s7567 + $0x890] sm:$0xff]
    %v7843 = vld [vmem:[%s7567 + $0x898] sm:$0xff]
    %v7844 = vld [vmem:[%s7567 + $0x8a0] sm:$0xff]
    %v7845 = vld [vmem:[%s7567 + $0x8a8] sm:$0xff]
    %v7846 = vld [vmem:[%s7567 + $0x8b0] sm:$0xff]
    %v7847 = vld [vmem:[%s7567 + $0x8b8] sm:$0xff]
    %v7848 = vld [vmem:[%s7567 + $0x8c0] sm:$0xff]
    %v7849 = vld [vmem:[%s7567 + $0x8c8] sm:$0xff]
    %v7850 = vld [vmem:[%s7567 + $0x8d0] sm:$0xff]
    %v7851 = vld [vmem:[%s7567 + $0x8d8] sm:$0xff]
    %v7852 = vld [vmem:[%s7567 + $0x8e0] sm:$0xff]
    %v7853 = vld [vmem:[%s7567 + $0x8e8] sm:$0xff]
    %v7854 = vld [vmem:[%s7567 + $0x8f0] sm:$0xff]
    %v7855 = vld [vmem:[%s7567 + $0x8f8] sm:$0xff]
    %v7856 = vld [vmem:[%s7567 + $0x900] sm:$0xff]
    %v7857 = vld [vmem:[%s7567 + $0x908] sm:$0xff]
    %v7858 = vld [vmem:[%s7567 + $0x910] sm:$0xff]
    %v7859 = vld [vmem:[%s7567 + $0x918] sm:$0xff]
    %v7860 = vld [vmem:[%s7567 + $0x920] sm:$0xff]
    %v7861 = vld [vmem:[%s7567 + $0x928] sm:$0xff]
    %v7862 = vld [vmem:[%s7567 + $0x930] sm:$0xff]
    %v7863 = vld [vmem:[%s7567 + $0x938] sm:$0xff]
    %v7864 = vld [vmem:[%s7567 + $0x940] sm:$0xff]
    %v7865 = vld [vmem:[%s7567 + $0x948] sm:$0xff]
    %v7866 = vld [vmem:[%s7567 + $0x950] sm:$0xff]
    %v7867 = vld [vmem:[%s7567 + $0x958] sm:$0xff]
    %v7868 = vld [vmem:[%s7567 + $0x960] sm:$0xff]
    %v7869 = vld [vmem:[%s7567 + $0x968] sm:$0xff]
    %v7870 = vld [vmem:[%s7567 + $0x970] sm:$0xff]
    %v7871 = vld [vmem:[%s7567 + $0x978] sm:$0xff]
    %v7872 = vld [vmem:[%s7567 + $0x980] sm:$0xff]
    %v7873 = vld [vmem:[%s7567 + $0x988] sm:$0xff]
    %v7874 = vld [vmem:[%s7567 + $0x990] sm:$0xff]
    %v7875 = vld [vmem:[%s7567 + $0x998] sm:$0xff]
    %v7876 = vld [vmem:[%s7567 + $0x9a0] sm:$0xff]
    %v7877 = vld [vmem:[%s7567 + $0x9a8] sm:$0xff]
    %v7878 = vld [vmem:[%s7567 + $0x9b0] sm:$0xff]
    %v7879 = vld [vmem:[%s7567 + $0x9b8] sm:$0xff]
    %v7880 = vld [vmem:[%s7567 + $0x9c0] sm:$0xff]
    %v7881 = vld [vmem:[%s7567 + $0x9c8] sm:$0xff]
    %v7882 = vld [vmem:[%s7567 + $0x9d0] sm:$0xff]
    %v7883 = vld [vmem:[%s7567 + $0x9d8] sm:$0xff]
    %v7884 = vld [vmem:[%s7567 + $0x9e0] sm:$0xff]
    %v7885 = vld [vmem:[%s7567 + $0x9e8] sm:$0xff]
    %v7886 = vld [vmem:[%s7567 + $0x9f0] sm:$0xff]
    %v7887 = vld [vmem:[%s7567 + $0x9f8] sm:$0xff]
    %v7888 = vld [vmem:[%s7567 + $0xa00] sm:$0xff]
    %v7889 = vld [vmem:[%s7567 + $0xa08] sm:$0xff]
    %v7890 = vld [vmem:[%s7567 + $0xa10] sm:$0xff]
    %v7891 = vld [vmem:[%s7567 + $0xa18] sm:$0xff]
    %v7892 = vld [vmem:[%s7567 + $0xa20] sm:$0xff]
    %v7893 = vld [vmem:[%s7567 + $0xa28] sm:$0xff]
    %v7894 = vld [vmem:[%s7567 + $0xa30] sm:$0xff]
    %v7895 = vld [vmem:[%s7567 + $0xa38] sm:$0xff]
    %v7896 = vld [vmem:[%s7567 + $0xa40] sm:$0xff]
    %v7897 = vld [vmem:[%s7567 + $0xa48] sm:$0xff]
    %v7898 = vld [vmem:[%s7567 + $0xa50] sm:$0xff]
    %v7899 = vld [vmem:[%s7567 + $0xa58] sm:$0xff]
    %v7900 = vld [vmem:[%s7567 + $0xa60] sm:$0xff]
    %v7901 = vld [vmem:[%s7567 + $0xa68] sm:$0xff]
    %v7902 = vld [vmem:[%s7567 + $0xa70] sm:$0xff]
    %v7903 = vld [vmem:[%s7567 + $0xa78] sm:$0xff]
    %v7904 = vld [vmem:[%s7567 + $0xa80] sm:$0xff]
    %v7905 = vld [vmem:[%s7567 + $0xa88] sm:$0xff]
    %v7906 = vld [vmem:[%s7567 + $0xa90] sm:$0xff]
    %v7907 = vld [vmem:[%s7567 + $0xa98] sm:$0xff]
    %v7908 = vld [vmem:[%s7567 + $0xaa0] sm:$0xff]
    %v7909 = vld [vmem:[%s7567 + $0xaa8] sm:$0xff]
    %v7910 = vld [vmem:[%s7567 + $0xab0] sm:$0xff]
    %v7911 = vld [vmem:[%s7567 + $0xab8] sm:$0xff]
    %v7912 = vld [vmem:[%s7567 + $0xac0] sm:$0xff]
    %v7913 = vld [vmem:[%s7567 + $0xac8] sm:$0xff]
    %v7914 = vld [vmem:[%s7567 + $0xad0] sm:$0xff]
    %v7915 = vld [vmem:[%s7567 + $0xad8] sm:$0xff]
    %v7916 = vld [vmem:[%s7567 + $0xae0] sm:$0xff]
    %v7917 = vld [vmem:[%s7567 + $0xae8] sm:$0xff]
    %v7918 = vld [vmem:[%s7567 + $0xaf0] sm:$0xff]
    %v7919 = vld [vmem:[%s7567 + $0xaf8] sm:$0xff]
    %v7920 = vld [vmem:[%s7567 + $0xb00] sm:$0xff]
    %v7921 = vld [vmem:[%s7567 + $0xb08] sm:$0xff]
    %v7922 = vld [vmem:[%s7567 + $0xb10] sm:$0xff]
    %v7923 = vld [vmem:[%s7567 + $0xb18] sm:$0xff]
    %v7924 = vld [vmem:[%s7567 + $0xb20] sm:$0xff]
    %v7925 = vld [vmem:[%s7567 + $0xb28] sm:$0xff]
    %v7926 = vld [vmem:[%s7567 + $0xb30] sm:$0xff]
    %v7927 = vld [vmem:[%s7567 + $0xb38] sm:$0xff]
    %v7928 = vld [vmem:[%s7567 + $0xb40] sm:$0xff]
    %v7929 = vld [vmem:[%s7567 + $0xb48] sm:$0xff]
    %v7930 = vld [vmem:[%s7567 + $0xb50] sm:$0xff]
    %v7931 = vld [vmem:[%s7567 + $0xb58] sm:$0xff]
    %v7932 = vld [vmem:[%s7567 + $0xb60] sm:$0xff]
    %v7933 = vld [vmem:[%s7567 + $0xb68] sm:$0xff]
    %v7934 = vld [vmem:[%s7567 + $0xb70] sm:$0xff]
    %v7935 = vld [vmem:[%s7567 + $0xb78] sm:$0xff]
    %v7936 = vld [vmem:[%s7567 + $0xb80] sm:$0xff]
    %v7937 = vld [vmem:[%s7567 + $0xb88] sm:$0xff]
    %v7938 = vld [vmem:[%s7567 + $0xb90] sm:$0xff]
    %v7939 = vld [vmem:[%s7567 + $0xb98] sm:$0xff]
    %v7940 = vld [vmem:[%s7567 + $0xba0] sm:$0xff]
    %v7941 = vld [vmem:[%s7567 + $0xba8] sm:$0xff]
    %v7942 = vld [vmem:[%s7567 + $0xbb0] sm:$0xff]
    %v7943 = vld [vmem:[%s7567 + $0xbb8] sm:$0xff]
    %v7944 = vld [vmem:[%s7567 + $0xbc0] sm:$0xff]
    %v7945 = vld [vmem:[%s7567 + $0xbc8] sm:$0xff]
    %v7946 = vld [vmem:[%s7567 + $0xbd0] sm:$0xff]
    %v7947 = vld [vmem:[%s7567 + $0xbd8] sm:$0xff]
    %v7948 = vld [vmem:[%s7567 + $0xbe0] sm:$0xff]
    %v7949 = vld [vmem:[%s7567 + $0xbe8] sm:$0xff]
    %v7950 = vld [vmem:[%s7567 + $0xbf0] sm:$0xff]
    %v7951 = vld [vmem:[%s7567 + $0xbf8] sm:$0xff]
    %v7952 = vld [vmem:[%s7567 + $0xc00] sm:$0xff]
    %v7953 = vld [vmem:[%s7567 + $0xc08] sm:$0xff]
    %v7954 = vld [vmem:[%s7567 + $0xc10] sm:$0xff]
    %v7955 = vld [vmem:[%s7567 + $0xc18] sm:$0xff]
    %v7956 = vld [vmem:[%s7567 + $0xc20] sm:$0xff]
    %v7957 = vld [vmem:[%s7567 + $0xc28] sm:$0xff]
    %v7958 = vld [vmem:[%s7567 + $0xc30] sm:$0xff]
    %v7959 = vld [vmem:[%s7567 + $0xc38] sm:$0xff]
    %v7960 = vld [vmem:[%s7567 + $0xc40] sm:$0xff]
    %v7961 = vld [vmem:[%s7567 + $0xc48] sm:$0xff]
    %v7962 = vld [vmem:[%s7567 + $0xc50] sm:$0xff]
    %v7963 = vld [vmem:[%s7567 + $0xc58] sm:$0xff]
    %v7964 = vld [vmem:[%s7567 + $0xc60] sm:$0xff]
    %v7965 = vld [vmem:[%s7567 + $0xc68] sm:$0xff]
    %v7966 = vld [vmem:[%s7567 + $0xc70] sm:$0xff]
    %v7967 = vld [vmem:[%s7567 + $0xc78] sm:$0xff]
    %v7968 = vld [vmem:[%s7567 + $0xc80] sm:$0xff]
    %v7969 = vld [vmem:[%s7567 + $0xc88] sm:$0xff]
    %v7970 = vld [vmem:[%s7567 + $0xc90] sm:$0xff]
    %v7971 = vld [vmem:[%s7567 + $0xc98] sm:$0xff]
    %v7972 = vld [vmem:[%s7567 + $0xca0] sm:$0xff]
    %v7973 = vld [vmem:[%s7567 + $0xca8] sm:$0xff]
    %v7974 = vld [vmem:[%s7567 + $0xcb0] sm:$0xff]
    %v7975 = vld [vmem:[%s7567 + $0xcb8] sm:$0xff]
    %v7976 = vld [vmem:[%s7567 + $0xcc0] sm:$0xff]
    %v7977 = vld [vmem:[%s7567 + $0xcc8] sm:$0xff]
    %v7978 = vld [vmem:[%s7567 + $0xcd0] sm:$0xff]
    %v7979 = vld [vmem:[%s7567 + $0xcd8] sm:$0xff]
    %v7980 = vld [vmem:[%s7567 + $0xce0] sm:$0xff]
    %v7981 = vld [vmem:[%s7567 + $0xce8] sm:$0xff]
    %v7982 = vld [vmem:[%s7567 + $0xcf0] sm:$0xff]
    %v7983 = vld [vmem:[%s7567 + $0xcf8] sm:$0xff]
    %v7984 = vld [vmem:[%s7567 + $0xd00] sm:$0xff]
    %v7985 = vld [vmem:[%s7567 + $0xd08] sm:$0xff]
    %v7986 = vld [vmem:[%s7567 + $0xd10] sm:$0xff]
    %v7987 = vld [vmem:[%s7567 + $0xd18] sm:$0xff]
    %v7988 = vld [vmem:[%s7567 + $0xd20] sm:$0xff]
    %v7989 = vld [vmem:[%s7567 + $0xd28] sm:$0xff]
    %v7990 = vld [vmem:[%s7567 + $0xd30] sm:$0xff]
    %v7991 = vld [vmem:[%s7567 + $0xd38] sm:$0xff]
    %v7992 = vld [vmem:[%s7567 + $0xd40] sm:$0xff]
    %v7993 = vld [vmem:[%s7567 + $0xd48] sm:$0xff]
    %v7994 = vld [vmem:[%s7567 + $0xd50] sm:$0xff]
    %v7995 = vld [vmem:[%s7567 + $0xd58] sm:$0xff]
    %v7996 = vld [vmem:[%s7567 + $0xd60] sm:$0xff]
    %v7997 = vld [vmem:[%s7567 + $0xd68] sm:$0xff]
    %v7998 = vld [vmem:[%s7567 + $0xd70] sm:$0xff]
    %v7999 = vld [vmem:[%s7567 + $0xd78] sm:$0xff]
    %v8000 = vld [vmem:[%s7567 + $0xd80] sm:$0xff]
    %v8001 = vld [vmem:[%s7567 + $0xd88] sm:$0xff]
    %v8002 = vld [vmem:[%s7567 + $0xd90] sm:$0xff]
    %v8003 = vld [vmem:[%s7567 + $0xd98] sm:$0xff]
    %v8004 = vld [vmem:[%s7567 + $0xda0] sm:$0xff]
    %v8005 = vld [vmem:[%s7567 + $0xda8] sm:$0xff]
    %v8006 = vld [vmem:[%s7567 + $0xdb0] sm:$0xff]
    %v8007 = vld [vmem:[%s7567 + $0xdb8] sm:$0xff]
    %v8008 = vld [vmem:[%s7567 + $0xdc0] sm:$0xff]
    %v8009 = vld [vmem:[%s7567 + $0xdc8] sm:$0xff]
    %v8010 = vld [vmem:[%s7567 + $0xdd0] sm:$0xff]
    %v8011 = vld [vmem:[%s7567 + $0xdd8] sm:$0xff]
    %v8012 = vld [vmem:[%s7567 + $0xde0] sm:$0xff]
    %v8013 = vld [vmem:[%s7567 + $0xde8] sm:$0xff]
    %v8014 = vld [vmem:[%s7567 + $0xdf0] sm:$0xff]
    %v8015 = vld [vmem:[%s7567 + $0xdf8] sm:$0xff]
    %v8016 = vld [vmem:[%s7567 + $0xe00] sm:$0xff]
    %v8017 = vld [vmem:[%s7567 + $0xe08] sm:$0xff]
    %v8018 = vld [vmem:[%s7567 + $0xe10] sm:$0xff]
    %v8019 = vld [vmem:[%s7567 + $0xe18] sm:$0xff]
    %v8020 = vld [vmem:[%s7567 + $0xe20] sm:$0xff]
    %v8021 = vld [vmem:[%s7567 + $0xe28] sm:$0xff]
    %v8022 = vld [vmem:[%s7567 + $0xe30] sm:$0xff]
    %v8023 = vld [vmem:[%s7567 + $0xe38] sm:$0xff]
    %v8024 = vld [vmem:[%s7567 + $0xe40] sm:$0xff]
    %v8025 = vld [vmem:[%s7567 + $0xe48] sm:$0xff]
    %v8026 = vld [vmem:[%s7567 + $0xe50] sm:$0xff]
    %v8027 = vld [vmem:[%s7567 + $0xe58] sm:$0xff]
    %v8028 = vld [vmem:[%s7567 + $0xe60] sm:$0xff]
    %v8029 = vld [vmem:[%s7567 + $0xe68] sm:$0xff]
    %v8030 = vld [vmem:[%s7567 + $0xe70] sm:$0xff]
    %v8031 = vld [vmem:[%s7567 + $0xe78] sm:$0xff]
    %v8032 = vld [vmem:[%s7567 + $0xe80] sm:$0xff]
    %v8033 = vld [vmem:[%s7567 + $0xe88] sm:$0xff]
    %v8034 = vld [vmem:[%s7567 + $0xe90] sm:$0xff]
    %v8035 = vld [vmem:[%s7567 + $0xe98] sm:$0xff]
    %v8036 = vld [vmem:[%s7567 + $0xea0] sm:$0xff]
    %v8037 = vld [vmem:[%s7567 + $0xea8] sm:$0xff]
    %v8038 = vld [vmem:[%s7567 + $0xeb0] sm:$0xff]
    %v8039 = vld [vmem:[%s7567 + $0xeb8] sm:$0xff]
    %v8040 = vld [vmem:[%s7567 + $0xec0] sm:$0xff]
    %v8041 = vld [vmem:[%s7567 + $0xec8] sm:$0xff]
    %v8042 = vld [vmem:[%s7567 + $0xed0] sm:$0xff]
    %v8043 = vld [vmem:[%s7567 + $0xed8] sm:$0xff]
    %v8044 = vld [vmem:[%s7567 + $0xee0] sm:$0xff]
    %v8045 = vld [vmem:[%s7567 + $0xee8] sm:$0xff]
    %v8046 = vld [vmem:[%s7567 + $0xef0] sm:$0xff]
    %v8047 = vld [vmem:[%s7567 + $0xef8] sm:$0xff]
    %v8048 = vld [vmem:[%s7567 + $0xf00] sm:$0xff]
    %v8049 = vld [vmem:[%s7567 + $0xf08] sm:$0xff]
    %v8050 = vld [vmem:[%s7567 + $0xf10] sm:$0xff]
    %v8051 = vld [vmem:[%s7567 + $0xf18] sm:$0xff]
    %v8052 = vld [vmem:[%s7567 + $0xf20] sm:$0xff]
    %v8053 = vld [vmem:[%s7567 + $0xf28] sm:$0xff]
    %v8054 = vld [vmem:[%s7567 + $0xf30] sm:$0xff]
    %v8055 = vld [vmem:[%s7567 + $0xf38] sm:$0xff]
    %v8056 = vld [vmem:[%s7567 + $0xf40] sm:$0xff]
    %v8057 = vld [vmem:[%s7567 + $0xf48] sm:$0xff]
    %v8058 = vld [vmem:[%s7567 + $0xf50] sm:$0xff]
    %v8059 = vld [vmem:[%s7567 + $0xf58] sm:$0xff]
    %v8060 = vld [vmem:[%s7567 + $0xf60] sm:$0xff]
    %v8061 = vld [vmem:[%s7567 + $0xf68] sm:$0xff]
    %v8062 = vld [vmem:[%s7567 + $0xf70] sm:$0xff]
    %v8063 = vld [vmem:[%s7567 + $0xf78] sm:$0xff]
    %v8064 = vld [vmem:[%s7567 + $0xf80] sm:$0xff]
    %v8065 = vld [vmem:[%s7567 + $0xf88] sm:$0xff]
    %v8066 = vld [vmem:[%s7567 + $0xf90] sm:$0xff]
    %v8067 = vld [vmem:[%s7567 + $0xf98] sm:$0xff]
    %v8068 = vld [vmem:[%s7567 + $0xfa0] sm:$0xff]
    %v8069 = vld [vmem:[%s7567 + $0xfa8] sm:$0xff]
    %v8070 = vld [vmem:[%s7567 + $0xfb0] sm:$0xff]
    %v8071 = vld [vmem:[%s7567 + $0xfb8] sm:$0xff]
    %v8072 = vld [vmem:[%s7567 + $0xfc0] sm:$0xff]
    %v8073 = vld [vmem:[%s7567 + $0xfc8] sm:$0xff]
    %v8074 = vld [vmem:[%s7567 + $0xfd0] sm:$0xff]
    %v8075 = vld [vmem:[%s7567 + $0xfd8] sm:$0xff]
    %v8076 = vld [vmem:[%s7567 + $0xfe0] sm:$0xff]
    %v8077 = vld [vmem:[%s7567 + $0xfe8] sm:$0xff]
    %v8078 = vld [vmem:[%s7567 + $0xff0] sm:$0xff]
    %v8079 = vld [vmem:[%s7567 + $0xff8] sm:$0xff]
    %v8080 = vld [vmem:[%s7567 + $0x1000] sm:$0xff]
    %v8081 = vld [vmem:[%s7567 + $0x1008] sm:$0xff]
    %v8082 = vld [vmem:[%s7567 + $0x1010] sm:$0xff]
    %v8083 = vld [vmem:[%s7567 + $0x1018] sm:$0xff]
    %v8084 = vld [vmem:[%s7567 + $0x1020] sm:$0xff]
    %v8085 = vld [vmem:[%s7567 + $0x1028] sm:$0xff]
    %v8086 = vld [vmem:[%s7567 + $0x1030] sm:$0xff]
    %v8087 = vld [vmem:[%s7567 + $0x1038] sm:$0xff]
    %v8088 = vld [vmem:[%s7567 + $0x1040] sm:$0xff]
    %v8089 = vld [vmem:[%s7567 + $0x1048] sm:$0xff]
    %v8090 = vld [vmem:[%s7567 + $0x1050] sm:$0xff]
    %v8091 = vld [vmem:[%s7567 + $0x1058] sm:$0xff]
    %v8092 = vld [vmem:[%s7567 + $0x1060] sm:$0xff]
    %v8093 = vld [vmem:[%s7567 + $0x1068] sm:$0xff]
    %v8094 = vld [vmem:[%s7567 + $0x1070] sm:$0xff]
    %v8095 = vld [vmem:[%s7567 + $0x1078] sm:$0xff]
    %v8096 = vld [vmem:[%s7567 + $0x1080] sm:$0xff]
    %v8097 = vld [vmem:[%s7567 + $0x1088] sm:$0xff]
    %v8098 = vld [vmem:[%s7567 + $0x1090] sm:$0xff]
    %v8099 = vld [vmem:[%s7567 + $0x1098] sm:$0xff]
    %v8100 = vld [vmem:[%s7567 + $0x10a0] sm:$0xff]
    %v8101 = vld [vmem:[%s7567 + $0x10a8] sm:$0xff]
    %v8102 = vld [vmem:[%s7567 + $0x10b0] sm:$0xff]
    %v8103 = vld [vmem:[%s7567 + $0x10b8] sm:$0xff]
    %v8104 = vld [vmem:[%s7567 + $0x10c0] sm:$0xff]
    %v8105 = vld [vmem:[%s7567 + $0x10c8] sm:$0xff]
    %v8106 = vld [vmem:[%s7567 + $0x10d0] sm:$0xff]
    %v8107 = vld [vmem:[%s7567 + $0x10d8] sm:$0xff]
    %v8108 = vld [vmem:[%s7567 + $0x10e0] sm:$0xff]
    %v8109 = vld [vmem:[%s7567 + $0x10e8] sm:$0xff]
    %v8110 = vld [vmem:[%s7567 + $0x10f0] sm:$0xff]
    %v8111 = vld [vmem:[%s7567 + $0x10f8] sm:$0xff]
    %v8112 = vld [vmem:[%s7567 + $0x1100] sm:$0xff]
    %v8113 = vld [vmem:[%s7567 + $0x1108] sm:$0xff]
    %v8114 = vld [vmem:[%s7567 + $0x1110] sm:$0xff]
    %v8115 = vld [vmem:[%s7567 + $0x1118] sm:$0xff]
    %v8116 = vld [vmem:[%s7567 + $0x1120] sm:$0xff]
    %v8117 = vld [vmem:[%s7567 + $0x1128] sm:$0xff]
    %v8118 = vld [vmem:[%s7567 + $0x1130] sm:$0xff]
    %v8119 = vld [vmem:[%s7567 + $0x1138] sm:$0xff]
    %v8120 = vld [vmem:[%s7567 + $0x1140] sm:$0xff]
    %v8121 = vld [vmem:[%s7567 + $0x1148] sm:$0xff]
    %v8122 = vld [vmem:[%s7567 + $0x1150] sm:$0xff]
    %v8123 = vld [vmem:[%s7567 + $0x1158] sm:$0xff]
    %v8124 = vld [vmem:[%s7567 + $0x1160] sm:$0xff]
    %v8125 = vld [vmem:[%s7567 + $0x1168] sm:$0xff]
    %v8126 = vld [vmem:[%s7567 + $0x1170] sm:$0xff]
    %v8127 = vld [vmem:[%s7567 + $0x1178] sm:$0xff]
    %v8128 = vld [vmem:[%s7567 + $0x1180] sm:$0xff]
    %v8129 = vld [vmem:[%s7567 + $0x1188] sm:$0xff]
    %v8130 = vld [vmem:[%s7567 + $0x1190] sm:$0xff]
    %v8131 = vld [vmem:[%s7567 + $0x1198] sm:$0xff]
    %v8132 = vld [vmem:[%s7567 + $0x11a0] sm:$0xff]
    %v8133 = vld [vmem:[%s7567 + $0x11a8] sm:$0xff]
    %v8134 = vld [vmem:[%s7567 + $0x11b0] sm:$0xff]
    %v8135 = vld [vmem:[%s7567 + $0x11b8] sm:$0xff]
    %v8136 = vld [vmem:[%s7567 + $0x11c0] sm:$0xff]
    %v8137 = vld [vmem:[%s7567 + $0x11c8] sm:$0xff]
    %v8138 = vld [vmem:[%s7567 + $0x11d0] sm:$0xff]
    %v8139 = vld [vmem:[%s7567 + $0x11d8] sm:$0xff]
    %v8140 = vld [vmem:[%s7567 + $0x11e0] sm:$0xff]
    %v8141 = vld [vmem:[%s7567 + $0x11e8] sm:$0xff]
    %v8142 = vld [vmem:[%s7567 + $0x11f0] sm:$0xff]
    %v8143 = vld [vmem:[%s7567 + $0x11f8] sm:$0xff]
    %v8144 = vrot.slane %v4522, 4
    %v8145 = vrot.slane %v4602, 4
    %v8146 = vrot.slane %v4682, 4
    %v8147 = vrot.slane %v4762, 4
    %v8148 = vrot.slane %v4842, 4
    %v8149 = vrot.slane %v4922, 4
    %8156 = vmatpush.msra.mxu0 %v7658
    %8157 = vmatpush.msra.mxu0 %v7652
    %8158 = vmatpush.msra.mxu0 %v7646
    %8159 = vmatpush.msra.mxu0 %v7640
    %8160 = vmatpush.msra.mxu0 %v7634
    %8161 = vmatpush.msra.mxu0 %v7628
    %8162 = vmatpush.msra.mxu0 %v7622
    %8163 = vmatpush.msra.mxu0 %v7616
    %8164 = vmatpush.msra.mxu0 %v7610
    %8165 = vmatpush.msra.mxu0 %v7604
    %8166 = vmatpush.msra.mxu0 %v7598
    %8167 = vmatpush.msra.mxu0 %v7592
    %8168 = vmatpush.msra.mxu0 %v7586
    %8169 = vmatpush.msra.mxu0 %v7580
    %8170 = vmatpush.msra.mxu0 %v7574
    %8171 = vmatpush.msra.mxu0 %v7568
    %8172 = vmatmul.f32.gmra.mxu0 %v8144
    %v8173 = vpop.f32.mrf.mxu0
    %v8174 = vadd.f32 0.0, %v8173
    %8175 = vdwg.mxu0
    %8176 = vmatpush.msra.mxu0 %v7754
    %8177 = vmatpush.msra.mxu0 %v7748
    %8178 = vmatpush.msra.mxu0 %v7742
    %8179 = vmatpush.msra.mxu0 %v7736
    %8180 = vmatpush.msra.mxu0 %v7730
    %8181 = vmatpush.msra.mxu0 %v7724
    %8182 = vmatpush.msra.mxu0 %v7718
    %8183 = vmatpush.msra.mxu0 %v7712
    %8184 = vmatpush.msra.mxu0 %v7706
    %8185 = vmatpush.msra.mxu0 %v7700
    %8186 = vmatpush.msra.mxu0 %v7694
    %8187 = vmatpush.msra.mxu0 %v7688
    %8188 = vmatpush.msra.mxu0 %v7682
    %8189 = vmatpush.msra.mxu0 %v7676
    %8190 = vmatpush.msra.mxu0 %v7670
    %8191 = vmatpush.msra.mxu0 %v7664
    %8192 = vmatmul.f32.gmra.mxu0 %v8145
    %v8193 = vpop.f32.mrf.mxu0
    %v8194 = vadd.f32 %v8174, %v8193
    %8195 = vdwg.mxu0
    %8196 = vmatpush.msra.mxu0 %v7850
    %8197 = vmatpush.msra.mxu0 %v7844
    %8198 = vmatpush.msra.mxu0 %v7838
    %8199 = vmatpush.msra.mxu0 %v7832
    %8200 = vmatpush.msra.mxu0 %v7826
    %8201 = vmatpush.msra.mxu0 %v7820
    %8202 = vmatpush.msra.mxu0 %v7814
    %8203 = vmatpush.msra.mxu0 %v7808
    %8204 = vmatpush.msra.mxu0 %v7802
    %8205 = vmatpush.msra.mxu0 %v7796
    %8206 = vmatpush.msra.mxu0 %v7790
    %8207 = vmatpush.msra.mxu0 %v7784
    %8208 = vmatpush.msra.mxu0 %v7778
    %8209 = vmatpush.msra.mxu0 %v7772
    %8210 = vmatpush.msra.mxu0 %v7766
    %8211 = vmatpush.msra.mxu0 %v7760
    %8212 = vmatmul.f32.gmra.mxu0 %v8146
    %v8213 = vpop.f32.mrf.mxu0
    %v8214 = vadd.f32 %v8194, %v8213
    %8215 = vdwg.mxu0
    %8216 = vmatpush.msra.mxu0 %v7946
    %8217 = vmatpush.msra.mxu0 %v7940
    %8218 = vmatpush.msra.mxu0 %v7934
    %8219 = vmatpush.msra.mxu0 %v7928
    %8220 = vmatpush.msra.mxu0 %v7922
    %8221 = vmatpush.msra.mxu0 %v7916
    %8222 = vmatpush.msra.mxu0 %v7910
    %8223 = vmatpush.msra.mxu0 %v7904
    %8224 = vmatpush.msra.mxu0 %v7898
    %8225 = vmatpush.msra.mxu0 %v7892
    %8226 = vmatpush.msra.mxu0 %v7886
    %8227 = vmatpush.msra.mxu0 %v7880
    %8228 = vmatpush.msra.mxu0 %v7874
    %8229 = vmatpush.msra.mxu0 %v7868
    %8230 = vmatpush.msra.mxu0 %v7862
    %8231 = vmatpush.msra.mxu0 %v7856
    %8232 = vmatmul.f32.gmra.mxu0 %v8147
    %v8233 = vpop.f32.mrf.mxu0
    %v8234 = vadd.f32 %v8214, %v8233
    %8235 = vdwg.mxu0
    %8236 = vmatpush.msra.mxu0 %v8042
    %8237 = vmatpush.msra.mxu0 %v8036
    %8238 = vmatpush.msra.mxu0 %v8030
    %8239 = vmatpush.msra.mxu0 %v8024
    %8240 = vmatpush.msra.mxu0 %v8018
    %8241 = vmatpush.msra.mxu0 %v8012
    %8242 = vmatpush.msra.mxu0 %v8006
    %8243 = vmatpush.msra.mxu0 %v8000
    %8244 = vmatpush.msra.mxu0 %v7994
    %8245 = vmatpush.msra.mxu0 %v7988
    %8246 = vmatpush.msra.mxu0 %v7982
    %8247 = vmatpush.msra.mxu0 %v7976
    %8248 = vmatpush.msra.mxu0 %v7970
    %8249 = vmatpush.msra.mxu0 %v7964
    %8250 = vmatpush.msra.mxu0 %v7958
    %8251 = vmatpush.msra.mxu0 %v7952
    %8252 = vmatmul.f32.gmra.mxu0 %v8148
    %v8253 = vpop.f32.mrf.mxu0
    %v8254 = vadd.f32 %v8234, %v8253
    %8255 = vdwg.mxu0
    %8256 = vmatpush.msra.mxu0 %v8138
    %8257 = vmatpush.msra.mxu0 %v8132
    %8258 = vmatpush.msra.mxu0 %v8126
    %8259 = vmatpush.msra.mxu0 %v8120
    %8260 = vmatpush.msra.mxu0 %v8114
    %8261 = vmatpush.msra.mxu0 %v8108
    %8262 = vmatpush.msra.mxu0 %v8102
    %8263 = vmatpush.msra.mxu0 %v8096
    %8264 = vmatpush.msra.mxu0 %v8090
    %8265 = vmatpush.msra.mxu0 %v8084
    %8266 = vmatpush.msra.mxu0 %v8078
    %8267 = vmatpush.msra.mxu0 %v8072
    %8268 = vmatpush.msra.mxu0 %v8066
    %8269 = vmatpush.msra.mxu0 %v8060
    %8270 = vmatpush.msra.mxu0 %v8054
    %8271 = vmatpush.msra.mxu0 %v8048
    %8272 = vmatmul.f32.gmra.mxu0 %v8149
    %v8273 = vpop.f32.mrf.mxu0
    %v8274 = vadd.f32 %v8254, %v8273
    %8275 = vdwg.mxu0
    %8276 = vmatpush.msra.mxu0 %v7659
    %8277 = vmatpush.msra.mxu0 %v7653
    %8278 = vmatpush.msra.mxu0 %v7647
    %8279 = vmatpush.msra.mxu0 %v7641
    %8280 = vmatpush.msra.mxu0 %v7635
    %8281 = vmatpush.msra.mxu0 %v7629
    %8282 = vmatpush.msra.mxu0 %v7623
    %8283 = vmatpush.msra.mxu0 %v7617
    %8284 = vmatpush.msra.mxu0 %v7611
    %8285 = vmatpush.msra.mxu0 %v7605
    %8286 = vmatpush.msra.mxu0 %v7599
    %8287 = vmatpush.msra.mxu0 %v7593
    %8288 = vmatpush.msra.mxu0 %v7587
    %8289 = vmatpush.msra.mxu0 %v7581
    %8290 = vmatpush.msra.mxu0 %v7575
    %8291 = vmatpush.msra.mxu0 %v7569
    %8292 = vmatmul.f32.gmra.mxu0 %v8144
    %v8293 = vpop.f32.mrf.mxu0
    %v8294 = vadd.f32 0.0, %v8293
    %8295 = vdwg.mxu0
    %8296 = vmatpush.msra.mxu0 %v7755
    %8297 = vmatpush.msra.mxu0 %v7749
    %8298 = vmatpush.msra.mxu0 %v7743
    %8299 = vmatpush.msra.mxu0 %v7737
    %8300 = vmatpush.msra.mxu0 %v7731
    %8301 = vmatpush.msra.mxu0 %v7725
    %8302 = vmatpush.msra.mxu0 %v7719
    %8303 = vmatpush.msra.mxu0 %v7713
    %8304 = vmatpush.msra.mxu0 %v7707
    %8305 = vmatpush.msra.mxu0 %v7701
    %8306 = vmatpush.msra.mxu0 %v7695
    %8307 = vmatpush.msra.mxu0 %v7689
    %8308 = vmatpush.msra.mxu0 %v7683
    %8309 = vmatpush.msra.mxu0 %v7677
    %8310 = vmatpush.msra.mxu0 %v7671
    %8311 = vmatpush.msra.mxu0 %v7665
    %8312 = vmatmul.f32.gmra.mxu0 %v8145
    %v8313 = vpop.f32.mrf.mxu0
    %v8314 = vadd.f32 %v8294, %v8313
    %8315 = vdwg.mxu0
    %8316 = vmatpush.msra.mxu0 %v7851
    %8317 = vmatpush.msra.mxu0 %v7845
    %8318 = vmatpush.msra.mxu0 %v7839
    %8319 = vmatpush.msra.mxu0 %v7833
    %8320 = vmatpush.msra.mxu0 %v7827
    %8321 = vmatpush.msra.mxu0 %v7821
    %8322 = vmatpush.msra.mxu0 %v7815
    %8323 = vmatpush.msra.mxu0 %v7809
    %8324 = vmatpush.msra.mxu0 %v7803
    %8325 = vmatpush.msra.mxu0 %v7797
    %8326 = vmatpush.msra.mxu0 %v7791
    %8327 = vmatpush.msra.mxu0 %v7785
    %8328 = vmatpush.msra.mxu0 %v7779
    %8329 = vmatpush.msra.mxu0 %v7773
    %8330 = vmatpush.msra.mxu0 %v7767
    %8331 = vmatpush.msra.mxu0 %v7761
    %8332 = vmatmul.f32.gmra.mxu0 %v8146
    %v8333 = vpop.f32.mrf.mxu0
    %v8334 = vadd.f32 %v8314, %v8333
    %8335 = vdwg.mxu0
    %8336 = vmatpush.msra.mxu0 %v7947
    %8337 = vmatpush.msra.mxu0 %v7941
    %8338 = vmatpush.msra.mxu0 %v7935
    %8339 = vmatpush.msra.mxu0 %v7929
    %8340 = vmatpush.msra.mxu0 %v7923
    %8341 = vmatpush.msra.mxu0 %v7917
    %8342 = vmatpush.msra.mxu0 %v7911
    %8343 = vmatpush.msra.mxu0 %v7905
    %8344 = vmatpush.msra.mxu0 %v7899
    %8345 = vmatpush.msra.mxu0 %v7893
    %8346 = vmatpush.msra.mxu0 %v7887
    %8347 = vmatpush.msra.mxu0 %v7881
    %8348 = vmatpush.msra.mxu0 %v7875
    %8349 = vmatpush.msra.mxu0 %v7869
    %8350 = vmatpush.msra.mxu0 %v7863
    %8351 = vmatpush.msra.mxu0 %v7857
    %8352 = vmatmul.f32.gmra.mxu0 %v8147
    %v8353 = vpop.f32.mrf.mxu0
    %v8354 = vadd.f32 %v8334, %v8353
    %8355 = vdwg.mxu0
    %8356 = vmatpush.msra.mxu0 %v8043
    %8357 = vmatpush.msra.mxu0 %v8037
    %8358 = vmatpush.msra.mxu0 %v8031
    %8359 = vmatpush.msra.mxu0 %v8025
    %8360 = vmatpush.msra.mxu0 %v8019
    %8361 = vmatpush.msra.mxu0 %v8013
    %8362 = vmatpush.msra.mxu0 %v8007
    %8363 = vmatpush.msra.mxu0 %v8001
    %8364 = vmatpush.msra.mxu0 %v7995
    %8365 = vmatpush.msra.mxu0 %v7989
    %8366 = vmatpush.msra.mxu0 %v7983
    %8367 = vmatpush.msra.mxu0 %v7977
    %8368 = vmatpush.msra.mxu0 %v7971
    %8369 = vmatpush.msra.mxu0 %v7965
    %8370 = vmatpush.msra.mxu0 %v7959
    %8371 = vmatpush.msra.mxu0 %v7953
    %8372 = vmatmul.f32.gmra.mxu0 %v8148
    %v8373 = vpop.f32.mrf.mxu0
    %v8374 = vadd.f32 %v8354, %v8373
    %8375 = vdwg.mxu0
    %8376 = vmatpush.msra.mxu0 %v8139
    %8377 = vmatpush.msra.mxu0 %v8133
    %8378 = vmatpush.msra.mxu0 %v8127
    %8379 = vmatpush.msra.mxu0 %v8121
    %8380 = vmatpush.msra.mxu0 %v8115
    %8381 = vmatpush.msra.mxu0 %v8109
    %8382 = vmatpush.msra.mxu0 %v8103
    %8383 = vmatpush.msra.mxu0 %v8097
    %8384 = vmatpush.msra.mxu0 %v8091
    %8385 = vmatpush.msra.mxu0 %v8085
    %8386 = vmatpush.msra.mxu0 %v8079
    %8387 = vmatpush.msra.mxu0 %v8073
    %8388 = vmatpush.msra.mxu0 %v8067
    %8389 = vmatpush.msra.mxu0 %v8061
    %8390 = vmatpush.msra.mxu0 %v8055
    %8391 = vmatpush.msra.mxu0 %v8049
    %8392 = vmatmul.f32.gmra.mxu0 %v8149
    %v8393 = vpop.f32.mrf.mxu0
    %v8394 = vadd.f32 %v8374, %v8393
    %8395 = vdwg.mxu0
    %8396 = vmatpush.msra.mxu0 %v7660
    %8397 = vmatpush.msra.mxu0 %v7654
    %8398 = vmatpush.msra.mxu0 %v7648
    %8399 = vmatpush.msra.mxu0 %v7642
    %8400 = vmatpush.msra.mxu0 %v7636
    %8401 = vmatpush.msra.mxu0 %v7630
    %8402 = vmatpush.msra.mxu0 %v7624
    %8403 = vmatpush.msra.mxu0 %v7618
    %8404 = vmatpush.msra.mxu0 %v7612
    %8405 = vmatpush.msra.mxu0 %v7606
    %8406 = vmatpush.msra.mxu0 %v7600
    %8407 = vmatpush.msra.mxu0 %v7594
    %8408 = vmatpush.msra.mxu0 %v7588
    %8409 = vmatpush.msra.mxu0 %v7582
    %8410 = vmatpush.msra.mxu0 %v7576
    %8411 = vmatpush.msra.mxu0 %v7570
    %8412 = vmatmul.f32.gmra.mxu0 %v8144
    %v8413 = vpop.f32.mrf.mxu0
    %v8414 = vadd.f32 0.0, %v8413
    %8415 = vdwg.mxu0
    %8416 = vmatpush.msra.mxu0 %v7756
    %8417 = vmatpush.msra.mxu0 %v7750
    %8418 = vmatpush.msra.mxu0 %v7744
    %8419 = vmatpush.msra.mxu0 %v7738
    %8420 = vmatpush.msra.mxu0 %v7732
    %8421 = vmatpush.msra.mxu0 %v7726
    %8422 = vmatpush.msra.mxu0 %v7720
    %8423 = vmatpush.msra.mxu0 %v7714
    %8424 = vmatpush.msra.mxu0 %v7708
    %8425 = vmatpush.msra.mxu0 %v7702
    %8426 = vmatpush.msra.mxu0 %v7696
    %8427 = vmatpush.msra.mxu0 %v7690
    %8428 = vmatpush.msra.mxu0 %v7684
    %8429 = vmatpush.msra.mxu0 %v7678
    %8430 = vmatpush.msra.mxu0 %v7672
    %8431 = vmatpush.msra.mxu0 %v7666
    %8432 = vmatmul.f32.gmra.mxu0 %v8145
    %v8433 = vpop.f32.mrf.mxu0
    %v8434 = vadd.f32 %v8414, %v8433
    %8435 = vdwg.mxu0
    %8436 = vmatpush.msra.mxu0 %v7852
    %8437 = vmatpush.msra.mxu0 %v7846
    %8438 = vmatpush.msra.mxu0 %v7840
    %8439 = vmatpush.msra.mxu0 %v7834
    %8440 = vmatpush.msra.mxu0 %v7828
    %8441 = vmatpush.msra.mxu0 %v7822
    %8442 = vmatpush.msra.mxu0 %v7816
    %8443 = vmatpush.msra.mxu0 %v7810
    %8444 = vmatpush.msra.mxu0 %v7804
    %8445 = vmatpush.msra.mxu0 %v7798
    %8446 = vmatpush.msra.mxu0 %v7792
    %8447 = vmatpush.msra.mxu0 %v7786
    %8448 = vmatpush.msra.mxu0 %v7780
    %8449 = vmatpush.msra.mxu0 %v7774
    %8450 = vmatpush.msra.mxu0 %v7768
    %8451 = vmatpush.msra.mxu0 %v7762
    %8452 = vmatmul.f32.gmra.mxu0 %v8146
    %v8453 = vpop.f32.mrf.mxu0
    %v8454 = vadd.f32 %v8434, %v8453
    %8455 = vdwg.mxu0
    %8456 = vmatpush.msra.mxu0 %v7948
    %8457 = vmatpush.msra.mxu0 %v7942
    %8458 = vmatpush.msra.mxu0 %v7936
    %8459 = vmatpush.msra.mxu0 %v7930
    %8460 = vmatpush.msra.mxu0 %v7924
    %8461 = vmatpush.msra.mxu0 %v7918
    %8462 = vmatpush.msra.mxu0 %v7912
    %8463 = vmatpush.msra.mxu0 %v7906
    %8464 = vmatpush.msra.mxu0 %v7900
    %8465 = vmatpush.msra.mxu0 %v7894
    %8466 = vmatpush.msra.mxu0 %v7888
    %8467 = vmatpush.msra.mxu0 %v7882
    %8468 = vmatpush.msra.mxu0 %v7876
    %8469 = vmatpush.msra.mxu0 %v7870
    %8470 = vmatpush.msra.mxu0 %v7864
    %8471 = vmatpush.msra.mxu0 %v7858
    %8472 = vmatmul.f32.gmra.mxu0 %v8147
    %v8473 = vpop.f32.mrf.mxu0
    %v8474 = vadd.f32 %v8454, %v8473
    %8475 = vdwg.mxu0
    %8476 = vmatpush.msra.mxu0 %v8044
    %8477 = vmatpush.msra.mxu0 %v8038
    %8478 = vmatpush.msra.mxu0 %v8032
    %8479 = vmatpush.msra.mxu0 %v8026
    %8480 = vmatpush.msra.mxu0 %v8020
    %8481 = vmatpush.msra.mxu0 %v8014
    %8482 = vmatpush.msra.mxu0 %v8008
    %8483 = vmatpush.msra.mxu0 %v8002
    %8484 = vmatpush.msra.mxu0 %v7996
    %8485 = vmatpush.msra.mxu0 %v7990
    %8486 = vmatpush.msra.mxu0 %v7984
    %8487 = vmatpush.msra.mxu0 %v7978
    %8488 = vmatpush.msra.mxu0 %v7972
    %8489 = vmatpush.msra.mxu0 %v7966
    %8490 = vmatpush.msra.mxu0 %v7960
    %8491 = vmatpush.msra.mxu0 %v7954
    %8492 = vmatmul.f32.gmra.mxu0 %v8148
    %v8493 = vpop.f32.mrf.mxu0
    %v8494 = vadd.f32 %v8474, %v8493
    %8495 = vdwg.mxu0
    %8496 = vmatpush.msra.mxu0 %v8140
    %8497 = vmatpush.msra.mxu0 %v8134
    %8498 = vmatpush.msra.mxu0 %v8128
    %8499 = vmatpush.msra.mxu0 %v8122
    %8500 = vmatpush.msra.mxu0 %v8116
    %8501 = vmatpush.msra.mxu0 %v8110
    %8502 = vmatpush.msra.mxu0 %v8104
    %8503 = vmatpush.msra.mxu0 %v8098
    %8504 = vmatpush.msra.mxu0 %v8092
    %8505 = vmatpush.msra.mxu0 %v8086
    %8506 = vmatpush.msra.mxu0 %v8080
    %8507 = vmatpush.msra.mxu0 %v8074
    %8508 = vmatpush.msra.mxu0 %v8068
    %8509 = vmatpush.msra.mxu0 %v8062
    %8510 = vmatpush.msra.mxu0 %v8056
    %8511 = vmatpush.msra.mxu0 %v8050
    %8512 = vmatmul.f32.gmra.mxu0 %v8149
    %v8513 = vpop.f32.mrf.mxu0
    %v8514 = vadd.f32 %v8494, %v8513
    %8515 = vdwg.mxu0
    %8516 = vmatpush.msra.mxu0 %v7661
    %8517 = vmatpush.msra.mxu0 %v7655
    %8518 = vmatpush.msra.mxu0 %v7649
    %8519 = vmatpush.msra.mxu0 %v7643
    %8520 = vmatpush.msra.mxu0 %v7637
    %8521 = vmatpush.msra.mxu0 %v7631
    %8522 = vmatpush.msra.mxu0 %v7625
    %8523 = vmatpush.msra.mxu0 %v7619
    %8524 = vmatpush.msra.mxu0 %v7613
    %8525 = vmatpush.msra.mxu0 %v7607
    %8526 = vmatpush.msra.mxu0 %v7601
    %8527 = vmatpush.msra.mxu0 %v7595
    %8528 = vmatpush.msra.mxu0 %v7589
    %8529 = vmatpush.msra.mxu0 %v7583
    %8530 = vmatpush.msra.mxu0 %v7577
    %8531 = vmatpush.msra.mxu0 %v7571
    %8532 = vmatmul.f32.gmra.mxu0 %v8144
    %v8533 = vpop.f32.mrf.mxu0
    %v8534 = vadd.f32 0.0, %v8533
    %8535 = vdwg.mxu0
    %8536 = vmatpush.msra.mxu0 %v7757
    %8537 = vmatpush.msra.mxu0 %v7751
    %8538 = vmatpush.msra.mxu0 %v7745
    %8539 = vmatpush.msra.mxu0 %v7739
    %8540 = vmatpush.msra.mxu0 %v7733
    %8541 = vmatpush.msra.mxu0 %v7727
    %8542 = vmatpush.msra.mxu0 %v7721
    %8543 = vmatpush.msra.mxu0 %v7715
    %8544 = vmatpush.msra.mxu0 %v7709
    %8545 = vmatpush.msra.mxu0 %v7703
    %8546 = vmatpush.msra.mxu0 %v7697
    %8547 = vmatpush.msra.mxu0 %v7691
    %8548 = vmatpush.msra.mxu0 %v7685
    %8549 = vmatpush.msra.mxu0 %v7679
    %8550 = vmatpush.msra.mxu0 %v7673
    %8551 = vmatpush.msra.mxu0 %v7667
    %8552 = vmatmul.f32.gmra.mxu0 %v8145
    %v8553 = vpop.f32.mrf.mxu0
    %v8554 = vadd.f32 %v8534, %v8553
    %8555 = vdwg.mxu0
    %8556 = vmatpush.msra.mxu0 %v7853
    %8557 = vmatpush.msra.mxu0 %v7847
    %8558 = vmatpush.msra.mxu0 %v7841
    %8559 = vmatpush.msra.mxu0 %v7835
    %8560 = vmatpush.msra.mxu0 %v7829
    %8561 = vmatpush.msra.mxu0 %v7823
    %8562 = vmatpush.msra.mxu0 %v7817
    %8563 = vmatpush.msra.mxu0 %v7811
    %8564 = vmatpush.msra.mxu0 %v7805
    %8565 = vmatpush.msra.mxu0 %v7799
    %8566 = vmatpush.msra.mxu0 %v7793
    %8567 = vmatpush.msra.mxu0 %v7787
    %8568 = vmatpush.msra.mxu0 %v7781
    %8569 = vmatpush.msra.mxu0 %v7775
    %8570 = vmatpush.msra.mxu0 %v7769
    %8571 = vmatpush.msra.mxu0 %v7763
    %8572 = vmatmul.f32.gmra.mxu0 %v8146
    %v8573 = vpop.f32.mrf.mxu0
    %v8574 = vadd.f32 %v8554, %v8573
    %8575 = vdwg.mxu0
    %8576 = vmatpush.msra.mxu0 %v7949
    %8577 = vmatpush.msra.mxu0 %v7943
    %8578 = vmatpush.msra.mxu0 %v7937
    %8579 = vmatpush.msra.mxu0 %v7931
    %8580 = vmatpush.msra.mxu0 %v7925
    %8581 = vmatpush.msra.mxu0 %v7919
    %8582 = vmatpush.msra.mxu0 %v7913
    %8583 = vmatpush.msra.mxu0 %v7907
    %8584 = vmatpush.msra.mxu0 %v7901
    %8585 = vmatpush.msra.mxu0 %v7895
    %8586 = vmatpush.msra.mxu0 %v7889
    %8587 = vmatpush.msra.mxu0 %v7883
    %8588 = vmatpush.msra.mxu0 %v7877
    %8589 = vmatpush.msra.mxu0 %v7871
    %8590 = vmatpush.msra.mxu0 %v7865
    %8591 = vmatpush.msra.mxu0 %v7859
    %8592 = vmatmul.f32.gmra.mxu0 %v8147
    %v8593 = vpop.f32.mrf.mxu0
    %v8594 = vadd.f32 %v8574, %v8593
    %8595 = vdwg.mxu0
    %8596 = vmatpush.msra.mxu0 %v8045
    %8597 = vmatpush.msra.mxu0 %v8039
    %8598 = vmatpush.msra.mxu0 %v8033
    %8599 = vmatpush.msra.mxu0 %v8027
    %8600 = vmatpush.msra.mxu0 %v8021
    %8601 = vmatpush.msra.mxu0 %v8015
    %8602 = vmatpush.msra.mxu0 %v8009
    %8603 = vmatpush.msra.mxu0 %v8003
    %8604 = vmatpush.msra.mxu0 %v7997
    %8605 = vmatpush.msra.mxu0 %v7991
    %8606 = vmatpush.msra.mxu0 %v7985
    %8607 = vmatpush.msra.mxu0 %v7979
    %8608 = vmatpush.msra.mxu0 %v7973
    %8609 = vmatpush.msra.mxu0 %v7967
    %8610 = vmatpush.msra.mxu0 %v7961
    %8611 = vmatpush.msra.mxu0 %v7955
    %8612 = vmatmul.f32.gmra.mxu0 %v8148
    %v8613 = vpop.f32.mrf.mxu0
    %v8614 = vadd.f32 %v8594, %v8613
    %8615 = vdwg.mxu0
    %8616 = vmatpush.msra.mxu0 %v8141
    %8617 = vmatpush.msra.mxu0 %v8135
    %8618 = vmatpush.msra.mxu0 %v8129
    %8619 = vmatpush.msra.mxu0 %v8123
    %8620 = vmatpush.msra.mxu0 %v8117
    %8621 = vmatpush.msra.mxu0 %v8111
    %8622 = vmatpush.msra.mxu0 %v8105
    %8623 = vmatpush.msra.mxu0 %v8099
    %8624 = vmatpush.msra.mxu0 %v8093
    %8625 = vmatpush.msra.mxu0 %v8087
    %8626 = vmatpush.msra.mxu0 %v8081
    %8627 = vmatpush.msra.mxu0 %v8075
    %8628 = vmatpush.msra.mxu0 %v8069
    %8629 = vmatpush.msra.mxu0 %v8063
    %8630 = vmatpush.msra.mxu0 %v8057
    %8631 = vmatpush.msra.mxu0 %v8051
    %8632 = vmatmul.f32.gmra.mxu0 %v8149
    %v8633 = vpop.f32.mrf.mxu0
    %v8634 = vadd.f32 %v8614, %v8633
    %8635 = vdwg.mxu0
    %8636 = vmatpush.msra.mxu0 %v7662
    %8637 = vmatpush.msra.mxu0 %v7656
    %8638 = vmatpush.msra.mxu0 %v7650
    %8639 = vmatpush.msra.mxu0 %v7644
    %8640 = vmatpush.msra.mxu0 %v7638
    %8641 = vmatpush.msra.mxu0 %v7632
    %8642 = vmatpush.msra.mxu0 %v7626
    %8643 = vmatpush.msra.mxu0 %v7620
    %8644 = vmatpush.msra.mxu0 %v7614
    %8645 = vmatpush.msra.mxu0 %v7608
    %8646 = vmatpush.msra.mxu0 %v7602
    %8647 = vmatpush.msra.mxu0 %v7596
    %8648 = vmatpush.msra.mxu0 %v7590
    %8649 = vmatpush.msra.mxu0 %v7584
    %8650 = vmatpush.msra.mxu0 %v7578
    %8651 = vmatpush.msra.mxu0 %v7572
    %8652 = vmatmul.f32.gmra.mxu0 %v8144
    %v8653 = vpop.f32.mrf.mxu0
    %v8654 = vadd.f32 0.0, %v8653
    %8655 = vdwg.mxu0
    %8656 = vmatpush.msra.mxu0 %v7758
    %8657 = vmatpush.msra.mxu0 %v7752
    %8658 = vmatpush.msra.mxu0 %v7746
    %8659 = vmatpush.msra.mxu0 %v7740
    %8660 = vmatpush.msra.mxu0 %v7734
    %8661 = vmatpush.msra.mxu0 %v7728
    %8662 = vmatpush.msra.mxu0 %v7722
    %8663 = vmatpush.msra.mxu0 %v7716
    %8664 = vmatpush.msra.mxu0 %v7710
    %8665 = vmatpush.msra.mxu0 %v7704
    %8666 = vmatpush.msra.mxu0 %v7698
    %8667 = vmatpush.msra.mxu0 %v7692
    %8668 = vmatpush.msra.mxu0 %v7686
    %8669 = vmatpush.msra.mxu0 %v7680
    %8670 = vmatpush.msra.mxu0 %v7674
    %8671 = vmatpush.msra.mxu0 %v7668
    %8672 = vmatmul.f32.gmra.mxu0 %v8145
    %v8673 = vpop.f32.mrf.mxu0
    %v8674 = vadd.f32 %v8654, %v8673
    %8675 = vdwg.mxu0
    %8676 = vmatpush.msra.mxu0 %v7854
    %8677 = vmatpush.msra.mxu0 %v7848
    %8678 = vmatpush.msra.mxu0 %v7842
    %8679 = vmatpush.msra.mxu0 %v7836
    %8680 = vmatpush.msra.mxu0 %v7830
    %8681 = vmatpush.msra.mxu0 %v7824
    %8682 = vmatpush.msra.mxu0 %v7818
    %8683 = vmatpush.msra.mxu0 %v7812
    %8684 = vmatpush.msra.mxu0 %v7806
    %8685 = vmatpush.msra.mxu0 %v7800
    %8686 = vmatpush.msra.mxu0 %v7794
    %8687 = vmatpush.msra.mxu0 %v7788
    %8688 = vmatpush.msra.mxu0 %v7782
    %8689 = vmatpush.msra.mxu0 %v7776
    %8690 = vmatpush.msra.mxu0 %v7770
    %8691 = vmatpush.msra.mxu0 %v7764
    %8692 = vmatmul.f32.gmra.mxu0 %v8146
    %v8693 = vpop.f32.mrf.mxu0
    %v8694 = vadd.f32 %v8674, %v8693
    %8695 = vdwg.mxu0
    %8696 = vmatpush.msra.mxu0 %v7950
    %8697 = vmatpush.msra.mxu0 %v7944
    %8698 = vmatpush.msra.mxu0 %v7938
    %8699 = vmatpush.msra.mxu0 %v7932
    %8700 = vmatpush.msra.mxu0 %v7926
    %8701 = vmatpush.msra.mxu0 %v7920
    %8702 = vmatpush.msra.mxu0 %v7914
    %8703 = vmatpush.msra.mxu0 %v7908
    %8704 = vmatpush.msra.mxu0 %v7902
    %8705 = vmatpush.msra.mxu0 %v7896
    %8706 = vmatpush.msra.mxu0 %v7890
    %8707 = vmatpush.msra.mxu0 %v7884
    %8708 = vmatpush.msra.mxu0 %v7878
    %8709 = vmatpush.msra.mxu0 %v7872
    %8710 = vmatpush.msra.mxu0 %v7866
    %8711 = vmatpush.msra.mxu0 %v7860
    %8712 = vmatmul.f32.gmra.mxu0 %v8147
    %v8713 = vpop.f32.mrf.mxu0
    %v8714 = vadd.f32 %v8694, %v8713
    %8715 = vdwg.mxu0
    %8716 = vmatpush.msra.mxu0 %v8046
    %8717 = vmatpush.msra.mxu0 %v8040
    %8718 = vmatpush.msra.mxu0 %v8034
    %8719 = vmatpush.msra.mxu0 %v8028
    %8720 = vmatpush.msra.mxu0 %v8022
    %8721 = vmatpush.msra.mxu0 %v8016
    %8722 = vmatpush.msra.mxu0 %v8010
    %8723 = vmatpush.msra.mxu0 %v8004
    %8724 = vmatpush.msra.mxu0 %v7998
    %8725 = vmatpush.msra.mxu0 %v7992
    %8726 = vmatpush.msra.mxu0 %v7986
    %8727 = vmatpush.msra.mxu0 %v7980
    %8728 = vmatpush.msra.mxu0 %v7974
    %8729 = vmatpush.msra.mxu0 %v7968
    %8730 = vmatpush.msra.mxu0 %v7962
    %8731 = vmatpush.msra.mxu0 %v7956
    %8732 = vmatmul.f32.gmra.mxu0 %v8148
    %v8733 = vpop.f32.mrf.mxu0
    %v8734 = vadd.f32 %v8714, %v8733
    %8735 = vdwg.mxu0
    %8736 = vmatpush.msra.mxu0 %v8142
    %8737 = vmatpush.msra.mxu0 %v8136
    %8738 = vmatpush.msra.mxu0 %v8130
    %8739 = vmatpush.msra.mxu0 %v8124
    %8740 = vmatpush.msra.mxu0 %v8118
    %8741 = vmatpush.msra.mxu0 %v8112
    %8742 = vmatpush.msra.mxu0 %v8106
    %8743 = vmatpush.msra.mxu0 %v8100
    %8744 = vmatpush.msra.mxu0 %v8094
    %8745 = vmatpush.msra.mxu0 %v8088
    %8746 = vmatpush.msra.mxu0 %v8082
    %8747 = vmatpush.msra.mxu0 %v8076
    %8748 = vmatpush.msra.mxu0 %v8070
    %8749 = vmatpush.msra.mxu0 %v8064
    %8750 = vmatpush.msra.mxu0 %v8058
    %8751 = vmatpush.msra.mxu0 %v8052
    %8752 = vmatmul.f32.gmra.mxu0 %v8149
    %v8753 = vpop.f32.mrf.mxu0
    %v8754 = vadd.f32 %v8734, %v8753
    %8755 = vdwg.mxu0
    %8756 = vmatpush.msra.mxu0 %v7663
    %8757 = vmatpush.msra.mxu0 %v7657
    %8758 = vmatpush.msra.mxu0 %v7651
    %8759 = vmatpush.msra.mxu0 %v7645
    %8760 = vmatpush.msra.mxu0 %v7639
    %8761 = vmatpush.msra.mxu0 %v7633
    %8762 = vmatpush.msra.mxu0 %v7627
    %8763 = vmatpush.msra.mxu0 %v7621
    %8764 = vmatpush.msra.mxu0 %v7615
    %8765 = vmatpush.msra.mxu0 %v7609
    %8766 = vmatpush.msra.mxu0 %v7603
    %8767 = vmatpush.msra.mxu0 %v7597
    %8768 = vmatpush.msra.mxu0 %v7591
    %8769 = vmatpush.msra.mxu0 %v7585
    %8770 = vmatpush.msra.mxu0 %v7579
    %8771 = vmatpush.msra.mxu0 %v7573
    %8772 = vmatmul.f32.gmra.mxu0 %v8144
    %v8773 = vpop.f32.mrf.mxu0
    %v8774 = vadd.f32 0.0, %v8773
    %8775 = vdwg.mxu0
    %8776 = vmatpush.msra.mxu0 %v7759
    %8777 = vmatpush.msra.mxu0 %v7753
    %8778 = vmatpush.msra.mxu0 %v7747
    %8779 = vmatpush.msra.mxu0 %v7741
    %8780 = vmatpush.msra.mxu0 %v7735
    %8781 = vmatpush.msra.mxu0 %v7729
    %8782 = vmatpush.msra.mxu0 %v7723
    %8783 = vmatpush.msra.mxu0 %v7717
    %8784 = vmatpush.msra.mxu0 %v7711
    %8785 = vmatpush.msra.mxu0 %v7705
    %8786 = vmatpush.msra.mxu0 %v7699
    %8787 = vmatpush.msra.mxu0 %v7693
    %8788 = vmatpush.msra.mxu0 %v7687
    %8789 = vmatpush.msra.mxu0 %v7681
    %8790 = vmatpush.msra.mxu0 %v7675
    %8791 = vmatpush.msra.mxu0 %v7669
    %8792 = vmatmul.f32.gmra.mxu0 %v8145
    %v8793 = vpop.f32.mrf.mxu0
    %v8794 = vadd.f32 %v8774, %v8793
    %8795 = vdwg.mxu0
    %8796 = vmatpush.msra.mxu0 %v7855
    %8797 = vmatpush.msra.mxu0 %v7849
    %8798 = vmatpush.msra.mxu0 %v7843
    %8799 = vmatpush.msra.mxu0 %v7837
    %8800 = vmatpush.msra.mxu0 %v7831
    %8801 = vmatpush.msra.mxu0 %v7825
    %8802 = vmatpush.msra.mxu0 %v7819
    %8803 = vmatpush.msra.mxu0 %v7813
    %8804 = vmatpush.msra.mxu0 %v7807
    %8805 = vmatpush.msra.mxu0 %v7801
    %8806 = vmatpush.msra.mxu0 %v7795
    %8807 = vmatpush.msra.mxu0 %v7789
    %8808 = vmatpush.msra.mxu0 %v7783
    %8809 = vmatpush.msra.mxu0 %v7777
    %8810 = vmatpush.msra.mxu0 %v7771
    %8811 = vmatpush.msra.mxu0 %v7765
    %8812 = vmatmul.f32.gmra.mxu0 %v8146
    %v8813 = vpop.f32.mrf.mxu0
    %v8814 = vadd.f32 %v8794, %v8813
    %8815 = vdwg.mxu0
    %8816 = vmatpush.msra.mxu0 %v7951
    %8817 = vmatpush.msra.mxu0 %v7945
    %8818 = vmatpush.msra.mxu0 %v7939
    %8819 = vmatpush.msra.mxu0 %v7933
    %8820 = vmatpush.msra.mxu0 %v7927
    %8821 = vmatpush.msra.mxu0 %v7921
    %8822 = vmatpush.msra.mxu0 %v7915
    %8823 = vmatpush.msra.mxu0 %v7909
    %8824 = vmatpush.msra.mxu0 %v7903
    %8825 = vmatpush.msra.mxu0 %v7897
    %8826 = vmatpush.msra.mxu0 %v7891
    %8827 = vmatpush.msra.mxu0 %v7885
    %8828 = vmatpush.msra.mxu0 %v7879
    %8829 = vmatpush.msra.mxu0 %v7873
    %8830 = vmatpush.msra.mxu0 %v7867
    %8831 = vmatpush.msra.mxu0 %v7861
    %8832 = vmatmul.f32.gmra.mxu0 %v8147
    %v8833 = vpop.f32.mrf.mxu0
    %v8834 = vadd.f32 %v8814, %v8833
    %8835 = vdwg.mxu0
    %8836 = vmatpush.msra.mxu0 %v8047
    %8837 = vmatpush.msra.mxu0 %v8041
    %8838 = vmatpush.msra.mxu0 %v8035
    %8839 = vmatpush.msra.mxu0 %v8029
    %8840 = vmatpush.msra.mxu0 %v8023
    %8841 = vmatpush.msra.mxu0 %v8017
    %8842 = vmatpush.msra.mxu0 %v8011
    %8843 = vmatpush.msra.mxu0 %v8005
    %8844 = vmatpush.msra.mxu0 %v7999
    %8845 = vmatpush.msra.mxu0 %v7993
    %8846 = vmatpush.msra.mxu0 %v7987
    %8847 = vmatpush.msra.mxu0 %v7981
    %8848 = vmatpush.msra.mxu0 %v7975
    %8849 = vmatpush.msra.mxu0 %v7969
    %8850 = vmatpush.msra.mxu0 %v7963
    %8851 = vmatpush.msra.mxu0 %v7957
    %8852 = vmatmul.f32.gmra.mxu0 %v8148
    %v8853 = vpop.f32.mrf.mxu0
    %v8854 = vadd.f32 %v8834, %v8853
    %8855 = vdwg.mxu0
    %8856 = vmatpush.msra.mxu0 %v8143
    %8857 = vmatpush.msra.mxu0 %v8137
    %8858 = vmatpush.msra.mxu0 %v8131
    %8859 = vmatpush.msra.mxu0 %v8125
    %8860 = vmatpush.msra.mxu0 %v8119
    %8861 = vmatpush.msra.mxu0 %v8113
    %8862 = vmatpush.msra.mxu0 %v8107
    %8863 = vmatpush.msra.mxu0 %v8101
    %8864 = vmatpush.msra.mxu0 %v8095
    %8865 = vmatpush.msra.mxu0 %v8089
    %8866 = vmatpush.msra.mxu0 %v8083
    %8867 = vmatpush.msra.mxu0 %v8077
    %8868 = vmatpush.msra.mxu0 %v8071
    %8869 = vmatpush.msra.mxu0 %v8065
    %8870 = vmatpush.msra.mxu0 %v8059
    %8871 = vmatpush.msra.mxu0 %v8053
    %8872 = vmatmul.f32.gmra.mxu0 %v8149
    %v8873 = vpop.f32.mrf.mxu0
    %v8874 = vadd.f32 %v8854, %v8873
    %8875 = vdwg.mxu0
    %v8876 = vadd.f32 %v7561, %v8274
    %v8877 = vadd.f32 %v7562, %v8394
    %v8878 = vadd.f32 %v7563, %v8514
    %v8879 = vadd.f32 %v7564, %v8634
    %v8880 = vadd.f32 %v7565, %v8754
    %v8881 = vadd.f32 %v7566, %v8874
    %v8882 = vld [vmem:[#allocation19] sm:$0xff]
    %v8883 = vld [vmem:[#allocation19 + $0x8] sm:$0xff]
    %v8884 = vld [vmem:[#allocation19 + $0x10] sm:$0xff]
    %v8885 = vld [vmem:[#allocation19 + $0x18] sm:$0xff]
    %v8886 = vld [vmem:[#allocation19 + $0x20] sm:$0xff]
    %v8887 = vld [vmem:[#allocation19 + $0x28] sm:$0xff]
    %v8888 = vld [vmem:[#allocation19 + $0x30] sm:$0xff]
    %v8889 = vld [vmem:[#allocation19 + $0x38] sm:$0xff]
    %v8890 = vld [vmem:[#allocation19 + $0x40] sm:$0xff]
    %v8891 = vld [vmem:[#allocation19 + $0x48] sm:$0xff]
    %v8892 = vld [vmem:[#allocation19 + $0x50] sm:$0xff]
    %v8893 = vld [vmem:[#allocation19 + $0x58] sm:$0xff]
    %v8894 = vld [vmem:[#allocation19 + $0x60] sm:$0xff]
    %v8895 = vld [vmem:[#allocation19 + $0x68] sm:$0xff]
    %v8896 = vld [vmem:[#allocation19 + $0x70] sm:$0xff]
    %v8897 = vld [vmem:[#allocation19 + $0x78] sm:$0xff]
    %v8898 = vld [vmem:[#allocation19 + $0x80] sm:$0xff]
    %v8899 = vld [vmem:[#allocation19 + $0x88] sm:$0xff]
    %v8900 = vld [vmem:[#allocation19 + $0x90] sm:$0xff]
    %v8901 = vld [vmem:[#allocation19 + $0x98] sm:$0xff]
    %v8902 = vld [vmem:[#allocation19 + $0xa0] sm:$0xff]
    %v8903 = vld [vmem:[#allocation19 + $0xa8] sm:$0xff]
    %v8904 = vld [vmem:[#allocation19 + $0xb0] sm:$0xff]
    %v8905 = vld [vmem:[#allocation19 + $0xb8] sm:$0xff]
    %v8906 = vld [vmem:[#allocation19 + $0xc0] sm:$0xff]
    %v8907 = vld [vmem:[#allocation19 + $0xc8] sm:$0xff]
    %v8908 = vld [vmem:[#allocation19 + $0xd0] sm:$0xff]
    %v8909 = vld [vmem:[#allocation19 + $0xd8] sm:$0xff]
    %v8910 = vld [vmem:[#allocation19 + $0xe0] sm:$0xff]
    %v8911 = vld [vmem:[#allocation19 + $0xe8] sm:$0xff]
    %v8912 = vld [vmem:[#allocation19 + $0xf0] sm:$0xff]
    %v8913 = vld [vmem:[#allocation19 + $0xf8] sm:$0xff]
    %v8914 = vld [vmem:[#allocation19 + $0x100] sm:$0xff]
    %v8915 = vld [vmem:[#allocation19 + $0x108] sm:$0xff]
    %v8916 = vld [vmem:[#allocation19 + $0x110] sm:$0xff]
    %v8917 = vld [vmem:[#allocation19 + $0x118] sm:$0xff]
    %v8918 = vld [vmem:[#allocation19 + $0x120] sm:$0xff]
    %v8919 = vld [vmem:[#allocation19 + $0x128] sm:$0xff]
    %v8920 = vld [vmem:[#allocation19 + $0x130] sm:$0xff]
    %v8921 = vld [vmem:[#allocation19 + $0x138] sm:$0xff]
    %v8922 = vld [vmem:[#allocation19 + $0x140] sm:$0xff]
    %v8923 = vld [vmem:[#allocation19 + $0x148] sm:$0xff]
    %v8924 = vld [vmem:[#allocation19 + $0x150] sm:$0xff]
    %v8925 = vld [vmem:[#allocation19 + $0x158] sm:$0xff]
    %v8926 = vld [vmem:[#allocation19 + $0x160] sm:$0xff]
    %v8927 = vld [vmem:[#allocation19 + $0x168] sm:$0xff]
    %v8928 = vld [vmem:[#allocation19 + $0x170] sm:$0xff]
    %v8929 = vld [vmem:[#allocation19 + $0x178] sm:$0xff]
    %v8930 = vld [vmem:[#allocation19 + $0x180] sm:$0xff]
    %v8931 = vld [vmem:[#allocation19 + $0x188] sm:$0xff]
    %v8932 = vld [vmem:[#allocation19 + $0x190] sm:$0xff]
    %v8933 = vld [vmem:[#allocation19 + $0x198] sm:$0xff]
    %v8934 = vld [vmem:[#allocation19 + $0x1a0] sm:$0xff]
    %v8935 = vld [vmem:[#allocation19 + $0x1a8] sm:$0xff]
    %v8936 = vld [vmem:[#allocation19 + $0x1b0] sm:$0xff]
    %v8937 = vld [vmem:[#allocation19 + $0x1b8] sm:$0xff]
    %v8938 = vld [vmem:[#allocation19 + $0x1c0] sm:$0xff]
    %v8939 = vld [vmem:[#allocation19 + $0x1c8] sm:$0xff]
    %v8940 = vld [vmem:[#allocation19 + $0x1d0] sm:$0xff]
    %v8941 = vld [vmem:[#allocation19 + $0x1d8] sm:$0xff]
    %v8942 = vld [vmem:[#allocation19 + $0x1e0] sm:$0xff]
    %v8943 = vld [vmem:[#allocation19 + $0x1e8] sm:$0xff]
    %v8944 = vld [vmem:[#allocation19 + $0x1f0] sm:$0xff]
    %v8945 = vld [vmem:[#allocation19 + $0x1f8] sm:$0xff]
    %v8946 = vld [vmem:[#allocation19 + $0x200] sm:$0xff]
    %v8947 = vld [vmem:[#allocation19 + $0x208] sm:$0xff]
    %v8948 = vld [vmem:[#allocation19 + $0x210] sm:$0xff]
    %v8949 = vld [vmem:[#allocation19 + $0x218] sm:$0xff]
    %v8950 = vld [vmem:[#allocation19 + $0x220] sm:$0xff]
    %v8951 = vld [vmem:[#allocation19 + $0x228] sm:$0xff]
    %v8952 = vld [vmem:[#allocation19 + $0x230] sm:$0xff]
    %v8953 = vld [vmem:[#allocation19 + $0x238] sm:$0xff]
    %v8954 = vld [vmem:[#allocation19 + $0x240] sm:$0xff]
    %v8955 = vld [vmem:[#allocation19 + $0x248] sm:$0xff]
    %v8956 = vld [vmem:[#allocation19 + $0x250] sm:$0xff]
    %v8957 = vld [vmem:[#allocation19 + $0x258] sm:$0xff]
    %v8958 = vld [vmem:[#allocation19 + $0x260] sm:$0xff]
    %v8959 = vld [vmem:[#allocation19 + $0x268] sm:$0xff]
    %v8960 = vld [vmem:[#allocation19 + $0x270] sm:$0xff]
    %v8961 = vld [vmem:[#allocation19 + $0x278] sm:$0xff]
    %v8962 = vld [vmem:[#allocation19 + $0x280] sm:$0xff]
    %v8963 = vld [vmem:[#allocation19 + $0x288] sm:$0xff]
    %v8964 = vld [vmem:[#allocation19 + $0x290] sm:$0xff]
    %v8965 = vld [vmem:[#allocation19 + $0x298] sm:$0xff]
    %v8966 = vld [vmem:[#allocation19 + $0x2a0] sm:$0xff]
    %v8967 = vld [vmem:[#allocation19 + $0x2a8] sm:$0xff]
    %v8968 = vld [vmem:[#allocation19 + $0x2b0] sm:$0xff]
    %v8969 = vld [vmem:[#allocation19 + $0x2b8] sm:$0xff]
    %v8970 = vld [vmem:[#allocation19 + $0x2c0] sm:$0xff]
    %v8971 = vld [vmem:[#allocation19 + $0x2c8] sm:$0xff]
    %v8972 = vld [vmem:[#allocation19 + $0x2d0] sm:$0xff]
    %v8973 = vld [vmem:[#allocation19 + $0x2d8] sm:$0xff]
    %v8974 = vld [vmem:[#allocation19 + $0x2e0] sm:$0xff]
    %v8975 = vld [vmem:[#allocation19 + $0x2e8] sm:$0xff]
    %v8976 = vld [vmem:[#allocation19 + $0x2f0] sm:$0xff]
    %v8977 = vld [vmem:[#allocation19 + $0x2f8] sm:$0xff]
    %v8978 = vld [vmem:[#allocation20] sm:$0x1]
    %v8980 = vperm.slane %v8978, 0
    %8982 = vmatpush.msra.mxu0 %v8897
    %8983 = vmatpush.msra.mxu0 %v8896
    %8984 = vmatpush.msra.mxu0 %v8895
    %8985 = vmatpush.msra.mxu0 %v8894
    %8986 = vmatpush.msra.mxu0 %v8893
    %8987 = vmatpush.msra.mxu0 %v8892
    %8988 = vmatpush.msra.mxu0 %v8891
    %8989 = vmatpush.msra.mxu0 %v8890
    %8990 = vmatpush.msra.mxu0 %v8889
    %8991 = vmatpush.msra.mxu0 %v8888
    %8992 = vmatpush.msra.mxu0 %v8887
    %8993 = vmatpush.msra.mxu0 %v8886
    %8994 = vmatpush.msra.mxu0 %v8885
    %8995 = vmatpush.msra.mxu0 %v8884
    %8996 = vmatpush.msra.mxu0 %v8883
    %8997 = vmatpush.msra.mxu0 %v8882
    %8998 = vmatmul.f32.gmra.mxu0 %v8876
    %v8999 = vpop.f32.mrf.mxu0
    %v9000 = vadd.f32 %v8980, %v8999
    %9001 = vdwg.mxu0
    %9002 = vmatpush.msra.mxu0 %v8913
    %9003 = vmatpush.msra.mxu0 %v8912
    %9004 = vmatpush.msra.mxu0 %v8911
    %9005 = vmatpush.msra.mxu0 %v8910
    %9006 = vmatpush.msra.mxu0 %v8909
    %9007 = vmatpush.msra.mxu0 %v8908
    %9008 = vmatpush.msra.mxu0 %v8907
    %9009 = vmatpush.msra.mxu0 %v8906
    %9010 = vmatpush.msra.mxu0 %v8905
    %9011 = vmatpush.msra.mxu0 %v8904
    %9012 = vmatpush.msra.mxu0 %v8903
    %9013 = vmatpush.msra.mxu0 %v8902
    %9014 = vmatpush.msra.mxu0 %v8901
    %9015 = vmatpush.msra.mxu0 %v8900
    %9016 = vmatpush.msra.mxu0 %v8899
    %9017 = vmatpush.msra.mxu0 %v8898
    %9018 = vmatmul.f32.gmra.mxu0 %v8877
    %v9019 = vpop.f32.mrf.mxu0
    %v9020 = vadd.f32 %v9000, %v9019
    %9021 = vdwg.mxu0
    %9022 = vmatpush.msra.mxu0 %v8929
    %9023 = vmatpush.msra.mxu0 %v8928
    %9024 = vmatpush.msra.mxu0 %v8927
    %9025 = vmatpush.msra.mxu0 %v8926
    %9026 = vmatpush.msra.mxu0 %v8925
    %9027 = vmatpush.msra.mxu0 %v8924
    %9028 = vmatpush.msra.mxu0 %v8923
    %9029 = vmatpush.msra.mxu0 %v8922
    %9030 = vmatpush.msra.mxu0 %v8921
    %9031 = vmatpush.msra.mxu0 %v8920
    %9032 = vmatpush.msra.mxu0 %v8919
    %9033 = vmatpush.msra.mxu0 %v8918
    %9034 = vmatpush.msra.mxu0 %v8917
    %9035 = vmatpush.msra.mxu0 %v8916
    %9036 = vmatpush.msra.mxu0 %v8915
    %9037 = vmatpush.msra.mxu0 %v8914
    %9038 = vmatmul.f32.gmra.mxu0 %v8878
    %v9039 = vpop.f32.mrf.mxu0
    %v9040 = vadd.f32 %v9020, %v9039
    %9041 = vdwg.mxu0
    %9042 = vmatpush.msra.mxu0 %v8945
    %9043 = vmatpush.msra.mxu0 %v8944
    %9044 = vmatpush.msra.mxu0 %v8943
    %9045 = vmatpush.msra.mxu0 %v8942
    %9046 = vmatpush.msra.mxu0 %v8941
    %9047 = vmatpush.msra.mxu0 %v8940
    %9048 = vmatpush.msra.mxu0 %v8939
    %9049 = vmatpush.msra.mxu0 %v8938
    %9050 = vmatpush.msra.mxu0 %v8937
    %9051 = vmatpush.msra.mxu0 %v8936
    %9052 = vmatpush.msra.mxu0 %v8935
    %9053 = vmatpush.msra.mxu0 %v8934
    %9054 = vmatpush.msra.mxu0 %v8933
    %9055 = vmatpush.msra.mxu0 %v8932
    %9056 = vmatpush.msra.mxu0 %v8931
    %9057 = vmatpush.msra.mxu0 %v8930
    %9058 = vmatmul.f32.gmra.mxu0 %v8879
    %v9059 = vpop.f32.mrf.mxu0
    %v9060 = vadd.f32 %v9040, %v9059
    %9061 = vdwg.mxu0
    %9062 = vmatpush.msra.mxu0 %v8961
    %9063 = vmatpush.msra.mxu0 %v8960
    %9064 = vmatpush.msra.mxu0 %v8959
    %9065 = vmatpush.msra.mxu0 %v8958
    %9066 = vmatpush.msra.mxu0 %v8957
    %9067 = vmatpush.msra.mxu0 %v8956
    %9068 = vmatpush.msra.mxu0 %v8955
    %9069 = vmatpush.msra.mxu0 %v8954
    %9070 = vmatpush.msra.mxu0 %v8953
    %9071 = vmatpush.msra.mxu0 %v8952
    %9072 = vmatpush.msra.mxu0 %v8951
    %9073 = vmatpush.msra.mxu0 %v8950
    %9074 = vmatpush.msra.mxu0 %v8949
    %9075 = vmatpush.msra.mxu0 %v8948
    %9076 = vmatpush.msra.mxu0 %v8947
    %9077 = vmatpush.msra.mxu0 %v8946
    %9078 = vmatmul.f32.gmra.mxu0 %v8880
    %v9079 = vpop.f32.mrf.mxu0
    %v9080 = vadd.f32 %v9060, %v9079
    %9081 = vdwg.mxu0
    %9082 = vmatpush.msra.mxu0 %v8977
    %9083 = vmatpush.msra.mxu0 %v8976
    %9084 = vmatpush.msra.mxu0 %v8975
    %9085 = vmatpush.msra.mxu0 %v8974
    %9086 = vmatpush.msra.mxu0 %v8973
    %9087 = vmatpush.msra.mxu0 %v8972
    %9088 = vmatpush.msra.mxu0 %v8971
    %9089 = vmatpush.msra.mxu0 %v8970
    %9090 = vmatpush.msra.mxu0 %v8969
    %9091 = vmatpush.msra.mxu0 %v8968
    %9092 = vmatpush.msra.mxu0 %v8967
    %9093 = vmatpush.msra.mxu0 %v8966
    %9094 = vmatpush.msra.mxu0 %v8965
    %9095 = vmatpush.msra.mxu0 %v8964
    %9096 = vmatpush.msra.mxu0 %v8963
    %9097 = vmatpush.msra.mxu0 %v8962
    %9098 = vmatmul.f32.gmra.mxu0 %v8881
    %v9099 = vpop.f32.mrf.mxu0
    %v9100 = vadd.f32 %v9080, %v9099
    %9101 = vdwg.mxu0
    %v9102 = vtanh.pop %v9100
    %9103 = vst [vmem:[#allocation32] sm:$0x3] %v9102
    // Predicated region
    $region154: #{tpu_custom_call.1} parent=1 // pred_check
      _
    $region155: #{tpu_custom_call.1} parent=1 // pred_check_branch
      %9105 = sbr.rel (0) target = $region157
    $region156: #{tpu_custom_call.1} parent=1 // pred_region
      %9107 = vsyncadd [#allocation4], 0
      %s9109 = sshll.u32 [#allocation32], 4
      %s9110 = int_to_ptr.vmem [resolvable:$true] %s9109
      %s9111 = sshll.u32 %s19, 4
      %s9112 = int_to_ptr.hbm [resolvable:$true] %s9111
      %9114 = dma.vmem_to_hbm [thread:$0]  %s9110, 32, %s9112, [#allocation4]
    $region157: #{tpu_custom_call.1} parent=1 // pred_fallthru
      _
    // Predicated region
    $region158: #{tpu_custom_call.1} parent=1 // pred_check
      _
    $region159: #{tpu_custom_call.1} parent=1 // pred_check_branch
      %9116 = sbr.rel (0) target = $region161
    $region160: #{tpu_custom_call.1} parent=1 // pred_region
      %9118 = vsyncadd [#allocation34], 0
      %s9120 = sshll.u32 [#allocation33], 4
      %s9121 = int_to_ptr.vmem [resolvable:$true] %s9120
      %s9122 = sshll.u32 %s20, 4
      %s9123 = int_to_ptr.hbm [resolvable:$true] %s9122
      %9125 = dma.vmem_to_hbm [thread:$0]  %s9121, 32, %s9123, [#allocation34]
    $region161: #{tpu_custom_call.1} parent=1 // pred_fallthru
      _
    // Predicated region
    $region162: #{tpu_custom_call.1} parent=1 // pred_check
      _
    $region163: #{tpu_custom_call.1} parent=1 // pred_check_branch
      %9127 = sbr.rel (0) target = $region165
    $region164: #{tpu_custom_call.1} parent=1 // pred_region
      %9129 = dma.done [#allocation4], 32
    $region165: #{tpu_custom_call.1} parent=1 // pred_fallthru
      _
    // Predicated region
    $region166: #{tpu_custom_call.1} parent=1 // pred_check
      _
    $region167: #{tpu_custom_call.1} parent=1 // pred_check_branch
      %9131 = sbr.rel (0) target = $region169
    $region168: #{tpu_custom_call.1} parent=1 // pred_region
      %9133 = dma.done [#allocation34], 32
    $region169: #{tpu_custom_call.1} parent=1 // pred_fallthru
      _
    %9134 = vsyncpa [#allocation3], 1
    %9135 = vsyncpa [#allocation6], 1
    %9136 = vsyncpa [#allocation9], 1
    %9137 = vsyncpa [#allocation12], 1
    %9138 = vsyncpa [#allocation15], 1
    %9139 = vsyncpa [#allocation18], 1
    %9140 = vsyncpa [#allocation21], 1
    %9141 = vsyncpa [#allocation24], 1
    %9142 = vsyncpa [#allocation27], 1
    %9143 = vsyncpa [#allocation30], 1
    %9144 = vsyncpa [#allocation4], 1
    %9145 = vsyncpa [#allocation34], 1

</llo_original>
